<compile_context>
chip_gen: v5e
topology: v5e:2x2
jax: 0.10.0
libtpu: 0.0.40
codegen_flags: <defaults>
</compile_context>

<pallas_src>
import functools

import jax
import jax.numpy as jnp
from jax.experimental import pallas as pl
from jax.experimental.pallas import tpu as pltpu


# ----------------------------- Pallas kernels ------------------------------ #

def _conv_relu_pool_kernel(x_ref, w_ref, b_ref, o_ref, z_ref,
                           *, W, Ho, Wo, Hp, Wp, Cout):
    """Fused 3x3 VALID conv + bias + ReLU + 2x2 max-pool for one image.

    x_ref: (1, H*W, Cin)  flat NHWC image (one batch element)
    w_ref: (9, Cin, Cout) conv weight, taps ordered (ky, kx)
    b_ref: (1, Cout)
    o_ref: (1, Hp, Wp, Cout) pooled output
    z_ref: (Lo, Cout) f32 scratch holding the (flat) ReLU'd conv output
    """
    Lo = (Ho - 1) * W + Wo  # flat conv-output length (garbage cols j>=Wo unused)

    # conv as 9 shifted dots on the flat image: out[i*W+j] += x[(i+ky)*W+j+kx] @ w[ky,kx]
    acc = jnp.zeros((Lo, Cout), jnp.float32)
    for t in range(9):
        ky, kx = t // 3, t % 3
        d = ky * W + kx
        acc = acc + jnp.dot(x_ref[0, pl.ds(d, Lo), :], w_ref[t],
                            preferred_element_type=jnp.float32)
    z_ref[...] = jnp.maximum(acc + b_ref[...], 0.0)

    # 0/1 selection matrices picking even / odd columns (stride-2 via the MXU).
    col = jax.lax.broadcasted_iota(jnp.int32, (Wp, Wo), 1)
    row2 = 2 * jax.lax.broadcasted_iota(jnp.int32, (Wp, Wo), 0)
    s_even = (col == row2).astype(jnp.float32)
    s_odd = (col == row2 + 1).astype(jnp.float32)

    # 2x2 max-pool, one pooled row per iteration (floor mode, matches nn.MaxPool2d).
    for ip in range(Hp):
        r0 = z_ref[pl.ds((2 * ip) * W, Wo), :]        # conv row 2*ip
        r1 = z_ref[pl.ds((2 * ip + 1) * W, Wo), :]    # conv row 2*ip + 1
        rv = jnp.maximum(r0, r1)                      # vertical max, (Wo, Cout)
        pr = jnp.maximum(
            jnp.dot(s_even, rv, preferred_element_type=jnp.float32),
            jnp.dot(s_odd, rv, preferred_element_type=jnp.float32))
        o_ref[0, ip, :, :] = pr.astype(o_ref.dtype)


def _fc_head_kernel(x_ref, w1_ref, b1_ref, w2_ref, b2_ref, o_ref, acc_ref):
    """Linear(F,128)+ReLU+Linear(128,1)+Sigmoid, reduction-tiled over F."""
    @pl.when(pl.program_id(0) == 0)
    def _():
        acc_ref[...] = jnp.zeros_like(acc_ref)

    acc_ref[...] += jnp.dot(x_ref[...], w1_ref[...],
                            preferred_element_type=jnp.float32)

    @pl.when(pl.program_id(0) == pl.num_programs(0) - 1)
    def _():
        h = jnp.maximum(acc_ref[...] + b1_ref[...], 0.0)
        z = jnp.dot(h, w2_ref[...], preferred_element_type=jnp.float32) + b2_ref[...]
        o_ref[...] = pl.reciprocal(1.0 + jnp.exp(-z), approx=True)  # sigmoid


# ------------------------------ Pallas wrappers ----------------------------- #

def conv_relu_pool(x_flat, w_hwio, b, H, W, *, out_dtype=jnp.float32):
    """x_flat: (N, H*W, Cin) flat NHWC; w_hwio: (3,3,Cin,Cout); b: (Cout,).
    Returns ((N, Hp, Wp, Cout), Hp, Wp)."""
    N, L, Cin = x_flat.shape
    assert L == H * W
    Cout = w_hwio.shape[-1]
    Ho, Wo = H - 2, W - 2
    Hp, Wp = Ho // 2, Wo // 2
    Lo = (Ho - 1) * W + Wo

    w9 = w_hwio.reshape(9, Cin, Cout).astype(jnp.float32)
    b2 = b.reshape(1, Cout).astype(jnp.float32)

    kernel = functools.partial(_conv_relu_pool_kernel,
                               W=W, Ho=Ho, Wo=Wo, Hp=Hp, Wp=Wp, Cout=Cout)
    out = pl.pallas_call(
        kernel,
        out_shape=jax.ShapeDtypeStruct((N, Hp, Wp, Cout), out_dtype),
        grid=(N,),
        in_specs=[
            pl.BlockSpec((1, L, Cin), lambda n: (n, 0, 0)),
            pl.BlockSpec((9, Cin, Cout), lambda n: (0, 0, 0)),
            pl.BlockSpec((1, Cout), lambda n: (0, 0)),
        ],
        out_specs=pl.BlockSpec((1, Hp, Wp, Cout), lambda n: (n, 0, 0, 0)),
        scratch_shapes=[pltpu.VMEM((Lo, Cout), jnp.float32)],
        compiler_params=pltpu.CompilerParams(dimension_semantics=("parallel",)),
    )(x_flat.astype(jnp.float32), w9, b2)
    return out, Hp, Wp


def fc_head(feat, w1, b1, w2, b2, *, tk=256):
    """feat: (N, F); w1: (F, 128); b1: (128,); w2: (128, 1); b2: (1,)."""
    N, F = feat.shape
    H1 = w1.shape[1]
    if F % tk:  # zero-pad the reduction axis to a tile multiple (no-op at test size)
        pad = tk - F % tk
        feat = jnp.pad(feat, ((0, 0), (0, pad)))
        w1 = jnp.pad(w1, ((0, pad), (0, 0)))
        F += pad
    nk = F // tk

    return pl.pallas_call(
        _fc_head_kernel,
        out_shape=jax.ShapeDtypeStruct((N, 1), jnp.float32),
        grid=(nk,),
        in_specs=[
            pl.BlockSpec((N, tk), lambda k: (0, k)),
            pl.BlockSpec((tk, H1), lambda k: (k, 0)),
            pl.BlockSpec((1, H1), lambda k: (0, 0)),
            pl.BlockSpec((H1, 1), lambda k: (0, 0)),
            pl.BlockSpec((1, 1), lambda k: (0, 0)),
        ],
        out_specs=pl.BlockSpec((N, 1), lambda k: (0, 0)),
        scratch_shapes=[pltpu.VMEM((N, H1), jnp.float32)],
        compiler_params=pltpu.CompilerParams(
            dimension_semantics=("arbitrary",),
            vmem_limit_bytes=64 * 1024 * 1024),
    )(feat, w1,
      b1.reshape(1, H1).astype(jnp.float32),
      w2.astype(jnp.float32),
      b2.reshape(1, 1).astype(jnp.float32))


def cnn_forward(x_nchw, p):
    # layout: public API is NCHW (PyTorch); compute is flat NHWC (N, H*W, C).
    N, Cin, H, W = x_nchw.shape
    x = jnp.transpose(x_nchw, (0, 2, 3, 1)).astype(jnp.float32)  # NHWC
    x_flat = x.reshape(N, H * W, Cin)

    # conv block 1: Conv2d(3, 32, 3) + ReLU + MaxPool2d(2)   (fused kernel)
    y1, H1, W1 = conv_relu_pool(x_flat, p["conv1_w"], p["conv1_b"], H, W,
                                out_dtype=jnp.float32)
    # conv block 2: Conv2d(32, 64, 3) + ReLU + MaxPool2d(2)  (fused kernel)
    y2, H2, W2 = conv_relu_pool(y1.reshape(N, H1 * W1, -1),
                                p["conv2_w"], p["conv2_b"], H1, W1,
                                out_dtype=jnp.bfloat16)

    # FC head.  Features are HWC-ordered; permute fc1_w's rows (stored in
    # PyTorch CHW-flatten order) once so the math matches nn.Flatten+Linear.
    C2 = p["conv2_w"].shape[-1]
    F = H2 * W2 * C2
    feat = y2.reshape(N, F)                                   # bf16, free reshape
    w1 = (p["fc1_w"].reshape(C2, H2, W2, -1)
                    .transpose(1, 2, 0, 3)
                    .reshape(F, -1)).astype(jnp.bfloat16)
    return fc_head(feat, w1, p["fc1_b"], p["fc2_w"], p["fc2_b"])


# --------------------------- params & pure-JAX ref -------------------------- #

def init_params(key, H, W):
    # mirrors nn.Module shapes; conv weights stored HWIO = (KH, KW, Cin, Cout)
    Hp2 = ((H - 2) // 2 - 2) // 2
    Wp2 = ((W - 2) // 2 - 2) // 2
    F = 64 * Hp2 * Wp2  # == flattened_size computed by the module's dummy pass
    ks = jax.random.split(key, 8)

    def norm(k, shape, fan_in):
        return jax.random.normal(k, shape, jnp.float32) / jnp.sqrt(fan_in)

    return {
        "conv1_w": norm(ks[0], (3, 3, 3, 32), 3 * 3 * 3),
        "conv1_b": norm(ks[1], (32,), 3 * 3 * 3),
        "conv2_w": norm(ks[2], (3, 3, 32, 64), 3 * 3 * 32),
        "conv2_b": norm(ks[3], (64,), 3 * 3 * 32),
        "fc1_w": norm(ks[4], (F, 128), F),
        "fc1_b": norm(ks[5], (128,), F),
        "fc2_w": norm(ks[6], (128, 1), 128),
        "fc2_b": norm(ks[7], (1,), 128),
    }


def _ref_conv_relu_pool(x_nchw, w_hwio, b):
    y = jax.lax.conv_general_dilated(
        x_nchw, w_hwio, window_strides=(1, 1), padding="VALID",
        dimension_numbers=("NCHW", "HWIO", "NCHW"),
        precision=jax.lax.Precision.HIGHEST)
    y = jnp.maximum(y + b[None, :, None, None], 0.0)
    N, C, H, W = y.shape
    y = y[:, :, :(H // 2) * 2, :(W // 2) * 2].reshape(N, C, H // 2, 2, W // 2, 2)
    return y.max(axis=(3, 5))


def reference_forward(x_nchw, p):
    y = _ref_conv_relu_pool(x_nchw, p["conv1_w"], p["conv1_b"])
    y = _ref_conv_relu_pool(y, p["conv2_w"], p["conv2_b"])
    N = y.shape[0]
    f = y.reshape(N, -1)  # PyTorch NCHW flatten order
    h = jnp.maximum(jnp.dot(f, p["fc1_w"], precision=jax.lax.Precision.HIGHEST) + p["fc1_b"], 0.0)
    z = jnp.dot(h, p["fc2_w"], precision=jax.lax.Precision.HIGHEST) + p["fc2_b"]
    return jax.nn.sigmoid(z)


# ----------------------------------- main ----------------------------------- #

if __name__ == "__main__":
    N, C, H, W = 2, 3, 22, 22  # small spatial; module logic identical at 150x150
    key = jax.random.PRNGKey(0)
    k_x, k_p = jax.random.split(key)
    x = jax.random.normal(k_x, (N, C, H, W), jnp.float32)
    params = init_params(k_p, H, W)

    out = jax.block_until_ready(jax.jit(cnn_forward)(x, params))
    ref = reference_forward(x, params)

    assert out.shape == (N, 1), out.shape
    assert bool(jnp.all(jnp.isfinite(out)))
    assert float(jnp.max(jnp.abs(out - ref))) < 3e-2
    print("KERNEL_OK")
</pallas_src>

<mosaic_0001>
module attributes {stable_mosaic.version = 11 : i64} {
  func.func @_conv_relu_pool_kernel(%arg0: i32, %arg1: memref<1x484x3xf32, #tpu.memory_space<vmem>>, %arg2: memref<9x3x32xf32, #tpu.memory_space<vmem>>, %arg3: memref<1x32xf32, #tpu.memory_space<vmem>>, %arg4: memref<1x10x10x32xf32, #tpu.memory_space<vmem>>, %arg5: memref<438x32xf32, #tpu.memory_space<vmem>>) attributes {dimension_semantics = [#tpu.dimension_semantics<parallel>], iteration_bounds = array<i64: 2>, scalar_prefetch = 0 : i64, scratch_operands = 1 : i64, tpu.core_type = #tpu.core_type<tc>, window_params = [{transform_indices = @transform_0, window_bounds = array<i64: 1, 484, 3>}, {pipeline_mode = #tpu.pipeline_mode<synchronous>, transform_indices = @transform_1, window_bounds = array<i64: 9, 3, 32>}, {pipeline_mode = #tpu.pipeline_mode<synchronous>, transform_indices = @transform_2, window_bounds = array<i64: 1, 32>}, {transform_indices = @transform_3, window_bounds = array<i64: 1, 10, 10, 32>}]} {
    %cst = arith.constant 0.000000e+00 : f32
    %0 = vector.broadcast %cst : f32 to vector<438x32xf32>
    %c0 = arith.constant 0 : index
    %c0_0 = arith.constant 0 : index
    %c0_1 = arith.constant 0 : index
    %1 = vector.load %arg1[%c0, %c0_0, %c0_1] : memref<1x484x3xf32, #tpu.memory_space<vmem>>, vector<1x438x3xf32>
    %2 = vector.shape_cast %1 : vector<1x438x3xf32> to vector<438x3xf32>
    %c0_2 = arith.constant 0 : index
    %c0_3 = arith.constant 0 : index
    %c0_4 = arith.constant 0 : index
    %3 = vector.load %arg2[%c0_2, %c0_3, %c0_4] : memref<9x3x32xf32, #tpu.memory_space<vmem>>, vector<1x3x32xf32>
    %4 = vector.shape_cast %3 : vector<1x3x32xf32> to vector<3x32xf32>
    %cst_5 = arith.constant dense<0.000000e+00> : vector<438x32xf32>
    %5 = tpu.matmul %2, %4, %cst_5 {dimension_numbers = #tpu.dot_dimension_numbers<[1], [0], [0], [1], [0, 0, 1, 1], [], []>} : vector<438x3xf32>, vector<3x32xf32>, vector<438x32xf32> -> vector<438x32xf32>
    %6 = arith.addf %0, %5 : vector<438x32xf32>
    %c0_6 = arith.constant 0 : index
    %c1 = arith.constant 1 : index
    %c0_7 = arith.constant 0 : index
    %7 = vector.load %arg1[%c0_6, %c1, %c0_7] : memref<1x484x3xf32, #tpu.memory_space<vmem>>, vector<1x438x3xf32>
    %8 = vector.shape_cast %7 : vector<1x438x3xf32> to vector<438x3xf32>
    %c1_8 = arith.constant 1 : index
    %c0_9 = arith.constant 0 : index
    %c0_10 = arith.constant 0 : index
    %9 = vector.load %arg2[%c1_8, %c0_9, %c0_10] : memref<9x3x32xf32, #tpu.memory_space<vmem>>, vector<1x3x32xf32>
    %10 = vector.shape_cast %9 : vector<1x3x32xf32> to vector<3x32xf32>
    %cst_11 = arith.constant dense<0.000000e+00> : vector<438x32xf32>
    %11 = tpu.matmul %8, %10, %cst_11 {dimension_numbers = #tpu.dot_dimension_numbers<[1], [0], [0], [1], [0, 0, 1, 1], [], []>} : vector<438x3xf32>, vector<3x32xf32>, vector<438x32xf32> -> vector<438x32xf32>
    %12 = arith.addf %6, %11 : vector<438x32xf32>
    %c0_12 = arith.constant 0 : index
    %c2 = arith.constant 2 : index
    %c0_13 = arith.constant 0 : index
    %13 = vector.load %arg1[%c0_12, %c2, %c0_13] : memref<1x484x3xf32, #tpu.memory_space<vmem>>, vector<1x438x3xf32>
    %14 = vector.shape_cast %13 : vector<1x438x3xf32> to vector<438x3xf32>
    %c2_14 = arith.constant 2 : index
    %c0_15 = arith.constant 0 : index
    %c0_16 = arith.constant 0 : index
    %15 = vector.load %arg2[%c2_14, %c0_15, %c0_16] : memref<9x3x32xf32, #tpu.memory_space<vmem>>, vector<1x3x32xf32>
    %16 = vector.shape_cast %15 : vector<1x3x32xf32> to vector<3x32xf32>
    %cst_17 = arith.constant dense<0.000000e+00> : vector<438x32xf32>
    %17 = tpu.matmul %14, %16, %cst_17 {dimension_numbers = #tpu.dot_dimension_numbers<[1], [0], [0], [1], [0, 0, 1, 1], [], []>} : vector<438x3xf32>, vector<3x32xf32>, vector<438x32xf32> -> vector<438x32xf32>
    %18 = arith.addf %12, %17 : vector<438x32xf32>
    %c0_18 = arith.constant 0 : index
    %c22 = arith.constant 22 : index
    %c0_19 = arith.constant 0 : index
    %19 = vector.load %arg1[%c0_18, %c22, %c0_19] : memref<1x484x3xf32, #tpu.memory_space<vmem>>, vector<1x438x3xf32>
    %20 = vector.shape_cast %19 : vector<1x438x3xf32> to vector<438x3xf32>
    %c3 = arith.constant 3 : index
    %c0_20 = arith.constant 0 : index
    %c0_21 = arith.constant 0 : index
    %21 = vector.load %arg2[%c3, %c0_20, %c0_21] : memref<9x3x32xf32, #tpu.memory_space<vmem>>, vector<1x3x32xf32>
    %22 = vector.shape_cast %21 : vector<1x3x32xf32> to vector<3x32xf32>
    %cst_22 = arith.constant dense<0.000000e+00> : vector<438x32xf32>
    %23 = tpu.matmul %20, %22, %cst_22 {dimension_numbers = #tpu.dot_dimension_numbers<[1], [0], [0], [1], [0, 0, 1, 1], [], []>} : vector<438x3xf32>, vector<3x32xf32>, vector<438x32xf32> -> vector<438x32xf32>
    %24 = arith.addf %18, %23 : vector<438x32xf32>
    %c0_23 = arith.constant 0 : index
    %c23 = arith.constant 23 : index
    %c0_24 = arith.constant 0 : index
    %25 = vector.load %arg1[%c0_23, %c23, %c0_24] : memref<1x484x3xf32, #tpu.memory_space<vmem>>, vector<1x438x3xf32>
    %26 = vector.shape_cast %25 : vector<1x438x3xf32> to vector<438x3xf32>
    %c4 = arith.constant 4 : index
    %c0_25 = arith.constant 0 : index
    %c0_26 = arith.constant 0 : index
    %27 = vector.load %arg2[%c4, %c0_25, %c0_26] : memref<9x3x32xf32, #tpu.memory_space<vmem>>, vector<1x3x32xf32>
    %28 = vector.shape_cast %27 : vector<1x3x32xf32> to vector<3x32xf32>
    %cst_27 = arith.constant dense<0.000000e+00> : vector<438x32xf32>
    %29 = tpu.matmul %26, %28, %cst_27 {dimension_numbers = #tpu.dot_dimension_numbers<[1], [0], [0], [1], [0, 0, 1, 1], [], []>} : vector<438x3xf32>, vector<3x32xf32>, vector<438x32xf32> -> vector<438x32xf32>
    %30 = arith.addf %24, %29 : vector<438x32xf32>
    %c0_28 = arith.constant 0 : index
    %c24 = arith.constant 24 : index
    %c0_29 = arith.constant 0 : index
    %31 = vector.load %arg1[%c0_28, %c24, %c0_29] : memref<1x484x3xf32, #tpu.memory_space<vmem>>, vector<1x438x3xf32>
    %32 = vector.shape_cast %31 : vector<1x438x3xf32> to vector<438x3xf32>
    %c5 = arith.constant 5 : index
    %c0_30 = arith.constant 0 : index
    %c0_31 = arith.constant 0 : index
    %33 = vector.load %arg2[%c5, %c0_30, %c0_31] : memref<9x3x32xf32, #tpu.memory_space<vmem>>, vector<1x3x32xf32>
    %34 = vector.shape_cast %33 : vector<1x3x32xf32> to vector<3x32xf32>
    %cst_32 = arith.constant dense<0.000000e+00> : vector<438x32xf32>
    %35 = tpu.matmul %32, %34, %cst_32 {dimension_numbers = #tpu.dot_dimension_numbers<[1], [0], [0], [1], [0, 0, 1, 1], [], []>} : vector<438x3xf32>, vector<3x32xf32>, vector<438x32xf32> -> vector<438x32xf32>
    %36 = arith.addf %30, %35 : vector<438x32xf32>
    %c0_33 = arith.constant 0 : index
    %c44 = arith.constant 44 : index
    %c0_34 = arith.constant 0 : index
    %37 = vector.load %arg1[%c0_33, %c44, %c0_34] : memref<1x484x3xf32, #tpu.memory_space<vmem>>, vector<1x438x3xf32>
    %38 = vector.shape_cast %37 : vector<1x438x3xf32> to vector<438x3xf32>
    %c6 = arith.constant 6 : index
    %c0_35 = arith.constant 0 : index
    %c0_36 = arith.constant 0 : index
    %39 = vector.load %arg2[%c6, %c0_35, %c0_36] : memref<9x3x32xf32, #tpu.memory_space<vmem>>, vector<1x3x32xf32>
    %40 = vector.shape_cast %39 : vector<1x3x32xf32> to vector<3x32xf32>
    %cst_37 = arith.constant dense<0.000000e+00> : vector<438x32xf32>
    %41 = tpu.matmul %38, %40, %cst_37 {dimension_numbers = #tpu.dot_dimension_numbers<[1], [0], [0], [1], [0, 0, 1, 1], [], []>} : vector<438x3xf32>, vector<3x32xf32>, vector<438x32xf32> -> vector<438x32xf32>
    %42 = arith.addf %36, %41 : vector<438x32xf32>
    %c0_38 = arith.constant 0 : index
    %c45 = arith.constant 45 : index
    %c0_39 = arith.constant 0 : index
    %43 = vector.load %arg1[%c0_38, %c45, %c0_39] : memref<1x484x3xf32, #tpu.memory_space<vmem>>, vector<1x438x3xf32>
    %44 = vector.shape_cast %43 : vector<1x438x3xf32> to vector<438x3xf32>
    %c7 = arith.constant 7 : index
    %c0_40 = arith.constant 0 : index
    %c0_41 = arith.constant 0 : index
    %45 = vector.load %arg2[%c7, %c0_40, %c0_41] : memref<9x3x32xf32, #tpu.memory_space<vmem>>, vector<1x3x32xf32>
    %46 = vector.shape_cast %45 : vector<1x3x32xf32> to vector<3x32xf32>
    %cst_42 = arith.constant dense<0.000000e+00> : vector<438x32xf32>
    %47 = tpu.matmul %44, %46, %cst_42 {dimension_numbers = #tpu.dot_dimension_numbers<[1], [0], [0], [1], [0, 0, 1, 1], [], []>} : vector<438x3xf32>, vector<3x32xf32>, vector<438x32xf32> -> vector<438x32xf32>
    %48 = arith.addf %42, %47 : vector<438x32xf32>
    %c0_43 = arith.constant 0 : index
    %c46 = arith.constant 46 : index
    %c0_44 = arith.constant 0 : index
    %49 = vector.load %arg1[%c0_43, %c46, %c0_44] : memref<1x484x3xf32, #tpu.memory_space<vmem>>, vector<1x438x3xf32>
    %50 = vector.shape_cast %49 : vector<1x438x3xf32> to vector<438x3xf32>
    %c8 = arith.constant 8 : index
    %c0_45 = arith.constant 0 : index
    %c0_46 = arith.constant 0 : index
    %51 = vector.load %arg2[%c8, %c0_45, %c0_46] : memref<9x3x32xf32, #tpu.memory_space<vmem>>, vector<1x3x32xf32>
    %52 = vector.shape_cast %51 : vector<1x3x32xf32> to vector<3x32xf32>
    %cst_47 = arith.constant dense<0.000000e+00> : vector<438x32xf32>
    %53 = tpu.matmul %50, %52, %cst_47 {dimension_numbers = #tpu.dot_dimension_numbers<[1], [0], [0], [1], [0, 0, 1, 1], [], []>} : vector<438x3xf32>, vector<3x32xf32>, vector<438x32xf32> -> vector<438x32xf32>
    %54 = arith.addf %48, %53 : vector<438x32xf32>
    %c0_48 = arith.constant 0 : index
    %c0_49 = arith.constant 0 : index
    %55 = vector.load %arg3[%c0_48, %c0_49] : memref<1x32xf32, #tpu.memory_space<vmem>>, vector<1x32xf32>
    %56 = vector.broadcast %55 : vector<1x32xf32> to vector<438x32xf32>
    %57 = arith.addf %54, %56 : vector<438x32xf32>
    %cst_50 = arith.constant 0.000000e+00 : f32
    %58 = vector.broadcast %cst_50 : f32 to vector<438x32xf32>
    %59 = arith.maximumf %57, %58 : vector<438x32xf32>
    %c0_51 = arith.constant 0 : index
    %c0_52 = arith.constant 0 : index
    %60 = vector.load %arg5[%c0_51, %c0_52] : memref<438x32xf32, #tpu.memory_space<vmem>>, vector<438x32xf32>
    tpu.vector_store %arg5[%c0_51, %c0_52], %59 {strides = array<i32>} : memref<438x32xf32, #tpu.memory_space<vmem>>, vector<438x32xf32>,
    %61 = tpu.iota {dimensions = array<i32: 1>} : vector<10x20xi32>
    %62 = tpu.iota {dimensions = array<i32: 0>} : vector<10x20xi32>
    %c2_i32 = arith.constant 2 : i32
    %63 = vector.broadcast %c2_i32 : i32 to vector<10x20xi32>
    %64 = arith.muli %63, %62 : vector<10x20xi32>
    %65 = arith.cmpi eq, %61, %64 : vector<10x20xi32>
    %66 = arith.extui %65 : vector<10x20xi1> to vector<10x20xi32>
    %67 = arith.sitofp %66 : vector<10x20xi32> to vector<10x20xf32>
    %c1_i32 = arith.constant 1 : i32
    %68 = vector.broadcast %c1_i32 : i32 to vector<10x20xi32>
    %69 = arith.addi %64, %68 : vector<10x20xi32>
    %70 = arith.cmpi eq, %61, %69 : vector<10x20xi32>
    %71 = arith.extui %70 : vector<10x20xi1> to vector<10x20xi32>
    %72 = arith.sitofp %71 : vector<10x20xi32> to vector<10x20xf32>
    %c0_53 = arith.constant 0 : index
    %c0_54 = arith.constant 0 : index
    %73 = vector.load %arg5[%c0_53, %c0_54] : memref<438x32xf32, #tpu.memory_space<vmem>>, vector<20x32xf32>
    %c22_55 = arith.constant 22 : index
    %c0_56 = arith.constant 0 : index
    %74 = vector.load %arg5[%c22_55, %c0_56] : memref<438x32xf32, #tpu.memory_space<vmem>>, vector<20x32xf32>
    %75 = arith.maximumf %73, %74 : vector<20x32xf32>
    %cst_57 = arith.constant dense<0.000000e+00> : vector<10x32xf32>
    %76 = tpu.matmul %67, %75, %cst_57 {dimension_numbers = #tpu.dot_dimension_numbers<[1], [0], [0], [1], [0, 0, 1, 1], [], []>} : vector<10x20xf32>, vector<20x32xf32>, vector<10x32xf32> -> vector<10x32xf32>
    %cst_58 = arith.constant dense<0.000000e+00> : vector<10x32xf32>
    %77 = tpu.matmul %72, %75, %cst_58 {dimension_numbers = #tpu.dot_dimension_numbers<[1], [0], [0], [1], [0, 0, 1, 1], [], []>} : vector<10x20xf32>, vector<20x32xf32>, vector<10x32xf32> -> vector<10x32xf32>
    %78 = arith.maximumf %76, %77 : vector<10x32xf32>
    %c0_59 = arith.constant 0 : index
    %c0_60 = arith.constant 0 : index
    %c0_61 = arith.constant 0 : index
    %c0_62 = arith.constant 0 : index
    %79 = vector.load %arg4[%c0_59, %c0_60, %c0_61, %c0_62] : memref<1x10x10x32xf32, #tpu.memory_space<vmem>>, vector<1x1x10x32xf32>
    %80 = vector.shape_cast %79 : vector<1x1x10x32xf32> to vector<10x32xf32>
    %81 = vector.shape_cast %78 : vector<10x32xf32> to vector<1x1x10x32xf32>
    tpu.vector_store %arg4[%c0_59, %c0_60, %c0_61, %c0_62], %81 {strides = array<i32>} : memref<1x10x10x32xf32, #tpu.memory_space<vmem>>, vector<1x1x10x32xf32>,
    %c44_63 = arith.constant 44 : index
    %c0_64 = arith.constant 0 : index
    %82 = vector.load %arg5[%c44_63, %c0_64] : memref<438x32xf32, #tpu.memory_space<vmem>>, vector<20x32xf32>
    %c66 = arith.constant 66 : index
    %c0_65 = arith.constant 0 : index
    %83 = vector.load %arg5[%c66, %c0_65] : memref<438x32xf32, #tpu.memory_space<vmem>>, vector<20x32xf32>
    %84 = arith.maximumf %82, %83 : vector<20x32xf32>
    %cst_66 = arith.constant dense<0.000000e+00> : vector<10x32xf32>
    %85 = tpu.matmul %67, %84, %cst_66 {dimension_numbers = #tpu.dot_dimension_numbers<[1], [0], [0], [1], [0, 0, 1, 1], [], []>} : vector<10x20xf32>, vector<20x32xf32>, vector<10x32xf32> -> vector<10x32xf32>
    %cst_67 = arith.constant dense<0.000000e+00> : vector<10x32xf32>
    %86 = tpu.matmul %72, %84, %cst_67 {dimension_numbers = #tpu.dot_dimension_numbers<[1], [0], [0], [1], [0, 0, 1, 1], [], []>} : vector<10x20xf32>, vector<20x32xf32>, vector<10x32xf32> -> vector<10x32xf32>
    %87 = arith.maximumf %85, %86 : vector<10x32xf32>
    %c0_68 = arith.constant 0 : index
    %c1_69 = arith.constant 1 : index
    %c0_70 = arith.constant 0 : index
    %c0_71 = arith.constant 0 : index
    %88 = vector.load %arg4[%c0_68, %c1_69, %c0_70, %c0_71] : memref<1x10x10x32xf32, #tpu.memory_space<vmem>>, vector<1x1x10x32xf32>
    %89 = vector.shape_cast %88 : vector<1x1x10x32xf32> to vector<10x32xf32>
    %90 = vector.shape_cast %87 : vector<10x32xf32> to vector<1x1x10x32xf32>
    tpu.vector_store %arg4[%c0_68, %c1_69, %c0_70, %c0_71], %90 {strides = array<i32>} : memref<1x10x10x32xf32, #tpu.memory_space<vmem>>, vector<1x1x10x32xf32>,
    %c88 = arith.constant 88 : index
    %c0_72 = arith.constant 0 : index
    %91 = vector.load %arg5[%c88, %c0_72] : memref<438x32xf32, #tpu.memory_space<vmem>>, vector<20x32xf32>
    %c110 = arith.constant 110 : index
    %c0_73 = arith.constant 0 : index
    %92 = vector.load %arg5[%c110, %c0_73] : memref<438x32xf32, #tpu.memory_space<vmem>>, vector<20x32xf32>
    %93 = arith.maximumf %91, %92 : vector<20x32xf32>
    %cst_74 = arith.constant dense<0.000000e+00> : vector<10x32xf32>
    %94 = tpu.matmul %67, %93, %cst_74 {dimension_numbers = #tpu.dot_dimension_numbers<[1], [0], [0], [1], [0, 0, 1, 1], [], []>} : vector<10x20xf32>, vector<20x32xf32>, vector<10x32xf32> -> vector<10x32xf32>
    %cst_75 = arith.constant dense<0.000000e+00> : vector<10x32xf32>
    %95 = tpu.matmul %72, %93, %cst_75 {dimension_numbers = #tpu.dot_dimension_numbers<[1], [0], [0], [1], [0, 0, 1, 1], [], []>} : vector<10x20xf32>, vector<20x32xf32>, vector<10x32xf32> -> vector<10x32xf32>
    %96 = arith.maximumf %94, %95 : vector<10x32xf32>
    %c0_76 = arith.constant 0 : index
    %c2_77 = arith.constant 2 : index
    %c0_78 = arith.constant 0 : index
    %c0_79 = arith.constant 0 : index
    %97 = vector.load %arg4[%c0_76, %c2_77, %c0_78, %c0_79] : memref<1x10x10x32xf32, #tpu.memory_space<vmem>>, vector<1x1x10x32xf32>
    %98 = vector.shape_cast %97 : vector<1x1x10x32xf32> to vector<10x32xf32>
    %99 = vector.shape_cast %96 : vector<10x32xf32> to vector<1x1x10x32xf32>
    tpu.vector_store %arg4[%c0_76, %c2_77, %c0_78, %c0_79], %99 {strides = array<i32>} : memref<1x10x10x32xf32, #tpu.memory_space<vmem>>, vector<1x1x10x32xf32>,
    %c132 = arith.constant 132 : index
    %c0_80 = arith.constant 0 : index
    %100 = vector.load %arg5[%c132, %c0_80] : memref<438x32xf32, #tpu.memory_space<vmem>>, vector<20x32xf32>
    %c154 = arith.constant 154 : index
    %c0_81 = arith.constant 0 : index
    %101 = vector.load %arg5[%c154, %c0_81] : memref<438x32xf32, #tpu.memory_space<vmem>>, vector<20x32xf32>
    %102 = arith.maximumf %100, %101 : vector<20x32xf32>
    %cst_82 = arith.constant dense<0.000000e+00> : vector<10x32xf32>
    %103 = tpu.matmul %67, %102, %cst_82 {dimension_numbers = #tpu.dot_dimension_numbers<[1], [0], [0], [1], [0, 0, 1, 1], [], []>} : vector<10x20xf32>, vector<20x32xf32>, vector<10x32xf32> -> vector<10x32xf32>
    %cst_83 = arith.constant dense<0.000000e+00> : vector<10x32xf32>
    %104 = tpu.matmul %72, %102, %cst_83 {dimension_numbers = #tpu.dot_dimension_numbers<[1], [0], [0], [1], [0, 0, 1, 1], [], []>} : vector<10x20xf32>, vector<20x32xf32>, vector<10x32xf32> -> vector<10x32xf32>
    %105 = arith.maximumf %103, %104 : vector<10x32xf32>
    %c0_84 = arith.constant 0 : index
    %c3_85 = arith.constant 3 : index
    %c0_86 = arith.constant 0 : index
    %c0_87 = arith.constant 0 : index
    %106 = vector.load %arg4[%c0_84, %c3_85, %c0_86, %c0_87] : memref<1x10x10x32xf32, #tpu.memory_space<vmem>>, vector<1x1x10x32xf32>
    %107 = vector.shape_cast %106 : vector<1x1x10x32xf32> to vector<10x32xf32>
    %108 = vector.shape_cast %105 : vector<10x32xf32> to vector<1x1x10x32xf32>
    tpu.vector_store %arg4[%c0_84, %c3_85, %c0_86, %c0_87], %108 {strides = array<i32>} : memref<1x10x10x32xf32, #tpu.memory_space<vmem>>, vector<1x1x10x32xf32>,
    %c176 = arith.constant 176 : index
    %c0_88 = arith.constant 0 : index
    %109 = vector.load %arg5[%c176, %c0_88] : memref<438x32xf32, #tpu.memory_space<vmem>>, vector<20x32xf32>
    %c198 = arith.constant 198 : index
    %c0_89 = arith.constant 0 : index
    %110 = vector.load %arg5[%c198, %c0_89] : memref<438x32xf32, #tpu.memory_space<vmem>>, vector<20x32xf32>
    %111 = arith.maximumf %109, %110 : vector<20x32xf32>
    %cst_90 = arith.constant dense<0.000000e+00> : vector<10x32xf32>
    %112 = tpu.matmul %67, %111, %cst_90 {dimension_numbers = #tpu.dot_dimension_numbers<[1], [0], [0], [1], [0, 0, 1, 1], [], []>} : vector<10x20xf32>, vector<20x32xf32>, vector<10x32xf32> -> vector<10x32xf32>
    %cst_91 = arith.constant dense<0.000000e+00> : vector<10x32xf32>
    %113 = tpu.matmul %72, %111, %cst_91 {dimension_numbers = #tpu.dot_dimension_numbers<[1], [0], [0], [1], [0, 0, 1, 1], [], []>} : vector<10x20xf32>, vector<20x32xf32>, vector<10x32xf32> -> vector<10x32xf32>
    %114 = arith.maximumf %112, %113 : vector<10x32xf32>
    %c0_92 = arith.constant 0 : index
    %c4_93 = arith.constant 4 : index
    %c0_94 = arith.constant 0 : index
    %c0_95 = arith.constant 0 : index
    %115 = vector.load %arg4[%c0_92, %c4_93, %c0_94, %c0_95] : memref<1x10x10x32xf32, #tpu.memory_space<vmem>>, vector<1x1x10x32xf32>
    %116 = vector.shape_cast %115 : vector<1x1x10x32xf32> to vector<10x32xf32>
    %117 = vector.shape_cast %114 : vector<10x32xf32> to vector<1x1x10x32xf32>
    tpu.vector_store %arg4[%c0_92, %c4_93, %c0_94, %c0_95], %117 {strides = array<i32>} : memref<1x10x10x32xf32, #tpu.memory_space<vmem>>, vector<1x1x10x32xf32>,
    %c220 = arith.constant 220 : index
    %c0_96 = arith.constant 0 : index
    %118 = vector.load %arg5[%c220, %c0_96] : memref<438x32xf32, #tpu.memory_space<vmem>>, vector<20x32xf32>
    %c242 = arith.constant 242 : index
    %c0_97 = arith.constant 0 : index
    %119 = vector.load %arg5[%c242, %c0_97] : memref<438x32xf32, #tpu.memory_space<vmem>>, vector<20x32xf32>
    %120 = arith.maximumf %118, %119 : vector<20x32xf32>
    %cst_98 = arith.constant dense<0.000000e+00> : vector<10x32xf32>
    %121 = tpu.matmul %67, %120, %cst_98 {dimension_numbers = #tpu.dot_dimension_numbers<[1], [0], [0], [1], [0, 0, 1, 1], [], []>} : vector<10x20xf32>, vector<20x32xf32>, vector<10x32xf32> -> vector<10x32xf32>
    %cst_99 = arith.constant dense<0.000000e+00> : vector<10x32xf32>
    %122 = tpu.matmul %72, %120, %cst_99 {dimension_numbers = #tpu.dot_dimension_numbers<[1], [0], [0], [1], [0, 0, 1, 1], [], []>} : vector<10x20xf32>, vector<20x32xf32>, vector<10x32xf32> -> vector<10x32xf32>
    %123 = arith.maximumf %121, %122 : vector<10x32xf32>
    %c0_100 = arith.constant 0 : index
    %c5_101 = arith.constant 5 : index
    %c0_102 = arith.constant 0 : index
    %c0_103 = arith.constant 0 : index
    %124 = vector.load %arg4[%c0_100, %c5_101, %c0_102, %c0_103] : memref<1x10x10x32xf32, #tpu.memory_space<vmem>>, vector<1x1x10x32xf32>
    %125 = vector.shape_cast %124 : vector<1x1x10x32xf32> to vector<10x32xf32>
    %126 = vector.shape_cast %123 : vector<10x32xf32> to vector<1x1x10x32xf32>
    tpu.vector_store %arg4[%c0_100, %c5_101, %c0_102, %c0_103], %126 {strides = array<i32>} : memref<1x10x10x32xf32, #tpu.memory_space<vmem>>, vector<1x1x10x32xf32>,
    %c264 = arith.constant 264 : index
    %c0_104 = arith.constant 0 : index
    %127 = vector.load %arg5[%c264, %c0_104] : memref<438x32xf32, #tpu.memory_space<vmem>>, vector<20x32xf32>
    %c286 = arith.constant 286 : index
    %c0_105 = arith.constant 0 : index
    %128 = vector.load %arg5[%c286, %c0_105] : memref<438x32xf32, #tpu.memory_space<vmem>>, vector<20x32xf32>
    %129 = arith.maximumf %127, %128 : vector<20x32xf32>
    %cst_106 = arith.constant dense<0.000000e+00> : vector<10x32xf32>
    %130 = tpu.matmul %67, %129, %cst_106 {dimension_numbers = #tpu.dot_dimension_numbers<[1], [0], [0], [1], [0, 0, 1, 1], [], []>} : vector<10x20xf32>, vector<20x32xf32>, vector<10x32xf32> -> vector<10x32xf32>
    %cst_107 = arith.constant dense<0.000000e+00> : vector<10x32xf32>
    %131 = tpu.matmul %72, %129, %cst_107 {dimension_numbers = #tpu.dot_dimension_numbers<[1], [0], [0], [1], [0, 0, 1, 1], [], []>} : vector<10x20xf32>, vector<20x32xf32>, vector<10x32xf32> -> vector<10x32xf32>
    %132 = arith.maximumf %130, %131 : vector<10x32xf32>
    %c0_108 = arith.constant 0 : index
    %c6_109 = arith.constant 6 : index
    %c0_110 = arith.constant 0 : index
    %c0_111 = arith.constant 0 : index
    %133 = vector.load %arg4[%c0_108, %c6_109, %c0_110, %c0_111] : memref<1x10x10x32xf32, #tpu.memory_space<vmem>>, vector<1x1x10x32xf32>
    %134 = vector.shape_cast %133 : vector<1x1x10x32xf32> to vector<10x32xf32>
    %135 = vector.shape_cast %132 : vector<10x32xf32> to vector<1x1x10x32xf32>
    tpu.vector_store %arg4[%c0_108, %c6_109, %c0_110, %c0_111], %135 {strides = array<i32>} : memref<1x10x10x32xf32, #tpu.memory_space<vmem>>, vector<1x1x10x32xf32>,
    %c308 = arith.constant 308 : index
    %c0_112 = arith.constant 0 : index
    %136 = vector.load %arg5[%c308, %c0_112] : memref<438x32xf32, #tpu.memory_space<vmem>>, vector<20x32xf32>
    %c330 = arith.constant 330 : index
    %c0_113 = arith.constant 0 : index
    %137 = vector.load %arg5[%c330, %c0_113] : memref<438x32xf32, #tpu.memory_space<vmem>>, vector<20x32xf32>
    %138 = arith.maximumf %136, %137 : vector<20x32xf32>
    %cst_114 = arith.constant dense<0.000000e+00> : vector<10x32xf32>
    %139 = tpu.matmul %67, %138, %cst_114 {dimension_numbers = #tpu.dot_dimension_numbers<[1], [0], [0], [1], [0, 0, 1, 1], [], []>} : vector<10x20xf32>, vector<20x32xf32>, vector<10x32xf32> -> vector<10x32xf32>
    %cst_115 = arith.constant dense<0.000000e+00> : vector<10x32xf32>
    %140 = tpu.matmul %72, %138, %cst_115 {dimension_numbers = #tpu.dot_dimension_numbers<[1], [0], [0], [1], [0, 0, 1, 1], [], []>} : vector<10x20xf32>, vector<20x32xf32>, vector<10x32xf32> -> vector<10x32xf32>
    %141 = arith.maximumf %139, %140 : vector<10x32xf32>
    %c0_116 = arith.constant 0 : index
    %c7_117 = arith.constant 7 : index
    %c0_118 = arith.constant 0 : index
    %c0_119 = arith.constant 0 : index
    %142 = vector.load %arg4[%c0_116, %c7_117, %c0_118, %c0_119] : memref<1x10x10x32xf32, #tpu.memory_space<vmem>>, vector<1x1x10x32xf32>
    %143 = vector.shape_cast %142 : vector<1x1x10x32xf32> to vector<10x32xf32>
    %144 = vector.shape_cast %141 : vector<10x32xf32> to vector<1x1x10x32xf32>
    tpu.vector_store %arg4[%c0_116, %c7_117, %c0_118, %c0_119], %144 {strides = array<i32>} : memref<1x10x10x32xf32, #tpu.memory_space<vmem>>, vector<1x1x10x32xf32>,
    %c352 = arith.constant 352 : index
    %c0_120 = arith.constant 0 : index
    %145 = vector.load %arg5[%c352, %c0_120] : memref<438x32xf32, #tpu.memory_space<vmem>>, vector<20x32xf32>
    %c374 = arith.constant 374 : index
    %c0_121 = arith.constant 0 : index
    %146 = vector.load %arg5[%c374, %c0_121] : memref<438x32xf32, #tpu.memory_space<vmem>>, vector<20x32xf32>
    %147 = arith.maximumf %145, %146 : vector<20x32xf32>
    %cst_122 = arith.constant dense<0.000000e+00> : vector<10x32xf32>
    %148 = tpu.matmul %67, %147, %cst_122 {dimension_numbers = #tpu.dot_dimension_numbers<[1], [0], [0], [1], [0, 0, 1, 1], [], []>} : vector<10x20xf32>, vector<20x32xf32>, vector<10x32xf32> -> vector<10x32xf32>
    %cst_123 = arith.constant dense<0.000000e+00> : vector<10x32xf32>
    %149 = tpu.matmul %72, %147, %cst_123 {dimension_numbers = #tpu.dot_dimension_numbers<[1], [0], [0], [1], [0, 0, 1, 1], [], []>} : vector<10x20xf32>, vector<20x32xf32>, vector<10x32xf32> -> vector<10x32xf32>
    %150 = arith.maximumf %148, %149 : vector<10x32xf32>
    %c0_124 = arith.constant 0 : index
    %c8_125 = arith.constant 8 : index
    %c0_126 = arith.constant 0 : index
    %c0_127 = arith.constant 0 : index
    %151 = vector.load %arg4[%c0_124, %c8_125, %c0_126, %c0_127] : memref<1x10x10x32xf32, #tpu.memory_space<vmem>>, vector<1x1x10x32xf32>
    %152 = vector.shape_cast %151 : vector<1x1x10x32xf32> to vector<10x32xf32>
    %153 = vector.shape_cast %150 : vector<10x32xf32> to vector<1x1x10x32xf32>
    tpu.vector_store %arg4[%c0_124, %c8_125, %c0_126, %c0_127], %153 {strides = array<i32>} : memref<1x10x10x32xf32, #tpu.memory_space<vmem>>, vector<1x1x10x32xf32>,
    %c396 = arith.constant 396 : index
    %c0_128 = arith.constant 0 : index
    %154 = vector.load %arg5[%c396, %c0_128] : memref<438x32xf32, #tpu.memory_space<vmem>>, vector<20x32xf32>
    %c418 = arith.constant 418 : index
    %c0_129 = arith.constant 0 : index
    %155 = vector.load %arg5[%c418, %c0_129] : memref<438x32xf32, #tpu.memory_space<vmem>>, vector<20x32xf32>
    %156 = arith.maximumf %154, %155 : vector<20x32xf32>
    %cst_130 = arith.constant dense<0.000000e+00> : vector<10x32xf32>
    %157 = tpu.matmul %67, %156, %cst_130 {dimension_numbers = #tpu.dot_dimension_numbers<[1], [0], [0], [1], [0, 0, 1, 1], [], []>} : vector<10x20xf32>, vector<20x32xf32>, vector<10x32xf32> -> vector<10x32xf32>
    %cst_131 = arith.constant dense<0.000000e+00> : vector<10x32xf32>
    %158 = tpu.matmul %72, %156, %cst_131 {dimension_numbers = #tpu.dot_dimension_numbers<[1], [0], [0], [1], [0, 0, 1, 1], [], []>} : vector<10x20xf32>, vector<20x32xf32>, vector<10x32xf32> -> vector<10x32xf32>
    %159 = arith.maximumf %157, %158 : vector<10x32xf32>
    %c0_132 = arith.constant 0 : index
    %c9 = arith.constant 9 : index
    %c0_133 = arith.constant 0 : index
    %c0_134 = arith.constant 0 : index
    %160 = vector.load %arg4[%c0_132, %c9, %c0_133, %c0_134] : memref<1x10x10x32xf32, #tpu.memory_space<vmem>>, vector<1x1x10x32xf32>
    %161 = vector.shape_cast %160 : vector<1x1x10x32xf32> to vector<10x32xf32>
    %162 = vector.shape_cast %159 : vector<10x32xf32> to vector<1x1x10x32xf32>
    tpu.vector_store %arg4[%c0_132, %c9, %c0_133, %c0_134], %162 {strides = array<i32>} : memref<1x10x10x32xf32, #tpu.memory_space<vmem>>, vector<1x1x10x32xf32>,
    return
  }
  func.func @transform_0(%arg0: i32) -> (i32, i32, i32) {
    %c0_i32 = arith.constant 0 : i32
    %c0_i32_0 = arith.constant 0 : i32
    %c0_i32_1 = arith.constant 0 : i32
    return %arg0, %c0_i32, %c0_i32_0 : i32, i32, i32
  }
  func.func @transform_1(%arg0: i32) -> (i32, i32, i32) {
    %c0_i32 = arith.constant 0 : i32
    %c0_i32_0 = arith.constant 0 : i32
    %c0_i32_1 = arith.constant 0 : i32
    %c0_i32_2 = arith.constant 0 : i32
    return %c0_i32, %c0_i32_0, %c0_i32_1 : i32, i32, i32
  }
  func.func @transform_2(%arg0: i32) -> (i32, i32) {
    %c0_i32 = arith.constant 0 : i32
    %c0_i32_0 = arith.constant 0 : i32
    %c0_i32_1 = arith.constant 0 : i32
    return %c0_i32, %c0_i32_0 : i32, i32
  }
  func.func @transform_3(%arg0: i32) -> (i32, i32, i32, i32) {
    %c0_i32 = arith.constant 0 : i32
    %c0_i32_0 = arith.constant 0 : i32
    %c0_i32_1 = arith.constant 0 : i32
    %c0_i32_2 = arith.constant 0 : i32
    return %arg0, %c0_i32, %c0_i32_0, %c0_i32_1 : i32, i32, i32, i32
  }
}

module attributes {stable_mosaic.version = 11 : i64} {
  func.func @_conv_relu_pool_kernel(%arg0: i32, %arg1: memref<1x100x32xf32, #tpu.memory_space<vmem>>, %arg2: memref<9x32x64xf32, #tpu.memory_space<vmem>>, %arg3: memref<1x64xf32, #tpu.memory_space<vmem>>, %arg4: memref<1x4x4x64xbf16, #tpu.memory_space<vmem>>, %arg5: memref<78x64xf32, #tpu.memory_space<vmem>>) attributes {dimension_semantics = [#tpu.dimension_semantics<parallel>], iteration_bounds = array<i64: 2>, scalar_prefetch = 0 : i64, scratch_operands = 1 : i64, tpu.core_type = #tpu.core_type<tc>, window_params = [{transform_indices = @transform_0, window_bounds = array<i64: 1, 100, 32>}, {pipeline_mode = #tpu.pipeline_mode<synchronous>, transform_indices = @transform_1, window_bounds = array<i64: 9, 32, 64>}, {pipeline_mode = #tpu.pipeline_mode<synchronous>, transform_indices = @transform_2, window_bounds = array<i64: 1, 64>}, {transform_indices = @transform_3, window_bounds = array<i64: 1, 4, 4, 64>}]} {
    %cst = arith.constant 0.000000e+00 : f32
    %0 = vector.broadcast %cst : f32 to vector<78x64xf32>
    %c0 = arith.constant 0 : index
    %c0_0 = arith.constant 0 : index
    %c0_1 = arith.constant 0 : index
    %1 = vector.load %arg1[%c0, %c0_0, %c0_1] : memref<1x100x32xf32, #tpu.memory_space<vmem>>, vector<1x78x32xf32>
    %2 = vector.shape_cast %1 : vector<1x78x32xf32> to vector<78x32xf32>
    %c0_2 = arith.constant 0 : index
    %c0_3 = arith.constant 0 : index
    %c0_4 = arith.constant 0 : index
    %3 = vector.load %arg2[%c0_2, %c0_3, %c0_4] : memref<9x32x64xf32, #tpu.memory_space<vmem>>, vector<1x32x64xf32>
    %4 = vector.shape_cast %3 : vector<1x32x64xf32> to vector<32x64xf32>
    %cst_5 = arith.constant dense<0.000000e+00> : vector<78x64xf32>
    %5 = tpu.matmul %2, %4, %cst_5 {dimension_numbers = #tpu.dot_dimension_numbers<[1], [0], [0], [1], [0, 0, 1, 1], [], []>} : vector<78x32xf32>, vector<32x64xf32>, vector<78x64xf32> -> vector<78x64xf32>
    %6 = arith.addf %0, %5 : vector<78x64xf32>
    %c0_6 = arith.constant 0 : index
    %c1 = arith.constant 1 : index
    %c0_7 = arith.constant 0 : index
    %7 = vector.load %arg1[%c0_6, %c1, %c0_7] : memref<1x100x32xf32, #tpu.memory_space<vmem>>, vector<1x78x32xf32>
    %8 = vector.shape_cast %7 : vector<1x78x32xf32> to vector<78x32xf32>
    %c1_8 = arith.constant 1 : index
    %c0_9 = arith.constant 0 : index
    %c0_10 = arith.constant 0 : index
    %9 = vector.load %arg2[%c1_8, %c0_9, %c0_10] : memref<9x32x64xf32, #tpu.memory_space<vmem>>, vector<1x32x64xf32>
    %10 = vector.shape_cast %9 : vector<1x32x64xf32> to vector<32x64xf32>
    %cst_11 = arith.constant dense<0.000000e+00> : vector<78x64xf32>
    %11 = tpu.matmul %8, %10, %cst_11 {dimension_numbers = #tpu.dot_dimension_numbers<[1], [0], [0], [1], [0, 0, 1, 1], [], []>} : vector<78x32xf32>, vector<32x64xf32>, vector<78x64xf32> -> vector<78x64xf32>
    %12 = arith.addf %6, %11 : vector<78x64xf32>
    %c0_12 = arith.constant 0 : index
    %c2 = arith.constant 2 : index
    %c0_13 = arith.constant 0 : index
    %13 = vector.load %arg1[%c0_12, %c2, %c0_13] : memref<1x100x32xf32, #tpu.memory_space<vmem>>, vector<1x78x32xf32>
    %14 = vector.shape_cast %13 : vector<1x78x32xf32> to vector<78x32xf32>
    %c2_14 = arith.constant 2 : index
    %c0_15 = arith.constant 0 : index
    %c0_16 = arith.constant 0 : index
    %15 = vector.load %arg2[%c2_14, %c0_15, %c0_16] : memref<9x32x64xf32, #tpu.memory_space<vmem>>, vector<1x32x64xf32>
    %16 = vector.shape_cast %15 : vector<1x32x64xf32> to vector<32x64xf32>
    %cst_17 = arith.constant dense<0.000000e+00> : vector<78x64xf32>
    %17 = tpu.matmul %14, %16, %cst_17 {dimension_numbers = #tpu.dot_dimension_numbers<[1], [0], [0], [1], [0, 0, 1, 1], [], []>} : vector<78x32xf32>, vector<32x64xf32>, vector<78x64xf32> -> vector<78x64xf32>
    %18 = arith.addf %12, %17 : vector<78x64xf32>
    %c0_18 = arith.constant 0 : index
    %c10 = arith.constant 10 : index
    %c0_19 = arith.constant 0 : index
    %19 = vector.load %arg1[%c0_18, %c10, %c0_19] : memref<1x100x32xf32, #tpu.memory_space<vmem>>, vector<1x78x32xf32>
    %20 = vector.shape_cast %19 : vector<1x78x32xf32> to vector<78x32xf32>
    %c3 = arith.constant 3 : index
    %c0_20 = arith.constant 0 : index
    %c0_21 = arith.constant 0 : index
    %21 = vector.load %arg2[%c3, %c0_20, %c0_21] : memref<9x32x64xf32, #tpu.memory_space<vmem>>, vector<1x32x64xf32>
    %22 = vector.shape_cast %21 : vector<1x32x64xf32> to vector<32x64xf32>
    %cst_22 = arith.constant dense<0.000000e+00> : vector<78x64xf32>
    %23 = tpu.matmul %20, %22, %cst_22 {dimension_numbers = #tpu.dot_dimension_numbers<[1], [0], [0], [1], [0, 0, 1, 1], [], []>} : vector<78x32xf32>, vector<32x64xf32>, vector<78x64xf32> -> vector<78x64xf32>
    %24 = arith.addf %18, %23 : vector<78x64xf32>
    %c0_23 = arith.constant 0 : index
    %c11 = arith.constant 11 : index
    %c0_24 = arith.constant 0 : index
    %25 = vector.load %arg1[%c0_23, %c11, %c0_24] : memref<1x100x32xf32, #tpu.memory_space<vmem>>, vector<1x78x32xf32>
    %26 = vector.shape_cast %25 : vector<1x78x32xf32> to vector<78x32xf32>
    %c4 = arith.constant 4 : index
    %c0_25 = arith.constant 0 : index
    %c0_26 = arith.constant 0 : index
    %27 = vector.load %arg2[%c4, %c0_25, %c0_26] : memref<9x32x64xf32, #tpu.memory_space<vmem>>, vector<1x32x64xf32>
    %28 = vector.shape_cast %27 : vector<1x32x64xf32> to vector<32x64xf32>
    %cst_27 = arith.constant dense<0.000000e+00> : vector<78x64xf32>
    %29 = tpu.matmul %26, %28, %cst_27 {dimension_numbers = #tpu.dot_dimension_numbers<[1], [0], [0], [1], [0, 0, 1, 1], [], []>} : vector<78x32xf32>, vector<32x64xf32>, vector<78x64xf32> -> vector<78x64xf32>
    %30 = arith.addf %24, %29 : vector<78x64xf32>
    %c0_28 = arith.constant 0 : index
    %c12 = arith.constant 12 : index
    %c0_29 = arith.constant 0 : index
    %31 = vector.load %arg1[%c0_28, %c12, %c0_29] : memref<1x100x32xf32, #tpu.memory_space<vmem>>, vector<1x78x32xf32>
    %32 = vector.shape_cast %31 : vector<1x78x32xf32> to vector<78x32xf32>
    %c5 = arith.constant 5 : index
    %c0_30 = arith.constant 0 : index
    %c0_31 = arith.constant 0 : index
    %33 = vector.load %arg2[%c5, %c0_30, %c0_31] : memref<9x32x64xf32, #tpu.memory_space<vmem>>, vector<1x32x64xf32>
    %34 = vector.shape_cast %33 : vector<1x32x64xf32> to vector<32x64xf32>
    %cst_32 = arith.constant dense<0.000000e+00> : vector<78x64xf32>
    %35 = tpu.matmul %32, %34, %cst_32 {dimension_numbers = #tpu.dot_dimension_numbers<[1], [0], [0], [1], [0, 0, 1, 1], [], []>} : vector<78x32xf32>, vector<32x64xf32>, vector<78x64xf32> -> vector<78x64xf32>
    %36 = arith.addf %30, %35 : vector<78x64xf32>
    %c0_33 = arith.constant 0 : index
    %c20 = arith.constant 20 : index
    %c0_34 = arith.constant 0 : index
    %37 = vector.load %arg1[%c0_33, %c20, %c0_34] : memref<1x100x32xf32, #tpu.memory_space<vmem>>, vector<1x78x32xf32>
    %38 = vector.shape_cast %37 : vector<1x78x32xf32> to vector<78x32xf32>
    %c6 = arith.constant 6 : index
    %c0_35 = arith.constant 0 : index
    %c0_36 = arith.constant 0 : index
    %39 = vector.load %arg2[%c6, %c0_35, %c0_36] : memref<9x32x64xf32, #tpu.memory_space<vmem>>, vector<1x32x64xf32>
    %40 = vector.shape_cast %39 : vector<1x32x64xf32> to vector<32x64xf32>
    %cst_37 = arith.constant dense<0.000000e+00> : vector<78x64xf32>
    %41 = tpu.matmul %38, %40, %cst_37 {dimension_numbers = #tpu.dot_dimension_numbers<[1], [0], [0], [1], [0, 0, 1, 1], [], []>} : vector<78x32xf32>, vector<32x64xf32>, vector<78x64xf32> -> vector<78x64xf32>
    %42 = arith.addf %36, %41 : vector<78x64xf32>
    %c0_38 = arith.constant 0 : index
    %c21 = arith.constant 21 : index
    %c0_39 = arith.constant 0 : index
    %43 = vector.load %arg1[%c0_38, %c21, %c0_39] : memref<1x100x32xf32, #tpu.memory_space<vmem>>, vector<1x78x32xf32>
    %44 = vector.shape_cast %43 : vector<1x78x32xf32> to vector<78x32xf32>
    %c7 = arith.constant 7 : index
    %c0_40 = arith.constant 0 : index
    %c0_41 = arith.constant 0 : index
    %45 = vector.load %arg2[%c7, %c0_40, %c0_41] : memref<9x32x64xf32, #tpu.memory_space<vmem>>, vector<1x32x64xf32>
    %46 = vector.shape_cast %45 : vector<1x32x64xf32> to vector<32x64xf32>
    %cst_42 = arith.constant dense<0.000000e+00> : vector<78x64xf32>
    %47 = tpu.matmul %44, %46, %cst_42 {dimension_numbers = #tpu.dot_dimension_numbers<[1], [0], [0], [1], [0, 0, 1, 1], [], []>} : vector<78x32xf32>, vector<32x64xf32>, vector<78x64xf32> -> vector<78x64xf32>
    %48 = arith.addf %42, %47 : vector<78x64xf32>
    %c0_43 = arith.constant 0 : index
    %c22 = arith.constant 22 : index
    %c0_44 = arith.constant 0 : index
    %49 = vector.load %arg1[%c0_43, %c22, %c0_44] : memref<1x100x32xf32, #tpu.memory_space<vmem>>, vector<1x78x32xf32>
    %50 = vector.shape_cast %49 : vector<1x78x32xf32> to vector<78x32xf32>
    %c8 = arith.constant 8 : index
    %c0_45 = arith.constant 0 : index
    %c0_46 = arith.constant 0 : index
    %51 = vector.load %arg2[%c8, %c0_45, %c0_46] : memref<9x32x64xf32, #tpu.memory_space<vmem>>, vector<1x32x64xf32>
    %52 = vector.shape_cast %51 : vector<1x32x64xf32> to vector<32x64xf32>
    %cst_47 = arith.constant dense<0.000000e+00> : vector<78x64xf32>
    %53 = tpu.matmul %50, %52, %cst_47 {dimension_numbers = #tpu.dot_dimension_numbers<[1], [0], [0], [1], [0, 0, 1, 1], [], []>} : vector<78x32xf32>, vector<32x64xf32>, vector<78x64xf32> -> vector<78x64xf32>
    %54 = arith.addf %48, %53 : vector<78x64xf32>
    %c0_48 = arith.constant 0 : index
    %c0_49 = arith.constant 0 : index
    %55 = vector.load %arg3[%c0_48, %c0_49] : memref<1x64xf32, #tpu.memory_space<vmem>>, vector<1x64xf32>
    %56 = vector.broadcast %55 : vector<1x64xf32> to vector<78x64xf32>
    %57 = arith.addf %54, %56 : vector<78x64xf32>
    %cst_50 = arith.constant 0.000000e+00 : f32
    %58 = vector.broadcast %cst_50 : f32 to vector<78x64xf32>
    %59 = arith.maximumf %57, %58 : vector<78x64xf32>
    %c0_51 = arith.constant 0 : index
    %c0_52 = arith.constant 0 : index
    %60 = vector.load %arg5[%c0_51, %c0_52] : memref<78x64xf32, #tpu.memory_space<vmem>>, vector<78x64xf32>
    tpu.vector_store %arg5[%c0_51, %c0_52], %59 {strides = array<i32>} : memref<78x64xf32, #tpu.memory_space<vmem>>, vector<78x64xf32>,
    %61 = tpu.iota {dimensions = array<i32: 1>} : vector<4x8xi32>
    %62 = tpu.iota {dimensions = array<i32: 0>} : vector<4x8xi32>
    %c2_i32 = arith.constant 2 : i32
    %63 = vector.broadcast %c2_i32 : i32 to vector<4x8xi32>
    %64 = arith.muli %63, %62 : vector<4x8xi32>
    %65 = arith.cmpi eq, %61, %64 : vector<4x8xi32>
    %66 = arith.extui %65 : vector<4x8xi1> to vector<4x8xi32>
    %67 = arith.sitofp %66 : vector<4x8xi32> to vector<4x8xf32>
    %c1_i32 = arith.constant 1 : i32
    %68 = vector.broadcast %c1_i32 : i32 to vector<4x8xi32>
    %69 = arith.addi %64, %68 : vector<4x8xi32>
    %70 = arith.cmpi eq, %61, %69 : vector<4x8xi32>
    %71 = arith.extui %70 : vector<4x8xi1> to vector<4x8xi32>
    %72 = arith.sitofp %71 : vector<4x8xi32> to vector<4x8xf32>
    %c0_53 = arith.constant 0 : index
    %c0_54 = arith.constant 0 : index
    %73 = vector.load %arg5[%c0_53, %c0_54] : memref<78x64xf32, #tpu.memory_space<vmem>>, vector<8x64xf32>
    %c10_55 = arith.constant 10 : index
    %c0_56 = arith.constant 0 : index
    %74 = vector.load %arg5[%c10_55, %c0_56] : memref<78x64xf32, #tpu.memory_space<vmem>>, vector<8x64xf32>
    %75 = arith.maximumf %73, %74 : vector<8x64xf32>
    %cst_57 = arith.constant dense<0.000000e+00> : vector<4x64xf32>
    %76 = tpu.matmul %67, %75, %cst_57 {dimension_numbers = #tpu.dot_dimension_numbers<[1], [0], [0], [1], [0, 0, 1, 1], [], []>} : vector<4x8xf32>, vector<8x64xf32>, vector<4x64xf32> -> vector<4x64xf32>
    %cst_58 = arith.constant dense<0.000000e+00> : vector<4x64xf32>
    %77 = tpu.matmul %72, %75, %cst_58 {dimension_numbers = #tpu.dot_dimension_numbers<[1], [0], [0], [1], [0, 0, 1, 1], [], []>} : vector<4x8xf32>, vector<8x64xf32>, vector<4x64xf32> -> vector<4x64xf32>
    %78 = arith.maximumf %76, %77 : vector<4x64xf32>
    %79 = arith.truncf %78 : vector<4x64xf32> to vector<4x64xbf16>
    %c0_59 = arith.constant 0 : index
    %c0_60 = arith.constant 0 : index
    %c0_61 = arith.constant 0 : index
    %c0_62 = arith.constant 0 : index
    %80 = vector.load %arg4[%c0_59, %c0_60, %c0_61, %c0_62] : memref<1x4x4x64xbf16, #tpu.memory_space<vmem>>, vector<1x1x4x64xbf16>
    %81 = vector.shape_cast %80 : vector<1x1x4x64xbf16> to vector<4x64xbf16>
    %82 = vector.shape_cast %79 : vector<4x64xbf16> to vector<1x1x4x64xbf16>
    tpu.vector_store %arg4[%c0_59, %c0_60, %c0_61, %c0_62], %82 {strides = array<i32>} : memref<1x4x4x64xbf16, #tpu.memory_space<vmem>>, vector<1x1x4x64xbf16>,
    %c20_63 = arith.constant 20 : index
    %c0_64 = arith.constant 0 : index
    %83 = vector.load %arg5[%c20_63, %c0_64] : memref<78x64xf32, #tpu.memory_space<vmem>>, vector<8x64xf32>
    %c30 = arith.constant 30 : index
    %c0_65 = arith.constant 0 : index
    %84 = vector.load %arg5[%c30, %c0_65] : memref<78x64xf32, #tpu.memory_space<vmem>>, vector<8x64xf32>
    %85 = arith.maximumf %83, %84 : vector<8x64xf32>
    %cst_66 = arith.constant dense<0.000000e+00> : vector<4x64xf32>
    %86 = tpu.matmul %67, %85, %cst_66 {dimension_numbers = #tpu.dot_dimension_numbers<[1], [0], [0], [1], [0, 0, 1, 1], [], []>} : vector<4x8xf32>, vector<8x64xf32>, vector<4x64xf32> -> vector<4x64xf32>
    %cst_67 = arith.constant dense<0.000000e+00> : vector<4x64xf32>
    %87 = tpu.matmul %72, %85, %cst_67 {dimension_numbers = #tpu.dot_dimension_numbers<[1], [0], [0], [1], [0, 0, 1, 1], [], []>} : vector<4x8xf32>, vector<8x64xf32>, vector<4x64xf32> -> vector<4x64xf32>
    %88 = arith.maximumf %86, %87 : vector<4x64xf32>
    %89 = arith.truncf %88 : vector<4x64xf32> to vector<4x64xbf16>
    %c0_68 = arith.constant 0 : index
    %c1_69 = arith.constant 1 : index
    %c0_70 = arith.constant 0 : index
    %c0_71 = arith.constant 0 : index
    %90 = vector.load %arg4[%c0_68, %c1_69, %c0_70, %c0_71] : memref<1x4x4x64xbf16, #tpu.memory_space<vmem>>, vector<1x1x4x64xbf16>
    %91 = vector.shape_cast %90 : vector<1x1x4x64xbf16> to vector<4x64xbf16>
    %92 = vector.shape_cast %89 : vector<4x64xbf16> to vector<1x1x4x64xbf16>
    tpu.vector_store %arg4[%c0_68, %c1_69, %c0_70, %c0_71], %92 {strides = array<i32>} : memref<1x4x4x64xbf16, #tpu.memory_space<vmem>>, vector<1x1x4x64xbf16>,
    %c40 = arith.constant 40 : index
    %c0_72 = arith.constant 0 : index
    %93 = vector.load %arg5[%c40, %c0_72] : memref<78x64xf32, #tpu.memory_space<vmem>>, vector<8x64xf32>
    %c50 = arith.constant 50 : index
    %c0_73 = arith.constant 0 : index
    %94 = vector.load %arg5[%c50, %c0_73] : memref<78x64xf32, #tpu.memory_space<vmem>>, vector<8x64xf32>
    %95 = arith.maximumf %93, %94 : vector<8x64xf32>
    %cst_74 = arith.constant dense<0.000000e+00> : vector<4x64xf32>
    %96 = tpu.matmul %67, %95, %cst_74 {dimension_numbers = #tpu.dot_dimension_numbers<[1], [0], [0], [1], [0, 0, 1, 1], [], []>} : vector<4x8xf32>, vector<8x64xf32>, vector<4x64xf32> -> vector<4x64xf32>
    %cst_75 = arith.constant dense<0.000000e+00> : vector<4x64xf32>
    %97 = tpu.matmul %72, %95, %cst_75 {dimension_numbers = #tpu.dot_dimension_numbers<[1], [0], [0], [1], [0, 0, 1, 1], [], []>} : vector<4x8xf32>, vector<8x64xf32>, vector<4x64xf32> -> vector<4x64xf32>
    %98 = arith.maximumf %96, %97 : vector<4x64xf32>
    %99 = arith.truncf %98 : vector<4x64xf32> to vector<4x64xbf16>
    %c0_76 = arith.constant 0 : index
    %c2_77 = arith.constant 2 : index
    %c0_78 = arith.constant 0 : index
    %c0_79 = arith.constant 0 : index
    %100 = vector.load %arg4[%c0_76, %c2_77, %c0_78, %c0_79] : memref<1x4x4x64xbf16, #tpu.memory_space<vmem>>, vector<1x1x4x64xbf16>
    %101 = vector.shape_cast %100 : vector<1x1x4x64xbf16> to vector<4x64xbf16>
    %102 = vector.shape_cast %99 : vector<4x64xbf16> to vector<1x1x4x64xbf16>
    tpu.vector_store %arg4[%c0_76, %c2_77, %c0_78, %c0_79], %102 {strides = array<i32>} : memref<1x4x4x64xbf16, #tpu.memory_space<vmem>>, vector<1x1x4x64xbf16>,
    %c60 = arith.constant 60 : index
    %c0_80 = arith.constant 0 : index
    %103 = vector.load %arg5[%c60, %c0_80] : memref<78x64xf32, #tpu.memory_space<vmem>>, vector<8x64xf32>
    %c70 = arith.constant 70 : index
    %c0_81 = arith.constant 0 : index
    %104 = vector.load %arg5[%c70, %c0_81] : memref<78x64xf32, #tpu.memory_space<vmem>>, vector<8x64xf32>
    %105 = arith.maximumf %103, %104 : vector<8x64xf32>
    %cst_82 = arith.constant dense<0.000000e+00> : vector<4x64xf32>
    %106 = tpu.matmul %67, %105, %cst_82 {dimension_numbers = #tpu.dot_dimension_numbers<[1], [0], [0], [1], [0, 0, 1, 1], [], []>} : vector<4x8xf32>, vector<8x64xf32>, vector<4x64xf32> -> vector<4x64xf32>
    %cst_83 = arith.constant dense<0.000000e+00> : vector<4x64xf32>
    %107 = tpu.matmul %72, %105, %cst_83 {dimension_numbers = #tpu.dot_dimension_numbers<[1], [0], [0], [1], [0, 0, 1, 1], [], []>} : vector<4x8xf32>, vector<8x64xf32>, vector<4x64xf32> -> vector<4x64xf32>
    %108 = arith.maximumf %106, %107 : vector<4x64xf32>
    %109 = arith.truncf %108 : vector<4x64xf32> to vector<4x64xbf16>
    %c0_84 = arith.constant 0 : index
    %c3_85 = arith.constant 3 : index
    %c0_86 = arith.constant 0 : index
    %c0_87 = arith.constant 0 : index
    %110 = vector.load %arg4[%c0_84, %c3_85, %c0_86, %c0_87] : memref<1x4x4x64xbf16, #tpu.memory_space<vmem>>, vector<1x1x4x64xbf16>
    %111 = vector.shape_cast %110 : vector<1x1x4x64xbf16> to vector<4x64xbf16>
    %112 = vector.shape_cast %109 : vector<4x64xbf16> to vector<1x1x4x64xbf16>
    tpu.vector_store %arg4[%c0_84, %c3_85, %c0_86, %c0_87], %112 {strides = array<i32>} : memref<1x4x4x64xbf16, #tpu.memory_space<vmem>>, vector<1x1x4x64xbf16>,
    return
  }
  func.func @transform_0(%arg0: i32) -> (i32, i32, i32) {
    %c0_i32 = arith.constant 0 : i32
    %c0_i32_0 = arith.constant 0 : i32
    %c0_i32_1 = arith.constant 0 : i32
    return %arg0, %c0_i32, %c0_i32_0 : i32, i32, i32
  }
  func.func @transform_1(%arg0: i32) -> (i32, i32, i32) {
    %c0_i32 = arith.constant 0 : i32
    %c0_i32_0 = arith.constant 0 : i32
    %c0_i32_1 = arith.constant 0 : i32
    %c0_i32_2 = arith.constant 0 : i32
    return %c0_i32, %c0_i32_0, %c0_i32_1 : i32, i32, i32
  }
  func.func @transform_2(%arg0: i32) -> (i32, i32) {
    %c0_i32 = arith.constant 0 : i32
    %c0_i32_0 = arith.constant 0 : i32
    %c0_i32_1 = arith.constant 0 : i32
    return %c0_i32, %c0_i32_0 : i32, i32
  }
  func.func @transform_3(%arg0: i32) -> (i32, i32, i32, i32) {
    %c0_i32 = arith.constant 0 : i32
    %c0_i32_0 = arith.constant 0 : i32
    %c0_i32_1 = arith.constant 0 : i32
    %c0_i32_2 = arith.constant 0 : i32
    return %arg0, %c0_i32, %c0_i32_0, %c0_i32_1 : i32, i32, i32, i32
  }
}

module attributes {stable_mosaic.version = 11 : i64} {
  func.func @_fc_head_kernel(%arg0: i32, %arg1: memref<2x256xbf16, #tpu.memory_space<vmem>>, %arg2: memref<256x128xbf16, #tpu.memory_space<vmem>>, %arg3: memref<1x128xf32, #tpu.memory_space<vmem>>, %arg4: memref<128x1xf32, #tpu.memory_space<vmem>>, %arg5: memref<1x1xf32, #tpu.memory_space<vmem>>, %arg6: memref<2x1xf32, #tpu.memory_space<vmem>>, %arg7: memref<2x128xf32, #tpu.memory_space<vmem>>) attributes {dimension_semantics = [#tpu.dimension_semantics<arbitrary>], iteration_bounds = array<i64: 4>, scalar_prefetch = 0 : i64, scratch_operands = 1 : i64, tpu.core_type = #tpu.core_type<tc>, window_params = [{transform_indices = @transform_0, window_bounds = array<i64: 2, 256>}, {transform_indices = @transform_1, window_bounds = array<i64: 256, 128>}, {pipeline_mode = #tpu.pipeline_mode<synchronous>, transform_indices = @transform_2, window_bounds = array<i64: 1, 128>}, {pipeline_mode = #tpu.pipeline_mode<synchronous>, transform_indices = @transform_3, window_bounds = array<i64: 128, 1>}, {pipeline_mode = #tpu.pipeline_mode<synchronous>, transform_indices = @transform_4, window_bounds = array<i64: 1, 1>}, {pipeline_mode = #tpu.pipeline_mode<synchronous>, transform_indices = @transform_5, window_bounds = array<i64: 2, 1>}]} {
    %c0_i32 = arith.constant 0 : i32
    %0 = arith.cmpi eq, %arg0, %c0_i32 : i32
    %1 = arith.extui %0 : i1 to i32
    %c0_i32_0 = arith.constant 0 : i32
    %2 = arith.cmpi ne, %1, %c0_i32_0 : i32
    scf.if %2 {
      %cst_9 = arith.constant 0.000000e+00 : f32
      %12 = vector.broadcast %cst_9 : f32 to vector<2x128xf32>
      %c0_10 = arith.constant 0 : index
      %c0_11 = arith.constant 0 : index
      %13 = vector.load %arg7[%c0_10, %c0_11] : memref<2x128xf32, #tpu.memory_space<vmem>>, vector<2x128xf32>
      tpu.vector_store %arg7[%c0_10, %c0_11], %12 {strides = array<i32>} : memref<2x128xf32, #tpu.memory_space<vmem>>, vector<2x128xf32>,
    } else {
    }
    %c0 = arith.constant 0 : index
    %c0_1 = arith.constant 0 : index
    %3 = vector.load %arg7[%c0, %c0_1] : memref<2x128xf32, #tpu.memory_space<vmem>>, vector<2x128xf32>
    %c0_2 = arith.constant 0 : index
    %c0_3 = arith.constant 0 : index
    %4 = vector.load %arg1[%c0_2, %c0_3] : memref<2x256xbf16, #tpu.memory_space<vmem>>, vector<2x256xbf16>
    %c0_4 = arith.constant 0 : index
    %c0_5 = arith.constant 0 : index
    %5 = vector.load %arg2[%c0_4, %c0_5] : memref<256x128xbf16, #tpu.memory_space<vmem>>, vector<256x128xbf16>
    %cst = arith.constant dense<0.000000e+00> : vector<2x128xf32>
    %6 = tpu.matmul %4, %5, %cst {dimension_numbers = #tpu.dot_dimension_numbers<[1], [0], [0], [1], [0, 0, 1, 1], [], []>} : vector<2x256xbf16>, vector<256x128xbf16>, vector<2x128xf32> -> vector<2x128xf32>
    %7 = arith.addf %3, %6 : vector<2x128xf32>
    %c0_6 = arith.constant 0 : index
    %c0_7 = arith.constant 0 : index
    %8 = vector.load %arg7[%c0_6, %c0_7] : memref<2x128xf32, #tpu.memory_space<vmem>>, vector<2x128xf32>
    tpu.vector_store %arg7[%c0_6, %c0_7], %7 {strides = array<i32>} : memref<2x128xf32, #tpu.memory_space<vmem>>, vector<2x128xf32>,
    %c3_i32 = arith.constant 3 : i32
    %9 = arith.cmpi eq, %arg0, %c3_i32 : i32
    %10 = arith.extui %9 : i1 to i32
    %c0_i32_8 = arith.constant 0 : i32
    %11 = arith.cmpi ne, %10, %c0_i32_8 : i32
    scf.if %11 {
      %c0_9 = arith.constant 0 : index
      %c0_10 = arith.constant 0 : index
      %12 = vector.load %arg7[%c0_9, %c0_10] : memref<2x128xf32, #tpu.memory_space<vmem>>, vector<2x128xf32>
      %c0_11 = arith.constant 0 : index
      %c0_12 = arith.constant 0 : index
      %13 = vector.load %arg3[%c0_11, %c0_12] : memref<1x128xf32, #tpu.memory_space<vmem>>, vector<1x128xf32>
      %14 = vector.broadcast %13 : vector<1x128xf32> to vector<2x128xf32>
      %15 = arith.addf %12, %14 : vector<2x128xf32>
      %cst_13 = arith.constant 0.000000e+00 : f32
      %16 = vector.broadcast %cst_13 : f32 to vector<2x128xf32>
      %17 = arith.maximumf %15, %16 : vector<2x128xf32>
      %c0_14 = arith.constant 0 : index
      %c0_15 = arith.constant 0 : index
      %18 = vector.load %arg4[%c0_14, %c0_15] : memref<128x1xf32, #tpu.memory_space<vmem>>, vector<128x1xf32>
      %cst_16 = arith.constant dense<0.000000e+00> : vector<2x1xf32>
      %19 = tpu.matmul %17, %18, %cst_16 {dimension_numbers = #tpu.dot_dimension_numbers<[1], [0], [0], [1], [0, 0, 1, 1], [], []>} : vector<2x128xf32>, vector<128x1xf32>, vector<2x1xf32> -> vector<2x1xf32>
      %c0_17 = arith.constant 0 : index
      %c0_18 = arith.constant 0 : index
      %20 = vector.load %arg5[%c0_17, %c0_18] : memref<1x1xf32, #tpu.memory_space<vmem>>, vector<1x1xf32>
      %21 = vector.broadcast %20 : vector<1x1xf32> to vector<2x1xf32>
      %22 = arith.addf %19, %21 : vector<2x1xf32>
      %cst_19 = arith.constant 0.000000e+00 : f32
      %23 = vector.broadcast %cst_19 : f32 to vector<2x1xf32>
      %24 = arith.subf %23, %22 : vector<2x1xf32>
      %25 = math.exp %24 : vector<2x1xf32>
      %cst_20 = arith.constant 1.000000e+00 : f32
      %26 = vector.broadcast %cst_20 : f32 to vector<2x1xf32>
      %27 = arith.addf %26, %25 : vector<2x1xf32>
      %28 = tpu.reciprocal %27 {approx = true} : vector<2x1xf32> -> vector<2x1xf32>
      %c0_21 = arith.constant 0 : index
      %c0_22 = arith.constant 0 : index
      %29 = vector.load %arg6[%c0_21, %c0_22] : memref<2x1xf32, #tpu.memory_space<vmem>>, vector<2x1xf32>
      tpu.vector_store %arg6[%c0_21, %c0_22], %28 {strides = array<i32>} : memref<2x1xf32, #tpu.memory_space<vmem>>, vector<2x1xf32>,
    } else {
    }
    return
  }
  func.func @transform_0(%arg0: i32) -> (i32, i32) {
    %c0_i32 = arith.constant 0 : i32
    %c0_i32_0 = arith.constant 0 : i32
    return %c0_i32, %arg0 : i32, i32
  }
  func.func @transform_1(%arg0: i32) -> (i32, i32) {
    %c0_i32 = arith.constant 0 : i32
    %c0_i32_0 = arith.constant 0 : i32
    return %arg0, %c0_i32 : i32, i32
  }
  func.func @transform_2(%arg0: i32) -> (i32, i32) {
    %c0_i32 = arith.constant 0 : i32
    %c0_i32_0 = arith.constant 0 : i32
    %c0_i32_1 = arith.constant 0 : i32
    return %c0_i32, %c0_i32_0 : i32, i32
  }
  func.func @transform_3(%arg0: i32) -> (i32, i32) {
    %c0_i32 = arith.constant 0 : i32
    %c0_i32_0 = arith.constant 0 : i32
    %c0_i32_1 = arith.constant 0 : i32
    return %c0_i32, %c0_i32_0 : i32, i32
  }
  func.func @transform_4(%arg0: i32) -> (i32, i32) {
    %c0_i32 = arith.constant 0 : i32
    %c0_i32_0 = arith.constant 0 : i32
    %c0_i32_1 = arith.constant 0 : i32
    return %c0_i32, %c0_i32_0 : i32, i32
  }
  func.func @transform_5(%arg0: i32) -> (i32, i32) {
    %c0_i32 = arith.constant 0 : i32
    %c0_i32_0 = arith.constant 0 : i32
    %c0_i32_1 = arith.constant 0 : i32
    return %c0_i32, %c0_i32_0 : i32, i32
  }
}

</mosaic_0001>

<llo_original>
// kernel: cnn_forward.5
$region0: #{cnn_forward.5}
  #allocation0 [shape = 'u32[]', space=smem, size = 0x4, offset = 0x4, fixed_abs, tag = 'smem constant byte address 0x4 - core index']
  #allocation1 [shape = 'u32[72,128]{1,0:T(1,128)}', space=vmem, size = 0x9000, scoped, tag = 'internal scratch']
  #allocation2 [shape = 'f32[2,128]{1,0:T(2,128)}', space=vmem, size = 0x400, scoped, tag = 'scratch operand']
  #allocation3 [shape = 'f32[1,1]{1,0:T(1,128)S(1)}', space=vmem, size = 0x200, scoped, tag = 'scoped memory for cnn_forward.5']
  %s0 = inlined_call_operand.vmem [shape: bf16[2,1024], index: 0, kind: input, shape index: {}]
  %s1 = inlined_call_operand.vmem [shape: bf16[1024,128], index: 1, kind: input, shape index: {}]
  %s2 = inlined_call_operand.vmem [shape: f32[1,128], index: 2, kind: input, shape index: {}]
  %s3 = inlined_call_operand.vmem [shape: f32[128,1], index: 3, kind: input, shape index: {}]
  %s4 = inlined_call_operand.<no memory space> [shape: f32[1,1], index: 4, kind: input, shape index: {}]
  %s5 = inlined_call_operand.vmem [shape: f32[2,1], index: 5, kind: output, shape index: {}]
  %s6 = sld [smem:[#allocation0]]
  $region61: #{cnn_forward.5} parent=0
    _
  %s8 = ssub.s32 1, %s6
  %s9 = scalar_select 0, %s8, %s6
  %v10 = vstv %s4
  %11 = vst [vmem:[#allocation3] sm:$0x1] %v10
  loop: start=0, step=1, limit=6
  $region2: #{cnn_forward.5} parent=0 // loop_pre_header
    _
  $region3: #{cnn_forward.5} parent=0 // loop_header
    %s13 = sphi 0, %s17
    %p14 = scmp.ge.s32.totalorder %s13, 6
    %s23 = sphi 0, %s25
    %s26 = sphi 0, %s23
    %s27 = sphi 0, %s26
    %s43 = sphi 0, %s27
    %s49 = sphi 0, %s51
    %s52 = sphi 0, %s49
    %s53 = sphi 0, %s52
    %s69 = sphi 0, %s53
    %s73 = sphi 0, %s73
    %s75 = sphi 0, %s73
    %s76 = sphi 0, %s75
    %s90 = sphi 0, %s76
    %s94 = sphi 0, %s94
    %s96 = sphi 0, %s94
    %s97 = sphi 0, %s96
    %s111 = sphi 0, %s97
    %s115 = sphi 0, %s115
    %s117 = sphi 0, %s115
    %s118 = sphi 0, %s117
    %s132 = sphi 0, %s118
    %s136 = sphi 0, %s136
    %s138 = sphi 0, %s136
    %s139 = sphi 0, %s138
    %s153 = sphi 0, %s139
  $region4: #{cnn_forward.5} parent=0 // loop_header_branch
    %16 = sbr.rel (%p14) target = $region8
  $region5: #{cnn_forward.5} parent=0 // loop_body
    %s18 = ssub.s32 %s13, 1
    %s19 = ssub.s32 %s13, 2
    %s20 = sadd.s32 %s13, 1
    %s21 = ssub.s32 %s13, %s20
    %p22 = scmp.eq.s32.totalorder %s21, 0
    %s24 = sadd.s32 %s23, 1
    %s25 = scalar_select %p22, %s23, %s24
    %p28 = pneg %p22
    %p29 = scmp.eq.s32.totalorder %s13, 3
    %p30 = por %p28, %p29
    %p31 = scmp.ne.s32.totalorder %s23, %s26
    %p32 = scmp.eq.s32.totalorder %s13, 0
    %p33 = por %p31, %p32
    %p34 = scmp.ne.s32.totalorder %s23, %s26
    %p35 = scmp.eq.s32.totalorder %s18, 3
    %p36 = por %p34, %p35
    %p37 = scmp.ne.s32.totalorder %s26, %s27
    %p38 = scmp.eq.s32.totalorder %s18, 0
    %p39 = por %p37, %p38
    %p40 = scmp.ne.s32.totalorder %s26, %s27
    %p41 = scmp.eq.s32.totalorder %s19, 3
    %p42 = por %p40, %p41
    %p44 = scmp.ne.s32.totalorder %s27, %s43
    %p45 = scmp.eq.s32.totalorder %s19, 0
    %p46 = por %p44, %p45
    %s47 = ssub.s32 %s13, %s20
    %p48 = scmp.eq.s32.totalorder %s47, 0
    %s50 = sadd.s32 %s49, 1
    %s51 = scalar_select %p48, %s49, %s50
    %p54 = pneg %p48
    %p55 = scmp.eq.s32.totalorder %s13, 3
    %p56 = por %p54, %p55
    %p57 = scmp.ne.s32.totalorder %s49, %s52
    %p58 = scmp.eq.s32.totalorder %s13, 0
    %p59 = por %p57, %p58
    %p60 = scmp.ne.s32.totalorder %s49, %s52
    %p61 = scmp.eq.s32.totalorder %s18, 3
    %p62 = por %p60, %p61
    %p63 = scmp.ne.s32.totalorder %s52, %s53
    %p64 = scmp.eq.s32.totalorder %s18, 0
    %p65 = por %p63, %p64
    %p66 = scmp.ne.s32.totalorder %s52, %s53
    %p67 = scmp.eq.s32.totalorder %s19, 3
    %p68 = por %p66, %p67
    %p70 = scmp.ne.s32.totalorder %s53, %s69
    %p71 = scmp.eq.s32.totalorder %s19, 0
    %p72 = por %p70, %p71
    %s74 = sadd.s32 %s73, 1
    %p77 = scmp.eq.s32.totalorder %s13, 3
    %p78 = scmp.ne.s32.totalorder %s73, %s75
    %p79 = scmp.eq.s32.totalorder %s13, 0
    %p80 = por %p78, %p79
    %p81 = scmp.ne.s32.totalorder %s73, %s75
    %p82 = scmp.eq.s32.totalorder %s18, 3
    %p83 = por %p81, %p82
    %p84 = scmp.ne.s32.totalorder %s75, %s76
    %p85 = scmp.eq.s32.totalorder %s18, 0
    %p86 = por %p84, %p85
    %p87 = scmp.ne.s32.totalorder %s75, %s76
    %p88 = scmp.eq.s32.totalorder %s19, 3
    %p89 = por %p87, %p88
    %p91 = scmp.ne.s32.totalorder %s76, %s90
    %p92 = scmp.eq.s32.totalorder %s19, 0
    %p93 = por %p91, %p92
    %s95 = sadd.s32 %s94, 1
    %p98 = scmp.eq.s32.totalorder %s13, 3
    %p99 = scmp.ne.s32.totalorder %s94, %s96
    %p100 = scmp.eq.s32.totalorder %s13, 0
    %p101 = por %p99, %p100
    %p102 = scmp.ne.s32.totalorder %s94, %s96
    %p103 = scmp.eq.s32.totalorder %s18, 3
    %p104 = por %p102, %p103
    %p105 = scmp.ne.s32.totalorder %s96, %s97
    %p106 = scmp.eq.s32.totalorder %s18, 0
    %p107 = por %p105, %p106
    %p108 = scmp.ne.s32.totalorder %s96, %s97
    %p109 = scmp.eq.s32.totalorder %s19, 3
    %p110 = por %p108, %p109
    %p112 = scmp.ne.s32.totalorder %s97, %s111
    %p113 = scmp.eq.s32.totalorder %s19, 0
    %p114 = por %p112, %p113
    %s116 = sadd.s32 %s115, 1
    %p119 = scmp.eq.s32.totalorder %s13, 3
    %p120 = scmp.ne.s32.totalorder %s115, %s117
    %p121 = scmp.eq.s32.totalorder %s13, 0
    %p122 = por %p120, %p121
    %p123 = scmp.ne.s32.totalorder %s115, %s117
    %p124 = scmp.eq.s32.totalorder %s18, 3
    %p125 = por %p123, %p124
    %p126 = scmp.ne.s32.totalorder %s117, %s118
    %p127 = scmp.eq.s32.totalorder %s18, 0
    %p128 = por %p126, %p127
    %p129 = scmp.ne.s32.totalorder %s117, %s118
    %p130 = scmp.eq.s32.totalorder %s19, 3
    %p131 = por %p129, %p130
    %p133 = scmp.ne.s32.totalorder %s118, %s132
    %p134 = scmp.eq.s32.totalorder %s19, 0
    %p135 = por %p133, %p134
    %s137 = sadd.s32 %s136, 1
    %p140 = scmp.eq.s32.totalorder %s13, 3
    %p141 = scmp.ne.s32.totalorder %s136, %s138
    %p142 = scmp.eq.s32.totalorder %s13, 0
    %p143 = por %p141, %p142
    %p144 = scmp.ne.s32.totalorder %s136, %s138
    %p145 = scmp.eq.s32.totalorder %s18, 3
    %p146 = por %p144, %p145
    %p147 = scmp.ne.s32.totalorder %s138, %s139
    %p148 = scmp.eq.s32.totalorder %s18, 0
    %p149 = por %p147, %p148
    %p150 = scmp.ne.s32.totalorder %s138, %s139
    %p151 = scmp.eq.s32.totalorder %s19, 3
    %p152 = por %p150, %p151
    %p154 = scmp.ne.s32.totalorder %s139, %s153
    %p155 = scmp.eq.s32.totalorder %s19, 0
    %p156 = por %p154, %p155
    %p157 = scmp.le.s32.totalorder 1, %s13
    %p158 = scmp.lt.s32.totalorder %s13, 5
    %p159 = pnand %p157, %p158
    %p160 = pneg %p159
    // Predicated region
    $region9: #{cnn_forward.5} parent=5 // pred_check
      _
    $region10: #{cnn_forward.5} parent=5 // pred_check_branch
      %162 = sbr.rel (%p159) target = $region12
    $region11: #{cnn_forward.5} parent=5 // pred_region
      %s163 = ssub.s32 %s13, 1
      // Predicated region
      $region13: #{cnn_forward.5} parent=11 // pred_check
        %p164 = pneg %p86
      $region14: #{cnn_forward.5} parent=11 // pred_check_branch
        %166 = sbr.rel (%p164) target = $region16
      $region15: #{cnn_forward.5} parent=11 // pred_region
        _
      $region16: #{cnn_forward.5} parent=11 // pred_fallthru
        _
      // Predicated region
      $region17: #{cnn_forward.5} parent=11 // pred_check
        %p167 = pneg %p107
      $region18: #{cnn_forward.5} parent=11 // pred_check_branch
        %169 = sbr.rel (%p167) target = $region20
      $region19: #{cnn_forward.5} parent=11 // pred_region
        _
      $region20: #{cnn_forward.5} parent=11 // pred_fallthru
        _
      // Predicated region
      $region21: #{cnn_forward.5} parent=11 // pred_check
        %p170 = pneg %p128
      $region22: #{cnn_forward.5} parent=11 // pred_check_branch
        %172 = sbr.rel (%p170) target = $region24
      $region23: #{cnn_forward.5} parent=11 // pred_region
        _
      $region24: #{cnn_forward.5} parent=11 // pred_fallthru
        _
    $region12: #{cnn_forward.5} parent=5 // pred_fallthru
      _
    %p173 = scmp.lt.s32.totalorder %s13, 4
    // Predicated region
    $region25: #{cnn_forward.5} parent=5 // pred_check
      %p174 = pneg %p173
    $region26: #{cnn_forward.5} parent=5 // pred_check_branch
      %176 = sbr.rel (%p174) target = $region28
    $region27: #{cnn_forward.5} parent=5 // pred_region
      // Predicated region
      $region29: #{cnn_forward.5} parent=27 // pred_check
        %p177 = pneg %p33
      $region30: #{cnn_forward.5} parent=27 // pred_check_branch
        %179 = sbr.rel (%p177) target = $region32
      $region31: #{cnn_forward.5} parent=27 // pred_region
        %s180 = smul.u32 2, %s13
        %p181 = scmp.lt.s32.totalorder %s180, 7
        %s182 = scalar_select %p181, %s180, 7
        %s183 = scalar_lea.vmem %s0, %s182
        %s184 = smul.u32 2, %s13
      $region32: #{cnn_forward.5} parent=27 // pred_fallthru
        _
      // Predicated region
      $region33: #{cnn_forward.5} parent=27 // pred_check
        %p185 = pneg %p59
      $region34: #{cnn_forward.5} parent=27 // pred_check_branch
        %187 = sbr.rel (%p185) target = $region36
      $region35: #{cnn_forward.5} parent=27 // pred_region
        %s188 = smul.u32 32, %s13
        %p189 = scmp.lt.s32.totalorder %s188, 127
        %s190 = scalar_select %p189, %s188, 127
        %s191 = smul.addr %s190, 4
        %s192 = scalar_lea.vmem %s1, %s191
        %s193 = smul.u32 32, %s13
      $region36: #{cnn_forward.5} parent=27 // pred_fallthru
        _
    $region28: #{cnn_forward.5} parent=5 // pred_fallthru
      _
    %p194 = scmp.le.s32.totalorder 1, %s13
    %p195 = scmp.lt.s32.totalorder %s13, 5
    %p196 = pnand %p194, %p195
    %p197 = pneg %p196
    // Predicated region
    $region37: #{cnn_forward.5} parent=5 // pred_check
      _
    $region38: #{cnn_forward.5} parent=5 // pred_check_branch
      %199 = sbr.rel (%p196) target = $region40
    $region39: #{cnn_forward.5} parent=5 // pred_region
      %s200 = ssub.s32 %s13, 1
      %s201 = smul.u32 2, %s18
      %p202 = scmp.lt.s32.totalorder %s201, 7
      %s203 = scalar_select %p202, %s201, 7
      %s204 = scalar_lea.vmem %s0, %s203
      %p205 = pneg %p39
      %p206 = pneg %p36
      %s207 = smul.u32 32, %s18
      %p208 = scmp.lt.s32.totalorder %s207, 127
      %s209 = scalar_select %p208, %s207, 127
      %s210 = smul.addr %s209, 4
      %s211 = scalar_lea.vmem %s1, %s210
      %p212 = pneg %p65
      %p213 = pneg %p62
      %p214 = pneg %p86
      %p215 = pneg %p83
      %p216 = pneg %p107
      %p217 = pneg %p104
      %p218 = pneg %p128
      %p219 = pneg %p125
      %p220 = pneg %p149
      %p221 = pneg %p146
      %s222 = smul.u32 2, %s18
      %p223 = scmp.lt.s32.totalorder %s222, 7
      %s224 = scalar_select %p223, %s222, 7
      %s225 = scalar_lea.vmem %s0, %s224
      %s226 = smul.u32 2, %s18
      %s227 = smul.u32 32, %s18
      %p228 = scmp.lt.s32.totalorder %s227, 127
      %s229 = scalar_select %p228, %s227, 127
      %s230 = smul.addr %s229, 4
      %s231 = scalar_lea.vmem %s1, %s230
      %s232 = smul.u32 32, %s18
      %p233 = scmp.eq.s32.totalorder %s18, 0
      // Predicated region
      $region41: #{cnn_forward.5} parent=39 // pred_check
        %p234 = pneg %p233
      $region42: #{cnn_forward.5} parent=39 // pred_check_branch
        %236 = sbr.rel (%p234) target = $region44
      $region43: #{cnn_forward.5} parent=39 // pred_region
        %237 = vst [vmem:[#allocation2] sm:$0x3] 0.0
      $region44: #{cnn_forward.5} parent=39 // pred_fallthru
        _
      %v238 = vld [vmem:[#allocation2] sm:$0x3]
      %v239 = vld [vmem:[%s225] sm:$0x3]
      %v240 = vld [vmem:[%s231] sm:$0xf]
      %v241 = vld [vmem:[%s231 + $0x4] sm:$0xf]
      %v242 = vld [vmem:[%s231 + $0x8] sm:$0xf]
      %v243 = vld [vmem:[%s231 + $0xc] sm:$0xf]
      %v244 = vld [vmem:[%s231 + $0x10] sm:$0xf]
      %v245 = vld [vmem:[%s231 + $0x14] sm:$0xf]
      %v246 = vld [vmem:[%s231 + $0x18] sm:$0xf]
      %v247 = vld [vmem:[%s231 + $0x1c] sm:$0xf]
      %v248 = vld [vmem:[%s231 + $0x20] sm:$0xf]
      %v249 = vld [vmem:[%s231 + $0x24] sm:$0xf]
      %v250 = vld [vmem:[%s231 + $0x28] sm:$0xf]
      %v251 = vld [vmem:[%s231 + $0x2c] sm:$0xf]
      %v252 = vld [vmem:[%s231 + $0x30] sm:$0xf]
      %v253 = vld [vmem:[%s231 + $0x34] sm:$0xf]
      %v254 = vld [vmem:[%s231 + $0x38] sm:$0xf]
      %v255 = vld [vmem:[%s231 + $0x3c] sm:$0xf]
      %v256 = vld [vmem:[%s231 + $0x40] sm:$0xf]
      %v257 = vld [vmem:[%s231 + $0x44] sm:$0xf]
      %v258 = vld [vmem:[%s231 + $0x48] sm:$0xf]
      %v259 = vld [vmem:[%s231 + $0x4c] sm:$0xf]
      %v260 = vld [vmem:[%s231 + $0x50] sm:$0xf]
      %v261 = vld [vmem:[%s231 + $0x54] sm:$0xf]
      %v262 = vld [vmem:[%s231 + $0x58] sm:$0xf]
      %v263 = vld [vmem:[%s231 + $0x5c] sm:$0xf]
      %v264 = vld [vmem:[%s231 + $0x60] sm:$0xf]
      %v265 = vld [vmem:[%s231 + $0x64] sm:$0xf]
      %v266 = vld [vmem:[%s231 + $0x68] sm:$0xf]
      %v267 = vld [vmem:[%s231 + $0x6c] sm:$0xf]
      %v268 = vld [vmem:[%s231 + $0x70] sm:$0xf]
      %v269 = vld [vmem:[%s231 + $0x74] sm:$0xf]
      %v270 = vld [vmem:[%s231 + $0x78] sm:$0xf]
      %v271 = vld [vmem:[%s231 + $0x7c] sm:$0xf]
      %273 = vst [vmem:[#allocation1] ss:$9 sm:$0xff] %v239
      %v274 = vld [vmem:[#allocation1] sm:$0xff]
      %v275 = vld [vmem:[#allocation1 + $0x9] sm:$0xff]
      %v310 = vunpack.c.l.b16 %v240
      %v311 = vunpack.c.l.b16 %v241
      %v312 = vunpack.c.l.b16 %v242
      %v313 = vunpack.c.l.b16 %v243
      %v314 = vunpack.c.l.b16 %v244
      %v315 = vunpack.c.l.b16 %v245
      %v316 = vunpack.c.l.b16 %v246
      %v317 = vunpack.c.l.b16 %v247
      %v318 = vunpack.c.l.b16 %v248
      %v319 = vunpack.c.l.b16 %v249
      %v320 = vunpack.c.l.b16 %v250
      %v321 = vunpack.c.l.b16 %v251
      %v322 = vunpack.c.l.b16 %v252
      %v323 = vunpack.c.l.b16 %v253
      %v324 = vunpack.c.l.b16 %v254
      %v325 = vunpack.c.l.b16 %v255
      %v326 = vunpack.c.l.b16 %v256
      %v327 = vunpack.c.l.b16 %v257
      %v328 = vunpack.c.l.b16 %v258
      %v329 = vunpack.c.l.b16 %v259
      %v330 = vunpack.c.l.b16 %v260
      %v331 = vunpack.c.l.b16 %v261
      %v332 = vunpack.c.l.b16 %v262
      %v333 = vunpack.c.l.b16 %v263
      %v334 = vunpack.c.l.b16 %v264
      %v335 = vunpack.c.l.b16 %v265
      %v336 = vunpack.c.l.b16 %v266
      %v337 = vunpack.c.l.b16 %v267
      %v338 = vunpack.c.l.b16 %v268
      %v339 = vunpack.c.l.b16 %v269
      %v340 = vunpack.c.l.b16 %v270
      %v341 = vunpack.c.l.b16 %v271
      %v342 = vpack.c.b16 %v311, %v310
      %v343 = vpack.c.b16 %v313, %v312
      %v344 = vpack.c.b16 %v315, %v314
      %v345 = vpack.c.b16 %v317, %v316
      %v346 = vpack.c.b16 %v319, %v318
      %v347 = vpack.c.b16 %v321, %v320
      %v348 = vpack.c.b16 %v323, %v322
      %v349 = vpack.c.b16 %v325, %v324
      %v350 = vpack.c.b16 %v327, %v326
      %v351 = vpack.c.b16 %v329, %v328
      %v352 = vpack.c.b16 %v331, %v330
      %v353 = vpack.c.b16 %v333, %v332
      %v354 = vpack.c.b16 %v335, %v334
      %v355 = vpack.c.b16 %v337, %v336
      %v356 = vpack.c.b16 %v339, %v338
      %v357 = vpack.c.b16 %v341, %v340
      %374 = vmatpush.bf16.msra.mxu0 %v349
      %375 = vmatpush.bf16.msra.mxu0 %v348
      %376 = vmatpush.bf16.msra.mxu0 %v347
      %377 = vmatpush.bf16.msra.mxu0 %v346
      %378 = vmatpush.bf16.msra.mxu0 %v345
      %379 = vmatpush.bf16.msra.mxu0 %v344
      %380 = vmatpush.bf16.msra.mxu0 %v343
      %381 = vmatpush.bf16.msra.mxu0 %v342
      %382 = vmatmul.bf16.gmra.mxu0 %v274
      %v383 = vpop.f32.mrf.mxu0
      %v384 = vadd.f32 0.0, %v383
      %v385 = vpop.f32.mrf.mxu0
      %386 = vdwg.mxu0
      %387 = vmatpush.bf16.msra.mxu0 %v357
      %388 = vmatpush.bf16.msra.mxu0 %v356
      %389 = vmatpush.bf16.msra.mxu0 %v355
      %390 = vmatpush.bf16.msra.mxu0 %v354
      %391 = vmatpush.bf16.msra.mxu0 %v353
      %392 = vmatpush.bf16.msra.mxu0 %v352
      %393 = vmatpush.bf16.msra.mxu0 %v351
      %394 = vmatpush.bf16.msra.mxu0 %v350
      %395 = vmatmul.bf16.gmra.mxu0 %v275
      %v396 = vpop.f32.mrf.mxu0
      %v397 = vadd.f32 %v384, %v396
      %v398 = vpop.f32.mrf.mxu0
      %399 = vdwg.mxu0
      %v400 = vadd.f32 %v238, %v397
      %401 = vst [vmem:[#allocation2] sm:$0x3] %v400
      %p402 = scmp.eq.s32.totalorder %s18, 3
      // Predicated region
      $region45: #{cnn_forward.5} parent=39 // pred_check
        %p403 = pneg %p402
      $region46: #{cnn_forward.5} parent=39 // pred_check_branch
        %405 = sbr.rel (%p403) target = $region48
      $region47: #{cnn_forward.5} parent=39 // pred_region
        %v406 = vld [vmem:[#allocation2] sm:$0x3]
        %v407 = vld [vmem:[%s2] sm:$0x1]
        %v409 = vperm.slane %v407, 0
        %v411 = vadd.f32 %v406, %v409
        %v412 = vmax.f32 %v411, 0.0
        %v413 = vld [vmem:[%s3] sm:$0xff]
        %v414 = vld [vmem:[%s3 + $0x8] sm:$0xff]
        %v415 = vld [vmem:[%s3 + $0x10] sm:$0xff]
        %v416 = vld [vmem:[%s3 + $0x18] sm:$0xff]
        %v417 = vld [vmem:[%s3 + $0x20] sm:$0xff]
        %v418 = vld [vmem:[%s3 + $0x28] sm:$0xff]
        %v419 = vld [vmem:[%s3 + $0x30] sm:$0xff]
        %v420 = vld [vmem:[%s3 + $0x38] sm:$0xff]
        %v421 = vld [vmem:[%s3 + $0x40] sm:$0xff]
        %v422 = vld [vmem:[%s3 + $0x48] sm:$0xff]
        %v423 = vld [vmem:[%s3 + $0x50] sm:$0xff]
        %v424 = vld [vmem:[%s3 + $0x58] sm:$0xff]
        %v425 = vld [vmem:[%s3 + $0x60] sm:$0xff]
        %v426 = vld [vmem:[%s3 + $0x68] sm:$0xff]
        %v427 = vld [vmem:[%s3 + $0x70] sm:$0xff]
        %v428 = vld [vmem:[%s3 + $0x78] sm:$0xff]
        %v429 = vld [vmem:[#allocation3] sm:$0x1]
        %v431 = vperm.slane %v429, 0
        %433 = vmatpush.msra.mxu0 %v428
        %434 = vmatpush.msra.mxu0 %v427
        %435 = vmatpush.msra.mxu0 %v426
        %436 = vmatpush.msra.mxu0 %v425
        %437 = vmatpush.msra.mxu0 %v424
        %438 = vmatpush.msra.mxu0 %v423
        %439 = vmatpush.msra.mxu0 %v422
        %440 = vmatpush.msra.mxu0 %v421
        %441 = vmatpush.msra.mxu0 %v420
        %442 = vmatpush.msra.mxu0 %v419
        %443 = vmatpush.msra.mxu0 %v418
        %444 = vmatpush.msra.mxu0 %v417
        %445 = vmatpush.msra.mxu0 %v416
        %446 = vmatpush.msra.mxu0 %v415
        %447 = vmatpush.msra.mxu0 %v414
        %448 = vmatpush.msra.mxu0 %v413
        %449 = vmatmul.f32.gmra.mxu0 %v412
        %v450 = vpop.f32.mrf.mxu0
        %v451 = vadd.f32 %v431, %v450
        %452 = vdwg.mxu0
        %v453 = vsub.f32 0.0, %v451
        %v454 = vmul.f32 %v453, 1.442695
        %v455 = vpow.pop %v454
        %v456 = vadd.f32 %v455, 1.0
        %v457 = vrcp.pop %v456
        %vm458 = vcmask 1024
        %459 = vst.msk [vmem:[%s5] sm:$0x3] %vm458, %v457
      $region48: #{cnn_forward.5} parent=39 // pred_fallthru
        _
      // Predicated region
      $region49: #{cnn_forward.5} parent=39 // pred_check
        %p460 = pneg %p146
      $region50: #{cnn_forward.5} parent=39 // pred_check_branch
        %462 = sbr.rel (%p460) target = $region52
      $region51: #{cnn_forward.5} parent=39 // pred_region
        _
      $region52: #{cnn_forward.5} parent=39 // pred_fallthru
        _
      // Predicated region
      $region53: #{cnn_forward.5} parent=39 // pred_check
        %p463 = pneg %p146
      $region54: #{cnn_forward.5} parent=39 // pred_check_branch
        %465 = sbr.rel (%p463) target = $region56
      $region55: #{cnn_forward.5} parent=39 // pred_region
        _
      $region56: #{cnn_forward.5} parent=39 // pred_fallthru
        _
    $region40: #{cnn_forward.5} parent=5 // pred_fallthru
      _
    %p466 = scmp.le.s32.totalorder 2, %s13
    // Predicated region
    $region57: #{cnn_forward.5} parent=5 // pred_check
      %p467 = pneg %p466
    $region58: #{cnn_forward.5} parent=5 // pred_check_branch
      %469 = sbr.rel (%p467) target = $region60
    $region59: #{cnn_forward.5} parent=5 // pred_region
      %s470 = ssub.s32 %s13, 2
    $region60: #{cnn_forward.5} parent=5 // pred_fallthru
      _
  $region6: #{cnn_forward.5} parent=0 // loop_footer
    %s17 = sadd.s32 1, %s13
  $region7: #{cnn_forward.5} parent=0 // loop_footer_branch
    %12 = sbr.rel target = $region3
  $region8: #{cnn_forward.5} parent=0 // loop_exit
    _

// kernel: cnn_forward.4
$region0: #{cnn_forward.4}
  #allocation0 [shape = 'u32[]', space=smem, size = 0x4, offset = 0x4, fixed_abs, tag = 'smem constant byte address 0x4 - core index']
  #allocation1 [shape = 'u32[72,128]{1,0:T(1,128)}', space=vmem, size = 0x9000, scoped, tag = 'internal scratch']
  #allocation2 [shape = 'f32[78,64]{1,0:T(8,128)}', space=vmem, size = 0xa000, scoped, tag = 'scratch operand']
  %s0 = inlined_call_operand.vmem [shape: f32[2,100,32], index: 0, kind: input, shape index: {}]
  %s1 = inlined_call_operand.vmem [shape: f32[9,32,64], index: 1, kind: input, shape index: {}]
  %s2 = inlined_call_operand.vmem [shape: f32[1,64], index: 2, kind: input, shape index: {}]
  %s3 = inlined_call_operand.vmem [shape: bf16[2,4,4,64], index: 3, kind: output, shape index: {}]
  %s4 = sld [smem:[#allocation0]]
  $region45: #{cnn_forward.4} parent=0
    _
  %s6 = ssub.s32 1, %s4
  %s7 = scalar_select 0, %s6, %s4
  loop: start=0, step=1, limit=4
  $region2: #{cnn_forward.4} parent=0 // loop_pre_header
    _
  $region3: #{cnn_forward.4} parent=0 // loop_header
    %s9 = sphi 0, %s13
    %p10 = scmp.ge.s32.totalorder %s9, 4
    %s19 = sphi 0, %s21
    %s22 = sphi 0, %s19
    %s23 = sphi 0, %s22
    %s39 = sphi 0, %s23
    %s43 = sphi 0, %s43
    %s45 = sphi 0, %s43
    %s46 = sphi 0, %s45
    %s60 = sphi 0, %s46
    %s64 = sphi 0, %s64
    %s66 = sphi 0, %s64
    %s67 = sphi 0, %s66
    %s81 = sphi 0, %s67
    %s87 = sphi 0, %s89
    %s90 = sphi 0, %s87
    %s91 = sphi 0, %s90
    %s107 = sphi 0, %s91
  $region4: #{cnn_forward.4} parent=0 // loop_header_branch
    %12 = sbr.rel (%p10) target = $region8
  $region5: #{cnn_forward.4} parent=0 // loop_body
    %s14 = ssub.s32 %s9, 1
    %s15 = ssub.s32 %s9, 2
    %s16 = sadd.s32 %s9, 1
    %s17 = ssub.s32 %s9, %s16
    %p18 = scmp.eq.s32.totalorder %s17, 0
    %s20 = sadd.s32 %s19, 1
    %s21 = scalar_select %p18, %s19, %s20
    %p24 = pneg %p18
    %p25 = scmp.eq.s32.totalorder %s9, 1
    %p26 = por %p24, %p25
    %p27 = scmp.ne.s32.totalorder %s19, %s22
    %p28 = scmp.eq.s32.totalorder %s9, 0
    %p29 = por %p27, %p28
    %p30 = scmp.ne.s32.totalorder %s19, %s22
    %p31 = scmp.eq.s32.totalorder %s14, 1
    %p32 = por %p30, %p31
    %p33 = scmp.ne.s32.totalorder %s22, %s23
    %p34 = scmp.eq.s32.totalorder %s14, 0
    %p35 = por %p33, %p34
    %p36 = scmp.ne.s32.totalorder %s22, %s23
    %p37 = scmp.eq.s32.totalorder %s15, 1
    %p38 = por %p36, %p37
    %p40 = scmp.ne.s32.totalorder %s23, %s39
    %p41 = scmp.eq.s32.totalorder %s15, 0
    %p42 = por %p40, %p41
    %s44 = sadd.s32 %s43, 1
    %p47 = scmp.eq.s32.totalorder %s9, 1
    %p48 = scmp.ne.s32.totalorder %s43, %s45
    %p49 = scmp.eq.s32.totalorder %s9, 0
    %p50 = por %p48, %p49
    %p51 = scmp.ne.s32.totalorder %s43, %s45
    %p52 = scmp.eq.s32.totalorder %s14, 1
    %p53 = por %p51, %p52
    %p54 = scmp.ne.s32.totalorder %s45, %s46
    %p55 = scmp.eq.s32.totalorder %s14, 0
    %p56 = por %p54, %p55
    %p57 = scmp.ne.s32.totalorder %s45, %s46
    %p58 = scmp.eq.s32.totalorder %s15, 1
    %p59 = por %p57, %p58
    %p61 = scmp.ne.s32.totalorder %s46, %s60
    %p62 = scmp.eq.s32.totalorder %s15, 0
    %p63 = por %p61, %p62
    %s65 = sadd.s32 %s64, 1
    %p68 = scmp.eq.s32.totalorder %s9, 1
    %p69 = scmp.ne.s32.totalorder %s64, %s66
    %p70 = scmp.eq.s32.totalorder %s9, 0
    %p71 = por %p69, %p70
    %p72 = scmp.ne.s32.totalorder %s64, %s66
    %p73 = scmp.eq.s32.totalorder %s14, 1
    %p74 = por %p72, %p73
    %p75 = scmp.ne.s32.totalorder %s66, %s67
    %p76 = scmp.eq.s32.totalorder %s14, 0
    %p77 = por %p75, %p76
    %p78 = scmp.ne.s32.totalorder %s66, %s67
    %p79 = scmp.eq.s32.totalorder %s15, 1
    %p80 = por %p78, %p79
    %p82 = scmp.ne.s32.totalorder %s67, %s81
    %p83 = scmp.eq.s32.totalorder %s15, 0
    %p84 = por %p82, %p83
    %s85 = ssub.s32 %s9, %s16
    %p86 = scmp.eq.s32.totalorder %s85, 0
    %s88 = sadd.s32 %s87, 1
    %s89 = scalar_select %p86, %s87, %s88
    %p92 = pneg %p86
    %p93 = scmp.eq.s32.totalorder %s9, 1
    %p94 = por %p92, %p93
    %p95 = scmp.ne.s32.totalorder %s87, %s90
    %p96 = scmp.eq.s32.totalorder %s9, 0
    %p97 = por %p95, %p96
    %p98 = scmp.ne.s32.totalorder %s87, %s90
    %p99 = scmp.eq.s32.totalorder %s14, 1
    %p100 = por %p98, %p99
    %p101 = scmp.ne.s32.totalorder %s90, %s91
    %p102 = scmp.eq.s32.totalorder %s14, 0
    %p103 = por %p101, %p102
    %p104 = scmp.ne.s32.totalorder %s90, %s91
    %p105 = scmp.eq.s32.totalorder %s15, 1
    %p106 = por %p104, %p105
    %p108 = scmp.ne.s32.totalorder %s91, %s107
    %p109 = scmp.eq.s32.totalorder %s15, 0
    %p110 = por %p108, %p109
    %p111 = scmp.le.s32.totalorder 1, %s9
    %p112 = scmp.lt.s32.totalorder %s9, 3
    %p113 = pnand %p111, %p112
    %p114 = pneg %p113
    // Predicated region
    $region9: #{cnn_forward.4} parent=5 // pred_check
      _
    $region10: #{cnn_forward.4} parent=5 // pred_check_branch
      %116 = sbr.rel (%p113) target = $region12
    $region11: #{cnn_forward.4} parent=5 // pred_region
      %s117 = ssub.s32 %s9, 1
      // Predicated region
      $region13: #{cnn_forward.4} parent=11 // pred_check
        %p118 = pneg %p56
      $region14: #{cnn_forward.4} parent=11 // pred_check_branch
        %120 = sbr.rel (%p118) target = $region16
      $region15: #{cnn_forward.4} parent=11 // pred_region
        _
      $region16: #{cnn_forward.4} parent=11 // pred_fallthru
        _
      // Predicated region
      $region17: #{cnn_forward.4} parent=11 // pred_check
        %p121 = pneg %p77
      $region18: #{cnn_forward.4} parent=11 // pred_check_branch
        %123 = sbr.rel (%p121) target = $region20
      $region19: #{cnn_forward.4} parent=11 // pred_region
        _
      $region20: #{cnn_forward.4} parent=11 // pred_fallthru
        _
    $region12: #{cnn_forward.4} parent=5 // pred_fallthru
      _
    %p124 = scmp.lt.s32.totalorder %s9, 2
    // Predicated region
    $region21: #{cnn_forward.4} parent=5 // pred_check
      %p125 = pneg %p124
    $region22: #{cnn_forward.4} parent=5 // pred_check_branch
      %127 = sbr.rel (%p125) target = $region24
    $region23: #{cnn_forward.4} parent=5 // pred_region
      // Predicated region
      $region25: #{cnn_forward.4} parent=23 // pred_check
        %p128 = pneg %p29
      $region26: #{cnn_forward.4} parent=23 // pred_check_branch
        %130 = sbr.rel (%p128) target = $region28
      $region27: #{cnn_forward.4} parent=23 // pred_region
        %p131 = scmp.lt.s32.totalorder %s9, 1
        %s132 = scalar_select %p131, %s9, 1
        %s133 = smul.addr %s132, 13
        %s134 = smul.addr %s133, 8
        %s135 = scalar_lea.vmem %s0, %s134
      $region28: #{cnn_forward.4} parent=23 // pred_fallthru
        _
    $region24: #{cnn_forward.4} parent=5 // pred_fallthru
      _
    %p136 = scmp.le.s32.totalorder 1, %s9
    %p137 = scmp.lt.s32.totalorder %s9, 3
    %p138 = pnand %p136, %p137
    %p139 = pneg %p138
    // Predicated region
    $region29: #{cnn_forward.4} parent=5 // pred_check
      _
    $region30: #{cnn_forward.4} parent=5 // pred_check_branch
      %141 = sbr.rel (%p138) target = $region32
    $region31: #{cnn_forward.4} parent=5 // pred_region
      %s142 = ssub.s32 %s9, 1
      %p143 = scmp.lt.s32.totalorder %s14, 1
      %s144 = scalar_select %p143, %s14, 1
      %s145 = smul.addr %s144, 13
      %s146 = smul.addr %s145, 8
      %s147 = scalar_lea.vmem %s0, %s146
      %p148 = pneg %p35
      %p149 = pneg %p32
      %p150 = pneg %p56
      %p151 = pneg %p53
      %p152 = pneg %p77
      %p153 = pneg %p74
      %p154 = pneg %p103
      %p155 = pneg %p100
      %p156 = scmp.lt.s32.totalorder %s14, 1
      %s157 = scalar_select %p156, %s14, 1
      %s158 = smul.addr %s157, 4
      %s159 = smul.addr %s158, 2
      %s160 = scalar_lea.vmem %s3, %s159
      %p161 = scmp.lt.s32.totalorder %s14, 1
      %s162 = scalar_select %p161, %s14, 1
      %s163 = smul.addr %s162, 13
      %s164 = smul.addr %s163, 8
      %s165 = scalar_lea.vmem %s0, %s164
      %p166 = scmp.lt.s32.totalorder %s14, 1
      %s167 = scalar_select %p166, %s14, 1
      %s168 = smul.addr %s167, 4
      %s169 = smul.addr %s168, 2
      %s170 = scalar_lea.vmem %s3, %s169
      %v171 = vld [vmem:[%s165] sm:$0xff]
      %v172 = vld [vmem:[%s165 + $0x8] sm:$0xff]
      %v173 = vld [vmem:[%s165 + $0x10] sm:$0xff]
      %v174 = vld [vmem:[%s165 + $0x18] sm:$0xff]
      %v175 = vld [vmem:[%s165 + $0x20] sm:$0xff]
      %v176 = vld [vmem:[%s165 + $0x28] sm:$0xff]
      %v177 = vld [vmem:[%s165 + $0x30] sm:$0xff]
      %v178 = vld [vmem:[%s165 + $0x38] sm:$0xff]
      %v179 = vld [vmem:[%s165 + $0x40] sm:$0xff]
      %v180 = vld [vmem:[%s165 + $0x48] sm:$0x3f]
      %v181 = vld [vmem:[%s1] sm:$0xff]
      %v182 = vld [vmem:[%s1 + $0x8] sm:$0xff]
      %v183 = vld [vmem:[%s1 + $0x10] sm:$0xff]
      %v184 = vld [vmem:[%s1 + $0x18] sm:$0xff]
      %v185 = vld [vmem:[%s165 + $0x1] sm:$0xff]
      %v186 = vld [vmem:[%s165 + $0x9] sm:$0xff]
      %v187 = vld [vmem:[%s165 + $0x11] sm:$0xff]
      %v188 = vld [vmem:[%s165 + $0x19] sm:$0xff]
      %v189 = vld [vmem:[%s165 + $0x21] sm:$0xff]
      %v190 = vld [vmem:[%s165 + $0x29] sm:$0xff]
      %v191 = vld [vmem:[%s165 + $0x31] sm:$0xff]
      %v192 = vld [vmem:[%s165 + $0x39] sm:$0xff]
      %v193 = vld [vmem:[%s165 + $0x41] sm:$0xff]
      %v194 = vld [vmem:[%s165 + $0x49] sm:$0x3f]
      %s195 = scalar_lea.vmem %s1, 32
      %v196 = vld [vmem:[%s195] sm:$0xff]
      %v197 = vld [vmem:[%s195 + $0x8] sm:$0xff]
      %v198 = vld [vmem:[%s195 + $0x10] sm:$0xff]
      %v199 = vld [vmem:[%s195 + $0x18] sm:$0xff]
      %vm200 = vcmask 261120
      %v202 = vsel %vm200, %v185, 0
      %v205 = vsel %vm200, %v186, 0
      %v208 = vsel %vm200, %v187, 0
      %v211 = vsel %vm200, %v188, 0
      %v214 = vsel %vm200, %v189, 0
      %v217 = vsel %vm200, %v190, 0
      %v220 = vsel %vm200, %v191, 0
      %v223 = vsel %vm200, %v192, 0
      %v226 = vsel %vm200, %v193, 0
      %v229 = vsel %vm200, %v194, 0
      %231 = vmatpush.msra.mxu0 0.0
      %232 = vmatpush.msra.mxu0 0.0
      %233 = vmatpush.msra.mxu0 0.0
      %234 = vmatpush.msra.mxu0 0.0
      %235 = vmatpush.msra.mxu0 0.0
      %236 = vmatpush.msra.mxu0 0.0
      %237 = vmatpush.msra.mxu0 0.0
      %238 = vmatpush.msra.mxu0 0.0
      %239 = vmatpush.msra.mxu0 0.0
      %240 = vmatpush.msra.mxu0 0.0
      %241 = vmatpush.msra.mxu0 0.0
      %242 = vmatpush.msra.mxu0 0.0
      %243 = vmatpush.msra.mxu0 %v199
      %244 = vmatpush.msra.mxu0 %v198
      %245 = vmatpush.msra.mxu0 %v197
      %246 = vmatpush.msra.mxu0 %v196
      %247 = vmatmul.f32.gmra.mxu0 %v202
      %v248 = vpop.f32.mrf.mxu0
      %v249 = vadd.f32 0.0, %v248
      %250 = vmatmul.f32.gmra.mxu0 %v205
      %v251 = vpop.f32.mrf.mxu0
      %v252 = vadd.f32 0.0, %v251
      %253 = vmatmul.f32.gmra.mxu0 %v208
      %v254 = vpop.f32.mrf.mxu0
      %v255 = vadd.f32 0.0, %v254
      %256 = vmatmul.f32.gmra.mxu0 %v211
      %v257 = vpop.f32.mrf.mxu0
      %v258 = vadd.f32 0.0, %v257
      %259 = vmatmul.f32.gmra.mxu0 %v214
      %v260 = vpop.f32.mrf.mxu0
      %v261 = vadd.f32 0.0, %v260
      %262 = vmatmul.f32.gmra.mxu0 %v217
      %v263 = vpop.f32.mrf.mxu0
      %v264 = vadd.f32 0.0, %v263
      %265 = vmatmul.f32.gmra.mxu0 %v220
      %v266 = vpop.f32.mrf.mxu0
      %v267 = vadd.f32 0.0, %v266
      %268 = vmatmul.f32.gmra.mxu0 %v223
      %v269 = vpop.f32.mrf.mxu0
      %v270 = vadd.f32 0.0, %v269
      %271 = vmatmul.f32.gmra.mxu0 %v226
      %v272 = vpop.f32.mrf.mxu0
      %v273 = vadd.f32 0.0, %v272
      %274 = vmatmul.f32.gmra.mxu0 %v229
      %v275 = vpop.f32.mrf.mxu0
      %v276 = vadd.f32 0.0, %v275
      %277 = vdwg.mxu0
      %v279 = vsel %vm200, %v171, 0
      %v282 = vsel %vm200, %v172, 0
      %v285 = vsel %vm200, %v173, 0
      %v288 = vsel %vm200, %v174, 0
      %v291 = vsel %vm200, %v175, 0
      %v294 = vsel %vm200, %v176, 0
      %v297 = vsel %vm200, %v177, 0
      %v300 = vsel %vm200, %v178, 0
      %v303 = vsel %vm200, %v179, 0
      %v306 = vsel %vm200, %v180, 0
      %308 = vmatpush.msra.mxu0 0.0
      %309 = vmatpush.msra.mxu0 0.0
      %310 = vmatpush.msra.mxu0 0.0
      %311 = vmatpush.msra.mxu0 0.0
      %312 = vmatpush.msra.mxu0 0.0
      %313 = vmatpush.msra.mxu0 0.0
      %314 = vmatpush.msra.mxu0 0.0
      %315 = vmatpush.msra.mxu0 0.0
      %316 = vmatpush.msra.mxu0 0.0
      %317 = vmatpush.msra.mxu0 0.0
      %318 = vmatpush.msra.mxu0 0.0
      %319 = vmatpush.msra.mxu0 0.0
      %320 = vmatpush.msra.mxu0 %v184
      %321 = vmatpush.msra.mxu0 %v183
      %322 = vmatpush.msra.mxu0 %v182
      %323 = vmatpush.msra.mxu0 %v181
      %324 = vmatmul.f32.gmra.mxu0 %v279
      %v325 = vpop.f32.mrf.mxu0
      %v326 = vadd.f32 %v249, %v325
      %327 = vmatmul.f32.gmra.mxu0 %v282
      %v328 = vpop.f32.mrf.mxu0
      %v329 = vadd.f32 %v252, %v328
      %330 = vmatmul.f32.gmra.mxu0 %v285
      %v331 = vpop.f32.mrf.mxu0
      %v332 = vadd.f32 %v255, %v331
      %333 = vmatmul.f32.gmra.mxu0 %v288
      %v334 = vpop.f32.mrf.mxu0
      %v335 = vadd.f32 %v258, %v334
      %336 = vmatmul.f32.gmra.mxu0 %v291
      %v337 = vpop.f32.mrf.mxu0
      %v338 = vadd.f32 %v261, %v337
      %339 = vmatmul.f32.gmra.mxu0 %v294
      %v340 = vpop.f32.mrf.mxu0
      %v341 = vadd.f32 %v264, %v340
      %342 = vmatmul.f32.gmra.mxu0 %v297
      %v343 = vpop.f32.mrf.mxu0
      %v344 = vadd.f32 %v267, %v343
      %345 = vmatmul.f32.gmra.mxu0 %v300
      %v346 = vpop.f32.mrf.mxu0
      %v347 = vadd.f32 %v270, %v346
      %348 = vmatmul.f32.gmra.mxu0 %v303
      %v349 = vpop.f32.mrf.mxu0
      %v350 = vadd.f32 %v273, %v349
      %351 = vmatmul.f32.gmra.mxu0 %v306
      %v352 = vpop.f32.mrf.mxu0
      %v353 = vadd.f32 %v276, %v352
      %354 = vdwg.mxu0
      %v355 = vld [vmem:[%s165 + $0x2] sm:$0xff]
      %v356 = vld [vmem:[%s165 + $0xa] sm:$0xff]
      %v357 = vld [vmem:[%s165 + $0x12] sm:$0xff]
      %v358 = vld [vmem:[%s165 + $0x1a] sm:$0xff]
      %v359 = vld [vmem:[%s165 + $0x22] sm:$0xff]
      %v360 = vld [vmem:[%s165 + $0x2a] sm:$0xff]
      %v361 = vld [vmem:[%s165 + $0x32] sm:$0xff]
      %v362 = vld [vmem:[%s165 + $0x3a] sm:$0xff]
      %v363 = vld [vmem:[%s165 + $0x42] sm:$0xff]
      %v364 = vld [vmem:[%s165 + $0x4a] sm:$0x3f]
      %s365 = scalar_lea.vmem %s1, 64
      %v366 = vld [vmem:[%s365] sm:$0xff]
      %v367 = vld [vmem:[%s365 + $0x8] sm:$0xff]
      %v368 = vld [vmem:[%s365 + $0x10] sm:$0xff]
      %v369 = vld [vmem:[%s365 + $0x18] sm:$0xff]
      %v371 = vsel %vm200, %v355, 0
      %v374 = vsel %vm200, %v356, 0
      %v377 = vsel %vm200, %v357, 0
      %v380 = vsel %vm200, %v358, 0
      %v383 = vsel %vm200, %v359, 0
      %v386 = vsel %vm200, %v360, 0
      %v389 = vsel %vm200, %v361, 0
      %v392 = vsel %vm200, %v362, 0
      %v395 = vsel %vm200, %v363, 0
      %v398 = vsel %vm200, %v364, 0
      %400 = vmatpush.msra.mxu0 0.0
      %401 = vmatpush.msra.mxu0 0.0
      %402 = vmatpush.msra.mxu0 0.0
      %403 = vmatpush.msra.mxu0 0.0
      %404 = vmatpush.msra.mxu0 0.0
      %405 = vmatpush.msra.mxu0 0.0
      %406 = vmatpush.msra.mxu0 0.0
      %407 = vmatpush.msra.mxu0 0.0
      %408 = vmatpush.msra.mxu0 0.0
      %409 = vmatpush.msra.mxu0 0.0
      %410 = vmatpush.msra.mxu0 0.0
      %411 = vmatpush.msra.mxu0 0.0
      %412 = vmatpush.msra.mxu0 %v369
      %413 = vmatpush.msra.mxu0 %v368
      %414 = vmatpush.msra.mxu0 %v367
      %415 = vmatpush.msra.mxu0 %v366
      %416 = vmatmul.f32.gmra.mxu0 %v371
      %v417 = vpop.f32.mrf.mxu0
      %v418 = vadd.f32 0.0, %v417
      %419 = vmatmul.f32.gmra.mxu0 %v374
      %v420 = vpop.f32.mrf.mxu0
      %v421 = vadd.f32 0.0, %v420
      %422 = vmatmul.f32.gmra.mxu0 %v377
      %v423 = vpop.f32.mrf.mxu0
      %v424 = vadd.f32 0.0, %v423
      %425 = vmatmul.f32.gmra.mxu0 %v380
      %v426 = vpop.f32.mrf.mxu0
      %v427 = vadd.f32 0.0, %v426
      %428 = vmatmul.f32.gmra.mxu0 %v383
      %v429 = vpop.f32.mrf.mxu0
      %v430 = vadd.f32 0.0, %v429
      %431 = vmatmul.f32.gmra.mxu0 %v386
      %v432 = vpop.f32.mrf.mxu0
      %v433 = vadd.f32 0.0, %v432
      %434 = vmatmul.f32.gmra.mxu0 %v389
      %v435 = vpop.f32.mrf.mxu0
      %v436 = vadd.f32 0.0, %v435
      %437 = vmatmul.f32.gmra.mxu0 %v392
      %v438 = vpop.f32.mrf.mxu0
      %v439 = vadd.f32 0.0, %v438
      %440 = vmatmul.f32.gmra.mxu0 %v395
      %v441 = vpop.f32.mrf.mxu0
      %v442 = vadd.f32 0.0, %v441
      %443 = vmatmul.f32.gmra.mxu0 %v398
      %v444 = vpop.f32.mrf.mxu0
      %v445 = vadd.f32 0.0, %v444
      %446 = vdwg.mxu0
      %v447 = vadd.f32 %v326, %v418
      %v448 = vadd.f32 %v329, %v421
      %v449 = vadd.f32 %v332, %v424
      %v450 = vadd.f32 %v335, %v427
      %v451 = vadd.f32 %v338, %v430
      %v452 = vadd.f32 %v341, %v433
      %v453 = vadd.f32 %v344, %v436
      %v454 = vadd.f32 %v347, %v439
      %v455 = vadd.f32 %v350, %v442
      %v456 = vadd.f32 %v353, %v445
      %v457 = vld [vmem:[%s165 + $0xa] sm:$0xff]
      %v458 = vld [vmem:[%s165 + $0x12] sm:$0xff]
      %v459 = vld [vmem:[%s165 + $0x1a] sm:$0xff]
      %v460 = vld [vmem:[%s165 + $0x22] sm:$0xff]
      %v461 = vld [vmem:[%s165 + $0x2a] sm:$0xff]
      %v462 = vld [vmem:[%s165 + $0x32] sm:$0xff]
      %v463 = vld [vmem:[%s165 + $0x3a] sm:$0xff]
      %v464 = vld [vmem:[%s165 + $0x42] sm:$0xff]
      %v465 = vld [vmem:[%s165 + $0x4a] sm:$0xff]
      %v466 = vld [vmem:[%s165 + $0x52] sm:$0x3f]
      %s467 = scalar_lea.vmem %s1, 96
      %v468 = vld [vmem:[%s467] sm:$0xff]
      %v469 = vld [vmem:[%s467 + $0x8] sm:$0xff]
      %v470 = vld [vmem:[%s467 + $0x10] sm:$0xff]
      %v471 = vld [vmem:[%s467 + $0x18] sm:$0xff]
      %v473 = vsel %vm200, %v457, 0
      %v476 = vsel %vm200, %v458, 0
      %v479 = vsel %vm200, %v459, 0
      %v482 = vsel %vm200, %v460, 0
      %v485 = vsel %vm200, %v461, 0
      %v488 = vsel %vm200, %v462, 0
      %v491 = vsel %vm200, %v463, 0
      %v494 = vsel %vm200, %v464, 0
      %v497 = vsel %vm200, %v465, 0
      %v500 = vsel %vm200, %v466, 0
      %502 = vmatpush.msra.mxu0 0.0
      %503 = vmatpush.msra.mxu0 0.0
      %504 = vmatpush.msra.mxu0 0.0
      %505 = vmatpush.msra.mxu0 0.0
      %506 = vmatpush.msra.mxu0 0.0
      %507 = vmatpush.msra.mxu0 0.0
      %508 = vmatpush.msra.mxu0 0.0
      %509 = vmatpush.msra.mxu0 0.0
      %510 = vmatpush.msra.mxu0 0.0
      %511 = vmatpush.msra.mxu0 0.0
      %512 = vmatpush.msra.mxu0 0.0
      %513 = vmatpush.msra.mxu0 0.0
      %514 = vmatpush.msra.mxu0 %v471
      %515 = vmatpush.msra.mxu0 %v470
      %516 = vmatpush.msra.mxu0 %v469
      %517 = vmatpush.msra.mxu0 %v468
      %518 = vmatmul.f32.gmra.mxu0 %v473
      %v519 = vpop.f32.mrf.mxu0
      %v520 = vadd.f32 0.0, %v519
      %521 = vmatmul.f32.gmra.mxu0 %v476
      %v522 = vpop.f32.mrf.mxu0
      %v523 = vadd.f32 0.0, %v522
      %524 = vmatmul.f32.gmra.mxu0 %v479
      %v525 = vpop.f32.mrf.mxu0
      %v526 = vadd.f32 0.0, %v525
      %527 = vmatmul.f32.gmra.mxu0 %v482
      %v528 = vpop.f32.mrf.mxu0
      %v529 = vadd.f32 0.0, %v528
      %530 = vmatmul.f32.gmra.mxu0 %v485
      %v531 = vpop.f32.mrf.mxu0
      %v532 = vadd.f32 0.0, %v531
      %533 = vmatmul.f32.gmra.mxu0 %v488
      %v534 = vpop.f32.mrf.mxu0
      %v535 = vadd.f32 0.0, %v534
      %536 = vmatmul.f32.gmra.mxu0 %v491
      %v537 = vpop.f32.mrf.mxu0
      %v538 = vadd.f32 0.0, %v537
      %539 = vmatmul.f32.gmra.mxu0 %v494
      %v540 = vpop.f32.mrf.mxu0
      %v541 = vadd.f32 0.0, %v540
      %542 = vmatmul.f32.gmra.mxu0 %v497
      %v543 = vpop.f32.mrf.mxu0
      %v544 = vadd.f32 0.0, %v543
      %545 = vmatmul.f32.gmra.mxu0 %v500
      %v546 = vpop.f32.mrf.mxu0
      %v547 = vadd.f32 0.0, %v546
      %548 = vdwg.mxu0
      %v549 = vadd.f32 %v447, %v520
      %v550 = vadd.f32 %v448, %v523
      %v551 = vadd.f32 %v449, %v526
      %v552 = vadd.f32 %v450, %v529
      %v553 = vadd.f32 %v451, %v532
      %v554 = vadd.f32 %v452, %v535
      %v555 = vadd.f32 %v453, %v538
      %v556 = vadd.f32 %v454, %v541
      %v557 = vadd.f32 %v455, %v544
      %v558 = vadd.f32 %v456, %v547
      %v559 = vld [vmem:[%s165 + $0xb] sm:$0xff]
      %v560 = vld [vmem:[%s165 + $0x13] sm:$0xff]
      %v561 = vld [vmem:[%s165 + $0x1b] sm:$0xff]
      %v562 = vld [vmem:[%s165 + $0x23] sm:$0xff]
      %v563 = vld [vmem:[%s165 + $0x2b] sm:$0xff]
      %v564 = vld [vmem:[%s165 + $0x33] sm:$0xff]
      %v565 = vld [vmem:[%s165 + $0x3b] sm:$0xff]
      %v566 = vld [vmem:[%s165 + $0x43] sm:$0xff]
      %v567 = vld [vmem:[%s165 + $0x4b] sm:$0xff]
      %v568 = vld [vmem:[%s165 + $0x53] sm:$0x3f]
      %s569 = scalar_lea.vmem %s1, 128
      %v570 = vld [vmem:[%s569] sm:$0xff]
      %v571 = vld [vmem:[%s569 + $0x8] sm:$0xff]
      %v572 = vld [vmem:[%s569 + $0x10] sm:$0xff]
      %v573 = vld [vmem:[%s569 + $0x18] sm:$0xff]
      %v575 = vsel %vm200, %v559, 0
      %v578 = vsel %vm200, %v560, 0
      %v581 = vsel %vm200, %v561, 0
      %v584 = vsel %vm200, %v562, 0
      %v587 = vsel %vm200, %v563, 0
      %v590 = vsel %vm200, %v564, 0
      %v593 = vsel %vm200, %v565, 0
      %v596 = vsel %vm200, %v566, 0
      %v599 = vsel %vm200, %v567, 0
      %v602 = vsel %vm200, %v568, 0
      %604 = vmatpush.msra.mxu0 0.0
      %605 = vmatpush.msra.mxu0 0.0
      %606 = vmatpush.msra.mxu0 0.0
      %607 = vmatpush.msra.mxu0 0.0
      %608 = vmatpush.msra.mxu0 0.0
      %609 = vmatpush.msra.mxu0 0.0
      %610 = vmatpush.msra.mxu0 0.0
      %611 = vmatpush.msra.mxu0 0.0
      %612 = vmatpush.msra.mxu0 0.0
      %613 = vmatpush.msra.mxu0 0.0
      %614 = vmatpush.msra.mxu0 0.0
      %615 = vmatpush.msra.mxu0 0.0
      %616 = vmatpush.msra.mxu0 %v573
      %617 = vmatpush.msra.mxu0 %v572
      %618 = vmatpush.msra.mxu0 %v571
      %619 = vmatpush.msra.mxu0 %v570
      %620 = vmatmul.f32.gmra.mxu0 %v575
      %v621 = vpop.f32.mrf.mxu0
      %v622 = vadd.f32 0.0, %v621
      %623 = vmatmul.f32.gmra.mxu0 %v578
      %v624 = vpop.f32.mrf.mxu0
      %v625 = vadd.f32 0.0, %v624
      %626 = vmatmul.f32.gmra.mxu0 %v581
      %v627 = vpop.f32.mrf.mxu0
      %v628 = vadd.f32 0.0, %v627
      %629 = vmatmul.f32.gmra.mxu0 %v584
      %v630 = vpop.f32.mrf.mxu0
      %v631 = vadd.f32 0.0, %v630
      %632 = vmatmul.f32.gmra.mxu0 %v587
      %v633 = vpop.f32.mrf.mxu0
      %v634 = vadd.f32 0.0, %v633
      %635 = vmatmul.f32.gmra.mxu0 %v590
      %v636 = vpop.f32.mrf.mxu0
      %v637 = vadd.f32 0.0, %v636
      %638 = vmatmul.f32.gmra.mxu0 %v593
      %v639 = vpop.f32.mrf.mxu0
      %v640 = vadd.f32 0.0, %v639
      %641 = vmatmul.f32.gmra.mxu0 %v596
      %v642 = vpop.f32.mrf.mxu0
      %v643 = vadd.f32 0.0, %v642
      %644 = vmatmul.f32.gmra.mxu0 %v599
      %v645 = vpop.f32.mrf.mxu0
      %v646 = vadd.f32 0.0, %v645
      %647 = vmatmul.f32.gmra.mxu0 %v602
      %v648 = vpop.f32.mrf.mxu0
      %v649 = vadd.f32 0.0, %v648
      %650 = vdwg.mxu0
      %v651 = vadd.f32 %v549, %v622
      %v652 = vadd.f32 %v550, %v625
      %v653 = vadd.f32 %v551, %v628
      %v654 = vadd.f32 %v552, %v631
      %v655 = vadd.f32 %v553, %v634
      %v656 = vadd.f32 %v554, %v637
      %v657 = vadd.f32 %v555, %v640
      %v658 = vadd.f32 %v556, %v643
      %v659 = vadd.f32 %v557, %v646
      %v660 = vadd.f32 %v558, %v649
      %v661 = vld [vmem:[%s165 + $0xc] sm:$0xff]
      %v662 = vld [vmem:[%s165 + $0x14] sm:$0xff]
      %v663 = vld [vmem:[%s165 + $0x1c] sm:$0xff]
      %v664 = vld [vmem:[%s165 + $0x24] sm:$0xff]
      %v665 = vld [vmem:[%s165 + $0x2c] sm:$0xff]
      %v666 = vld [vmem:[%s165 + $0x34] sm:$0xff]
      %v667 = vld [vmem:[%s165 + $0x3c] sm:$0xff]
      %v668 = vld [vmem:[%s165 + $0x44] sm:$0xff]
      %v669 = vld [vmem:[%s165 + $0x4c] sm:$0xff]
      %v670 = vld [vmem:[%s165 + $0x54] sm:$0x3f]
      %s671 = scalar_lea.vmem %s1, 160
      %v672 = vld [vmem:[%s671] sm:$0xff]
      %v673 = vld [vmem:[%s671 + $0x8] sm:$0xff]
      %v674 = vld [vmem:[%s671 + $0x10] sm:$0xff]
      %v675 = vld [vmem:[%s671 + $0x18] sm:$0xff]
      %v677 = vsel %vm200, %v661, 0
      %v680 = vsel %vm200, %v662, 0
      %v683 = vsel %vm200, %v663, 0
      %v686 = vsel %vm200, %v664, 0
      %v689 = vsel %vm200, %v665, 0
      %v692 = vsel %vm200, %v666, 0
      %v695 = vsel %vm200, %v667, 0
      %v698 = vsel %vm200, %v668, 0
      %v701 = vsel %vm200, %v669, 0
      %v704 = vsel %vm200, %v670, 0
      %706 = vmatpush.msra.mxu0 0.0
      %707 = vmatpush.msra.mxu0 0.0
      %708 = vmatpush.msra.mxu0 0.0
      %709 = vmatpush.msra.mxu0 0.0
      %710 = vmatpush.msra.mxu0 0.0
      %711 = vmatpush.msra.mxu0 0.0
      %712 = vmatpush.msra.mxu0 0.0
      %713 = vmatpush.msra.mxu0 0.0
      %714 = vmatpush.msra.mxu0 0.0
      %715 = vmatpush.msra.mxu0 0.0
      %716 = vmatpush.msra.mxu0 0.0
      %717 = vmatpush.msra.mxu0 0.0
      %718 = vmatpush.msra.mxu0 %v675
      %719 = vmatpush.msra.mxu0 %v674
      %720 = vmatpush.msra.mxu0 %v673
      %721 = vmatpush.msra.mxu0 %v672
      %722 = vmatmul.f32.gmra.mxu0 %v677
      %v723 = vpop.f32.mrf.mxu0
      %v724 = vadd.f32 0.0, %v723
      %725 = vmatmul.f32.gmra.mxu0 %v680
      %v726 = vpop.f32.mrf.mxu0
      %v727 = vadd.f32 0.0, %v726
      %728 = vmatmul.f32.gmra.mxu0 %v683
      %v729 = vpop.f32.mrf.mxu0
      %v730 = vadd.f32 0.0, %v729
      %731 = vmatmul.f32.gmra.mxu0 %v686
      %v732 = vpop.f32.mrf.mxu0
      %v733 = vadd.f32 0.0, %v732
      %734 = vmatmul.f32.gmra.mxu0 %v689
      %v735 = vpop.f32.mrf.mxu0
      %v736 = vadd.f32 0.0, %v735
      %737 = vmatmul.f32.gmra.mxu0 %v692
      %v738 = vpop.f32.mrf.mxu0
      %v739 = vadd.f32 0.0, %v738
      %740 = vmatmul.f32.gmra.mxu0 %v695
      %v741 = vpop.f32.mrf.mxu0
      %v742 = vadd.f32 0.0, %v741
      %743 = vmatmul.f32.gmra.mxu0 %v698
      %v744 = vpop.f32.mrf.mxu0
      %v745 = vadd.f32 0.0, %v744
      %746 = vmatmul.f32.gmra.mxu0 %v701
      %v747 = vpop.f32.mrf.mxu0
      %v748 = vadd.f32 0.0, %v747
      %749 = vmatmul.f32.gmra.mxu0 %v704
      %v750 = vpop.f32.mrf.mxu0
      %v751 = vadd.f32 0.0, %v750
      %752 = vdwg.mxu0
      %v753 = vadd.f32 %v651, %v724
      %v754 = vadd.f32 %v652, %v727
      %v755 = vadd.f32 %v653, %v730
      %v756 = vadd.f32 %v654, %v733
      %v757 = vadd.f32 %v655, %v736
      %v758 = vadd.f32 %v656, %v739
      %v759 = vadd.f32 %v657, %v742
      %v760 = vadd.f32 %v658, %v745
      %v761 = vadd.f32 %v659, %v748
      %v762 = vadd.f32 %v660, %v751
      %v763 = vld [vmem:[%s165 + $0x14] sm:$0xff]
      %v764 = vld [vmem:[%s165 + $0x1c] sm:$0xff]
      %v765 = vld [vmem:[%s165 + $0x24] sm:$0xff]
      %v766 = vld [vmem:[%s165 + $0x2c] sm:$0xff]
      %v767 = vld [vmem:[%s165 + $0x34] sm:$0xff]
      %v768 = vld [vmem:[%s165 + $0x3c] sm:$0xff]
      %v769 = vld [vmem:[%s165 + $0x44] sm:$0xff]
      %v770 = vld [vmem:[%s165 + $0x4c] sm:$0xff]
      %v771 = vld [vmem:[%s165 + $0x54] sm:$0xff]
      %v772 = vld [vmem:[%s165 + $0x5c] sm:$0x3f]
      %s773 = scalar_lea.vmem %s1, 192
      %v774 = vld [vmem:[%s773] sm:$0xff]
      %v775 = vld [vmem:[%s773 + $0x8] sm:$0xff]
      %v776 = vld [vmem:[%s773 + $0x10] sm:$0xff]
      %v777 = vld [vmem:[%s773 + $0x18] sm:$0xff]
      %v779 = vsel %vm200, %v763, 0
      %v782 = vsel %vm200, %v764, 0
      %v785 = vsel %vm200, %v765, 0
      %v788 = vsel %vm200, %v766, 0
      %v791 = vsel %vm200, %v767, 0
      %v794 = vsel %vm200, %v768, 0
      %v797 = vsel %vm200, %v769, 0
      %v800 = vsel %vm200, %v770, 0
      %v803 = vsel %vm200, %v771, 0
      %v806 = vsel %vm200, %v772, 0
      %808 = vmatpush.msra.mxu0 0.0
      %809 = vmatpush.msra.mxu0 0.0
      %810 = vmatpush.msra.mxu0 0.0
      %811 = vmatpush.msra.mxu0 0.0
      %812 = vmatpush.msra.mxu0 0.0
      %813 = vmatpush.msra.mxu0 0.0
      %814 = vmatpush.msra.mxu0 0.0
      %815 = vmatpush.msra.mxu0 0.0
      %816 = vmatpush.msra.mxu0 0.0
      %817 = vmatpush.msra.mxu0 0.0
      %818 = vmatpush.msra.mxu0 0.0
      %819 = vmatpush.msra.mxu0 0.0
      %820 = vmatpush.msra.mxu0 %v777
      %821 = vmatpush.msra.mxu0 %v776
      %822 = vmatpush.msra.mxu0 %v775
      %823 = vmatpush.msra.mxu0 %v774
      %824 = vmatmul.f32.gmra.mxu0 %v779
      %v825 = vpop.f32.mrf.mxu0
      %v826 = vadd.f32 0.0, %v825
      %827 = vmatmul.f32.gmra.mxu0 %v782
      %v828 = vpop.f32.mrf.mxu0
      %v829 = vadd.f32 0.0, %v828
      %830 = vmatmul.f32.gmra.mxu0 %v785
      %v831 = vpop.f32.mrf.mxu0
      %v832 = vadd.f32 0.0, %v831
      %833 = vmatmul.f32.gmra.mxu0 %v788
      %v834 = vpop.f32.mrf.mxu0
      %v835 = vadd.f32 0.0, %v834
      %836 = vmatmul.f32.gmra.mxu0 %v791
      %v837 = vpop.f32.mrf.mxu0
      %v838 = vadd.f32 0.0, %v837
      %839 = vmatmul.f32.gmra.mxu0 %v794
      %v840 = vpop.f32.mrf.mxu0
      %v841 = vadd.f32 0.0, %v840
      %842 = vmatmul.f32.gmra.mxu0 %v797
      %v843 = vpop.f32.mrf.mxu0
      %v844 = vadd.f32 0.0, %v843
      %845 = vmatmul.f32.gmra.mxu0 %v800
      %v846 = vpop.f32.mrf.mxu0
      %v847 = vadd.f32 0.0, %v846
      %848 = vmatmul.f32.gmra.mxu0 %v803
      %v849 = vpop.f32.mrf.mxu0
      %v850 = vadd.f32 0.0, %v849
      %851 = vmatmul.f32.gmra.mxu0 %v806
      %v852 = vpop.f32.mrf.mxu0
      %v853 = vadd.f32 0.0, %v852
      %854 = vdwg.mxu0
      %v855 = vadd.f32 %v753, %v826
      %v856 = vadd.f32 %v754, %v829
      %v857 = vadd.f32 %v755, %v832
      %v858 = vadd.f32 %v756, %v835
      %v859 = vadd.f32 %v757, %v838
      %v860 = vadd.f32 %v758, %v841
      %v861 = vadd.f32 %v759, %v844
      %v862 = vadd.f32 %v760, %v847
      %v863 = vadd.f32 %v761, %v850
      %v864 = vadd.f32 %v762, %v853
      %v865 = vld [vmem:[%s165 + $0x15] sm:$0xff]
      %v866 = vld [vmem:[%s165 + $0x1d] sm:$0xff]
      %v867 = vld [vmem:[%s165 + $0x25] sm:$0xff]
      %v868 = vld [vmem:[%s165 + $0x2d] sm:$0xff]
      %v869 = vld [vmem:[%s165 + $0x35] sm:$0xff]
      %v870 = vld [vmem:[%s165 + $0x3d] sm:$0xff]
      %v871 = vld [vmem:[%s165 + $0x45] sm:$0xff]
      %v872 = vld [vmem:[%s165 + $0x4d] sm:$0xff]
      %v873 = vld [vmem:[%s165 + $0x55] sm:$0xff]
      %v874 = vld [vmem:[%s165 + $0x5d] sm:$0x3f]
      %s875 = scalar_lea.vmem %s1, 224
      %v876 = vld [vmem:[%s875] sm:$0xff]
      %v877 = vld [vmem:[%s875 + $0x8] sm:$0xff]
      %v878 = vld [vmem:[%s875 + $0x10] sm:$0xff]
      %v879 = vld [vmem:[%s875 + $0x18] sm:$0xff]
      %v881 = vsel %vm200, %v865, 0
      %v884 = vsel %vm200, %v866, 0
      %v887 = vsel %vm200, %v867, 0
      %v890 = vsel %vm200, %v868, 0
      %v893 = vsel %vm200, %v869, 0
      %v896 = vsel %vm200, %v870, 0
      %v899 = vsel %vm200, %v871, 0
      %v902 = vsel %vm200, %v872, 0
      %v905 = vsel %vm200, %v873, 0
      %v908 = vsel %vm200, %v874, 0
      %910 = vmatpush.msra.mxu0 0.0
      %911 = vmatpush.msra.mxu0 0.0
      %912 = vmatpush.msra.mxu0 0.0
      %913 = vmatpush.msra.mxu0 0.0
      %914 = vmatpush.msra.mxu0 0.0
      %915 = vmatpush.msra.mxu0 0.0
      %916 = vmatpush.msra.mxu0 0.0
      %917 = vmatpush.msra.mxu0 0.0
      %918 = vmatpush.msra.mxu0 0.0
      %919 = vmatpush.msra.mxu0 0.0
      %920 = vmatpush.msra.mxu0 0.0
      %921 = vmatpush.msra.mxu0 0.0
      %922 = vmatpush.msra.mxu0 %v879
      %923 = vmatpush.msra.mxu0 %v878
      %924 = vmatpush.msra.mxu0 %v877
      %925 = vmatpush.msra.mxu0 %v876
      %926 = vmatmul.f32.gmra.mxu0 %v881
      %v927 = vpop.f32.mrf.mxu0
      %v928 = vadd.f32 0.0, %v927
      %929 = vmatmul.f32.gmra.mxu0 %v884
      %v930 = vpop.f32.mrf.mxu0
      %v931 = vadd.f32 0.0, %v930
      %932 = vmatmul.f32.gmra.mxu0 %v887
      %v933 = vpop.f32.mrf.mxu0
      %v934 = vadd.f32 0.0, %v933
      %935 = vmatmul.f32.gmra.mxu0 %v890
      %v936 = vpop.f32.mrf.mxu0
      %v937 = vadd.f32 0.0, %v936
      %938 = vmatmul.f32.gmra.mxu0 %v893
      %v939 = vpop.f32.mrf.mxu0
      %v940 = vadd.f32 0.0, %v939
      %941 = vmatmul.f32.gmra.mxu0 %v896
      %v942 = vpop.f32.mrf.mxu0
      %v943 = vadd.f32 0.0, %v942
      %944 = vmatmul.f32.gmra.mxu0 %v899
      %v945 = vpop.f32.mrf.mxu0
      %v946 = vadd.f32 0.0, %v945
      %947 = vmatmul.f32.gmra.mxu0 %v902
      %v948 = vpop.f32.mrf.mxu0
      %v949 = vadd.f32 0.0, %v948
      %950 = vmatmul.f32.gmra.mxu0 %v905
      %v951 = vpop.f32.mrf.mxu0
      %v952 = vadd.f32 0.0, %v951
      %953 = vmatmul.f32.gmra.mxu0 %v908
      %v954 = vpop.f32.mrf.mxu0
      %v955 = vadd.f32 0.0, %v954
      %956 = vdwg.mxu0
      %v957 = vadd.f32 %v855, %v928
      %v958 = vadd.f32 %v856, %v931
      %v959 = vadd.f32 %v857, %v934
      %v960 = vadd.f32 %v858, %v937
      %v961 = vadd.f32 %v859, %v940
      %v962 = vadd.f32 %v860, %v943
      %v963 = vadd.f32 %v861, %v946
      %v964 = vadd.f32 %v862, %v949
      %v965 = vadd.f32 %v863, %v952
      %v966 = vadd.f32 %v864, %v955
      %v967 = vld [vmem:[%s165 + $0x16] sm:$0xff]
      %v968 = vld [vmem:[%s165 + $0x1e] sm:$0xff]
      %v969 = vld [vmem:[%s165 + $0x26] sm:$0xff]
      %v970 = vld [vmem:[%s165 + $0x2e] sm:$0xff]
      %v971 = vld [vmem:[%s165 + $0x36] sm:$0xff]
      %v972 = vld [vmem:[%s165 + $0x3e] sm:$0xff]
      %v973 = vld [vmem:[%s165 + $0x46] sm:$0xff]
      %v974 = vld [vmem:[%s165 + $0x4e] sm:$0xff]
      %v975 = vld [vmem:[%s165 + $0x56] sm:$0xff]
      %v976 = vld [vmem:[%s165 + $0x5e] sm:$0x3f]
      %s977 = scalar_lea.vmem %s1, 256
      %v978 = vld [vmem:[%s977] sm:$0xff]
      %v979 = vld [vmem:[%s977 + $0x8] sm:$0xff]
      %v980 = vld [vmem:[%s977 + $0x10] sm:$0xff]
      %v981 = vld [vmem:[%s977 + $0x18] sm:$0xff]
      %v983 = vsel %vm200, %v967, 0
      %v986 = vsel %vm200, %v968, 0
      %v989 = vsel %vm200, %v969, 0
      %v992 = vsel %vm200, %v970, 0
      %v995 = vsel %vm200, %v971, 0
      %v998 = vsel %vm200, %v972, 0
      %v1001 = vsel %vm200, %v973, 0
      %v1004 = vsel %vm200, %v974, 0
      %v1007 = vsel %vm200, %v975, 0
      %v1010 = vsel %vm200, %v976, 0
      %1012 = vmatpush.msra.mxu0 0.0
      %1013 = vmatpush.msra.mxu0 0.0
      %1014 = vmatpush.msra.mxu0 0.0
      %1015 = vmatpush.msra.mxu0 0.0
      %1016 = vmatpush.msra.mxu0 0.0
      %1017 = vmatpush.msra.mxu0 0.0
      %1018 = vmatpush.msra.mxu0 0.0
      %1019 = vmatpush.msra.mxu0 0.0
      %1020 = vmatpush.msra.mxu0 0.0
      %1021 = vmatpush.msra.mxu0 0.0
      %1022 = vmatpush.msra.mxu0 0.0
      %1023 = vmatpush.msra.mxu0 0.0
      %1024 = vmatpush.msra.mxu0 %v981
      %1025 = vmatpush.msra.mxu0 %v980
      %1026 = vmatpush.msra.mxu0 %v979
      %1027 = vmatpush.msra.mxu0 %v978
      %1028 = vmatmul.f32.gmra.mxu0 %v983
      %v1029 = vpop.f32.mrf.mxu0
      %v1030 = vadd.f32 0.0, %v1029
      %1031 = vmatmul.f32.gmra.mxu0 %v986
      %v1032 = vpop.f32.mrf.mxu0
      %v1033 = vadd.f32 0.0, %v1032
      %1034 = vmatmul.f32.gmra.mxu0 %v989
      %v1035 = vpop.f32.mrf.mxu0
      %v1036 = vadd.f32 0.0, %v1035
      %1037 = vmatmul.f32.gmra.mxu0 %v992
      %v1038 = vpop.f32.mrf.mxu0
      %v1039 = vadd.f32 0.0, %v1038
      %1040 = vmatmul.f32.gmra.mxu0 %v995
      %v1041 = vpop.f32.mrf.mxu0
      %v1042 = vadd.f32 0.0, %v1041
      %1043 = vmatmul.f32.gmra.mxu0 %v998
      %v1044 = vpop.f32.mrf.mxu0
      %v1045 = vadd.f32 0.0, %v1044
      %1046 = vmatmul.f32.gmra.mxu0 %v1001
      %v1047 = vpop.f32.mrf.mxu0
      %v1048 = vadd.f32 0.0, %v1047
      %1049 = vmatmul.f32.gmra.mxu0 %v1004
      %v1050 = vpop.f32.mrf.mxu0
      %v1051 = vadd.f32 0.0, %v1050
      %1052 = vmatmul.f32.gmra.mxu0 %v1007
      %v1053 = vpop.f32.mrf.mxu0
      %v1054 = vadd.f32 0.0, %v1053
      %1055 = vmatmul.f32.gmra.mxu0 %v1010
      %v1056 = vpop.f32.mrf.mxu0
      %v1057 = vadd.f32 0.0, %v1056
      %1058 = vdwg.mxu0
      %v1059 = vadd.f32 %v957, %v1030
      %v1060 = vadd.f32 %v958, %v1033
      %v1061 = vadd.f32 %v959, %v1036
      %v1062 = vadd.f32 %v960, %v1039
      %v1063 = vadd.f32 %v961, %v1042
      %v1064 = vadd.f32 %v962, %v1045
      %v1065 = vadd.f32 %v963, %v1048
      %v1066 = vadd.f32 %v964, %v1051
      %v1067 = vadd.f32 %v965, %v1054
      %v1068 = vadd.f32 %v966, %v1057
      %v1069 = vld [vmem:[%s2] sm:$0x1]
      %v1071 = vperm.slane %v1069, 0
      %v1073 = vadd.f32 %v1059, %v1071
      %v1074 = vadd.f32 %v1060, %v1071
      %v1075 = vadd.f32 %v1061, %v1071
      %v1076 = vadd.f32 %v1062, %v1071
      %v1077 = vadd.f32 %v1063, %v1071
      %v1078 = vadd.f32 %v1064, %v1071
      %v1079 = vadd.f32 %v1065, %v1071
      %v1080 = vadd.f32 %v1066, %v1071
      %v1081 = vadd.f32 %v1067, %v1071
      %v1082 = vadd.f32 %v1068, %v1071
      %v1083 = vmax.f32 %v1073, 0.0
      %v1084 = vmax.f32 %v1074, 0.0
      %v1085 = vmax.f32 %v1075, 0.0
      %v1086 = vmax.f32 %v1076, 0.0
      %v1087 = vmax.f32 %v1077, 0.0
      %v1088 = vmax.f32 %v1078, 0.0
      %v1089 = vmax.f32 %v1079, 0.0
      %v1090 = vmax.f32 %v1080, 0.0
      %v1091 = vmax.f32 %v1081, 0.0
      %v1092 = vmax.f32 %v1082, 0.0
      %vm1093 = vcmask 523264
      %1094 = vst.msk [vmem:[#allocation2] sm:$0xff] %vm1093, %v1083
      %1095 = vst.msk [vmem:[#allocation2 + $0x8] sm:$0xff] %vm1093, %v1084
      %1096 = vst.msk [vmem:[#allocation2 + $0x10] sm:$0xff] %vm1093, %v1085
      %1097 = vst.msk [vmem:[#allocation2 + $0x18] sm:$0xff] %vm1093, %v1086
      %1098 = vst.msk [vmem:[#allocation2 + $0x20] sm:$0xff] %vm1093, %v1087
      %1099 = vst.msk [vmem:[#allocation2 + $0x28] sm:$0xff] %vm1093, %v1088
      %1100 = vst.msk [vmem:[#allocation2 + $0x30] sm:$0xff] %vm1093, %v1089
      %1101 = vst.msk [vmem:[#allocation2 + $0x38] sm:$0xff] %vm1093, %v1090
      %1102 = vst.msk [vmem:[#allocation2 + $0x40] sm:$0xff] %vm1093, %v1091
      %vm1103 = vcmask 521216
      %1104 = vst.msk [vmem:[#allocation2 + $0x48] sm:$0x3f] %vm1103, %v1092
      %v1105 = vlaneseq
      %v1106 = vand.u32 %v1105, 127
      %v1107 = vlaneseq
      %v1108 = vshrl.u32 %v1107, 7
      %v1109 = vmul.u32 %v1108, 2
      %vm1110 = vcmp.eq.s32.totalorder %v1106, %v1109
      %v1111 = vsel %vm1110, 1, 0
      %v1112 = vcvt.s32.f32 %v1111
      %v1113 = vadd.s32 %v1109, 1
      %vm1114 = vcmp.eq.s32.totalorder %v1106, %v1113
      %v1115 = vsel %vm1114, 1, 0
      %v1116 = vcvt.s32.f32 %v1115
      %v1117 = vld [vmem:[#allocation2] sm:$0xff]
      %v1118 = vld [vmem:[#allocation2 + $0xa] sm:$0xff]
      %v1119 = vmax.f32 %v1117, %v1118
      %vm1120 = vcmask 64512
      %v1122 = vsel %vm1120, %v1112, 0
      %1124 = vmatpush.msra.mxu0 0.0
      %1125 = vmatpush.msra.mxu0 0.0
      %1126 = vmatpush.msra.mxu0 0.0
      %1127 = vmatpush.msra.mxu0 0.0
      %1128 = vmatpush.msra.mxu0 0.0
      %1129 = vmatpush.msra.mxu0 0.0
      %1130 = vmatpush.msra.mxu0 0.0
      %1131 = vmatpush.msra.mxu0 0.0
      %1132 = vmatpush.msra.mxu0 0.0
      %1133 = vmatpush.msra.mxu0 0.0
      %1134 = vmatpush.msra.mxu0 0.0
      %1135 = vmatpush.msra.mxu0 0.0
      %1136 = vmatpush.msra.mxu0 0.0
      %1137 = vmatpush.msra.mxu0 0.0
      %1138 = vmatpush.msra.mxu0 0.0
      %1139 = vmatpush.msra.mxu0 %v1119
      %1140 = vmatmul.f32.gmra.mxu0 %v1122
      %v1141 = vpop.f32.mrf.mxu0
      %v1142 = vadd.f32 0.0, %v1141
      %1143 = vdwg.mxu0
      %v1145 = vsel %vm1120, %v1116, 0
      %1147 = vmatpush.msra.mxu0 0.0
      %1148 = vmatpush.msra.mxu0 0.0
      %1149 = vmatpush.msra.mxu0 0.0
      %1150 = vmatpush.msra.mxu0 0.0
      %1151 = vmatpush.msra.mxu0 0.0
      %1152 = vmatpush.msra.mxu0 0.0
      %1153 = vmatpush.msra.mxu0 0.0
      %1154 = vmatpush.msra.mxu0 0.0
      %1155 = vmatpush.msra.mxu0 0.0
      %1156 = vmatpush.msra.mxu0 0.0
      %1157 = vmatpush.msra.mxu0 0.0
      %1158 = vmatpush.msra.mxu0 0.0
      %1159 = vmatpush.msra.mxu0 0.0
      %1160 = vmatpush.msra.mxu0 0.0
      %1161 = vmatpush.msra.mxu0 0.0
      %1162 = vmatpush.msra.mxu0 %v1119
      %1163 = vmatmul.f32.gmra.mxu0 %v1145
      %v1164 = vpop.f32.mrf.mxu0
      %v1165 = vadd.f32 0.0, %v1164
      %1166 = vdwg.mxu0
      %v1167 = vmax.f32 %v1142, %v1165
      %v1168 = vpack.c.bf16 %v1167, %v1167
      %vm1169 = vcmask 517120
      %1170 = vst.msk [vmem:[%s170] sm:$0x3] %vm1169, %v1168
      %v1171 = vld [vmem:[#allocation2 + $0x14] sm:$0xff]
      %v1172 = vld [vmem:[#allocation2 + $0x1e] sm:$0xff]
      %v1173 = vmax.f32 %v1171, %v1172
      %1174 = vmatpush.msra.mxu0 0.0
      %1175 = vmatpush.msra.mxu0 0.0
      %1176 = vmatpush.msra.mxu0 0.0
      %1177 = vmatpush.msra.mxu0 0.0
      %1178 = vmatpush.msra.mxu0 0.0
      %1179 = vmatpush.msra.mxu0 0.0
      %1180 = vmatpush.msra.mxu0 0.0
      %1181 = vmatpush.msra.mxu0 0.0
      %1182 = vmatpush.msra.mxu0 0.0
      %1183 = vmatpush.msra.mxu0 0.0
      %1184 = vmatpush.msra.mxu0 0.0
      %1185 = vmatpush.msra.mxu0 0.0
      %1186 = vmatpush.msra.mxu0 0.0
      %1187 = vmatpush.msra.mxu0 0.0
      %1188 = vmatpush.msra.mxu0 0.0
      %1189 = vmatpush.msra.mxu0 %v1173
      %1190 = vmatmul.f32.gmra.mxu0 %v1122
      %v1191 = vpop.f32.mrf.mxu0
      %v1192 = vadd.f32 0.0, %v1191
      %1193 = vdwg.mxu0
      %1194 = vmatpush.msra.mxu0 0.0
      %1195 = vmatpush.msra.mxu0 0.0
      %1196 = vmatpush.msra.mxu0 0.0
      %1197 = vmatpush.msra.mxu0 0.0
      %1198 = vmatpush.msra.mxu0 0.0
      %1199 = vmatpush.msra.mxu0 0.0
      %1200 = vmatpush.msra.mxu0 0.0
      %1201 = vmatpush.msra.mxu0 0.0
      %1202 = vmatpush.msra.mxu0 0.0
      %1203 = vmatpush.msra.mxu0 0.0
      %1204 = vmatpush.msra.mxu0 0.0
      %1205 = vmatpush.msra.mxu0 0.0
      %1206 = vmatpush.msra.mxu0 0.0
      %1207 = vmatpush.msra.mxu0 0.0
      %1208 = vmatpush.msra.mxu0 0.0
      %1209 = vmatpush.msra.mxu0 %v1173
      %1210 = vmatmul.f32.gmra.mxu0 %v1145
      %v1211 = vpop.f32.mrf.mxu0
      %v1212 = vadd.f32 0.0, %v1211
      %1213 = vdwg.mxu0
      %v1214 = vmax.f32 %v1192, %v1212
      %v1215 = vpack.c.bf16 %v1214, %v1214
      %s1216 = scalar_lea.vmem %s170, 2
      %1217 = vst.msk [vmem:[%s1216] sm:$0x3] %vm1169, %v1215
      %v1218 = vld [vmem:[#allocation2 + $0x28] sm:$0xff]
      %v1219 = vld [vmem:[#allocation2 + $0x32] sm:$0xff]
      %v1220 = vmax.f32 %v1218, %v1219
      %1221 = vmatpush.msra.mxu0 0.0
      %1222 = vmatpush.msra.mxu0 0.0
      %1223 = vmatpush.msra.mxu0 0.0
      %1224 = vmatpush.msra.mxu0 0.0
      %1225 = vmatpush.msra.mxu0 0.0
      %1226 = vmatpush.msra.mxu0 0.0
      %1227 = vmatpush.msra.mxu0 0.0
      %1228 = vmatpush.msra.mxu0 0.0
      %1229 = vmatpush.msra.mxu0 0.0
      %1230 = vmatpush.msra.mxu0 0.0
      %1231 = vmatpush.msra.mxu0 0.0
      %1232 = vmatpush.msra.mxu0 0.0
      %1233 = vmatpush.msra.mxu0 0.0
      %1234 = vmatpush.msra.mxu0 0.0
      %1235 = vmatpush.msra.mxu0 0.0
      %1236 = vmatpush.msra.mxu0 %v1220
      %1237 = vmatmul.f32.gmra.mxu0 %v1122
      %v1238 = vpop.f32.mrf.mxu0
      %v1239 = vadd.f32 0.0, %v1238
      %1240 = vdwg.mxu0
      %1241 = vmatpush.msra.mxu0 0.0
      %1242 = vmatpush.msra.mxu0 0.0
      %1243 = vmatpush.msra.mxu0 0.0
      %1244 = vmatpush.msra.mxu0 0.0
      %1245 = vmatpush.msra.mxu0 0.0
      %1246 = vmatpush.msra.mxu0 0.0
      %1247 = vmatpush.msra.mxu0 0.0
      %1248 = vmatpush.msra.mxu0 0.0
      %1249 = vmatpush.msra.mxu0 0.0
      %1250 = vmatpush.msra.mxu0 0.0
      %1251 = vmatpush.msra.mxu0 0.0
      %1252 = vmatpush.msra.mxu0 0.0
      %1253 = vmatpush.msra.mxu0 0.0
      %1254 = vmatpush.msra.mxu0 0.0
      %1255 = vmatpush.msra.mxu0 0.0
      %1256 = vmatpush.msra.mxu0 %v1220
      %1257 = vmatmul.f32.gmra.mxu0 %v1145
      %v1258 = vpop.f32.mrf.mxu0
      %v1259 = vadd.f32 0.0, %v1258
      %1260 = vdwg.mxu0
      %v1261 = vmax.f32 %v1239, %v1259
      %v1262 = vpack.c.bf16 %v1261, %v1261
      %s1263 = scalar_lea.vmem %s170, 4
      %1264 = vst.msk [vmem:[%s1263] sm:$0x3] %vm1169, %v1262
      %v1265 = vld [vmem:[#allocation2 + $0x3c] sm:$0xff]
      %v1266 = vld [vmem:[#allocation2 + $0x46] sm:$0xff]
      %v1267 = vmax.f32 %v1265, %v1266
      %1268 = vmatpush.msra.mxu0 0.0
      %1269 = vmatpush.msra.mxu0 0.0
      %1270 = vmatpush.msra.mxu0 0.0
      %1271 = vmatpush.msra.mxu0 0.0
      %1272 = vmatpush.msra.mxu0 0.0
      %1273 = vmatpush.msra.mxu0 0.0
      %1274 = vmatpush.msra.mxu0 0.0
      %1275 = vmatpush.msra.mxu0 0.0
      %1276 = vmatpush.msra.mxu0 0.0
      %1277 = vmatpush.msra.mxu0 0.0
      %1278 = vmatpush.msra.mxu0 0.0
      %1279 = vmatpush.msra.mxu0 0.0
      %1280 = vmatpush.msra.mxu0 0.0
      %1281 = vmatpush.msra.mxu0 0.0
      %1282 = vmatpush.msra.mxu0 0.0
      %1283 = vmatpush.msra.mxu0 %v1267
      %1284 = vmatmul.f32.gmra.mxu0 %v1122
      %v1285 = vpop.f32.mrf.mxu0
      %v1286 = vadd.f32 0.0, %v1285
      %1287 = vdwg.mxu0
      %1288 = vmatpush.msra.mxu0 0.0
      %1289 = vmatpush.msra.mxu0 0.0
      %1290 = vmatpush.msra.mxu0 0.0
      %1291 = vmatpush.msra.mxu0 0.0
      %1292 = vmatpush.msra.mxu0 0.0
      %1293 = vmatpush.msra.mxu0 0.0
      %1294 = vmatpush.msra.mxu0 0.0
      %1295 = vmatpush.msra.mxu0 0.0
      %1296 = vmatpush.msra.mxu0 0.0
      %1297 = vmatpush.msra.mxu0 0.0
      %1298 = vmatpush.msra.mxu0 0.0
      %1299 = vmatpush.msra.mxu0 0.0
      %1300 = vmatpush.msra.mxu0 0.0
      %1301 = vmatpush.msra.mxu0 0.0
      %1302 = vmatpush.msra.mxu0 0.0
      %1303 = vmatpush.msra.mxu0 %v1267
      %1304 = vmatmul.f32.gmra.mxu0 %v1145
      %v1305 = vpop.f32.mrf.mxu0
      %v1306 = vadd.f32 0.0, %v1305
      %1307 = vdwg.mxu0
      %v1308 = vmax.f32 %v1286, %v1306
      %v1309 = vpack.c.bf16 %v1308, %v1308
      %s1310 = scalar_lea.vmem %s170, 6
      %1311 = vst.msk [vmem:[%s1310] sm:$0x3] %vm1169, %v1309
      %p1312 = scmp.lt.s32.totalorder %s14, 1
      %s1313 = scalar_select %p1312, %s14, 1
      %s1314 = smul.addr %s1313, 4
      %s1315 = smul.addr %s1314, 2
      %s1316 = scalar_lea.vmem %s3, %s1315
      // Predicated region
      $region33: #{cnn_forward.4} parent=31 // pred_check
        %p1317 = pneg %p100
      $region34: #{cnn_forward.4} parent=31 // pred_check_branch
        %1319 = sbr.rel (%p1317) target = $region36
      $region35: #{cnn_forward.4} parent=31 // pred_region
        _
      $region36: #{cnn_forward.4} parent=31 // pred_fallthru
        _
    $region32: #{cnn_forward.4} parent=5 // pred_fallthru
      _
    %p1320 = scmp.le.s32.totalorder 2, %s9
    // Predicated region
    $region37: #{cnn_forward.4} parent=5 // pred_check
      %p1321 = pneg %p1320
    $region38: #{cnn_forward.4} parent=5 // pred_check_branch
      %1323 = sbr.rel (%p1321) target = $region40
    $region39: #{cnn_forward.4} parent=5 // pred_region
      %s1324 = ssub.s32 %s9, 2
      // Predicated region
      $region41: #{cnn_forward.4} parent=39 // pred_check
        %p1325 = pneg %p106
      $region42: #{cnn_forward.4} parent=39 // pred_check_branch
        %1327 = sbr.rel (%p1325) target = $region44
      $region43: #{cnn_forward.4} parent=39 // pred_region
        %p1328 = scmp.lt.s32.totalorder %s15, 1
        %s1329 = scalar_select %p1328, %s15, 1
        %s1330 = smul.addr %s1329, 4
        %s1331 = smul.addr %s1330, 2
        %s1332 = scalar_lea.vmem %s3, %s1331
      $region44: #{cnn_forward.4} parent=39 // pred_fallthru
        _
    $region40: #{cnn_forward.4} parent=5 // pred_fallthru
      _
  $region6: #{cnn_forward.4} parent=0 // loop_footer
    %s13 = sadd.s32 1, %s9
  $region7: #{cnn_forward.4} parent=0 // loop_footer_branch
    %8 = sbr.rel target = $region3
  $region8: #{cnn_forward.4} parent=0 // loop_exit
    _

// kernel: cnn_forward.3
$region0: #{cnn_forward.3}
  #allocation0 [shape = 'u32[]', space=smem, size = 0x4, offset = 0x4, fixed_abs, tag = 'smem constant byte address 0x4 - core index']
  #allocation1 [shape = 'u32[72,128]{1,0:T(1,128)}', space=vmem, size = 0x9000, scoped, tag = 'internal scratch']
  #allocation2 [shape = 'f32[438,32]{1,0:T(8,128)}', space=vmem, size = 0x37000, scoped, tag = 'scratch operand']
  %s0 = inlined_call_operand.vmem [shape: f32[2,484,3], index: 0, kind: input, shape index: {}]
  %s1 = inlined_call_operand.vmem [shape: f32[9,3,32], index: 1, kind: input, shape index: {}]
  %s2 = inlined_call_operand.vmem [shape: f32[1,32], index: 2, kind: input, shape index: {}]
  %s3 = inlined_call_operand.vmem [shape: f32[2,10,10,32], index: 3, kind: output, shape index: {}]
  %s4 = sld [smem:[#allocation0]]
  $region45: #{cnn_forward.3} parent=0
    _
  %s6 = ssub.s32 1, %s4
  %s7 = scalar_select 0, %s6, %s4
  loop: start=0, step=1, limit=4
  $region2: #{cnn_forward.3} parent=0 // loop_pre_header
    _
  $region3: #{cnn_forward.3} parent=0 // loop_header
    %s9 = sphi 0, %s13
    %p10 = scmp.ge.s32.totalorder %s9, 4
    %s19 = sphi 0, %s21
    %s22 = sphi 0, %s19
    %s23 = sphi 0, %s22
    %s39 = sphi 0, %s23
    %s43 = sphi 0, %s43
    %s45 = sphi 0, %s43
    %s46 = sphi 0, %s45
    %s60 = sphi 0, %s46
    %s64 = sphi 0, %s64
    %s66 = sphi 0, %s64
    %s67 = sphi 0, %s66
    %s81 = sphi 0, %s67
    %s87 = sphi 0, %s89
    %s90 = sphi 0, %s87
    %s91 = sphi 0, %s90
    %s107 = sphi 0, %s91
  $region4: #{cnn_forward.3} parent=0 // loop_header_branch
    %12 = sbr.rel (%p10) target = $region8
  $region5: #{cnn_forward.3} parent=0 // loop_body
    %s14 = ssub.s32 %s9, 1
    %s15 = ssub.s32 %s9, 2
    %s16 = sadd.s32 %s9, 1
    %s17 = ssub.s32 %s9, %s16
    %p18 = scmp.eq.s32.totalorder %s17, 0
    %s20 = sadd.s32 %s19, 1
    %s21 = scalar_select %p18, %s19, %s20
    %p24 = pneg %p18
    %p25 = scmp.eq.s32.totalorder %s9, 1
    %p26 = por %p24, %p25
    %p27 = scmp.ne.s32.totalorder %s19, %s22
    %p28 = scmp.eq.s32.totalorder %s9, 0
    %p29 = por %p27, %p28
    %p30 = scmp.ne.s32.totalorder %s19, %s22
    %p31 = scmp.eq.s32.totalorder %s14, 1
    %p32 = por %p30, %p31
    %p33 = scmp.ne.s32.totalorder %s22, %s23
    %p34 = scmp.eq.s32.totalorder %s14, 0
    %p35 = por %p33, %p34
    %p36 = scmp.ne.s32.totalorder %s22, %s23
    %p37 = scmp.eq.s32.totalorder %s15, 1
    %p38 = por %p36, %p37
    %p40 = scmp.ne.s32.totalorder %s23, %s39
    %p41 = scmp.eq.s32.totalorder %s15, 0
    %p42 = por %p40, %p41
    %s44 = sadd.s32 %s43, 1
    %p47 = scmp.eq.s32.totalorder %s9, 1
    %p48 = scmp.ne.s32.totalorder %s43, %s45
    %p49 = scmp.eq.s32.totalorder %s9, 0
    %p50 = por %p48, %p49
    %p51 = scmp.ne.s32.totalorder %s43, %s45
    %p52 = scmp.eq.s32.totalorder %s14, 1
    %p53 = por %p51, %p52
    %p54 = scmp.ne.s32.totalorder %s45, %s46
    %p55 = scmp.eq.s32.totalorder %s14, 0
    %p56 = por %p54, %p55
    %p57 = scmp.ne.s32.totalorder %s45, %s46
    %p58 = scmp.eq.s32.totalorder %s15, 1
    %p59 = por %p57, %p58
    %p61 = scmp.ne.s32.totalorder %s46, %s60
    %p62 = scmp.eq.s32.totalorder %s15, 0
    %p63 = por %p61, %p62
    %s65 = sadd.s32 %s64, 1
    %p68 = scmp.eq.s32.totalorder %s9, 1
    %p69 = scmp.ne.s32.totalorder %s64, %s66
    %p70 = scmp.eq.s32.totalorder %s9, 0
    %p71 = por %p69, %p70
    %p72 = scmp.ne.s32.totalorder %s64, %s66
    %p73 = scmp.eq.s32.totalorder %s14, 1
    %p74 = por %p72, %p73
    %p75 = scmp.ne.s32.totalorder %s66, %s67
    %p76 = scmp.eq.s32.totalorder %s14, 0
    %p77 = por %p75, %p76
    %p78 = scmp.ne.s32.totalorder %s66, %s67
    %p79 = scmp.eq.s32.totalorder %s15, 1
    %p80 = por %p78, %p79
    %p82 = scmp.ne.s32.totalorder %s67, %s81
    %p83 = scmp.eq.s32.totalorder %s15, 0
    %p84 = por %p82, %p83
    %s85 = ssub.s32 %s9, %s16
    %p86 = scmp.eq.s32.totalorder %s85, 0
    %s88 = sadd.s32 %s87, 1
    %s89 = scalar_select %p86, %s87, %s88
    %p92 = pneg %p86
    %p93 = scmp.eq.s32.totalorder %s9, 1
    %p94 = por %p92, %p93
    %p95 = scmp.ne.s32.totalorder %s87, %s90
    %p96 = scmp.eq.s32.totalorder %s9, 0
    %p97 = por %p95, %p96
    %p98 = scmp.ne.s32.totalorder %s87, %s90
    %p99 = scmp.eq.s32.totalorder %s14, 1
    %p100 = por %p98, %p99
    %p101 = scmp.ne.s32.totalorder %s90, %s91
    %p102 = scmp.eq.s32.totalorder %s14, 0
    %p103 = por %p101, %p102
    %p104 = scmp.ne.s32.totalorder %s90, %s91
    %p105 = scmp.eq.s32.totalorder %s15, 1
    %p106 = por %p104, %p105
    %p108 = scmp.ne.s32.totalorder %s91, %s107
    %p109 = scmp.eq.s32.totalorder %s15, 0
    %p110 = por %p108, %p109
    %p111 = scmp.le.s32.totalorder 1, %s9
    %p112 = scmp.lt.s32.totalorder %s9, 3
    %p113 = pnand %p111, %p112
    %p114 = pneg %p113
    // Predicated region
    $region9: #{cnn_forward.3} parent=5 // pred_check
      _
    $region10: #{cnn_forward.3} parent=5 // pred_check_branch
      %116 = sbr.rel (%p113) target = $region12
    $region11: #{cnn_forward.3} parent=5 // pred_region
      %s117 = ssub.s32 %s9, 1
      // Predicated region
      $region13: #{cnn_forward.3} parent=11 // pred_check
        %p118 = pneg %p56
      $region14: #{cnn_forward.3} parent=11 // pred_check_branch
        %120 = sbr.rel (%p118) target = $region16
      $region15: #{cnn_forward.3} parent=11 // pred_region
        _
      $region16: #{cnn_forward.3} parent=11 // pred_fallthru
        _
      // Predicated region
      $region17: #{cnn_forward.3} parent=11 // pred_check
        %p121 = pneg %p77
      $region18: #{cnn_forward.3} parent=11 // pred_check_branch
        %123 = sbr.rel (%p121) target = $region20
      $region19: #{cnn_forward.3} parent=11 // pred_region
        _
      $region20: #{cnn_forward.3} parent=11 // pred_fallthru
        _
    $region12: #{cnn_forward.3} parent=5 // pred_fallthru
      _
    %p124 = scmp.lt.s32.totalorder %s9, 2
    // Predicated region
    $region21: #{cnn_forward.3} parent=5 // pred_check
      %p125 = pneg %p124
    $region22: #{cnn_forward.3} parent=5 // pred_check_branch
      %127 = sbr.rel (%p125) target = $region24
    $region23: #{cnn_forward.3} parent=5 // pred_region
      // Predicated region
      $region25: #{cnn_forward.3} parent=23 // pred_check
        %p128 = pneg %p29
      $region26: #{cnn_forward.3} parent=23 // pred_check_branch
        %130 = sbr.rel (%p128) target = $region28
      $region27: #{cnn_forward.3} parent=23 // pred_region
        %p131 = scmp.lt.s32.totalorder %s9, 1
        %s132 = scalar_select %p131, %s9, 1
        %s133 = smul.addr %s132, 61
        %s134 = smul.addr %s133, 8
        %s135 = scalar_lea.vmem %s0, %s134
      $region28: #{cnn_forward.3} parent=23 // pred_fallthru
        _
    $region24: #{cnn_forward.3} parent=5 // pred_fallthru
      _
    %p136 = scmp.le.s32.totalorder 1, %s9
    %p137 = scmp.lt.s32.totalorder %s9, 3
    %p138 = pnand %p136, %p137
    %p139 = pneg %p138
    // Predicated region
    $region29: #{cnn_forward.3} parent=5 // pred_check
      _
    $region30: #{cnn_forward.3} parent=5 // pred_check_branch
      %141 = sbr.rel (%p138) target = $region32
    $region31: #{cnn_forward.3} parent=5 // pred_region
      %s142 = ssub.s32 %s9, 1
      %p143 = scmp.lt.s32.totalorder %s14, 1
      %s144 = scalar_select %p143, %s14, 1
      %s145 = smul.addr %s144, 61
      %s146 = smul.addr %s145, 8
      %s147 = scalar_lea.vmem %s0, %s146
      %p148 = pneg %p35
      %p149 = pneg %p32
      %p150 = pneg %p56
      %p151 = pneg %p53
      %p152 = pneg %p77
      %p153 = pneg %p74
      %p154 = pneg %p103
      %p155 = pneg %p100
      %p156 = scmp.lt.s32.totalorder %s14, 1
      %s157 = scalar_select %p156, %s14, 1
      %s158 = smul.addr %s157, 20
      %s159 = smul.addr %s158, 8
      %s160 = scalar_lea.vmem %s3, %s159
      %p161 = scmp.lt.s32.totalorder %s14, 1
      %s162 = scalar_select %p161, %s14, 1
      %s163 = smul.addr %s162, 61
      %s164 = smul.addr %s163, 8
      %s165 = scalar_lea.vmem %s0, %s164
      %p166 = scmp.lt.s32.totalorder %s14, 1
      %s167 = scalar_select %p166, %s14, 1
      %s168 = smul.addr %s167, 20
      %s169 = smul.addr %s168, 8
      %s170 = scalar_lea.vmem %s3, %s169
      %v171 = vld [vmem:[%s165] sm:$0xff]
      %v172 = vld [vmem:[%s165 + $0x8] sm:$0xff]
      %v173 = vld [vmem:[%s165 + $0x10] sm:$0xff]
      %v174 = vld [vmem:[%s165 + $0x18] sm:$0xff]
      %v175 = vld [vmem:[%s165 + $0x20] sm:$0xff]
      %v176 = vld [vmem:[%s165 + $0x28] sm:$0xff]
      %v177 = vld [vmem:[%s165 + $0x30] sm:$0xff]
      %v178 = vld [vmem:[%s165 + $0x38] sm:$0xff]
      %v179 = vld [vmem:[%s165 + $0x40] sm:$0xff]
      %v180 = vld [vmem:[%s165 + $0x48] sm:$0xff]
      %v181 = vld [vmem:[%s165 + $0x50] sm:$0xff]
      %v182 = vld [vmem:[%s165 + $0x58] sm:$0xff]
      %v183 = vld [vmem:[%s165 + $0x60] sm:$0xff]
      %v184 = vld [vmem:[%s165 + $0x68] sm:$0xff]
      %v185 = vld [vmem:[%s165 + $0x70] sm:$0xff]
      %v186 = vld [vmem:[%s165 + $0x78] sm:$0xff]
      %v187 = vld [vmem:[%s165 + $0x80] sm:$0xff]
      %v188 = vld [vmem:[%s165 + $0x88] sm:$0xff]
      %v189 = vld [vmem:[%s165 + $0x90] sm:$0xff]
      %v190 = vld [vmem:[%s165 + $0x98] sm:$0xff]
      %v191 = vld [vmem:[%s165 + $0xa0] sm:$0xff]
      %v192 = vld [vmem:[%s165 + $0xa8] sm:$0xff]
      %v193 = vld [vmem:[%s165 + $0xb0] sm:$0xff]
      %v194 = vld [vmem:[%s165 + $0xb8] sm:$0xff]
      %v195 = vld [vmem:[%s165 + $0xc0] sm:$0xff]
      %v196 = vld [vmem:[%s165 + $0xc8] sm:$0xff]
      %v197 = vld [vmem:[%s165 + $0xd0] sm:$0xff]
      %v198 = vld [vmem:[%s165 + $0xd8] sm:$0xff]
      %v199 = vld [vmem:[%s165 + $0xe0] sm:$0xff]
      %v200 = vld [vmem:[%s165 + $0xe8] sm:$0xff]
      %v201 = vld [vmem:[%s165 + $0xf0] sm:$0xff]
      %v202 = vld [vmem:[%s165 + $0xf8] sm:$0xff]
      %v203 = vld [vmem:[%s165 + $0x100] sm:$0xff]
      %v204 = vld [vmem:[%s165 + $0x108] sm:$0xff]
      %v205 = vld [vmem:[%s165 + $0x110] sm:$0xff]
      %v206 = vld [vmem:[%s165 + $0x118] sm:$0xff]
      %v207 = vld [vmem:[%s165 + $0x120] sm:$0xff]
      %v208 = vld [vmem:[%s165 + $0x128] sm:$0xff]
      %v209 = vld [vmem:[%s165 + $0x130] sm:$0xff]
      %v210 = vld [vmem:[%s165 + $0x138] sm:$0xff]
      %v211 = vld [vmem:[%s165 + $0x140] sm:$0xff]
      %v212 = vld [vmem:[%s165 + $0x148] sm:$0xff]
      %v213 = vld [vmem:[%s165 + $0x150] sm:$0xff]
      %v214 = vld [vmem:[%s165 + $0x158] sm:$0xff]
      %v215 = vld [vmem:[%s165 + $0x160] sm:$0xff]
      %v216 = vld [vmem:[%s165 + $0x168] sm:$0xff]
      %v217 = vld [vmem:[%s165 + $0x170] sm:$0xff]
      %v218 = vld [vmem:[%s165 + $0x178] sm:$0xff]
      %v219 = vld [vmem:[%s165 + $0x180] sm:$0xff]
      %v220 = vld [vmem:[%s165 + $0x188] sm:$0xff]
      %v221 = vld [vmem:[%s165 + $0x190] sm:$0xff]
      %v222 = vld [vmem:[%s165 + $0x198] sm:$0xff]
      %v223 = vld [vmem:[%s165 + $0x1a0] sm:$0xff]
      %v224 = vld [vmem:[%s165 + $0x1a8] sm:$0xff]
      %v225 = vld [vmem:[%s165 + $0x1b0] sm:$0x3f]
      %v226 = vld [vmem:[%s1] sm:$0x7]
      %v227 = vld [vmem:[%s165 + $0x1] sm:$0xff]
      %v228 = vld [vmem:[%s165 + $0x9] sm:$0xff]
      %v229 = vld [vmem:[%s165 + $0x11] sm:$0xff]
      %v230 = vld [vmem:[%s165 + $0x19] sm:$0xff]
      %v231 = vld [vmem:[%s165 + $0x21] sm:$0xff]
      %v232 = vld [vmem:[%s165 + $0x29] sm:$0xff]
      %v233 = vld [vmem:[%s165 + $0x31] sm:$0xff]
      %v234 = vld [vmem:[%s165 + $0x39] sm:$0xff]
      %v235 = vld [vmem:[%s165 + $0x41] sm:$0xff]
      %v236 = vld [vmem:[%s165 + $0x49] sm:$0xff]
      %v237 = vld [vmem:[%s165 + $0x51] sm:$0xff]
      %v238 = vld [vmem:[%s165 + $0x59] sm:$0xff]
      %v239 = vld [vmem:[%s165 + $0x61] sm:$0xff]
      %v240 = vld [vmem:[%s165 + $0x69] sm:$0xff]
      %v241 = vld [vmem:[%s165 + $0x71] sm:$0xff]
      %v242 = vld [vmem:[%s165 + $0x79] sm:$0xff]
      %v243 = vld [vmem:[%s165 + $0x81] sm:$0xff]
      %v244 = vld [vmem:[%s165 + $0x89] sm:$0xff]
      %v245 = vld [vmem:[%s165 + $0x91] sm:$0xff]
      %v246 = vld [vmem:[%s165 + $0x99] sm:$0xff]
      %v247 = vld [vmem:[%s165 + $0xa1] sm:$0xff]
      %v248 = vld [vmem:[%s165 + $0xa9] sm:$0xff]
      %v249 = vld [vmem:[%s165 + $0xb1] sm:$0xff]
      %v250 = vld [vmem:[%s165 + $0xb9] sm:$0xff]
      %v251 = vld [vmem:[%s165 + $0xc1] sm:$0xff]
      %v252 = vld [vmem:[%s165 + $0xc9] sm:$0xff]
      %v253 = vld [vmem:[%s165 + $0xd1] sm:$0xff]
      %v254 = vld [vmem:[%s165 + $0xd9] sm:$0xff]
      %v255 = vld [vmem:[%s165 + $0xe1] sm:$0xff]
      %v256 = vld [vmem:[%s165 + $0xe9] sm:$0xff]
      %v257 = vld [vmem:[%s165 + $0xf1] sm:$0xff]
      %v258 = vld [vmem:[%s165 + $0xf9] sm:$0xff]
      %v259 = vld [vmem:[%s165 + $0x101] sm:$0xff]
      %v260 = vld [vmem:[%s165 + $0x109] sm:$0xff]
      %v261 = vld [vmem:[%s165 + $0x111] sm:$0xff]
      %v262 = vld [vmem:[%s165 + $0x119] sm:$0xff]
      %v263 = vld [vmem:[%s165 + $0x121] sm:$0xff]
      %v264 = vld [vmem:[%s165 + $0x129] sm:$0xff]
      %v265 = vld [vmem:[%s165 + $0x131] sm:$0xff]
      %v266 = vld [vmem:[%s165 + $0x139] sm:$0xff]
      %v267 = vld [vmem:[%s165 + $0x141] sm:$0xff]
      %v268 = vld [vmem:[%s165 + $0x149] sm:$0xff]
      %v269 = vld [vmem:[%s165 + $0x151] sm:$0xff]
      %v270 = vld [vmem:[%s165 + $0x159] sm:$0xff]
      %v271 = vld [vmem:[%s165 + $0x161] sm:$0xff]
      %v272 = vld [vmem:[%s165 + $0x169] sm:$0xff]
      %v273 = vld [vmem:[%s165 + $0x171] sm:$0xff]
      %v274 = vld [vmem:[%s165 + $0x179] sm:$0xff]
      %v275 = vld [vmem:[%s165 + $0x181] sm:$0xff]
      %v276 = vld [vmem:[%s165 + $0x189] sm:$0xff]
      %v277 = vld [vmem:[%s165 + $0x191] sm:$0xff]
      %v278 = vld [vmem:[%s165 + $0x199] sm:$0xff]
      %v279 = vld [vmem:[%s165 + $0x1a1] sm:$0xff]
      %v280 = vld [vmem:[%s165 + $0x1a9] sm:$0xff]
      %v281 = vld [vmem:[%s165 + $0x1b1] sm:$0x3f]
      %s282 = scalar_lea.vmem %s1, 4
      %v283 = vld [vmem:[%s282] sm:$0x7]
      %vm284 = vcmask 23552
      %v286 = vsel %vm284, %v227, 0
      %v289 = vsel %vm284, %v228, 0
      %v292 = vsel %vm284, %v229, 0
      %v295 = vsel %vm284, %v230, 0
      %v298 = vsel %vm284, %v231, 0
      %v301 = vsel %vm284, %v232, 0
      %v304 = vsel %vm284, %v233, 0
      %v307 = vsel %vm284, %v234, 0
      %v310 = vsel %vm284, %v235, 0
      %v313 = vsel %vm284, %v236, 0
      %v316 = vsel %vm284, %v237, 0
      %v319 = vsel %vm284, %v238, 0
      %v322 = vsel %vm284, %v239, 0
      %v325 = vsel %vm284, %v240, 0
      %v328 = vsel %vm284, %v241, 0
      %v331 = vsel %vm284, %v242, 0
      %v334 = vsel %vm284, %v243, 0
      %v337 = vsel %vm284, %v244, 0
      %v340 = vsel %vm284, %v245, 0
      %v343 = vsel %vm284, %v246, 0
      %v346 = vsel %vm284, %v247, 0
      %v349 = vsel %vm284, %v248, 0
      %v352 = vsel %vm284, %v249, 0
      %v355 = vsel %vm284, %v250, 0
      %v358 = vsel %vm284, %v251, 0
      %v361 = vsel %vm284, %v252, 0
      %v364 = vsel %vm284, %v253, 0
      %v367 = vsel %vm284, %v254, 0
      %v370 = vsel %vm284, %v255, 0
      %v373 = vsel %vm284, %v256, 0
      %v376 = vsel %vm284, %v257, 0
      %v379 = vsel %vm284, %v258, 0
      %v382 = vsel %vm284, %v259, 0
      %v385 = vsel %vm284, %v260, 0
      %v388 = vsel %vm284, %v261, 0
      %v391 = vsel %vm284, %v262, 0
      %v394 = vsel %vm284, %v263, 0
      %v397 = vsel %vm284, %v264, 0
      %v400 = vsel %vm284, %v265, 0
      %v403 = vsel %vm284, %v266, 0
      %v406 = vsel %vm284, %v267, 0
      %v409 = vsel %vm284, %v268, 0
      %v412 = vsel %vm284, %v269, 0
      %v415 = vsel %vm284, %v270, 0
      %v418 = vsel %vm284, %v271, 0
      %v421 = vsel %vm284, %v272, 0
      %v424 = vsel %vm284, %v273, 0
      %v427 = vsel %vm284, %v274, 0
      %v430 = vsel %vm284, %v275, 0
      %v433 = vsel %vm284, %v276, 0
      %v436 = vsel %vm284, %v277, 0
      %v439 = vsel %vm284, %v278, 0
      %v442 = vsel %vm284, %v279, 0
      %v445 = vsel %vm284, %v280, 0
      %v448 = vsel %vm284, %v281, 0
      %vm450 = vcmask 1042432
      %v452 = vsel %vm450, %v283, 0
      %454 = vmatpush.msra.mxu0 0.0
      %455 = vmatpush.msra.mxu0 0.0
      %456 = vmatpush.msra.mxu0 0.0
      %457 = vmatpush.msra.mxu0 0.0
      %458 = vmatpush.msra.mxu0 0.0
      %459 = vmatpush.msra.mxu0 0.0
      %460 = vmatpush.msra.mxu0 0.0
      %461 = vmatpush.msra.mxu0 0.0
      %462 = vmatpush.msra.mxu0 0.0
      %463 = vmatpush.msra.mxu0 0.0
      %464 = vmatpush.msra.mxu0 0.0
      %465 = vmatpush.msra.mxu0 0.0
      %466 = vmatpush.msra.mxu0 0.0
      %467 = vmatpush.msra.mxu0 0.0
      %468 = vmatpush.msra.mxu0 0.0
      %469 = vmatpush.msra.mxu0 %v452
      %470 = vmatmul.f32.gmra.mxu0 %v286
      %v471 = vpop.f32.mrf.mxu0
      %v472 = vadd.f32 0.0, %v471
      %473 = vmatmul.f32.gmra.mxu0 %v289
      %v474 = vpop.f32.mrf.mxu0
      %v475 = vadd.f32 0.0, %v474
      %476 = vmatmul.f32.gmra.mxu0 %v292
      %v477 = vpop.f32.mrf.mxu0
      %v478 = vadd.f32 0.0, %v477
      %479 = vmatmul.f32.gmra.mxu0 %v295
      %v480 = vpop.f32.mrf.mxu0
      %v481 = vadd.f32 0.0, %v480
      %482 = vmatmul.f32.gmra.mxu0 %v298
      %v483 = vpop.f32.mrf.mxu0
      %v484 = vadd.f32 0.0, %v483
      %485 = vmatmul.f32.gmra.mxu0 %v301
      %v486 = vpop.f32.mrf.mxu0
      %v487 = vadd.f32 0.0, %v486
      %488 = vmatmul.f32.gmra.mxu0 %v304
      %v489 = vpop.f32.mrf.mxu0
      %v490 = vadd.f32 0.0, %v489
      %491 = vmatmul.f32.gmra.mxu0 %v307
      %v492 = vpop.f32.mrf.mxu0
      %v493 = vadd.f32 0.0, %v492
      %494 = vmatmul.f32.gmra.mxu0 %v310
      %v495 = vpop.f32.mrf.mxu0
      %v496 = vadd.f32 0.0, %v495
      %497 = vmatmul.f32.gmra.mxu0 %v313
      %v498 = vpop.f32.mrf.mxu0
      %v499 = vadd.f32 0.0, %v498
      %500 = vmatmul.f32.gmra.mxu0 %v316
      %v501 = vpop.f32.mrf.mxu0
      %v502 = vadd.f32 0.0, %v501
      %503 = vmatmul.f32.gmra.mxu0 %v319
      %v504 = vpop.f32.mrf.mxu0
      %v505 = vadd.f32 0.0, %v504
      %506 = vmatmul.f32.gmra.mxu0 %v322
      %v507 = vpop.f32.mrf.mxu0
      %v508 = vadd.f32 0.0, %v507
      %509 = vmatmul.f32.gmra.mxu0 %v325
      %v510 = vpop.f32.mrf.mxu0
      %v511 = vadd.f32 0.0, %v510
      %512 = vmatmul.f32.gmra.mxu0 %v328
      %v513 = vpop.f32.mrf.mxu0
      %v514 = vadd.f32 0.0, %v513
      %515 = vmatmul.f32.gmra.mxu0 %v331
      %v516 = vpop.f32.mrf.mxu0
      %v517 = vadd.f32 0.0, %v516
      %518 = vmatmul.f32.gmra.mxu0 %v334
      %v519 = vpop.f32.mrf.mxu0
      %v520 = vadd.f32 0.0, %v519
      %521 = vmatmul.f32.gmra.mxu0 %v337
      %v522 = vpop.f32.mrf.mxu0
      %v523 = vadd.f32 0.0, %v522
      %524 = vmatmul.f32.gmra.mxu0 %v340
      %v525 = vpop.f32.mrf.mxu0
      %v526 = vadd.f32 0.0, %v525
      %527 = vmatmul.f32.gmra.mxu0 %v343
      %v528 = vpop.f32.mrf.mxu0
      %v529 = vadd.f32 0.0, %v528
      %530 = vmatmul.f32.gmra.mxu0 %v346
      %v531 = vpop.f32.mrf.mxu0
      %v532 = vadd.f32 0.0, %v531
      %533 = vmatmul.f32.gmra.mxu0 %v349
      %v534 = vpop.f32.mrf.mxu0
      %v535 = vadd.f32 0.0, %v534
      %536 = vmatmul.f32.gmra.mxu0 %v352
      %v537 = vpop.f32.mrf.mxu0
      %v538 = vadd.f32 0.0, %v537
      %539 = vmatmul.f32.gmra.mxu0 %v355
      %v540 = vpop.f32.mrf.mxu0
      %v541 = vadd.f32 0.0, %v540
      %542 = vmatmul.f32.gmra.mxu0 %v358
      %v543 = vpop.f32.mrf.mxu0
      %v544 = vadd.f32 0.0, %v543
      %545 = vmatmul.f32.gmra.mxu0 %v361
      %v546 = vpop.f32.mrf.mxu0
      %v547 = vadd.f32 0.0, %v546
      %548 = vmatmul.f32.gmra.mxu0 %v364
      %v549 = vpop.f32.mrf.mxu0
      %v550 = vadd.f32 0.0, %v549
      %551 = vmatmul.f32.gmra.mxu0 %v367
      %v552 = vpop.f32.mrf.mxu0
      %v553 = vadd.f32 0.0, %v552
      %554 = vmatmul.f32.gmra.mxu0 %v370
      %v555 = vpop.f32.mrf.mxu0
      %v556 = vadd.f32 0.0, %v555
      %557 = vmatmul.f32.gmra.mxu0 %v373
      %v558 = vpop.f32.mrf.mxu0
      %v559 = vadd.f32 0.0, %v558
      %560 = vmatmul.f32.gmra.mxu0 %v376
      %v561 = vpop.f32.mrf.mxu0
      %v562 = vadd.f32 0.0, %v561
      %563 = vmatmul.f32.gmra.mxu0 %v379
      %v564 = vpop.f32.mrf.mxu0
      %v565 = vadd.f32 0.0, %v564
      %566 = vmatmul.f32.gmra.mxu0 %v382
      %v567 = vpop.f32.mrf.mxu0
      %v568 = vadd.f32 0.0, %v567
      %569 = vmatmul.f32.gmra.mxu0 %v385
      %v570 = vpop.f32.mrf.mxu0
      %v571 = vadd.f32 0.0, %v570
      %572 = vmatmul.f32.gmra.mxu0 %v388
      %v573 = vpop.f32.mrf.mxu0
      %v574 = vadd.f32 0.0, %v573
      %575 = vmatmul.f32.gmra.mxu0 %v391
      %v576 = vpop.f32.mrf.mxu0
      %v577 = vadd.f32 0.0, %v576
      %578 = vmatmul.f32.gmra.mxu0 %v394
      %v579 = vpop.f32.mrf.mxu0
      %v580 = vadd.f32 0.0, %v579
      %581 = vmatmul.f32.gmra.mxu0 %v397
      %v582 = vpop.f32.mrf.mxu0
      %v583 = vadd.f32 0.0, %v582
      %584 = vmatmul.f32.gmra.mxu0 %v400
      %v585 = vpop.f32.mrf.mxu0
      %v586 = vadd.f32 0.0, %v585
      %587 = vmatmul.f32.gmra.mxu0 %v403
      %v588 = vpop.f32.mrf.mxu0
      %v589 = vadd.f32 0.0, %v588
      %590 = vmatmul.f32.gmra.mxu0 %v406
      %v591 = vpop.f32.mrf.mxu0
      %v592 = vadd.f32 0.0, %v591
      %593 = vmatmul.f32.gmra.mxu0 %v409
      %v594 = vpop.f32.mrf.mxu0
      %v595 = vadd.f32 0.0, %v594
      %596 = vmatmul.f32.gmra.mxu0 %v412
      %v597 = vpop.f32.mrf.mxu0
      %v598 = vadd.f32 0.0, %v597
      %599 = vmatmul.f32.gmra.mxu0 %v415
      %v600 = vpop.f32.mrf.mxu0
      %v601 = vadd.f32 0.0, %v600
      %602 = vmatmul.f32.gmra.mxu0 %v418
      %v603 = vpop.f32.mrf.mxu0
      %v604 = vadd.f32 0.0, %v603
      %605 = vmatmul.f32.gmra.mxu0 %v421
      %v606 = vpop.f32.mrf.mxu0
      %v607 = vadd.f32 0.0, %v606
      %608 = vmatmul.f32.gmra.mxu0 %v424
      %v609 = vpop.f32.mrf.mxu0
      %v610 = vadd.f32 0.0, %v609
      %611 = vmatmul.f32.gmra.mxu0 %v427
      %v612 = vpop.f32.mrf.mxu0
      %v613 = vadd.f32 0.0, %v612
      %614 = vmatmul.f32.gmra.mxu0 %v430
      %v615 = vpop.f32.mrf.mxu0
      %v616 = vadd.f32 0.0, %v615
      %617 = vmatmul.f32.gmra.mxu0 %v433
      %v618 = vpop.f32.mrf.mxu0
      %v619 = vadd.f32 0.0, %v618
      %620 = vmatmul.f32.gmra.mxu0 %v436
      %v621 = vpop.f32.mrf.mxu0
      %v622 = vadd.f32 0.0, %v621
      %623 = vmatmul.f32.gmra.mxu0 %v439
      %v624 = vpop.f32.mrf.mxu0
      %v625 = vadd.f32 0.0, %v624
      %626 = vmatmul.f32.gmra.mxu0 %v442
      %v627 = vpop.f32.mrf.mxu0
      %v628 = vadd.f32 0.0, %v627
      %629 = vmatmul.f32.gmra.mxu0 %v445
      %v630 = vpop.f32.mrf.mxu0
      %v631 = vadd.f32 0.0, %v630
      %632 = vmatmul.f32.gmra.mxu0 %v448
      %v633 = vpop.f32.mrf.mxu0
      %v634 = vadd.f32 0.0, %v633
      %635 = vdwg.mxu0
      %v637 = vsel %vm284, %v171, 0
      %v640 = vsel %vm284, %v172, 0
      %v643 = vsel %vm284, %v173, 0
      %v646 = vsel %vm284, %v174, 0
      %v649 = vsel %vm284, %v175, 0
      %v652 = vsel %vm284, %v176, 0
      %v655 = vsel %vm284, %v177, 0
      %v658 = vsel %vm284, %v178, 0
      %v661 = vsel %vm284, %v179, 0
      %v664 = vsel %vm284, %v180, 0
      %v667 = vsel %vm284, %v181, 0
      %v670 = vsel %vm284, %v182, 0
      %v673 = vsel %vm284, %v183, 0
      %v676 = vsel %vm284, %v184, 0
      %v679 = vsel %vm284, %v185, 0
      %v682 = vsel %vm284, %v186, 0
      %v685 = vsel %vm284, %v187, 0
      %v688 = vsel %vm284, %v188, 0
      %v691 = vsel %vm284, %v189, 0
      %v694 = vsel %vm284, %v190, 0
      %v697 = vsel %vm284, %v191, 0
      %v700 = vsel %vm284, %v192, 0
      %v703 = vsel %vm284, %v193, 0
      %v706 = vsel %vm284, %v194, 0
      %v709 = vsel %vm284, %v195, 0
      %v712 = vsel %vm284, %v196, 0
      %v715 = vsel %vm284, %v197, 0
      %v718 = vsel %vm284, %v198, 0
      %v721 = vsel %vm284, %v199, 0
      %v724 = vsel %vm284, %v200, 0
      %v727 = vsel %vm284, %v201, 0
      %v730 = vsel %vm284, %v202, 0
      %v733 = vsel %vm284, %v203, 0
      %v736 = vsel %vm284, %v204, 0
      %v739 = vsel %vm284, %v205, 0
      %v742 = vsel %vm284, %v206, 0
      %v745 = vsel %vm284, %v207, 0
      %v748 = vsel %vm284, %v208, 0
      %v751 = vsel %vm284, %v209, 0
      %v754 = vsel %vm284, %v210, 0
      %v757 = vsel %vm284, %v211, 0
      %v760 = vsel %vm284, %v212, 0
      %v763 = vsel %vm284, %v213, 0
      %v766 = vsel %vm284, %v214, 0
      %v769 = vsel %vm284, %v215, 0
      %v772 = vsel %vm284, %v216, 0
      %v775 = vsel %vm284, %v217, 0
      %v778 = vsel %vm284, %v218, 0
      %v781 = vsel %vm284, %v219, 0
      %v784 = vsel %vm284, %v220, 0
      %v787 = vsel %vm284, %v221, 0
      %v790 = vsel %vm284, %v222, 0
      %v793 = vsel %vm284, %v223, 0
      %v796 = vsel %vm284, %v224, 0
      %v799 = vsel %vm284, %v225, 0
      %v802 = vsel %vm450, %v226, 0
      %804 = vmatpush.msra.mxu0 0.0
      %805 = vmatpush.msra.mxu0 0.0
      %806 = vmatpush.msra.mxu0 0.0
      %807 = vmatpush.msra.mxu0 0.0
      %808 = vmatpush.msra.mxu0 0.0
      %809 = vmatpush.msra.mxu0 0.0
      %810 = vmatpush.msra.mxu0 0.0
      %811 = vmatpush.msra.mxu0 0.0
      %812 = vmatpush.msra.mxu0 0.0
      %813 = vmatpush.msra.mxu0 0.0
      %814 = vmatpush.msra.mxu0 0.0
      %815 = vmatpush.msra.mxu0 0.0
      %816 = vmatpush.msra.mxu0 0.0
      %817 = vmatpush.msra.mxu0 0.0
      %818 = vmatpush.msra.mxu0 0.0
      %819 = vmatpush.msra.mxu0 %v802
      %820 = vmatmul.f32.gmra.mxu0 %v637
      %v821 = vpop.f32.mrf.mxu0
      %v822 = vadd.f32 %v472, %v821
      %823 = vmatmul.f32.gmra.mxu0 %v640
      %v824 = vpop.f32.mrf.mxu0
      %v825 = vadd.f32 %v475, %v824
      %826 = vmatmul.f32.gmra.mxu0 %v643
      %v827 = vpop.f32.mrf.mxu0
      %v828 = vadd.f32 %v478, %v827
      %829 = vmatmul.f32.gmra.mxu0 %v646
      %v830 = vpop.f32.mrf.mxu0
      %v831 = vadd.f32 %v481, %v830
      %832 = vmatmul.f32.gmra.mxu0 %v649
      %v833 = vpop.f32.mrf.mxu0
      %v834 = vadd.f32 %v484, %v833
      %835 = vmatmul.f32.gmra.mxu0 %v652
      %v836 = vpop.f32.mrf.mxu0
      %v837 = vadd.f32 %v487, %v836
      %838 = vmatmul.f32.gmra.mxu0 %v655
      %v839 = vpop.f32.mrf.mxu0
      %v840 = vadd.f32 %v490, %v839
      %841 = vmatmul.f32.gmra.mxu0 %v658
      %v842 = vpop.f32.mrf.mxu0
      %v843 = vadd.f32 %v493, %v842
      %844 = vmatmul.f32.gmra.mxu0 %v661
      %v845 = vpop.f32.mrf.mxu0
      %v846 = vadd.f32 %v496, %v845
      %847 = vmatmul.f32.gmra.mxu0 %v664
      %v848 = vpop.f32.mrf.mxu0
      %v849 = vadd.f32 %v499, %v848
      %850 = vmatmul.f32.gmra.mxu0 %v667
      %v851 = vpop.f32.mrf.mxu0
      %v852 = vadd.f32 %v502, %v851
      %853 = vmatmul.f32.gmra.mxu0 %v670
      %v854 = vpop.f32.mrf.mxu0
      %v855 = vadd.f32 %v505, %v854
      %856 = vmatmul.f32.gmra.mxu0 %v673
      %v857 = vpop.f32.mrf.mxu0
      %v858 = vadd.f32 %v508, %v857
      %859 = vmatmul.f32.gmra.mxu0 %v676
      %v860 = vpop.f32.mrf.mxu0
      %v861 = vadd.f32 %v511, %v860
      %862 = vmatmul.f32.gmra.mxu0 %v679
      %v863 = vpop.f32.mrf.mxu0
      %v864 = vadd.f32 %v514, %v863
      %865 = vmatmul.f32.gmra.mxu0 %v682
      %v866 = vpop.f32.mrf.mxu0
      %v867 = vadd.f32 %v517, %v866
      %868 = vmatmul.f32.gmra.mxu0 %v685
      %v869 = vpop.f32.mrf.mxu0
      %v870 = vadd.f32 %v520, %v869
      %871 = vmatmul.f32.gmra.mxu0 %v688
      %v872 = vpop.f32.mrf.mxu0
      %v873 = vadd.f32 %v523, %v872
      %874 = vmatmul.f32.gmra.mxu0 %v691
      %v875 = vpop.f32.mrf.mxu0
      %v876 = vadd.f32 %v526, %v875
      %877 = vmatmul.f32.gmra.mxu0 %v694
      %v878 = vpop.f32.mrf.mxu0
      %v879 = vadd.f32 %v529, %v878
      %880 = vmatmul.f32.gmra.mxu0 %v697
      %v881 = vpop.f32.mrf.mxu0
      %v882 = vadd.f32 %v532, %v881
      %883 = vmatmul.f32.gmra.mxu0 %v700
      %v884 = vpop.f32.mrf.mxu0
      %v885 = vadd.f32 %v535, %v884
      %886 = vmatmul.f32.gmra.mxu0 %v703
      %v887 = vpop.f32.mrf.mxu0
      %v888 = vadd.f32 %v538, %v887
      %889 = vmatmul.f32.gmra.mxu0 %v706
      %v890 = vpop.f32.mrf.mxu0
      %v891 = vadd.f32 %v541, %v890
      %892 = vmatmul.f32.gmra.mxu0 %v709
      %v893 = vpop.f32.mrf.mxu0
      %v894 = vadd.f32 %v544, %v893
      %895 = vmatmul.f32.gmra.mxu0 %v712
      %v896 = vpop.f32.mrf.mxu0
      %v897 = vadd.f32 %v547, %v896
      %898 = vmatmul.f32.gmra.mxu0 %v715
      %v899 = vpop.f32.mrf.mxu0
      %v900 = vadd.f32 %v550, %v899
      %901 = vmatmul.f32.gmra.mxu0 %v718
      %v902 = vpop.f32.mrf.mxu0
      %v903 = vadd.f32 %v553, %v902
      %904 = vmatmul.f32.gmra.mxu0 %v721
      %v905 = vpop.f32.mrf.mxu0
      %v906 = vadd.f32 %v556, %v905
      %907 = vmatmul.f32.gmra.mxu0 %v724
      %v908 = vpop.f32.mrf.mxu0
      %v909 = vadd.f32 %v559, %v908
      %910 = vmatmul.f32.gmra.mxu0 %v727
      %v911 = vpop.f32.mrf.mxu0
      %v912 = vadd.f32 %v562, %v911
      %913 = vmatmul.f32.gmra.mxu0 %v730
      %v914 = vpop.f32.mrf.mxu0
      %v915 = vadd.f32 %v565, %v914
      %916 = vmatmul.f32.gmra.mxu0 %v733
      %v917 = vpop.f32.mrf.mxu0
      %v918 = vadd.f32 %v568, %v917
      %919 = vmatmul.f32.gmra.mxu0 %v736
      %v920 = vpop.f32.mrf.mxu0
      %v921 = vadd.f32 %v571, %v920
      %922 = vmatmul.f32.gmra.mxu0 %v739
      %v923 = vpop.f32.mrf.mxu0
      %v924 = vadd.f32 %v574, %v923
      %925 = vmatmul.f32.gmra.mxu0 %v742
      %v926 = vpop.f32.mrf.mxu0
      %v927 = vadd.f32 %v577, %v926
      %928 = vmatmul.f32.gmra.mxu0 %v745
      %v929 = vpop.f32.mrf.mxu0
      %v930 = vadd.f32 %v580, %v929
      %931 = vmatmul.f32.gmra.mxu0 %v748
      %v932 = vpop.f32.mrf.mxu0
      %v933 = vadd.f32 %v583, %v932
      %934 = vmatmul.f32.gmra.mxu0 %v751
      %v935 = vpop.f32.mrf.mxu0
      %v936 = vadd.f32 %v586, %v935
      %937 = vmatmul.f32.gmra.mxu0 %v754
      %v938 = vpop.f32.mrf.mxu0
      %v939 = vadd.f32 %v589, %v938
      %940 = vmatmul.f32.gmra.mxu0 %v757
      %v941 = vpop.f32.mrf.mxu0
      %v942 = vadd.f32 %v592, %v941
      %943 = vmatmul.f32.gmra.mxu0 %v760
      %v944 = vpop.f32.mrf.mxu0
      %v945 = vadd.f32 %v595, %v944
      %946 = vmatmul.f32.gmra.mxu0 %v763
      %v947 = vpop.f32.mrf.mxu0
      %v948 = vadd.f32 %v598, %v947
      %949 = vmatmul.f32.gmra.mxu0 %v766
      %v950 = vpop.f32.mrf.mxu0
      %v951 = vadd.f32 %v601, %v950
      %952 = vmatmul.f32.gmra.mxu0 %v769
      %v953 = vpop.f32.mrf.mxu0
      %v954 = vadd.f32 %v604, %v953
      %955 = vmatmul.f32.gmra.mxu0 %v772
      %v956 = vpop.f32.mrf.mxu0
      %v957 = vadd.f32 %v607, %v956
      %958 = vmatmul.f32.gmra.mxu0 %v775
      %v959 = vpop.f32.mrf.mxu0
      %v960 = vadd.f32 %v610, %v959
      %961 = vmatmul.f32.gmra.mxu0 %v778
      %v962 = vpop.f32.mrf.mxu0
      %v963 = vadd.f32 %v613, %v962
      %964 = vmatmul.f32.gmra.mxu0 %v781
      %v965 = vpop.f32.mrf.mxu0
      %v966 = vadd.f32 %v616, %v965
      %967 = vmatmul.f32.gmra.mxu0 %v784
      %v968 = vpop.f32.mrf.mxu0
      %v969 = vadd.f32 %v619, %v968
      %970 = vmatmul.f32.gmra.mxu0 %v787
      %v971 = vpop.f32.mrf.mxu0
      %v972 = vadd.f32 %v622, %v971
      %973 = vmatmul.f32.gmra.mxu0 %v790
      %v974 = vpop.f32.mrf.mxu0
      %v975 = vadd.f32 %v625, %v974
      %976 = vmatmul.f32.gmra.mxu0 %v793
      %v977 = vpop.f32.mrf.mxu0
      %v978 = vadd.f32 %v628, %v977
      %979 = vmatmul.f32.gmra.mxu0 %v796
      %v980 = vpop.f32.mrf.mxu0
      %v981 = vadd.f32 %v631, %v980
      %982 = vmatmul.f32.gmra.mxu0 %v799
      %v983 = vpop.f32.mrf.mxu0
      %v984 = vadd.f32 %v634, %v983
      %985 = vdwg.mxu0
      %v986 = vld [vmem:[%s165 + $0x2] sm:$0xff]
      %v987 = vld [vmem:[%s165 + $0xa] sm:$0xff]
      %v988 = vld [vmem:[%s165 + $0x12] sm:$0xff]
      %v989 = vld [vmem:[%s165 + $0x1a] sm:$0xff]
      %v990 = vld [vmem:[%s165 + $0x22] sm:$0xff]
      %v991 = vld [vmem:[%s165 + $0x2a] sm:$0xff]
      %v992 = vld [vmem:[%s165 + $0x32] sm:$0xff]
      %v993 = vld [vmem:[%s165 + $0x3a] sm:$0xff]
      %v994 = vld [vmem:[%s165 + $0x42] sm:$0xff]
      %v995 = vld [vmem:[%s165 + $0x4a] sm:$0xff]
      %v996 = vld [vmem:[%s165 + $0x52] sm:$0xff]
      %v997 = vld [vmem:[%s165 + $0x5a] sm:$0xff]
      %v998 = vld [vmem:[%s165 + $0x62] sm:$0xff]
      %v999 = vld [vmem:[%s165 + $0x6a] sm:$0xff]
      %v1000 = vld [vmem:[%s165 + $0x72] sm:$0xff]
      %v1001 = vld [vmem:[%s165 + $0x7a] sm:$0xff]
      %v1002 = vld [vmem:[%s165 + $0x82] sm:$0xff]
      %v1003 = vld [vmem:[%s165 + $0x8a] sm:$0xff]
      %v1004 = vld [vmem:[%s165 + $0x92] sm:$0xff]
      %v1005 = vld [vmem:[%s165 + $0x9a] sm:$0xff]
      %v1006 = vld [vmem:[%s165 + $0xa2] sm:$0xff]
      %v1007 = vld [vmem:[%s165 + $0xaa] sm:$0xff]
      %v1008 = vld [vmem:[%s165 + $0xb2] sm:$0xff]
      %v1009 = vld [vmem:[%s165 + $0xba] sm:$0xff]
      %v1010 = vld [vmem:[%s165 + $0xc2] sm:$0xff]
      %v1011 = vld [vmem:[%s165 + $0xca] sm:$0xff]
      %v1012 = vld [vmem:[%s165 + $0xd2] sm:$0xff]
      %v1013 = vld [vmem:[%s165 + $0xda] sm:$0xff]
      %v1014 = vld [vmem:[%s165 + $0xe2] sm:$0xff]
      %v1015 = vld [vmem:[%s165 + $0xea] sm:$0xff]
      %v1016 = vld [vmem:[%s165 + $0xf2] sm:$0xff]
      %v1017 = vld [vmem:[%s165 + $0xfa] sm:$0xff]
      %v1018 = vld [vmem:[%s165 + $0x102] sm:$0xff]
      %v1019 = vld [vmem:[%s165 + $0x10a] sm:$0xff]
      %v1020 = vld [vmem:[%s165 + $0x112] sm:$0xff]
      %v1021 = vld [vmem:[%s165 + $0x11a] sm:$0xff]
      %v1022 = vld [vmem:[%s165 + $0x122] sm:$0xff]
      %v1023 = vld [vmem:[%s165 + $0x12a] sm:$0xff]
      %v1024 = vld [vmem:[%s165 + $0x132] sm:$0xff]
      %v1025 = vld [vmem:[%s165 + $0x13a] sm:$0xff]
      %v1026 = vld [vmem:[%s165 + $0x142] sm:$0xff]
      %v1027 = vld [vmem:[%s165 + $0x14a] sm:$0xff]
      %v1028 = vld [vmem:[%s165 + $0x152] sm:$0xff]
      %v1029 = vld [vmem:[%s165 + $0x15a] sm:$0xff]
      %v1030 = vld [vmem:[%s165 + $0x162] sm:$0xff]
      %v1031 = vld [vmem:[%s165 + $0x16a] sm:$0xff]
      %v1032 = vld [vmem:[%s165 + $0x172] sm:$0xff]
      %v1033 = vld [vmem:[%s165 + $0x17a] sm:$0xff]
      %v1034 = vld [vmem:[%s165 + $0x182] sm:$0xff]
      %v1035 = vld [vmem:[%s165 + $0x18a] sm:$0xff]
      %v1036 = vld [vmem:[%s165 + $0x192] sm:$0xff]
      %v1037 = vld [vmem:[%s165 + $0x19a] sm:$0xff]
      %v1038 = vld [vmem:[%s165 + $0x1a2] sm:$0xff]
      %v1039 = vld [vmem:[%s165 + $0x1aa] sm:$0xff]
      %v1040 = vld [vmem:[%s165 + $0x1b2] sm:$0x3f]
      %s1041 = scalar_lea.vmem %s1, 8
      %v1042 = vld [vmem:[%s1041] sm:$0x7]
      %v1044 = vsel %vm284, %v986, 0
      %v1047 = vsel %vm284, %v987, 0
      %v1050 = vsel %vm284, %v988, 0
      %v1053 = vsel %vm284, %v989, 0
      %v1056 = vsel %vm284, %v990, 0
      %v1059 = vsel %vm284, %v991, 0
      %v1062 = vsel %vm284, %v992, 0
      %v1065 = vsel %vm284, %v993, 0
      %v1068 = vsel %vm284, %v994, 0
      %v1071 = vsel %vm284, %v995, 0
      %v1074 = vsel %vm284, %v996, 0
      %v1077 = vsel %vm284, %v997, 0
      %v1080 = vsel %vm284, %v998, 0
      %v1083 = vsel %vm284, %v999, 0
      %v1086 = vsel %vm284, %v1000, 0
      %v1089 = vsel %vm284, %v1001, 0
      %v1092 = vsel %vm284, %v1002, 0
      %v1095 = vsel %vm284, %v1003, 0
      %v1098 = vsel %vm284, %v1004, 0
      %v1101 = vsel %vm284, %v1005, 0
      %v1104 = vsel %vm284, %v1006, 0
      %v1107 = vsel %vm284, %v1007, 0
      %v1110 = vsel %vm284, %v1008, 0
      %v1113 = vsel %vm284, %v1009, 0
      %v1116 = vsel %vm284, %v1010, 0
      %v1119 = vsel %vm284, %v1011, 0
      %v1122 = vsel %vm284, %v1012, 0
      %v1125 = vsel %vm284, %v1013, 0
      %v1128 = vsel %vm284, %v1014, 0
      %v1131 = vsel %vm284, %v1015, 0
      %v1134 = vsel %vm284, %v1016, 0
      %v1137 = vsel %vm284, %v1017, 0
      %v1140 = vsel %vm284, %v1018, 0
      %v1143 = vsel %vm284, %v1019, 0
      %v1146 = vsel %vm284, %v1020, 0
      %v1149 = vsel %vm284, %v1021, 0
      %v1152 = vsel %vm284, %v1022, 0
      %v1155 = vsel %vm284, %v1023, 0
      %v1158 = vsel %vm284, %v1024, 0
      %v1161 = vsel %vm284, %v1025, 0
      %v1164 = vsel %vm284, %v1026, 0
      %v1167 = vsel %vm284, %v1027, 0
      %v1170 = vsel %vm284, %v1028, 0
      %v1173 = vsel %vm284, %v1029, 0
      %v1176 = vsel %vm284, %v1030, 0
      %v1179 = vsel %vm284, %v1031, 0
      %v1182 = vsel %vm284, %v1032, 0
      %v1185 = vsel %vm284, %v1033, 0
      %v1188 = vsel %vm284, %v1034, 0
      %v1191 = vsel %vm284, %v1035, 0
      %v1194 = vsel %vm284, %v1036, 0
      %v1197 = vsel %vm284, %v1037, 0
      %v1200 = vsel %vm284, %v1038, 0
      %v1203 = vsel %vm284, %v1039, 0
      %v1206 = vsel %vm284, %v1040, 0
      %v1209 = vsel %vm450, %v1042, 0
      %1211 = vmatpush.msra.mxu0 0.0
      %1212 = vmatpush.msra.mxu0 0.0
      %1213 = vmatpush.msra.mxu0 0.0
      %1214 = vmatpush.msra.mxu0 0.0
      %1215 = vmatpush.msra.mxu0 0.0
      %1216 = vmatpush.msra.mxu0 0.0
      %1217 = vmatpush.msra.mxu0 0.0
      %1218 = vmatpush.msra.mxu0 0.0
      %1219 = vmatpush.msra.mxu0 0.0
      %1220 = vmatpush.msra.mxu0 0.0
      %1221 = vmatpush.msra.mxu0 0.0
      %1222 = vmatpush.msra.mxu0 0.0
      %1223 = vmatpush.msra.mxu0 0.0
      %1224 = vmatpush.msra.mxu0 0.0
      %1225 = vmatpush.msra.mxu0 0.0
      %1226 = vmatpush.msra.mxu0 %v1209
      %1227 = vmatmul.f32.gmra.mxu0 %v1044
      %v1228 = vpop.f32.mrf.mxu0
      %v1229 = vadd.f32 0.0, %v1228
      %1230 = vmatmul.f32.gmra.mxu0 %v1047
      %v1231 = vpop.f32.mrf.mxu0
      %v1232 = vadd.f32 0.0, %v1231
      %1233 = vmatmul.f32.gmra.mxu0 %v1050
      %v1234 = vpop.f32.mrf.mxu0
      %v1235 = vadd.f32 0.0, %v1234
      %1236 = vmatmul.f32.gmra.mxu0 %v1053
      %v1237 = vpop.f32.mrf.mxu0
      %v1238 = vadd.f32 0.0, %v1237
      %1239 = vmatmul.f32.gmra.mxu0 %v1056
      %v1240 = vpop.f32.mrf.mxu0
      %v1241 = vadd.f32 0.0, %v1240
      %1242 = vmatmul.f32.gmra.mxu0 %v1059
      %v1243 = vpop.f32.mrf.mxu0
      %v1244 = vadd.f32 0.0, %v1243
      %1245 = vmatmul.f32.gmra.mxu0 %v1062
      %v1246 = vpop.f32.mrf.mxu0
      %v1247 = vadd.f32 0.0, %v1246
      %1248 = vmatmul.f32.gmra.mxu0 %v1065
      %v1249 = vpop.f32.mrf.mxu0
      %v1250 = vadd.f32 0.0, %v1249
      %1251 = vmatmul.f32.gmra.mxu0 %v1068
      %v1252 = vpop.f32.mrf.mxu0
      %v1253 = vadd.f32 0.0, %v1252
      %1254 = vmatmul.f32.gmra.mxu0 %v1071
      %v1255 = vpop.f32.mrf.mxu0
      %v1256 = vadd.f32 0.0, %v1255
      %1257 = vmatmul.f32.gmra.mxu0 %v1074
      %v1258 = vpop.f32.mrf.mxu0
      %v1259 = vadd.f32 0.0, %v1258
      %1260 = vmatmul.f32.gmra.mxu0 %v1077
      %v1261 = vpop.f32.mrf.mxu0
      %v1262 = vadd.f32 0.0, %v1261
      %1263 = vmatmul.f32.gmra.mxu0 %v1080
      %v1264 = vpop.f32.mrf.mxu0
      %v1265 = vadd.f32 0.0, %v1264
      %1266 = vmatmul.f32.gmra.mxu0 %v1083
      %v1267 = vpop.f32.mrf.mxu0
      %v1268 = vadd.f32 0.0, %v1267
      %1269 = vmatmul.f32.gmra.mxu0 %v1086
      %v1270 = vpop.f32.mrf.mxu0
      %v1271 = vadd.f32 0.0, %v1270
      %1272 = vmatmul.f32.gmra.mxu0 %v1089
      %v1273 = vpop.f32.mrf.mxu0
      %v1274 = vadd.f32 0.0, %v1273
      %1275 = vmatmul.f32.gmra.mxu0 %v1092
      %v1276 = vpop.f32.mrf.mxu0
      %v1277 = vadd.f32 0.0, %v1276
      %1278 = vmatmul.f32.gmra.mxu0 %v1095
      %v1279 = vpop.f32.mrf.mxu0
      %v1280 = vadd.f32 0.0, %v1279
      %1281 = vmatmul.f32.gmra.mxu0 %v1098
      %v1282 = vpop.f32.mrf.mxu0
      %v1283 = vadd.f32 0.0, %v1282
      %1284 = vmatmul.f32.gmra.mxu0 %v1101
      %v1285 = vpop.f32.mrf.mxu0
      %v1286 = vadd.f32 0.0, %v1285
      %1287 = vmatmul.f32.gmra.mxu0 %v1104
      %v1288 = vpop.f32.mrf.mxu0
      %v1289 = vadd.f32 0.0, %v1288
      %1290 = vmatmul.f32.gmra.mxu0 %v1107
      %v1291 = vpop.f32.mrf.mxu0
      %v1292 = vadd.f32 0.0, %v1291
      %1293 = vmatmul.f32.gmra.mxu0 %v1110
      %v1294 = vpop.f32.mrf.mxu0
      %v1295 = vadd.f32 0.0, %v1294
      %1296 = vmatmul.f32.gmra.mxu0 %v1113
      %v1297 = vpop.f32.mrf.mxu0
      %v1298 = vadd.f32 0.0, %v1297
      %1299 = vmatmul.f32.gmra.mxu0 %v1116
      %v1300 = vpop.f32.mrf.mxu0
      %v1301 = vadd.f32 0.0, %v1300
      %1302 = vmatmul.f32.gmra.mxu0 %v1119
      %v1303 = vpop.f32.mrf.mxu0
      %v1304 = vadd.f32 0.0, %v1303
      %1305 = vmatmul.f32.gmra.mxu0 %v1122
      %v1306 = vpop.f32.mrf.mxu0
      %v1307 = vadd.f32 0.0, %v1306
      %1308 = vmatmul.f32.gmra.mxu0 %v1125
      %v1309 = vpop.f32.mrf.mxu0
      %v1310 = vadd.f32 0.0, %v1309
      %1311 = vmatmul.f32.gmra.mxu0 %v1128
      %v1312 = vpop.f32.mrf.mxu0
      %v1313 = vadd.f32 0.0, %v1312
      %1314 = vmatmul.f32.gmra.mxu0 %v1131
      %v1315 = vpop.f32.mrf.mxu0
      %v1316 = vadd.f32 0.0, %v1315
      %1317 = vmatmul.f32.gmra.mxu0 %v1134
      %v1318 = vpop.f32.mrf.mxu0
      %v1319 = vadd.f32 0.0, %v1318
      %1320 = vmatmul.f32.gmra.mxu0 %v1137
      %v1321 = vpop.f32.mrf.mxu0
      %v1322 = vadd.f32 0.0, %v1321
      %1323 = vmatmul.f32.gmra.mxu0 %v1140
      %v1324 = vpop.f32.mrf.mxu0
      %v1325 = vadd.f32 0.0, %v1324
      %1326 = vmatmul.f32.gmra.mxu0 %v1143
      %v1327 = vpop.f32.mrf.mxu0
      %v1328 = vadd.f32 0.0, %v1327
      %1329 = vmatmul.f32.gmra.mxu0 %v1146
      %v1330 = vpop.f32.mrf.mxu0
      %v1331 = vadd.f32 0.0, %v1330
      %1332 = vmatmul.f32.gmra.mxu0 %v1149
      %v1333 = vpop.f32.mrf.mxu0
      %v1334 = vadd.f32 0.0, %v1333
      %1335 = vmatmul.f32.gmra.mxu0 %v1152
      %v1336 = vpop.f32.mrf.mxu0
      %v1337 = vadd.f32 0.0, %v1336
      %1338 = vmatmul.f32.gmra.mxu0 %v1155
      %v1339 = vpop.f32.mrf.mxu0
      %v1340 = vadd.f32 0.0, %v1339
      %1341 = vmatmul.f32.gmra.mxu0 %v1158
      %v1342 = vpop.f32.mrf.mxu0
      %v1343 = vadd.f32 0.0, %v1342
      %1344 = vmatmul.f32.gmra.mxu0 %v1161
      %v1345 = vpop.f32.mrf.mxu0
      %v1346 = vadd.f32 0.0, %v1345
      %1347 = vmatmul.f32.gmra.mxu0 %v1164
      %v1348 = vpop.f32.mrf.mxu0
      %v1349 = vadd.f32 0.0, %v1348
      %1350 = vmatmul.f32.gmra.mxu0 %v1167
      %v1351 = vpop.f32.mrf.mxu0
      %v1352 = vadd.f32 0.0, %v1351
      %1353 = vmatmul.f32.gmra.mxu0 %v1170
      %v1354 = vpop.f32.mrf.mxu0
      %v1355 = vadd.f32 0.0, %v1354
      %1356 = vmatmul.f32.gmra.mxu0 %v1173
      %v1357 = vpop.f32.mrf.mxu0
      %v1358 = vadd.f32 0.0, %v1357
      %1359 = vmatmul.f32.gmra.mxu0 %v1176
      %v1360 = vpop.f32.mrf.mxu0
      %v1361 = vadd.f32 0.0, %v1360
      %1362 = vmatmul.f32.gmra.mxu0 %v1179
      %v1363 = vpop.f32.mrf.mxu0
      %v1364 = vadd.f32 0.0, %v1363
      %1365 = vmatmul.f32.gmra.mxu0 %v1182
      %v1366 = vpop.f32.mrf.mxu0
      %v1367 = vadd.f32 0.0, %v1366
      %1368 = vmatmul.f32.gmra.mxu0 %v1185
      %v1369 = vpop.f32.mrf.mxu0
      %v1370 = vadd.f32 0.0, %v1369
      %1371 = vmatmul.f32.gmra.mxu0 %v1188
      %v1372 = vpop.f32.mrf.mxu0
      %v1373 = vadd.f32 0.0, %v1372
      %1374 = vmatmul.f32.gmra.mxu0 %v1191
      %v1375 = vpop.f32.mrf.mxu0
      %v1376 = vadd.f32 0.0, %v1375
      %1377 = vmatmul.f32.gmra.mxu0 %v1194
      %v1378 = vpop.f32.mrf.mxu0
      %v1379 = vadd.f32 0.0, %v1378
      %1380 = vmatmul.f32.gmra.mxu0 %v1197
      %v1381 = vpop.f32.mrf.mxu0
      %v1382 = vadd.f32 0.0, %v1381
      %1383 = vmatmul.f32.gmra.mxu0 %v1200
      %v1384 = vpop.f32.mrf.mxu0
      %v1385 = vadd.f32 0.0, %v1384
      %1386 = vmatmul.f32.gmra.mxu0 %v1203
      %v1387 = vpop.f32.mrf.mxu0
      %v1388 = vadd.f32 0.0, %v1387
      %1389 = vmatmul.f32.gmra.mxu0 %v1206
      %v1390 = vpop.f32.mrf.mxu0
      %v1391 = vadd.f32 0.0, %v1390
      %1392 = vdwg.mxu0
      %v1393 = vadd.f32 %v822, %v1229
      %v1394 = vadd.f32 %v825, %v1232
      %v1395 = vadd.f32 %v828, %v1235
      %v1396 = vadd.f32 %v831, %v1238
      %v1397 = vadd.f32 %v834, %v1241
      %v1398 = vadd.f32 %v837, %v1244
      %v1399 = vadd.f32 %v840, %v1247
      %v1400 = vadd.f32 %v843, %v1250
      %v1401 = vadd.f32 %v846, %v1253
      %v1402 = vadd.f32 %v849, %v1256
      %v1403 = vadd.f32 %v852, %v1259
      %v1404 = vadd.f32 %v855, %v1262
      %v1405 = vadd.f32 %v858, %v1265
      %v1406 = vadd.f32 %v861, %v1268
      %v1407 = vadd.f32 %v864, %v1271
      %v1408 = vadd.f32 %v867, %v1274
      %v1409 = vadd.f32 %v870, %v1277
      %v1410 = vadd.f32 %v873, %v1280
      %v1411 = vadd.f32 %v876, %v1283
      %v1412 = vadd.f32 %v879, %v1286
      %v1413 = vadd.f32 %v882, %v1289
      %v1414 = vadd.f32 %v885, %v1292
      %v1415 = vadd.f32 %v888, %v1295
      %v1416 = vadd.f32 %v891, %v1298
      %v1417 = vadd.f32 %v894, %v1301
      %v1418 = vadd.f32 %v897, %v1304
      %v1419 = vadd.f32 %v900, %v1307
      %v1420 = vadd.f32 %v903, %v1310
      %v1421 = vadd.f32 %v906, %v1313
      %v1422 = vadd.f32 %v909, %v1316
      %v1423 = vadd.f32 %v912, %v1319
      %v1424 = vadd.f32 %v915, %v1322
      %v1425 = vadd.f32 %v918, %v1325
      %v1426 = vadd.f32 %v921, %v1328
      %v1427 = vadd.f32 %v924, %v1331
      %v1428 = vadd.f32 %v927, %v1334
      %v1429 = vadd.f32 %v930, %v1337
      %v1430 = vadd.f32 %v933, %v1340
      %v1431 = vadd.f32 %v936, %v1343
      %v1432 = vadd.f32 %v939, %v1346
      %v1433 = vadd.f32 %v942, %v1349
      %v1434 = vadd.f32 %v945, %v1352
      %v1435 = vadd.f32 %v948, %v1355
      %v1436 = vadd.f32 %v951, %v1358
      %v1437 = vadd.f32 %v954, %v1361
      %v1438 = vadd.f32 %v957, %v1364
      %v1439 = vadd.f32 %v960, %v1367
      %v1440 = vadd.f32 %v963, %v1370
      %v1441 = vadd.f32 %v966, %v1373
      %v1442 = vadd.f32 %v969, %v1376
      %v1443 = vadd.f32 %v972, %v1379
      %v1444 = vadd.f32 %v975, %v1382
      %v1445 = vadd.f32 %v978, %v1385
      %v1446 = vadd.f32 %v981, %v1388
      %v1447 = vadd.f32 %v984, %v1391
      %v1448 = vld [vmem:[%s165 + $0x16] sm:$0xff]
      %v1449 = vld [vmem:[%s165 + $0x1e] sm:$0xff]
      %v1450 = vld [vmem:[%s165 + $0x26] sm:$0xff]
      %v1451 = vld [vmem:[%s165 + $0x2e] sm:$0xff]
      %v1452 = vld [vmem:[%s165 + $0x36] sm:$0xff]
      %v1453 = vld [vmem:[%s165 + $0x3e] sm:$0xff]
      %v1454 = vld [vmem:[%s165 + $0x46] sm:$0xff]
      %v1455 = vld [vmem:[%s165 + $0x4e] sm:$0xff]
      %v1456 = vld [vmem:[%s165 + $0x56] sm:$0xff]
      %v1457 = vld [vmem:[%s165 + $0x5e] sm:$0xff]
      %v1458 = vld [vmem:[%s165 + $0x66] sm:$0xff]
      %v1459 = vld [vmem:[%s165 + $0x6e] sm:$0xff]
      %v1460 = vld [vmem:[%s165 + $0x76] sm:$0xff]
      %v1461 = vld [vmem:[%s165 + $0x7e] sm:$0xff]
      %v1462 = vld [vmem:[%s165 + $0x86] sm:$0xff]
      %v1463 = vld [vmem:[%s165 + $0x8e] sm:$0xff]
      %v1464 = vld [vmem:[%s165 + $0x96] sm:$0xff]
      %v1465 = vld [vmem:[%s165 + $0x9e] sm:$0xff]
      %v1466 = vld [vmem:[%s165 + $0xa6] sm:$0xff]
      %v1467 = vld [vmem:[%s165 + $0xae] sm:$0xff]
      %v1468 = vld [vmem:[%s165 + $0xb6] sm:$0xff]
      %v1469 = vld [vmem:[%s165 + $0xbe] sm:$0xff]
      %v1470 = vld [vmem:[%s165 + $0xc6] sm:$0xff]
      %v1471 = vld [vmem:[%s165 + $0xce] sm:$0xff]
      %v1472 = vld [vmem:[%s165 + $0xd6] sm:$0xff]
      %v1473 = vld [vmem:[%s165 + $0xde] sm:$0xff]
      %v1474 = vld [vmem:[%s165 + $0xe6] sm:$0xff]
      %v1475 = vld [vmem:[%s165 + $0xee] sm:$0xff]
      %v1476 = vld [vmem:[%s165 + $0xf6] sm:$0xff]
      %v1477 = vld [vmem:[%s165 + $0xfe] sm:$0xff]
      %v1478 = vld [vmem:[%s165 + $0x106] sm:$0xff]
      %v1479 = vld [vmem:[%s165 + $0x10e] sm:$0xff]
      %v1480 = vld [vmem:[%s165 + $0x116] sm:$0xff]
      %v1481 = vld [vmem:[%s165 + $0x11e] sm:$0xff]
      %v1482 = vld [vmem:[%s165 + $0x126] sm:$0xff]
      %v1483 = vld [vmem:[%s165 + $0x12e] sm:$0xff]
      %v1484 = vld [vmem:[%s165 + $0x136] sm:$0xff]
      %v1485 = vld [vmem:[%s165 + $0x13e] sm:$0xff]
      %v1486 = vld [vmem:[%s165 + $0x146] sm:$0xff]
      %v1487 = vld [vmem:[%s165 + $0x14e] sm:$0xff]
      %v1488 = vld [vmem:[%s165 + $0x156] sm:$0xff]
      %v1489 = vld [vmem:[%s165 + $0x15e] sm:$0xff]
      %v1490 = vld [vmem:[%s165 + $0x166] sm:$0xff]
      %v1491 = vld [vmem:[%s165 + $0x16e] sm:$0xff]
      %v1492 = vld [vmem:[%s165 + $0x176] sm:$0xff]
      %v1493 = vld [vmem:[%s165 + $0x17e] sm:$0xff]
      %v1494 = vld [vmem:[%s165 + $0x186] sm:$0xff]
      %v1495 = vld [vmem:[%s165 + $0x18e] sm:$0xff]
      %v1496 = vld [vmem:[%s165 + $0x196] sm:$0xff]
      %v1497 = vld [vmem:[%s165 + $0x19e] sm:$0xff]
      %v1498 = vld [vmem:[%s165 + $0x1a6] sm:$0xff]
      %v1499 = vld [vmem:[%s165 + $0x1ae] sm:$0xff]
      %v1500 = vld [vmem:[%s165 + $0x1b6] sm:$0xff]
      %v1501 = vld [vmem:[%s165 + $0x1be] sm:$0xff]
      %v1502 = vld [vmem:[%s165 + $0x1c6] sm:$0x3f]
      %s1503 = scalar_lea.vmem %s1, 12
      %v1504 = vld [vmem:[%s1503] sm:$0x7]
      %v1506 = vsel %vm284, %v1448, 0
      %v1509 = vsel %vm284, %v1449, 0
      %v1512 = vsel %vm284, %v1450, 0
      %v1515 = vsel %vm284, %v1451, 0
      %v1518 = vsel %vm284, %v1452, 0
      %v1521 = vsel %vm284, %v1453, 0
      %v1524 = vsel %vm284, %v1454, 0
      %v1527 = vsel %vm284, %v1455, 0
      %v1530 = vsel %vm284, %v1456, 0
      %v1533 = vsel %vm284, %v1457, 0
      %v1536 = vsel %vm284, %v1458, 0
      %v1539 = vsel %vm284, %v1459, 0
      %v1542 = vsel %vm284, %v1460, 0
      %v1545 = vsel %vm284, %v1461, 0
      %v1548 = vsel %vm284, %v1462, 0
      %v1551 = vsel %vm284, %v1463, 0
      %v1554 = vsel %vm284, %v1464, 0
      %v1557 = vsel %vm284, %v1465, 0
      %v1560 = vsel %vm284, %v1466, 0
      %v1563 = vsel %vm284, %v1467, 0
      %v1566 = vsel %vm284, %v1468, 0
      %v1569 = vsel %vm284, %v1469, 0
      %v1572 = vsel %vm284, %v1470, 0
      %v1575 = vsel %vm284, %v1471, 0
      %v1578 = vsel %vm284, %v1472, 0
      %v1581 = vsel %vm284, %v1473, 0
      %v1584 = vsel %vm284, %v1474, 0
      %v1587 = vsel %vm284, %v1475, 0
      %v1590 = vsel %vm284, %v1476, 0
      %v1593 = vsel %vm284, %v1477, 0
      %v1596 = vsel %vm284, %v1478, 0
      %v1599 = vsel %vm284, %v1479, 0
      %v1602 = vsel %vm284, %v1480, 0
      %v1605 = vsel %vm284, %v1481, 0
      %v1608 = vsel %vm284, %v1482, 0
      %v1611 = vsel %vm284, %v1483, 0
      %v1614 = vsel %vm284, %v1484, 0
      %v1617 = vsel %vm284, %v1485, 0
      %v1620 = vsel %vm284, %v1486, 0
      %v1623 = vsel %vm284, %v1487, 0
      %v1626 = vsel %vm284, %v1488, 0
      %v1629 = vsel %vm284, %v1489, 0
      %v1632 = vsel %vm284, %v1490, 0
      %v1635 = vsel %vm284, %v1491, 0
      %v1638 = vsel %vm284, %v1492, 0
      %v1641 = vsel %vm284, %v1493, 0
      %v1644 = vsel %vm284, %v1494, 0
      %v1647 = vsel %vm284, %v1495, 0
      %v1650 = vsel %vm284, %v1496, 0
      %v1653 = vsel %vm284, %v1497, 0
      %v1656 = vsel %vm284, %v1498, 0
      %v1659 = vsel %vm284, %v1499, 0
      %v1662 = vsel %vm284, %v1500, 0
      %v1665 = vsel %vm284, %v1501, 0
      %v1668 = vsel %vm284, %v1502, 0
      %v1671 = vsel %vm450, %v1504, 0
      %1673 = vmatpush.msra.mxu0 0.0
      %1674 = vmatpush.msra.mxu0 0.0
      %1675 = vmatpush.msra.mxu0 0.0
      %1676 = vmatpush.msra.mxu0 0.0
      %1677 = vmatpush.msra.mxu0 0.0
      %1678 = vmatpush.msra.mxu0 0.0
      %1679 = vmatpush.msra.mxu0 0.0
      %1680 = vmatpush.msra.mxu0 0.0
      %1681 = vmatpush.msra.mxu0 0.0
      %1682 = vmatpush.msra.mxu0 0.0
      %1683 = vmatpush.msra.mxu0 0.0
      %1684 = vmatpush.msra.mxu0 0.0
      %1685 = vmatpush.msra.mxu0 0.0
      %1686 = vmatpush.msra.mxu0 0.0
      %1687 = vmatpush.msra.mxu0 0.0
      %1688 = vmatpush.msra.mxu0 %v1671
      %1689 = vmatmul.f32.gmra.mxu0 %v1506
      %v1690 = vpop.f32.mrf.mxu0
      %v1691 = vadd.f32 0.0, %v1690
      %1692 = vmatmul.f32.gmra.mxu0 %v1509
      %v1693 = vpop.f32.mrf.mxu0
      %v1694 = vadd.f32 0.0, %v1693
      %1695 = vmatmul.f32.gmra.mxu0 %v1512
      %v1696 = vpop.f32.mrf.mxu0
      %v1697 = vadd.f32 0.0, %v1696
      %1698 = vmatmul.f32.gmra.mxu0 %v1515
      %v1699 = vpop.f32.mrf.mxu0
      %v1700 = vadd.f32 0.0, %v1699
      %1701 = vmatmul.f32.gmra.mxu0 %v1518
      %v1702 = vpop.f32.mrf.mxu0
      %v1703 = vadd.f32 0.0, %v1702
      %1704 = vmatmul.f32.gmra.mxu0 %v1521
      %v1705 = vpop.f32.mrf.mxu0
      %v1706 = vadd.f32 0.0, %v1705
      %1707 = vmatmul.f32.gmra.mxu0 %v1524
      %v1708 = vpop.f32.mrf.mxu0
      %v1709 = vadd.f32 0.0, %v1708
      %1710 = vmatmul.f32.gmra.mxu0 %v1527
      %v1711 = vpop.f32.mrf.mxu0
      %v1712 = vadd.f32 0.0, %v1711
      %1713 = vmatmul.f32.gmra.mxu0 %v1530
      %v1714 = vpop.f32.mrf.mxu0
      %v1715 = vadd.f32 0.0, %v1714
      %1716 = vmatmul.f32.gmra.mxu0 %v1533
      %v1717 = vpop.f32.mrf.mxu0
      %v1718 = vadd.f32 0.0, %v1717
      %1719 = vmatmul.f32.gmra.mxu0 %v1536
      %v1720 = vpop.f32.mrf.mxu0
      %v1721 = vadd.f32 0.0, %v1720
      %1722 = vmatmul.f32.gmra.mxu0 %v1539
      %v1723 = vpop.f32.mrf.mxu0
      %v1724 = vadd.f32 0.0, %v1723
      %1725 = vmatmul.f32.gmra.mxu0 %v1542
      %v1726 = vpop.f32.mrf.mxu0
      %v1727 = vadd.f32 0.0, %v1726
      %1728 = vmatmul.f32.gmra.mxu0 %v1545
      %v1729 = vpop.f32.mrf.mxu0
      %v1730 = vadd.f32 0.0, %v1729
      %1731 = vmatmul.f32.gmra.mxu0 %v1548
      %v1732 = vpop.f32.mrf.mxu0
      %v1733 = vadd.f32 0.0, %v1732
      %1734 = vmatmul.f32.gmra.mxu0 %v1551
      %v1735 = vpop.f32.mrf.mxu0
      %v1736 = vadd.f32 0.0, %v1735
      %1737 = vmatmul.f32.gmra.mxu0 %v1554
      %v1738 = vpop.f32.mrf.mxu0
      %v1739 = vadd.f32 0.0, %v1738
      %1740 = vmatmul.f32.gmra.mxu0 %v1557
      %v1741 = vpop.f32.mrf.mxu0
      %v1742 = vadd.f32 0.0, %v1741
      %1743 = vmatmul.f32.gmra.mxu0 %v1560
      %v1744 = vpop.f32.mrf.mxu0
      %v1745 = vadd.f32 0.0, %v1744
      %1746 = vmatmul.f32.gmra.mxu0 %v1563
      %v1747 = vpop.f32.mrf.mxu0
      %v1748 = vadd.f32 0.0, %v1747
      %1749 = vmatmul.f32.gmra.mxu0 %v1566
      %v1750 = vpop.f32.mrf.mxu0
      %v1751 = vadd.f32 0.0, %v1750
      %1752 = vmatmul.f32.gmra.mxu0 %v1569
      %v1753 = vpop.f32.mrf.mxu0
      %v1754 = vadd.f32 0.0, %v1753
      %1755 = vmatmul.f32.gmra.mxu0 %v1572
      %v1756 = vpop.f32.mrf.mxu0
      %v1757 = vadd.f32 0.0, %v1756
      %1758 = vmatmul.f32.gmra.mxu0 %v1575
      %v1759 = vpop.f32.mrf.mxu0
      %v1760 = vadd.f32 0.0, %v1759
      %1761 = vmatmul.f32.gmra.mxu0 %v1578
      %v1762 = vpop.f32.mrf.mxu0
      %v1763 = vadd.f32 0.0, %v1762
      %1764 = vmatmul.f32.gmra.mxu0 %v1581
      %v1765 = vpop.f32.mrf.mxu0
      %v1766 = vadd.f32 0.0, %v1765
      %1767 = vmatmul.f32.gmra.mxu0 %v1584
      %v1768 = vpop.f32.mrf.mxu0
      %v1769 = vadd.f32 0.0, %v1768
      %1770 = vmatmul.f32.gmra.mxu0 %v1587
      %v1771 = vpop.f32.mrf.mxu0
      %v1772 = vadd.f32 0.0, %v1771
      %1773 = vmatmul.f32.gmra.mxu0 %v1590
      %v1774 = vpop.f32.mrf.mxu0
      %v1775 = vadd.f32 0.0, %v1774
      %1776 = vmatmul.f32.gmra.mxu0 %v1593
      %v1777 = vpop.f32.mrf.mxu0
      %v1778 = vadd.f32 0.0, %v1777
      %1779 = vmatmul.f32.gmra.mxu0 %v1596
      %v1780 = vpop.f32.mrf.mxu0
      %v1781 = vadd.f32 0.0, %v1780
      %1782 = vmatmul.f32.gmra.mxu0 %v1599
      %v1783 = vpop.f32.mrf.mxu0
      %v1784 = vadd.f32 0.0, %v1783
      %1785 = vmatmul.f32.gmra.mxu0 %v1602
      %v1786 = vpop.f32.mrf.mxu0
      %v1787 = vadd.f32 0.0, %v1786
      %1788 = vmatmul.f32.gmra.mxu0 %v1605
      %v1789 = vpop.f32.mrf.mxu0
      %v1790 = vadd.f32 0.0, %v1789
      %1791 = vmatmul.f32.gmra.mxu0 %v1608
      %v1792 = vpop.f32.mrf.mxu0
      %v1793 = vadd.f32 0.0, %v1792
      %1794 = vmatmul.f32.gmra.mxu0 %v1611
      %v1795 = vpop.f32.mrf.mxu0
      %v1796 = vadd.f32 0.0, %v1795
      %1797 = vmatmul.f32.gmra.mxu0 %v1614
      %v1798 = vpop.f32.mrf.mxu0
      %v1799 = vadd.f32 0.0, %v1798
      %1800 = vmatmul.f32.gmra.mxu0 %v1617
      %v1801 = vpop.f32.mrf.mxu0
      %v1802 = vadd.f32 0.0, %v1801
      %1803 = vmatmul.f32.gmra.mxu0 %v1620
      %v1804 = vpop.f32.mrf.mxu0
      %v1805 = vadd.f32 0.0, %v1804
      %1806 = vmatmul.f32.gmra.mxu0 %v1623
      %v1807 = vpop.f32.mrf.mxu0
      %v1808 = vadd.f32 0.0, %v1807
      %1809 = vmatmul.f32.gmra.mxu0 %v1626
      %v1810 = vpop.f32.mrf.mxu0
      %v1811 = vadd.f32 0.0, %v1810
      %1812 = vmatmul.f32.gmra.mxu0 %v1629
      %v1813 = vpop.f32.mrf.mxu0
      %v1814 = vadd.f32 0.0, %v1813
      %1815 = vmatmul.f32.gmra.mxu0 %v1632
      %v1816 = vpop.f32.mrf.mxu0
      %v1817 = vadd.f32 0.0, %v1816
      %1818 = vmatmul.f32.gmra.mxu0 %v1635
      %v1819 = vpop.f32.mrf.mxu0
      %v1820 = vadd.f32 0.0, %v1819
      %1821 = vmatmul.f32.gmra.mxu0 %v1638
      %v1822 = vpop.f32.mrf.mxu0
      %v1823 = vadd.f32 0.0, %v1822
      %1824 = vmatmul.f32.gmra.mxu0 %v1641
      %v1825 = vpop.f32.mrf.mxu0
      %v1826 = vadd.f32 0.0, %v1825
      %1827 = vmatmul.f32.gmra.mxu0 %v1644
      %v1828 = vpop.f32.mrf.mxu0
      %v1829 = vadd.f32 0.0, %v1828
      %1830 = vmatmul.f32.gmra.mxu0 %v1647
      %v1831 = vpop.f32.mrf.mxu0
      %v1832 = vadd.f32 0.0, %v1831
      %1833 = vmatmul.f32.gmra.mxu0 %v1650
      %v1834 = vpop.f32.mrf.mxu0
      %v1835 = vadd.f32 0.0, %v1834
      %1836 = vmatmul.f32.gmra.mxu0 %v1653
      %v1837 = vpop.f32.mrf.mxu0
      %v1838 = vadd.f32 0.0, %v1837
      %1839 = vmatmul.f32.gmra.mxu0 %v1656
      %v1840 = vpop.f32.mrf.mxu0
      %v1841 = vadd.f32 0.0, %v1840
      %1842 = vmatmul.f32.gmra.mxu0 %v1659
      %v1843 = vpop.f32.mrf.mxu0
      %v1844 = vadd.f32 0.0, %v1843
      %1845 = vmatmul.f32.gmra.mxu0 %v1662
      %v1846 = vpop.f32.mrf.mxu0
      %v1847 = vadd.f32 0.0, %v1846
      %1848 = vmatmul.f32.gmra.mxu0 %v1665
      %v1849 = vpop.f32.mrf.mxu0
      %v1850 = vadd.f32 0.0, %v1849
      %1851 = vmatmul.f32.gmra.mxu0 %v1668
      %v1852 = vpop.f32.mrf.mxu0
      %v1853 = vadd.f32 0.0, %v1852
      %1854 = vdwg.mxu0
      %v1855 = vadd.f32 %v1393, %v1691
      %v1856 = vadd.f32 %v1394, %v1694
      %v1857 = vadd.f32 %v1395, %v1697
      %v1858 = vadd.f32 %v1396, %v1700
      %v1859 = vadd.f32 %v1397, %v1703
      %v1860 = vadd.f32 %v1398, %v1706
      %v1861 = vadd.f32 %v1399, %v1709
      %v1862 = vadd.f32 %v1400, %v1712
      %v1863 = vadd.f32 %v1401, %v1715
      %v1864 = vadd.f32 %v1402, %v1718
      %v1865 = vadd.f32 %v1403, %v1721
      %v1866 = vadd.f32 %v1404, %v1724
      %v1867 = vadd.f32 %v1405, %v1727
      %v1868 = vadd.f32 %v1406, %v1730
      %v1869 = vadd.f32 %v1407, %v1733
      %v1870 = vadd.f32 %v1408, %v1736
      %v1871 = vadd.f32 %v1409, %v1739
      %v1872 = vadd.f32 %v1410, %v1742
      %v1873 = vadd.f32 %v1411, %v1745
      %v1874 = vadd.f32 %v1412, %v1748
      %v1875 = vadd.f32 %v1413, %v1751
      %v1876 = vadd.f32 %v1414, %v1754
      %v1877 = vadd.f32 %v1415, %v1757
      %v1878 = vadd.f32 %v1416, %v1760
      %v1879 = vadd.f32 %v1417, %v1763
      %v1880 = vadd.f32 %v1418, %v1766
      %v1881 = vadd.f32 %v1419, %v1769
      %v1882 = vadd.f32 %v1420, %v1772
      %v1883 = vadd.f32 %v1421, %v1775
      %v1884 = vadd.f32 %v1422, %v1778
      %v1885 = vadd.f32 %v1423, %v1781
      %v1886 = vadd.f32 %v1424, %v1784
      %v1887 = vadd.f32 %v1425, %v1787
      %v1888 = vadd.f32 %v1426, %v1790
      %v1889 = vadd.f32 %v1427, %v1793
      %v1890 = vadd.f32 %v1428, %v1796
      %v1891 = vadd.f32 %v1429, %v1799
      %v1892 = vadd.f32 %v1430, %v1802
      %v1893 = vadd.f32 %v1431, %v1805
      %v1894 = vadd.f32 %v1432, %v1808
      %v1895 = vadd.f32 %v1433, %v1811
      %v1896 = vadd.f32 %v1434, %v1814
      %v1897 = vadd.f32 %v1435, %v1817
      %v1898 = vadd.f32 %v1436, %v1820
      %v1899 = vadd.f32 %v1437, %v1823
      %v1900 = vadd.f32 %v1438, %v1826
      %v1901 = vadd.f32 %v1439, %v1829
      %v1902 = vadd.f32 %v1440, %v1832
      %v1903 = vadd.f32 %v1441, %v1835
      %v1904 = vadd.f32 %v1442, %v1838
      %v1905 = vadd.f32 %v1443, %v1841
      %v1906 = vadd.f32 %v1444, %v1844
      %v1907 = vadd.f32 %v1445, %v1847
      %v1908 = vadd.f32 %v1446, %v1850
      %v1909 = vadd.f32 %v1447, %v1853
      %v1910 = vld [vmem:[%s165 + $0x17] sm:$0xff]
      %v1911 = vld [vmem:[%s165 + $0x1f] sm:$0xff]
      %v1912 = vld [vmem:[%s165 + $0x27] sm:$0xff]
      %v1913 = vld [vmem:[%s165 + $0x2f] sm:$0xff]
      %v1914 = vld [vmem:[%s165 + $0x37] sm:$0xff]
      %v1915 = vld [vmem:[%s165 + $0x3f] sm:$0xff]
      %v1916 = vld [vmem:[%s165 + $0x47] sm:$0xff]
      %v1917 = vld [vmem:[%s165 + $0x4f] sm:$0xff]
      %v1918 = vld [vmem:[%s165 + $0x57] sm:$0xff]
      %v1919 = vld [vmem:[%s165 + $0x5f] sm:$0xff]
      %v1920 = vld [vmem:[%s165 + $0x67] sm:$0xff]
      %v1921 = vld [vmem:[%s165 + $0x6f] sm:$0xff]
      %v1922 = vld [vmem:[%s165 + $0x77] sm:$0xff]
      %v1923 = vld [vmem:[%s165 + $0x7f] sm:$0xff]
      %v1924 = vld [vmem:[%s165 + $0x87] sm:$0xff]
      %v1925 = vld [vmem:[%s165 + $0x8f] sm:$0xff]
      %v1926 = vld [vmem:[%s165 + $0x97] sm:$0xff]
      %v1927 = vld [vmem:[%s165 + $0x9f] sm:$0xff]
      %v1928 = vld [vmem:[%s165 + $0xa7] sm:$0xff]
      %v1929 = vld [vmem:[%s165 + $0xaf] sm:$0xff]
      %v1930 = vld [vmem:[%s165 + $0xb7] sm:$0xff]
      %v1931 = vld [vmem:[%s165 + $0xbf] sm:$0xff]
      %v1932 = vld [vmem:[%s165 + $0xc7] sm:$0xff]
      %v1933 = vld [vmem:[%s165 + $0xcf] sm:$0xff]
      %v1934 = vld [vmem:[%s165 + $0xd7] sm:$0xff]
      %v1935 = vld [vmem:[%s165 + $0xdf] sm:$0xff]
      %v1936 = vld [vmem:[%s165 + $0xe7] sm:$0xff]
      %v1937 = vld [vmem:[%s165 + $0xef] sm:$0xff]
      %v1938 = vld [vmem:[%s165 + $0xf7] sm:$0xff]
      %v1939 = vld [vmem:[%s165 + $0xff] sm:$0xff]
      %v1940 = vld [vmem:[%s165 + $0x107] sm:$0xff]
      %v1941 = vld [vmem:[%s165 + $0x10f] sm:$0xff]
      %v1942 = vld [vmem:[%s165 + $0x117] sm:$0xff]
      %v1943 = vld [vmem:[%s165 + $0x11f] sm:$0xff]
      %v1944 = vld [vmem:[%s165 + $0x127] sm:$0xff]
      %v1945 = vld [vmem:[%s165 + $0x12f] sm:$0xff]
      %v1946 = vld [vmem:[%s165 + $0x137] sm:$0xff]
      %v1947 = vld [vmem:[%s165 + $0x13f] sm:$0xff]
      %v1948 = vld [vmem:[%s165 + $0x147] sm:$0xff]
      %v1949 = vld [vmem:[%s165 + $0x14f] sm:$0xff]
      %v1950 = vld [vmem:[%s165 + $0x157] sm:$0xff]
      %v1951 = vld [vmem:[%s165 + $0x15f] sm:$0xff]
      %v1952 = vld [vmem:[%s165 + $0x167] sm:$0xff]
      %v1953 = vld [vmem:[%s165 + $0x16f] sm:$0xff]
      %v1954 = vld [vmem:[%s165 + $0x177] sm:$0xff]
      %v1955 = vld [vmem:[%s165 + $0x17f] sm:$0xff]
      %v1956 = vld [vmem:[%s165 + $0x187] sm:$0xff]
      %v1957 = vld [vmem:[%s165 + $0x18f] sm:$0xff]
      %v1958 = vld [vmem:[%s165 + $0x197] sm:$0xff]
      %v1959 = vld [vmem:[%s165 + $0x19f] sm:$0xff]
      %v1960 = vld [vmem:[%s165 + $0x1a7] sm:$0xff]
      %v1961 = vld [vmem:[%s165 + $0x1af] sm:$0xff]
      %v1962 = vld [vmem:[%s165 + $0x1b7] sm:$0xff]
      %v1963 = vld [vmem:[%s165 + $0x1bf] sm:$0xff]
      %v1964 = vld [vmem:[%s165 + $0x1c7] sm:$0x3f]
      %s1965 = scalar_lea.vmem %s1, 16
      %v1966 = vld [vmem:[%s1965] sm:$0x7]
      %v1968 = vsel %vm284, %v1910, 0
      %v1971 = vsel %vm284, %v1911, 0
      %v1974 = vsel %vm284, %v1912, 0
      %v1977 = vsel %vm284, %v1913, 0
      %v1980 = vsel %vm284, %v1914, 0
      %v1983 = vsel %vm284, %v1915, 0
      %v1986 = vsel %vm284, %v1916, 0
      %v1989 = vsel %vm284, %v1917, 0
      %v1992 = vsel %vm284, %v1918, 0
      %v1995 = vsel %vm284, %v1919, 0
      %v1998 = vsel %vm284, %v1920, 0
      %v2001 = vsel %vm284, %v1921, 0
      %v2004 = vsel %vm284, %v1922, 0
      %v2007 = vsel %vm284, %v1923, 0
      %v2010 = vsel %vm284, %v1924, 0
      %v2013 = vsel %vm284, %v1925, 0
      %v2016 = vsel %vm284, %v1926, 0
      %v2019 = vsel %vm284, %v1927, 0
      %v2022 = vsel %vm284, %v1928, 0
      %v2025 = vsel %vm284, %v1929, 0
      %v2028 = vsel %vm284, %v1930, 0
      %v2031 = vsel %vm284, %v1931, 0
      %v2034 = vsel %vm284, %v1932, 0
      %v2037 = vsel %vm284, %v1933, 0
      %v2040 = vsel %vm284, %v1934, 0
      %v2043 = vsel %vm284, %v1935, 0
      %v2046 = vsel %vm284, %v1936, 0
      %v2049 = vsel %vm284, %v1937, 0
      %v2052 = vsel %vm284, %v1938, 0
      %v2055 = vsel %vm284, %v1939, 0
      %v2058 = vsel %vm284, %v1940, 0
      %v2061 = vsel %vm284, %v1941, 0
      %v2064 = vsel %vm284, %v1942, 0
      %v2067 = vsel %vm284, %v1943, 0
      %v2070 = vsel %vm284, %v1944, 0
      %v2073 = vsel %vm284, %v1945, 0
      %v2076 = vsel %vm284, %v1946, 0
      %v2079 = vsel %vm284, %v1947, 0
      %v2082 = vsel %vm284, %v1948, 0
      %v2085 = vsel %vm284, %v1949, 0
      %v2088 = vsel %vm284, %v1950, 0
      %v2091 = vsel %vm284, %v1951, 0
      %v2094 = vsel %vm284, %v1952, 0
      %v2097 = vsel %vm284, %v1953, 0
      %v2100 = vsel %vm284, %v1954, 0
      %v2103 = vsel %vm284, %v1955, 0
      %v2106 = vsel %vm284, %v1956, 0
      %v2109 = vsel %vm284, %v1957, 0
      %v2112 = vsel %vm284, %v1958, 0
      %v2115 = vsel %vm284, %v1959, 0
      %v2118 = vsel %vm284, %v1960, 0
      %v2121 = vsel %vm284, %v1961, 0
      %v2124 = vsel %vm284, %v1962, 0
      %v2127 = vsel %vm284, %v1963, 0
      %v2130 = vsel %vm284, %v1964, 0
      %v2133 = vsel %vm450, %v1966, 0
      %2135 = vmatpush.msra.mxu0 0.0
      %2136 = vmatpush.msra.mxu0 0.0
      %2137 = vmatpush.msra.mxu0 0.0
      %2138 = vmatpush.msra.mxu0 0.0
      %2139 = vmatpush.msra.mxu0 0.0
      %2140 = vmatpush.msra.mxu0 0.0
      %2141 = vmatpush.msra.mxu0 0.0
      %2142 = vmatpush.msra.mxu0 0.0
      %2143 = vmatpush.msra.mxu0 0.0
      %2144 = vmatpush.msra.mxu0 0.0
      %2145 = vmatpush.msra.mxu0 0.0
      %2146 = vmatpush.msra.mxu0 0.0
      %2147 = vmatpush.msra.mxu0 0.0
      %2148 = vmatpush.msra.mxu0 0.0
      %2149 = vmatpush.msra.mxu0 0.0
      %2150 = vmatpush.msra.mxu0 %v2133
      %2151 = vmatmul.f32.gmra.mxu0 %v1968
      %v2152 = vpop.f32.mrf.mxu0
      %v2153 = vadd.f32 0.0, %v2152
      %2154 = vmatmul.f32.gmra.mxu0 %v1971
      %v2155 = vpop.f32.mrf.mxu0
      %v2156 = vadd.f32 0.0, %v2155
      %2157 = vmatmul.f32.gmra.mxu0 %v1974
      %v2158 = vpop.f32.mrf.mxu0
      %v2159 = vadd.f32 0.0, %v2158
      %2160 = vmatmul.f32.gmra.mxu0 %v1977
      %v2161 = vpop.f32.mrf.mxu0
      %v2162 = vadd.f32 0.0, %v2161
      %2163 = vmatmul.f32.gmra.mxu0 %v1980
      %v2164 = vpop.f32.mrf.mxu0
      %v2165 = vadd.f32 0.0, %v2164
      %2166 = vmatmul.f32.gmra.mxu0 %v1983
      %v2167 = vpop.f32.mrf.mxu0
      %v2168 = vadd.f32 0.0, %v2167
      %2169 = vmatmul.f32.gmra.mxu0 %v1986
      %v2170 = vpop.f32.mrf.mxu0
      %v2171 = vadd.f32 0.0, %v2170
      %2172 = vmatmul.f32.gmra.mxu0 %v1989
      %v2173 = vpop.f32.mrf.mxu0
      %v2174 = vadd.f32 0.0, %v2173
      %2175 = vmatmul.f32.gmra.mxu0 %v1992
      %v2176 = vpop.f32.mrf.mxu0
      %v2177 = vadd.f32 0.0, %v2176
      %2178 = vmatmul.f32.gmra.mxu0 %v1995
      %v2179 = vpop.f32.mrf.mxu0
      %v2180 = vadd.f32 0.0, %v2179
      %2181 = vmatmul.f32.gmra.mxu0 %v1998
      %v2182 = vpop.f32.mrf.mxu0
      %v2183 = vadd.f32 0.0, %v2182
      %2184 = vmatmul.f32.gmra.mxu0 %v2001
      %v2185 = vpop.f32.mrf.mxu0
      %v2186 = vadd.f32 0.0, %v2185
      %2187 = vmatmul.f32.gmra.mxu0 %v2004
      %v2188 = vpop.f32.mrf.mxu0
      %v2189 = vadd.f32 0.0, %v2188
      %2190 = vmatmul.f32.gmra.mxu0 %v2007
      %v2191 = vpop.f32.mrf.mxu0
      %v2192 = vadd.f32 0.0, %v2191
      %2193 = vmatmul.f32.gmra.mxu0 %v2010
      %v2194 = vpop.f32.mrf.mxu0
      %v2195 = vadd.f32 0.0, %v2194
      %2196 = vmatmul.f32.gmra.mxu0 %v2013
      %v2197 = vpop.f32.mrf.mxu0
      %v2198 = vadd.f32 0.0, %v2197
      %2199 = vmatmul.f32.gmra.mxu0 %v2016
      %v2200 = vpop.f32.mrf.mxu0
      %v2201 = vadd.f32 0.0, %v2200
      %2202 = vmatmul.f32.gmra.mxu0 %v2019
      %v2203 = vpop.f32.mrf.mxu0
      %v2204 = vadd.f32 0.0, %v2203
      %2205 = vmatmul.f32.gmra.mxu0 %v2022
      %v2206 = vpop.f32.mrf.mxu0
      %v2207 = vadd.f32 0.0, %v2206
      %2208 = vmatmul.f32.gmra.mxu0 %v2025
      %v2209 = vpop.f32.mrf.mxu0
      %v2210 = vadd.f32 0.0, %v2209
      %2211 = vmatmul.f32.gmra.mxu0 %v2028
      %v2212 = vpop.f32.mrf.mxu0
      %v2213 = vadd.f32 0.0, %v2212
      %2214 = vmatmul.f32.gmra.mxu0 %v2031
      %v2215 = vpop.f32.mrf.mxu0
      %v2216 = vadd.f32 0.0, %v2215
      %2217 = vmatmul.f32.gmra.mxu0 %v2034
      %v2218 = vpop.f32.mrf.mxu0
      %v2219 = vadd.f32 0.0, %v2218
      %2220 = vmatmul.f32.gmra.mxu0 %v2037
      %v2221 = vpop.f32.mrf.mxu0
      %v2222 = vadd.f32 0.0, %v2221
      %2223 = vmatmul.f32.gmra.mxu0 %v2040
      %v2224 = vpop.f32.mrf.mxu0
      %v2225 = vadd.f32 0.0, %v2224
      %2226 = vmatmul.f32.gmra.mxu0 %v2043
      %v2227 = vpop.f32.mrf.mxu0
      %v2228 = vadd.f32 0.0, %v2227
      %2229 = vmatmul.f32.gmra.mxu0 %v2046
      %v2230 = vpop.f32.mrf.mxu0
      %v2231 = vadd.f32 0.0, %v2230
      %2232 = vmatmul.f32.gmra.mxu0 %v2049
      %v2233 = vpop.f32.mrf.mxu0
      %v2234 = vadd.f32 0.0, %v2233
      %2235 = vmatmul.f32.gmra.mxu0 %v2052
      %v2236 = vpop.f32.mrf.mxu0
      %v2237 = vadd.f32 0.0, %v2236
      %2238 = vmatmul.f32.gmra.mxu0 %v2055
      %v2239 = vpop.f32.mrf.mxu0
      %v2240 = vadd.f32 0.0, %v2239
      %2241 = vmatmul.f32.gmra.mxu0 %v2058
      %v2242 = vpop.f32.mrf.mxu0
      %v2243 = vadd.f32 0.0, %v2242
      %2244 = vmatmul.f32.gmra.mxu0 %v2061
      %v2245 = vpop.f32.mrf.mxu0
      %v2246 = vadd.f32 0.0, %v2245
      %2247 = vmatmul.f32.gmra.mxu0 %v2064
      %v2248 = vpop.f32.mrf.mxu0
      %v2249 = vadd.f32 0.0, %v2248
      %2250 = vmatmul.f32.gmra.mxu0 %v2067
      %v2251 = vpop.f32.mrf.mxu0
      %v2252 = vadd.f32 0.0, %v2251
      %2253 = vmatmul.f32.gmra.mxu0 %v2070
      %v2254 = vpop.f32.mrf.mxu0
      %v2255 = vadd.f32 0.0, %v2254
      %2256 = vmatmul.f32.gmra.mxu0 %v2073
      %v2257 = vpop.f32.mrf.mxu0
      %v2258 = vadd.f32 0.0, %v2257
      %2259 = vmatmul.f32.gmra.mxu0 %v2076
      %v2260 = vpop.f32.mrf.mxu0
      %v2261 = vadd.f32 0.0, %v2260
      %2262 = vmatmul.f32.gmra.mxu0 %v2079
      %v2263 = vpop.f32.mrf.mxu0
      %v2264 = vadd.f32 0.0, %v2263
      %2265 = vmatmul.f32.gmra.mxu0 %v2082
      %v2266 = vpop.f32.mrf.mxu0
      %v2267 = vadd.f32 0.0, %v2266
      %2268 = vmatmul.f32.gmra.mxu0 %v2085
      %v2269 = vpop.f32.mrf.mxu0
      %v2270 = vadd.f32 0.0, %v2269
      %2271 = vmatmul.f32.gmra.mxu0 %v2088
      %v2272 = vpop.f32.mrf.mxu0
      %v2273 = vadd.f32 0.0, %v2272
      %2274 = vmatmul.f32.gmra.mxu0 %v2091
      %v2275 = vpop.f32.mrf.mxu0
      %v2276 = vadd.f32 0.0, %v2275
      %2277 = vmatmul.f32.gmra.mxu0 %v2094
      %v2278 = vpop.f32.mrf.mxu0
      %v2279 = vadd.f32 0.0, %v2278
      %2280 = vmatmul.f32.gmra.mxu0 %v2097
      %v2281 = vpop.f32.mrf.mxu0
      %v2282 = vadd.f32 0.0, %v2281
      %2283 = vmatmul.f32.gmra.mxu0 %v2100
      %v2284 = vpop.f32.mrf.mxu0
      %v2285 = vadd.f32 0.0, %v2284
      %2286 = vmatmul.f32.gmra.mxu0 %v2103
      %v2287 = vpop.f32.mrf.mxu0
      %v2288 = vadd.f32 0.0, %v2287
      %2289 = vmatmul.f32.gmra.mxu0 %v2106
      %v2290 = vpop.f32.mrf.mxu0
      %v2291 = vadd.f32 0.0, %v2290
      %2292 = vmatmul.f32.gmra.mxu0 %v2109
      %v2293 = vpop.f32.mrf.mxu0
      %v2294 = vadd.f32 0.0, %v2293
      %2295 = vmatmul.f32.gmra.mxu0 %v2112
      %v2296 = vpop.f32.mrf.mxu0
      %v2297 = vadd.f32 0.0, %v2296
      %2298 = vmatmul.f32.gmra.mxu0 %v2115
      %v2299 = vpop.f32.mrf.mxu0
      %v2300 = vadd.f32 0.0, %v2299
      %2301 = vmatmul.f32.gmra.mxu0 %v2118
      %v2302 = vpop.f32.mrf.mxu0
      %v2303 = vadd.f32 0.0, %v2302
      %2304 = vmatmul.f32.gmra.mxu0 %v2121
      %v2305 = vpop.f32.mrf.mxu0
      %v2306 = vadd.f32 0.0, %v2305
      %2307 = vmatmul.f32.gmra.mxu0 %v2124
      %v2308 = vpop.f32.mrf.mxu0
      %v2309 = vadd.f32 0.0, %v2308
      %2310 = vmatmul.f32.gmra.mxu0 %v2127
      %v2311 = vpop.f32.mrf.mxu0
      %v2312 = vadd.f32 0.0, %v2311
      %2313 = vmatmul.f32.gmra.mxu0 %v2130
      %v2314 = vpop.f32.mrf.mxu0
      %v2315 = vadd.f32 0.0, %v2314
      %2316 = vdwg.mxu0
      %v2317 = vadd.f32 %v1855, %v2153
      %v2318 = vadd.f32 %v1856, %v2156
      %v2319 = vadd.f32 %v1857, %v2159
      %v2320 = vadd.f32 %v1858, %v2162
      %v2321 = vadd.f32 %v1859, %v2165
      %v2322 = vadd.f32 %v1860, %v2168
      %v2323 = vadd.f32 %v1861, %v2171
      %v2324 = vadd.f32 %v1862, %v2174
      %v2325 = vadd.f32 %v1863, %v2177
      %v2326 = vadd.f32 %v1864, %v2180
      %v2327 = vadd.f32 %v1865, %v2183
      %v2328 = vadd.f32 %v1866, %v2186
      %v2329 = vadd.f32 %v1867, %v2189
      %v2330 = vadd.f32 %v1868, %v2192
      %v2331 = vadd.f32 %v1869, %v2195
      %v2332 = vadd.f32 %v1870, %v2198
      %v2333 = vadd.f32 %v1871, %v2201
      %v2334 = vadd.f32 %v1872, %v2204
      %v2335 = vadd.f32 %v1873, %v2207
      %v2336 = vadd.f32 %v1874, %v2210
      %v2337 = vadd.f32 %v1875, %v2213
      %v2338 = vadd.f32 %v1876, %v2216
      %v2339 = vadd.f32 %v1877, %v2219
      %v2340 = vadd.f32 %v1878, %v2222
      %v2341 = vadd.f32 %v1879, %v2225
      %v2342 = vadd.f32 %v1880, %v2228
      %v2343 = vadd.f32 %v1881, %v2231
      %v2344 = vadd.f32 %v1882, %v2234
      %v2345 = vadd.f32 %v1883, %v2237
      %v2346 = vadd.f32 %v1884, %v2240
      %v2347 = vadd.f32 %v1885, %v2243
      %v2348 = vadd.f32 %v1886, %v2246
      %v2349 = vadd.f32 %v1887, %v2249
      %v2350 = vadd.f32 %v1888, %v2252
      %v2351 = vadd.f32 %v1889, %v2255
      %v2352 = vadd.f32 %v1890, %v2258
      %v2353 = vadd.f32 %v1891, %v2261
      %v2354 = vadd.f32 %v1892, %v2264
      %v2355 = vadd.f32 %v1893, %v2267
      %v2356 = vadd.f32 %v1894, %v2270
      %v2357 = vadd.f32 %v1895, %v2273
      %v2358 = vadd.f32 %v1896, %v2276
      %v2359 = vadd.f32 %v1897, %v2279
      %v2360 = vadd.f32 %v1898, %v2282
      %v2361 = vadd.f32 %v1899, %v2285
      %v2362 = vadd.f32 %v1900, %v2288
      %v2363 = vadd.f32 %v1901, %v2291
      %v2364 = vadd.f32 %v1902, %v2294
      %v2365 = vadd.f32 %v1903, %v2297
      %v2366 = vadd.f32 %v1904, %v2300
      %v2367 = vadd.f32 %v1905, %v2303
      %v2368 = vadd.f32 %v1906, %v2306
      %v2369 = vadd.f32 %v1907, %v2309
      %v2370 = vadd.f32 %v1908, %v2312
      %v2371 = vadd.f32 %v1909, %v2315
      %v2372 = vld [vmem:[%s165 + $0x18] sm:$0xff]
      %v2373 = vld [vmem:[%s165 + $0x20] sm:$0xff]
      %v2374 = vld [vmem:[%s165 + $0x28] sm:$0xff]
      %v2375 = vld [vmem:[%s165 + $0x30] sm:$0xff]
      %v2376 = vld [vmem:[%s165 + $0x38] sm:$0xff]
      %v2377 = vld [vmem:[%s165 + $0x40] sm:$0xff]
      %v2378 = vld [vmem:[%s165 + $0x48] sm:$0xff]
      %v2379 = vld [vmem:[%s165 + $0x50] sm:$0xff]
      %v2380 = vld [vmem:[%s165 + $0x58] sm:$0xff]
      %v2381 = vld [vmem:[%s165 + $0x60] sm:$0xff]
      %v2382 = vld [vmem:[%s165 + $0x68] sm:$0xff]
      %v2383 = vld [vmem:[%s165 + $0x70] sm:$0xff]
      %v2384 = vld [vmem:[%s165 + $0x78] sm:$0xff]
      %v2385 = vld [vmem:[%s165 + $0x80] sm:$0xff]
      %v2386 = vld [vmem:[%s165 + $0x88] sm:$0xff]
      %v2387 = vld [vmem:[%s165 + $0x90] sm:$0xff]
      %v2388 = vld [vmem:[%s165 + $0x98] sm:$0xff]
      %v2389 = vld [vmem:[%s165 + $0xa0] sm:$0xff]
      %v2390 = vld [vmem:[%s165 + $0xa8] sm:$0xff]
      %v2391 = vld [vmem:[%s165 + $0xb0] sm:$0xff]
      %v2392 = vld [vmem:[%s165 + $0xb8] sm:$0xff]
      %v2393 = vld [vmem:[%s165 + $0xc0] sm:$0xff]
      %v2394 = vld [vmem:[%s165 + $0xc8] sm:$0xff]
      %v2395 = vld [vmem:[%s165 + $0xd0] sm:$0xff]
      %v2396 = vld [vmem:[%s165 + $0xd8] sm:$0xff]
      %v2397 = vld [vmem:[%s165 + $0xe0] sm:$0xff]
      %v2398 = vld [vmem:[%s165 + $0xe8] sm:$0xff]
      %v2399 = vld [vmem:[%s165 + $0xf0] sm:$0xff]
      %v2400 = vld [vmem:[%s165 + $0xf8] sm:$0xff]
      %v2401 = vld [vmem:[%s165 + $0x100] sm:$0xff]
      %v2402 = vld [vmem:[%s165 + $0x108] sm:$0xff]
      %v2403 = vld [vmem:[%s165 + $0x110] sm:$0xff]
      %v2404 = vld [vmem:[%s165 + $0x118] sm:$0xff]
      %v2405 = vld [vmem:[%s165 + $0x120] sm:$0xff]
      %v2406 = vld [vmem:[%s165 + $0x128] sm:$0xff]
      %v2407 = vld [vmem:[%s165 + $0x130] sm:$0xff]
      %v2408 = vld [vmem:[%s165 + $0x138] sm:$0xff]
      %v2409 = vld [vmem:[%s165 + $0x140] sm:$0xff]
      %v2410 = vld [vmem:[%s165 + $0x148] sm:$0xff]
      %v2411 = vld [vmem:[%s165 + $0x150] sm:$0xff]
      %v2412 = vld [vmem:[%s165 + $0x158] sm:$0xff]
      %v2413 = vld [vmem:[%s165 + $0x160] sm:$0xff]
      %v2414 = vld [vmem:[%s165 + $0x168] sm:$0xff]
      %v2415 = vld [vmem:[%s165 + $0x170] sm:$0xff]
      %v2416 = vld [vmem:[%s165 + $0x178] sm:$0xff]
      %v2417 = vld [vmem:[%s165 + $0x180] sm:$0xff]
      %v2418 = vld [vmem:[%s165 + $0x188] sm:$0xff]
      %v2419 = vld [vmem:[%s165 + $0x190] sm:$0xff]
      %v2420 = vld [vmem:[%s165 + $0x198] sm:$0xff]
      %v2421 = vld [vmem:[%s165 + $0x1a0] sm:$0xff]
      %v2422 = vld [vmem:[%s165 + $0x1a8] sm:$0xff]
      %v2423 = vld [vmem:[%s165 + $0x1b0] sm:$0xff]
      %v2424 = vld [vmem:[%s165 + $0x1b8] sm:$0xff]
      %v2425 = vld [vmem:[%s165 + $0x1c0] sm:$0xff]
      %v2426 = vld [vmem:[%s165 + $0x1c8] sm:$0x3f]
      %s2427 = scalar_lea.vmem %s1, 20
      %v2428 = vld [vmem:[%s2427] sm:$0x7]
      %v2430 = vsel %vm284, %v2372, 0
      %v2433 = vsel %vm284, %v2373, 0
      %v2436 = vsel %vm284, %v2374, 0
      %v2439 = vsel %vm284, %v2375, 0
      %v2442 = vsel %vm284, %v2376, 0
      %v2445 = vsel %vm284, %v2377, 0
      %v2448 = vsel %vm284, %v2378, 0
      %v2451 = vsel %vm284, %v2379, 0
      %v2454 = vsel %vm284, %v2380, 0
      %v2457 = vsel %vm284, %v2381, 0
      %v2460 = vsel %vm284, %v2382, 0
      %v2463 = vsel %vm284, %v2383, 0
      %v2466 = vsel %vm284, %v2384, 0
      %v2469 = vsel %vm284, %v2385, 0
      %v2472 = vsel %vm284, %v2386, 0
      %v2475 = vsel %vm284, %v2387, 0
      %v2478 = vsel %vm284, %v2388, 0
      %v2481 = vsel %vm284, %v2389, 0
      %v2484 = vsel %vm284, %v2390, 0
      %v2487 = vsel %vm284, %v2391, 0
      %v2490 = vsel %vm284, %v2392, 0
      %v2493 = vsel %vm284, %v2393, 0
      %v2496 = vsel %vm284, %v2394, 0
      %v2499 = vsel %vm284, %v2395, 0
      %v2502 = vsel %vm284, %v2396, 0
      %v2505 = vsel %vm284, %v2397, 0
      %v2508 = vsel %vm284, %v2398, 0
      %v2511 = vsel %vm284, %v2399, 0
      %v2514 = vsel %vm284, %v2400, 0
      %v2517 = vsel %vm284, %v2401, 0
      %v2520 = vsel %vm284, %v2402, 0
      %v2523 = vsel %vm284, %v2403, 0
      %v2526 = vsel %vm284, %v2404, 0
      %v2529 = vsel %vm284, %v2405, 0
      %v2532 = vsel %vm284, %v2406, 0
      %v2535 = vsel %vm284, %v2407, 0
      %v2538 = vsel %vm284, %v2408, 0
      %v2541 = vsel %vm284, %v2409, 0
      %v2544 = vsel %vm284, %v2410, 0
      %v2547 = vsel %vm284, %v2411, 0
      %v2550 = vsel %vm284, %v2412, 0
      %v2553 = vsel %vm284, %v2413, 0
      %v2556 = vsel %vm284, %v2414, 0
      %v2559 = vsel %vm284, %v2415, 0
      %v2562 = vsel %vm284, %v2416, 0
      %v2565 = vsel %vm284, %v2417, 0
      %v2568 = vsel %vm284, %v2418, 0
      %v2571 = vsel %vm284, %v2419, 0
      %v2574 = vsel %vm284, %v2420, 0
      %v2577 = vsel %vm284, %v2421, 0
      %v2580 = vsel %vm284, %v2422, 0
      %v2583 = vsel %vm284, %v2423, 0
      %v2586 = vsel %vm284, %v2424, 0
      %v2589 = vsel %vm284, %v2425, 0
      %v2592 = vsel %vm284, %v2426, 0
      %v2595 = vsel %vm450, %v2428, 0
      %2597 = vmatpush.msra.mxu0 0.0
      %2598 = vmatpush.msra.mxu0 0.0
      %2599 = vmatpush.msra.mxu0 0.0
      %2600 = vmatpush.msra.mxu0 0.0
      %2601 = vmatpush.msra.mxu0 0.0
      %2602 = vmatpush.msra.mxu0 0.0
      %2603 = vmatpush.msra.mxu0 0.0
      %2604 = vmatpush.msra.mxu0 0.0
      %2605 = vmatpush.msra.mxu0 0.0
      %2606 = vmatpush.msra.mxu0 0.0
      %2607 = vmatpush.msra.mxu0 0.0
      %2608 = vmatpush.msra.mxu0 0.0
      %2609 = vmatpush.msra.mxu0 0.0
      %2610 = vmatpush.msra.mxu0 0.0
      %2611 = vmatpush.msra.mxu0 0.0
      %2612 = vmatpush.msra.mxu0 %v2595
      %2613 = vmatmul.f32.gmra.mxu0 %v2430
      %v2614 = vpop.f32.mrf.mxu0
      %v2615 = vadd.f32 0.0, %v2614
      %2616 = vmatmul.f32.gmra.mxu0 %v2433
      %v2617 = vpop.f32.mrf.mxu0
      %v2618 = vadd.f32 0.0, %v2617
      %2619 = vmatmul.f32.gmra.mxu0 %v2436
      %v2620 = vpop.f32.mrf.mxu0
      %v2621 = vadd.f32 0.0, %v2620
      %2622 = vmatmul.f32.gmra.mxu0 %v2439
      %v2623 = vpop.f32.mrf.mxu0
      %v2624 = vadd.f32 0.0, %v2623
      %2625 = vmatmul.f32.gmra.mxu0 %v2442
      %v2626 = vpop.f32.mrf.mxu0
      %v2627 = vadd.f32 0.0, %v2626
      %2628 = vmatmul.f32.gmra.mxu0 %v2445
      %v2629 = vpop.f32.mrf.mxu0
      %v2630 = vadd.f32 0.0, %v2629
      %2631 = vmatmul.f32.gmra.mxu0 %v2448
      %v2632 = vpop.f32.mrf.mxu0
      %v2633 = vadd.f32 0.0, %v2632
      %2634 = vmatmul.f32.gmra.mxu0 %v2451
      %v2635 = vpop.f32.mrf.mxu0
      %v2636 = vadd.f32 0.0, %v2635
      %2637 = vmatmul.f32.gmra.mxu0 %v2454
      %v2638 = vpop.f32.mrf.mxu0
      %v2639 = vadd.f32 0.0, %v2638
      %2640 = vmatmul.f32.gmra.mxu0 %v2457
      %v2641 = vpop.f32.mrf.mxu0
      %v2642 = vadd.f32 0.0, %v2641
      %2643 = vmatmul.f32.gmra.mxu0 %v2460
      %v2644 = vpop.f32.mrf.mxu0
      %v2645 = vadd.f32 0.0, %v2644
      %2646 = vmatmul.f32.gmra.mxu0 %v2463
      %v2647 = vpop.f32.mrf.mxu0
      %v2648 = vadd.f32 0.0, %v2647
      %2649 = vmatmul.f32.gmra.mxu0 %v2466
      %v2650 = vpop.f32.mrf.mxu0
      %v2651 = vadd.f32 0.0, %v2650
      %2652 = vmatmul.f32.gmra.mxu0 %v2469
      %v2653 = vpop.f32.mrf.mxu0
      %v2654 = vadd.f32 0.0, %v2653
      %2655 = vmatmul.f32.gmra.mxu0 %v2472
      %v2656 = vpop.f32.mrf.mxu0
      %v2657 = vadd.f32 0.0, %v2656
      %2658 = vmatmul.f32.gmra.mxu0 %v2475
      %v2659 = vpop.f32.mrf.mxu0
      %v2660 = vadd.f32 0.0, %v2659
      %2661 = vmatmul.f32.gmra.mxu0 %v2478
      %v2662 = vpop.f32.mrf.mxu0
      %v2663 = vadd.f32 0.0, %v2662
      %2664 = vmatmul.f32.gmra.mxu0 %v2481
      %v2665 = vpop.f32.mrf.mxu0
      %v2666 = vadd.f32 0.0, %v2665
      %2667 = vmatmul.f32.gmra.mxu0 %v2484
      %v2668 = vpop.f32.mrf.mxu0
      %v2669 = vadd.f32 0.0, %v2668
      %2670 = vmatmul.f32.gmra.mxu0 %v2487
      %v2671 = vpop.f32.mrf.mxu0
      %v2672 = vadd.f32 0.0, %v2671
      %2673 = vmatmul.f32.gmra.mxu0 %v2490
      %v2674 = vpop.f32.mrf.mxu0
      %v2675 = vadd.f32 0.0, %v2674
      %2676 = vmatmul.f32.gmra.mxu0 %v2493
      %v2677 = vpop.f32.mrf.mxu0
      %v2678 = vadd.f32 0.0, %v2677
      %2679 = vmatmul.f32.gmra.mxu0 %v2496
      %v2680 = vpop.f32.mrf.mxu0
      %v2681 = vadd.f32 0.0, %v2680
      %2682 = vmatmul.f32.gmra.mxu0 %v2499
      %v2683 = vpop.f32.mrf.mxu0
      %v2684 = vadd.f32 0.0, %v2683
      %2685 = vmatmul.f32.gmra.mxu0 %v2502
      %v2686 = vpop.f32.mrf.mxu0
      %v2687 = vadd.f32 0.0, %v2686
      %2688 = vmatmul.f32.gmra.mxu0 %v2505
      %v2689 = vpop.f32.mrf.mxu0
      %v2690 = vadd.f32 0.0, %v2689
      %2691 = vmatmul.f32.gmra.mxu0 %v2508
      %v2692 = vpop.f32.mrf.mxu0
      %v2693 = vadd.f32 0.0, %v2692
      %2694 = vmatmul.f32.gmra.mxu0 %v2511
      %v2695 = vpop.f32.mrf.mxu0
      %v2696 = vadd.f32 0.0, %v2695
      %2697 = vmatmul.f32.gmra.mxu0 %v2514
      %v2698 = vpop.f32.mrf.mxu0
      %v2699 = vadd.f32 0.0, %v2698
      %2700 = vmatmul.f32.gmra.mxu0 %v2517
      %v2701 = vpop.f32.mrf.mxu0
      %v2702 = vadd.f32 0.0, %v2701
      %2703 = vmatmul.f32.gmra.mxu0 %v2520
      %v2704 = vpop.f32.mrf.mxu0
      %v2705 = vadd.f32 0.0, %v2704
      %2706 = vmatmul.f32.gmra.mxu0 %v2523
      %v2707 = vpop.f32.mrf.mxu0
      %v2708 = vadd.f32 0.0, %v2707
      %2709 = vmatmul.f32.gmra.mxu0 %v2526
      %v2710 = vpop.f32.mrf.mxu0
      %v2711 = vadd.f32 0.0, %v2710
      %2712 = vmatmul.f32.gmra.mxu0 %v2529
      %v2713 = vpop.f32.mrf.mxu0
      %v2714 = vadd.f32 0.0, %v2713
      %2715 = vmatmul.f32.gmra.mxu0 %v2532
      %v2716 = vpop.f32.mrf.mxu0
      %v2717 = vadd.f32 0.0, %v2716
      %2718 = vmatmul.f32.gmra.mxu0 %v2535
      %v2719 = vpop.f32.mrf.mxu0
      %v2720 = vadd.f32 0.0, %v2719
      %2721 = vmatmul.f32.gmra.mxu0 %v2538
      %v2722 = vpop.f32.mrf.mxu0
      %v2723 = vadd.f32 0.0, %v2722
      %2724 = vmatmul.f32.gmra.mxu0 %v2541
      %v2725 = vpop.f32.mrf.mxu0
      %v2726 = vadd.f32 0.0, %v2725
      %2727 = vmatmul.f32.gmra.mxu0 %v2544
      %v2728 = vpop.f32.mrf.mxu0
      %v2729 = vadd.f32 0.0, %v2728
      %2730 = vmatmul.f32.gmra.mxu0 %v2547
      %v2731 = vpop.f32.mrf.mxu0
      %v2732 = vadd.f32 0.0, %v2731
      %2733 = vmatmul.f32.gmra.mxu0 %v2550
      %v2734 = vpop.f32.mrf.mxu0
      %v2735 = vadd.f32 0.0, %v2734
      %2736 = vmatmul.f32.gmra.mxu0 %v2553
      %v2737 = vpop.f32.mrf.mxu0
      %v2738 = vadd.f32 0.0, %v2737
      %2739 = vmatmul.f32.gmra.mxu0 %v2556
      %v2740 = vpop.f32.mrf.mxu0
      %v2741 = vadd.f32 0.0, %v2740
      %2742 = vmatmul.f32.gmra.mxu0 %v2559
      %v2743 = vpop.f32.mrf.mxu0
      %v2744 = vadd.f32 0.0, %v2743
      %2745 = vmatmul.f32.gmra.mxu0 %v2562
      %v2746 = vpop.f32.mrf.mxu0
      %v2747 = vadd.f32 0.0, %v2746
      %2748 = vmatmul.f32.gmra.mxu0 %v2565
      %v2749 = vpop.f32.mrf.mxu0
      %v2750 = vadd.f32 0.0, %v2749
      %2751 = vmatmul.f32.gmra.mxu0 %v2568
      %v2752 = vpop.f32.mrf.mxu0
      %v2753 = vadd.f32 0.0, %v2752
      %2754 = vmatmul.f32.gmra.mxu0 %v2571
      %v2755 = vpop.f32.mrf.mxu0
      %v2756 = vadd.f32 0.0, %v2755
      %2757 = vmatmul.f32.gmra.mxu0 %v2574
      %v2758 = vpop.f32.mrf.mxu0
      %v2759 = vadd.f32 0.0, %v2758
      %2760 = vmatmul.f32.gmra.mxu0 %v2577
      %v2761 = vpop.f32.mrf.mxu0
      %v2762 = vadd.f32 0.0, %v2761
      %2763 = vmatmul.f32.gmra.mxu0 %v2580
      %v2764 = vpop.f32.mrf.mxu0
      %v2765 = vadd.f32 0.0, %v2764
      %2766 = vmatmul.f32.gmra.mxu0 %v2583
      %v2767 = vpop.f32.mrf.mxu0
      %v2768 = vadd.f32 0.0, %v2767
      %2769 = vmatmul.f32.gmra.mxu0 %v2586
      %v2770 = vpop.f32.mrf.mxu0
      %v2771 = vadd.f32 0.0, %v2770
      %2772 = vmatmul.f32.gmra.mxu0 %v2589
      %v2773 = vpop.f32.mrf.mxu0
      %v2774 = vadd.f32 0.0, %v2773
      %2775 = vmatmul.f32.gmra.mxu0 %v2592
      %v2776 = vpop.f32.mrf.mxu0
      %v2777 = vadd.f32 0.0, %v2776
      %2778 = vdwg.mxu0
      %v2779 = vadd.f32 %v2317, %v2615
      %v2780 = vadd.f32 %v2318, %v2618
      %v2781 = vadd.f32 %v2319, %v2621
      %v2782 = vadd.f32 %v2320, %v2624
      %v2783 = vadd.f32 %v2321, %v2627
      %v2784 = vadd.f32 %v2322, %v2630
      %v2785 = vadd.f32 %v2323, %v2633
      %v2786 = vadd.f32 %v2324, %v2636
      %v2787 = vadd.f32 %v2325, %v2639
      %v2788 = vadd.f32 %v2326, %v2642
      %v2789 = vadd.f32 %v2327, %v2645
      %v2790 = vadd.f32 %v2328, %v2648
      %v2791 = vadd.f32 %v2329, %v2651
      %v2792 = vadd.f32 %v2330, %v2654
      %v2793 = vadd.f32 %v2331, %v2657
      %v2794 = vadd.f32 %v2332, %v2660
      %v2795 = vadd.f32 %v2333, %v2663
      %v2796 = vadd.f32 %v2334, %v2666
      %v2797 = vadd.f32 %v2335, %v2669
      %v2798 = vadd.f32 %v2336, %v2672
      %v2799 = vadd.f32 %v2337, %v2675
      %v2800 = vadd.f32 %v2338, %v2678
      %v2801 = vadd.f32 %v2339, %v2681
      %v2802 = vadd.f32 %v2340, %v2684
      %v2803 = vadd.f32 %v2341, %v2687
      %v2804 = vadd.f32 %v2342, %v2690
      %v2805 = vadd.f32 %v2343, %v2693
      %v2806 = vadd.f32 %v2344, %v2696
      %v2807 = vadd.f32 %v2345, %v2699
      %v2808 = vadd.f32 %v2346, %v2702
      %v2809 = vadd.f32 %v2347, %v2705
      %v2810 = vadd.f32 %v2348, %v2708
      %v2811 = vadd.f32 %v2349, %v2711
      %v2812 = vadd.f32 %v2350, %v2714
      %v2813 = vadd.f32 %v2351, %v2717
      %v2814 = vadd.f32 %v2352, %v2720
      %v2815 = vadd.f32 %v2353, %v2723
      %v2816 = vadd.f32 %v2354, %v2726
      %v2817 = vadd.f32 %v2355, %v2729
      %v2818 = vadd.f32 %v2356, %v2732
      %v2819 = vadd.f32 %v2357, %v2735
      %v2820 = vadd.f32 %v2358, %v2738
      %v2821 = vadd.f32 %v2359, %v2741
      %v2822 = vadd.f32 %v2360, %v2744
      %v2823 = vadd.f32 %v2361, %v2747
      %v2824 = vadd.f32 %v2362, %v2750
      %v2825 = vadd.f32 %v2363, %v2753
      %v2826 = vadd.f32 %v2364, %v2756
      %v2827 = vadd.f32 %v2365, %v2759
      %v2828 = vadd.f32 %v2366, %v2762
      %v2829 = vadd.f32 %v2367, %v2765
      %v2830 = vadd.f32 %v2368, %v2768
      %v2831 = vadd.f32 %v2369, %v2771
      %v2832 = vadd.f32 %v2370, %v2774
      %v2833 = vadd.f32 %v2371, %v2777
      %v2834 = vld [vmem:[%s165 + $0x2c] sm:$0xff]
      %v2835 = vld [vmem:[%s165 + $0x34] sm:$0xff]
      %v2836 = vld [vmem:[%s165 + $0x3c] sm:$0xff]
      %v2837 = vld [vmem:[%s165 + $0x44] sm:$0xff]
      %v2838 = vld [vmem:[%s165 + $0x4c] sm:$0xff]
      %v2839 = vld [vmem:[%s165 + $0x54] sm:$0xff]
      %v2840 = vld [vmem:[%s165 + $0x5c] sm:$0xff]
      %v2841 = vld [vmem:[%s165 + $0x64] sm:$0xff]
      %v2842 = vld [vmem:[%s165 + $0x6c] sm:$0xff]
      %v2843 = vld [vmem:[%s165 + $0x74] sm:$0xff]
      %v2844 = vld [vmem:[%s165 + $0x7c] sm:$0xff]
      %v2845 = vld [vmem:[%s165 + $0x84] sm:$0xff]
      %v2846 = vld [vmem:[%s165 + $0x8c] sm:$0xff]
      %v2847 = vld [vmem:[%s165 + $0x94] sm:$0xff]
      %v2848 = vld [vmem:[%s165 + $0x9c] sm:$0xff]
      %v2849 = vld [vmem:[%s165 + $0xa4] sm:$0xff]
      %v2850 = vld [vmem:[%s165 + $0xac] sm:$0xff]
      %v2851 = vld [vmem:[%s165 + $0xb4] sm:$0xff]
      %v2852 = vld [vmem:[%s165 + $0xbc] sm:$0xff]
      %v2853 = vld [vmem:[%s165 + $0xc4] sm:$0xff]
      %v2854 = vld [vmem:[%s165 + $0xcc] sm:$0xff]
      %v2855 = vld [vmem:[%s165 + $0xd4] sm:$0xff]
      %v2856 = vld [vmem:[%s165 + $0xdc] sm:$0xff]
      %v2857 = vld [vmem:[%s165 + $0xe4] sm:$0xff]
      %v2858 = vld [vmem:[%s165 + $0xec] sm:$0xff]
      %v2859 = vld [vmem:[%s165 + $0xf4] sm:$0xff]
      %v2860 = vld [vmem:[%s165 + $0xfc] sm:$0xff]
      %v2861 = vld [vmem:[%s165 + $0x104] sm:$0xff]
      %v2862 = vld [vmem:[%s165 + $0x10c] sm:$0xff]
      %v2863 = vld [vmem:[%s165 + $0x114] sm:$0xff]
      %v2864 = vld [vmem:[%s165 + $0x11c] sm:$0xff]
      %v2865 = vld [vmem:[%s165 + $0x124] sm:$0xff]
      %v2866 = vld [vmem:[%s165 + $0x12c] sm:$0xff]
      %v2867 = vld [vmem:[%s165 + $0x134] sm:$0xff]
      %v2868 = vld [vmem:[%s165 + $0x13c] sm:$0xff]
      %v2869 = vld [vmem:[%s165 + $0x144] sm:$0xff]
      %v2870 = vld [vmem:[%s165 + $0x14c] sm:$0xff]
      %v2871 = vld [vmem:[%s165 + $0x154] sm:$0xff]
      %v2872 = vld [vmem:[%s165 + $0x15c] sm:$0xff]
      %v2873 = vld [vmem:[%s165 + $0x164] sm:$0xff]
      %v2874 = vld [vmem:[%s165 + $0x16c] sm:$0xff]
      %v2875 = vld [vmem:[%s165 + $0x174] sm:$0xff]
      %v2876 = vld [vmem:[%s165 + $0x17c] sm:$0xff]
      %v2877 = vld [vmem:[%s165 + $0x184] sm:$0xff]
      %v2878 = vld [vmem:[%s165 + $0x18c] sm:$0xff]
      %v2879 = vld [vmem:[%s165 + $0x194] sm:$0xff]
      %v2880 = vld [vmem:[%s165 + $0x19c] sm:$0xff]
      %v2881 = vld [vmem:[%s165 + $0x1a4] sm:$0xff]
      %v2882 = vld [vmem:[%s165 + $0x1ac] sm:$0xff]
      %v2883 = vld [vmem:[%s165 + $0x1b4] sm:$0xff]
      %v2884 = vld [vmem:[%s165 + $0x1bc] sm:$0xff]
      %v2885 = vld [vmem:[%s165 + $0x1c4] sm:$0xff]
      %v2886 = vld [vmem:[%s165 + $0x1cc] sm:$0xff]
      %v2887 = vld [vmem:[%s165 + $0x1d4] sm:$0xff]
      %v2888 = vld [vmem:[%s165 + $0x1dc] sm:$0x3f]
      %s2889 = scalar_lea.vmem %s1, 24
      %v2890 = vld [vmem:[%s2889] sm:$0x7]
      %v2892 = vsel %vm284, %v2834, 0
      %v2895 = vsel %vm284, %v2835, 0
      %v2898 = vsel %vm284, %v2836, 0
      %v2901 = vsel %vm284, %v2837, 0
      %v2904 = vsel %vm284, %v2838, 0
      %v2907 = vsel %vm284, %v2839, 0
      %v2910 = vsel %vm284, %v2840, 0
      %v2913 = vsel %vm284, %v2841, 0
      %v2916 = vsel %vm284, %v2842, 0
      %v2919 = vsel %vm284, %v2843, 0
      %v2922 = vsel %vm284, %v2844, 0
      %v2925 = vsel %vm284, %v2845, 0
      %v2928 = vsel %vm284, %v2846, 0
      %v2931 = vsel %vm284, %v2847, 0
      %v2934 = vsel %vm284, %v2848, 0
      %v2937 = vsel %vm284, %v2849, 0
      %v2940 = vsel %vm284, %v2850, 0
      %v2943 = vsel %vm284, %v2851, 0
      %v2946 = vsel %vm284, %v2852, 0
      %v2949 = vsel %vm284, %v2853, 0
      %v2952 = vsel %vm284, %v2854, 0
      %v2955 = vsel %vm284, %v2855, 0
      %v2958 = vsel %vm284, %v2856, 0
      %v2961 = vsel %vm284, %v2857, 0
      %v2964 = vsel %vm284, %v2858, 0
      %v2967 = vsel %vm284, %v2859, 0
      %v2970 = vsel %vm284, %v2860, 0
      %v2973 = vsel %vm284, %v2861, 0
      %v2976 = vsel %vm284, %v2862, 0
      %v2979 = vsel %vm284, %v2863, 0
      %v2982 = vsel %vm284, %v2864, 0
      %v2985 = vsel %vm284, %v2865, 0
      %v2988 = vsel %vm284, %v2866, 0
      %v2991 = vsel %vm284, %v2867, 0
      %v2994 = vsel %vm284, %v2868, 0
      %v2997 = vsel %vm284, %v2869, 0
      %v3000 = vsel %vm284, %v2870, 0
      %v3003 = vsel %vm284, %v2871, 0
      %v3006 = vsel %vm284, %v2872, 0
      %v3009 = vsel %vm284, %v2873, 0
      %v3012 = vsel %vm284, %v2874, 0
      %v3015 = vsel %vm284, %v2875, 0
      %v3018 = vsel %vm284, %v2876, 0
      %v3021 = vsel %vm284, %v2877, 0
      %v3024 = vsel %vm284, %v2878, 0
      %v3027 = vsel %vm284, %v2879, 0
      %v3030 = vsel %vm284, %v2880, 0
      %v3033 = vsel %vm284, %v2881, 0
      %v3036 = vsel %vm284, %v2882, 0
      %v3039 = vsel %vm284, %v2883, 0
      %v3042 = vsel %vm284, %v2884, 0
      %v3045 = vsel %vm284, %v2885, 0
      %v3048 = vsel %vm284, %v2886, 0
      %v3051 = vsel %vm284, %v2887, 0
      %v3054 = vsel %vm284, %v2888, 0
      %v3057 = vsel %vm450, %v2890, 0
      %3059 = vmatpush.msra.mxu0 0.0
      %3060 = vmatpush.msra.mxu0 0.0
      %3061 = vmatpush.msra.mxu0 0.0
      %3062 = vmatpush.msra.mxu0 0.0
      %3063 = vmatpush.msra.mxu0 0.0
      %3064 = vmatpush.msra.mxu0 0.0
      %3065 = vmatpush.msra.mxu0 0.0
      %3066 = vmatpush.msra.mxu0 0.0
      %3067 = vmatpush.msra.mxu0 0.0
      %3068 = vmatpush.msra.mxu0 0.0
      %3069 = vmatpush.msra.mxu0 0.0
      %3070 = vmatpush.msra.mxu0 0.0
      %3071 = vmatpush.msra.mxu0 0.0
      %3072 = vmatpush.msra.mxu0 0.0
      %3073 = vmatpush.msra.mxu0 0.0
      %3074 = vmatpush.msra.mxu0 %v3057
      %3075 = vmatmul.f32.gmra.mxu0 %v2892
      %v3076 = vpop.f32.mrf.mxu0
      %v3077 = vadd.f32 0.0, %v3076
      %3078 = vmatmul.f32.gmra.mxu0 %v2895
      %v3079 = vpop.f32.mrf.mxu0
      %v3080 = vadd.f32 0.0, %v3079
      %3081 = vmatmul.f32.gmra.mxu0 %v2898
      %v3082 = vpop.f32.mrf.mxu0
      %v3083 = vadd.f32 0.0, %v3082
      %3084 = vmatmul.f32.gmra.mxu0 %v2901
      %v3085 = vpop.f32.mrf.mxu0
      %v3086 = vadd.f32 0.0, %v3085
      %3087 = vmatmul.f32.gmra.mxu0 %v2904
      %v3088 = vpop.f32.mrf.mxu0
      %v3089 = vadd.f32 0.0, %v3088
      %3090 = vmatmul.f32.gmra.mxu0 %v2907
      %v3091 = vpop.f32.mrf.mxu0
      %v3092 = vadd.f32 0.0, %v3091
      %3093 = vmatmul.f32.gmra.mxu0 %v2910
      %v3094 = vpop.f32.mrf.mxu0
      %v3095 = vadd.f32 0.0, %v3094
      %3096 = vmatmul.f32.gmra.mxu0 %v2913
      %v3097 = vpop.f32.mrf.mxu0
      %v3098 = vadd.f32 0.0, %v3097
      %3099 = vmatmul.f32.gmra.mxu0 %v2916
      %v3100 = vpop.f32.mrf.mxu0
      %v3101 = vadd.f32 0.0, %v3100
      %3102 = vmatmul.f32.gmra.mxu0 %v2919
      %v3103 = vpop.f32.mrf.mxu0
      %v3104 = vadd.f32 0.0, %v3103
      %3105 = vmatmul.f32.gmra.mxu0 %v2922
      %v3106 = vpop.f32.mrf.mxu0
      %v3107 = vadd.f32 0.0, %v3106
      %3108 = vmatmul.f32.gmra.mxu0 %v2925
      %v3109 = vpop.f32.mrf.mxu0
      %v3110 = vadd.f32 0.0, %v3109
      %3111 = vmatmul.f32.gmra.mxu0 %v2928
      %v3112 = vpop.f32.mrf.mxu0
      %v3113 = vadd.f32 0.0, %v3112
      %3114 = vmatmul.f32.gmra.mxu0 %v2931
      %v3115 = vpop.f32.mrf.mxu0
      %v3116 = vadd.f32 0.0, %v3115
      %3117 = vmatmul.f32.gmra.mxu0 %v2934
      %v3118 = vpop.f32.mrf.mxu0
      %v3119 = vadd.f32 0.0, %v3118
      %3120 = vmatmul.f32.gmra.mxu0 %v2937
      %v3121 = vpop.f32.mrf.mxu0
      %v3122 = vadd.f32 0.0, %v3121
      %3123 = vmatmul.f32.gmra.mxu0 %v2940
      %v3124 = vpop.f32.mrf.mxu0
      %v3125 = vadd.f32 0.0, %v3124
      %3126 = vmatmul.f32.gmra.mxu0 %v2943
      %v3127 = vpop.f32.mrf.mxu0
      %v3128 = vadd.f32 0.0, %v3127
      %3129 = vmatmul.f32.gmra.mxu0 %v2946
      %v3130 = vpop.f32.mrf.mxu0
      %v3131 = vadd.f32 0.0, %v3130
      %3132 = vmatmul.f32.gmra.mxu0 %v2949
      %v3133 = vpop.f32.mrf.mxu0
      %v3134 = vadd.f32 0.0, %v3133
      %3135 = vmatmul.f32.gmra.mxu0 %v2952
      %v3136 = vpop.f32.mrf.mxu0
      %v3137 = vadd.f32 0.0, %v3136
      %3138 = vmatmul.f32.gmra.mxu0 %v2955
      %v3139 = vpop.f32.mrf.mxu0
      %v3140 = vadd.f32 0.0, %v3139
      %3141 = vmatmul.f32.gmra.mxu0 %v2958
      %v3142 = vpop.f32.mrf.mxu0
      %v3143 = vadd.f32 0.0, %v3142
      %3144 = vmatmul.f32.gmra.mxu0 %v2961
      %v3145 = vpop.f32.mrf.mxu0
      %v3146 = vadd.f32 0.0, %v3145
      %3147 = vmatmul.f32.gmra.mxu0 %v2964
      %v3148 = vpop.f32.mrf.mxu0
      %v3149 = vadd.f32 0.0, %v3148
      %3150 = vmatmul.f32.gmra.mxu0 %v2967
      %v3151 = vpop.f32.mrf.mxu0
      %v3152 = vadd.f32 0.0, %v3151
      %3153 = vmatmul.f32.gmra.mxu0 %v2970
      %v3154 = vpop.f32.mrf.mxu0
      %v3155 = vadd.f32 0.0, %v3154
      %3156 = vmatmul.f32.gmra.mxu0 %v2973
      %v3157 = vpop.f32.mrf.mxu0
      %v3158 = vadd.f32 0.0, %v3157
      %3159 = vmatmul.f32.gmra.mxu0 %v2976
      %v3160 = vpop.f32.mrf.mxu0
      %v3161 = vadd.f32 0.0, %v3160
      %3162 = vmatmul.f32.gmra.mxu0 %v2979
      %v3163 = vpop.f32.mrf.mxu0
      %v3164 = vadd.f32 0.0, %v3163
      %3165 = vmatmul.f32.gmra.mxu0 %v2982
      %v3166 = vpop.f32.mrf.mxu0
      %v3167 = vadd.f32 0.0, %v3166
      %3168 = vmatmul.f32.gmra.mxu0 %v2985
      %v3169 = vpop.f32.mrf.mxu0
      %v3170 = vadd.f32 0.0, %v3169
      %3171 = vmatmul.f32.gmra.mxu0 %v2988
      %v3172 = vpop.f32.mrf.mxu0
      %v3173 = vadd.f32 0.0, %v3172
      %3174 = vmatmul.f32.gmra.mxu0 %v2991
      %v3175 = vpop.f32.mrf.mxu0
      %v3176 = vadd.f32 0.0, %v3175
      %3177 = vmatmul.f32.gmra.mxu0 %v2994
      %v3178 = vpop.f32.mrf.mxu0
      %v3179 = vadd.f32 0.0, %v3178
      %3180 = vmatmul.f32.gmra.mxu0 %v2997
      %v3181 = vpop.f32.mrf.mxu0
      %v3182 = vadd.f32 0.0, %v3181
      %3183 = vmatmul.f32.gmra.mxu0 %v3000
      %v3184 = vpop.f32.mrf.mxu0
      %v3185 = vadd.f32 0.0, %v3184
      %3186 = vmatmul.f32.gmra.mxu0 %v3003
      %v3187 = vpop.f32.mrf.mxu0
      %v3188 = vadd.f32 0.0, %v3187
      %3189 = vmatmul.f32.gmra.mxu0 %v3006
      %v3190 = vpop.f32.mrf.mxu0
      %v3191 = vadd.f32 0.0, %v3190
      %3192 = vmatmul.f32.gmra.mxu0 %v3009
      %v3193 = vpop.f32.mrf.mxu0
      %v3194 = vadd.f32 0.0, %v3193
      %3195 = vmatmul.f32.gmra.mxu0 %v3012
      %v3196 = vpop.f32.mrf.mxu0
      %v3197 = vadd.f32 0.0, %v3196
      %3198 = vmatmul.f32.gmra.mxu0 %v3015
      %v3199 = vpop.f32.mrf.mxu0
      %v3200 = vadd.f32 0.0, %v3199
      %3201 = vmatmul.f32.gmra.mxu0 %v3018
      %v3202 = vpop.f32.mrf.mxu0
      %v3203 = vadd.f32 0.0, %v3202
      %3204 = vmatmul.f32.gmra.mxu0 %v3021
      %v3205 = vpop.f32.mrf.mxu0
      %v3206 = vadd.f32 0.0, %v3205
      %3207 = vmatmul.f32.gmra.mxu0 %v3024
      %v3208 = vpop.f32.mrf.mxu0
      %v3209 = vadd.f32 0.0, %v3208
      %3210 = vmatmul.f32.gmra.mxu0 %v3027
      %v3211 = vpop.f32.mrf.mxu0
      %v3212 = vadd.f32 0.0, %v3211
      %3213 = vmatmul.f32.gmra.mxu0 %v3030
      %v3214 = vpop.f32.mrf.mxu0
      %v3215 = vadd.f32 0.0, %v3214
      %3216 = vmatmul.f32.gmra.mxu0 %v3033
      %v3217 = vpop.f32.mrf.mxu0
      %v3218 = vadd.f32 0.0, %v3217
      %3219 = vmatmul.f32.gmra.mxu0 %v3036
      %v3220 = vpop.f32.mrf.mxu0
      %v3221 = vadd.f32 0.0, %v3220
      %3222 = vmatmul.f32.gmra.mxu0 %v3039
      %v3223 = vpop.f32.mrf.mxu0
      %v3224 = vadd.f32 0.0, %v3223
      %3225 = vmatmul.f32.gmra.mxu0 %v3042
      %v3226 = vpop.f32.mrf.mxu0
      %v3227 = vadd.f32 0.0, %v3226
      %3228 = vmatmul.f32.gmra.mxu0 %v3045
      %v3229 = vpop.f32.mrf.mxu0
      %v3230 = vadd.f32 0.0, %v3229
      %3231 = vmatmul.f32.gmra.mxu0 %v3048
      %v3232 = vpop.f32.mrf.mxu0
      %v3233 = vadd.f32 0.0, %v3232
      %3234 = vmatmul.f32.gmra.mxu0 %v3051
      %v3235 = vpop.f32.mrf.mxu0
      %v3236 = vadd.f32 0.0, %v3235
      %3237 = vmatmul.f32.gmra.mxu0 %v3054
      %v3238 = vpop.f32.mrf.mxu0
      %v3239 = vadd.f32 0.0, %v3238
      %3240 = vdwg.mxu0
      %v3241 = vadd.f32 %v2779, %v3077
      %v3242 = vadd.f32 %v2780, %v3080
      %v3243 = vadd.f32 %v2781, %v3083
      %v3244 = vadd.f32 %v2782, %v3086
      %v3245 = vadd.f32 %v2783, %v3089
      %v3246 = vadd.f32 %v2784, %v3092
      %v3247 = vadd.f32 %v2785, %v3095
      %v3248 = vadd.f32 %v2786, %v3098
      %v3249 = vadd.f32 %v2787, %v3101
      %v3250 = vadd.f32 %v2788, %v3104
      %v3251 = vadd.f32 %v2789, %v3107
      %v3252 = vadd.f32 %v2790, %v3110
      %v3253 = vadd.f32 %v2791, %v3113
      %v3254 = vadd.f32 %v2792, %v3116
      %v3255 = vadd.f32 %v2793, %v3119
      %v3256 = vadd.f32 %v2794, %v3122
      %v3257 = vadd.f32 %v2795, %v3125
      %v3258 = vadd.f32 %v2796, %v3128
      %v3259 = vadd.f32 %v2797, %v3131
      %v3260 = vadd.f32 %v2798, %v3134
      %v3261 = vadd.f32 %v2799, %v3137
      %v3262 = vadd.f32 %v2800, %v3140
      %v3263 = vadd.f32 %v2801, %v3143
      %v3264 = vadd.f32 %v2802, %v3146
      %v3265 = vadd.f32 %v2803, %v3149
      %v3266 = vadd.f32 %v2804, %v3152
      %v3267 = vadd.f32 %v2805, %v3155
      %v3268 = vadd.f32 %v2806, %v3158
      %v3269 = vadd.f32 %v2807, %v3161
      %v3270 = vadd.f32 %v2808, %v3164
      %v3271 = vadd.f32 %v2809, %v3167
      %v3272 = vadd.f32 %v2810, %v3170
      %v3273 = vadd.f32 %v2811, %v3173
      %v3274 = vadd.f32 %v2812, %v3176
      %v3275 = vadd.f32 %v2813, %v3179
      %v3276 = vadd.f32 %v2814, %v3182
      %v3277 = vadd.f32 %v2815, %v3185
      %v3278 = vadd.f32 %v2816, %v3188
      %v3279 = vadd.f32 %v2817, %v3191
      %v3280 = vadd.f32 %v2818, %v3194
      %v3281 = vadd.f32 %v2819, %v3197
      %v3282 = vadd.f32 %v2820, %v3200
      %v3283 = vadd.f32 %v2821, %v3203
      %v3284 = vadd.f32 %v2822, %v3206
      %v3285 = vadd.f32 %v2823, %v3209
      %v3286 = vadd.f32 %v2824, %v3212
      %v3287 = vadd.f32 %v2825, %v3215
      %v3288 = vadd.f32 %v2826, %v3218
      %v3289 = vadd.f32 %v2827, %v3221
      %v3290 = vadd.f32 %v2828, %v3224
      %v3291 = vadd.f32 %v2829, %v3227
      %v3292 = vadd.f32 %v2830, %v3230
      %v3293 = vadd.f32 %v2831, %v3233
      %v3294 = vadd.f32 %v2832, %v3236
      %v3295 = vadd.f32 %v2833, %v3239
      %v3296 = vld [vmem:[%s165 + $0x2d] sm:$0xff]
      %v3297 = vld [vmem:[%s165 + $0x35] sm:$0xff]
      %v3298 = vld [vmem:[%s165 + $0x3d] sm:$0xff]
      %v3299 = vld [vmem:[%s165 + $0x45] sm:$0xff]
      %v3300 = vld [vmem:[%s165 + $0x4d] sm:$0xff]
      %v3301 = vld [vmem:[%s165 + $0x55] sm:$0xff]
      %v3302 = vld [vmem:[%s165 + $0x5d] sm:$0xff]
      %v3303 = vld [vmem:[%s165 + $0x65] sm:$0xff]
      %v3304 = vld [vmem:[%s165 + $0x6d] sm:$0xff]
      %v3305 = vld [vmem:[%s165 + $0x75] sm:$0xff]
      %v3306 = vld [vmem:[%s165 + $0x7d] sm:$0xff]
      %v3307 = vld [vmem:[%s165 + $0x85] sm:$0xff]
      %v3308 = vld [vmem:[%s165 + $0x8d] sm:$0xff]
      %v3309 = vld [vmem:[%s165 + $0x95] sm:$0xff]
      %v3310 = vld [vmem:[%s165 + $0x9d] sm:$0xff]
      %v3311 = vld [vmem:[%s165 + $0xa5] sm:$0xff]
      %v3312 = vld [vmem:[%s165 + $0xad] sm:$0xff]
      %v3313 = vld [vmem:[%s165 + $0xb5] sm:$0xff]
      %v3314 = vld [vmem:[%s165 + $0xbd] sm:$0xff]
      %v3315 = vld [vmem:[%s165 + $0xc5] sm:$0xff]
      %v3316 = vld [vmem:[%s165 + $0xcd] sm:$0xff]
      %v3317 = vld [vmem:[%s165 + $0xd5] sm:$0xff]
      %v3318 = vld [vmem:[%s165 + $0xdd] sm:$0xff]
      %v3319 = vld [vmem:[%s165 + $0xe5] sm:$0xff]
      %v3320 = vld [vmem:[%s165 + $0xed] sm:$0xff]
      %v3321 = vld [vmem:[%s165 + $0xf5] sm:$0xff]
      %v3322 = vld [vmem:[%s165 + $0xfd] sm:$0xff]
      %v3323 = vld [vmem:[%s165 + $0x105] sm:$0xff]
      %v3324 = vld [vmem:[%s165 + $0x10d] sm:$0xff]
      %v3325 = vld [vmem:[%s165 + $0x115] sm:$0xff]
      %v3326 = vld [vmem:[%s165 + $0x11d] sm:$0xff]
      %v3327 = vld [vmem:[%s165 + $0x125] sm:$0xff]
      %v3328 = vld [vmem:[%s165 + $0x12d] sm:$0xff]
      %v3329 = vld [vmem:[%s165 + $0x135] sm:$0xff]
      %v3330 = vld [vmem:[%s165 + $0x13d] sm:$0xff]
      %v3331 = vld [vmem:[%s165 + $0x145] sm:$0xff]
      %v3332 = vld [vmem:[%s165 + $0x14d] sm:$0xff]
      %v3333 = vld [vmem:[%s165 + $0x155] sm:$0xff]
      %v3334 = vld [vmem:[%s165 + $0x15d] sm:$0xff]
      %v3335 = vld [vmem:[%s165 + $0x165] sm:$0xff]
      %v3336 = vld [vmem:[%s165 + $0x16d] sm:$0xff]
      %v3337 = vld [vmem:[%s165 + $0x175] sm:$0xff]
      %v3338 = vld [vmem:[%s165 + $0x17d] sm:$0xff]
      %v3339 = vld [vmem:[%s165 + $0x185] sm:$0xff]
      %v3340 = vld [vmem:[%s165 + $0x18d] sm:$0xff]
      %v3341 = vld [vmem:[%s165 + $0x195] sm:$0xff]
      %v3342 = vld [vmem:[%s165 + $0x19d] sm:$0xff]
      %v3343 = vld [vmem:[%s165 + $0x1a5] sm:$0xff]
      %v3344 = vld [vmem:[%s165 + $0x1ad] sm:$0xff]
      %v3345 = vld [vmem:[%s165 + $0x1b5] sm:$0xff]
      %v3346 = vld [vmem:[%s165 + $0x1bd] sm:$0xff]
      %v3347 = vld [vmem:[%s165 + $0x1c5] sm:$0xff]
      %v3348 = vld [vmem:[%s165 + $0x1cd] sm:$0xff]
      %v3349 = vld [vmem:[%s165 + $0x1d5] sm:$0xff]
      %v3350 = vld [vmem:[%s165 + $0x1dd] sm:$0x3f]
      %s3351 = scalar_lea.vmem %s1, 28
      %v3352 = vld [vmem:[%s3351] sm:$0x7]
      %v3354 = vsel %vm284, %v3296, 0
      %v3357 = vsel %vm284, %v3297, 0
      %v3360 = vsel %vm284, %v3298, 0
      %v3363 = vsel %vm284, %v3299, 0
      %v3366 = vsel %vm284, %v3300, 0
      %v3369 = vsel %vm284, %v3301, 0
      %v3372 = vsel %vm284, %v3302, 0
      %v3375 = vsel %vm284, %v3303, 0
      %v3378 = vsel %vm284, %v3304, 0
      %v3381 = vsel %vm284, %v3305, 0
      %v3384 = vsel %vm284, %v3306, 0
      %v3387 = vsel %vm284, %v3307, 0
      %v3390 = vsel %vm284, %v3308, 0
      %v3393 = vsel %vm284, %v3309, 0
      %v3396 = vsel %vm284, %v3310, 0
      %v3399 = vsel %vm284, %v3311, 0
      %v3402 = vsel %vm284, %v3312, 0
      %v3405 = vsel %vm284, %v3313, 0
      %v3408 = vsel %vm284, %v3314, 0
      %v3411 = vsel %vm284, %v3315, 0
      %v3414 = vsel %vm284, %v3316, 0
      %v3417 = vsel %vm284, %v3317, 0
      %v3420 = vsel %vm284, %v3318, 0
      %v3423 = vsel %vm284, %v3319, 0
      %v3426 = vsel %vm284, %v3320, 0
      %v3429 = vsel %vm284, %v3321, 0
      %v3432 = vsel %vm284, %v3322, 0
      %v3435 = vsel %vm284, %v3323, 0
      %v3438 = vsel %vm284, %v3324, 0
      %v3441 = vsel %vm284, %v3325, 0
      %v3444 = vsel %vm284, %v3326, 0
      %v3447 = vsel %vm284, %v3327, 0
      %v3450 = vsel %vm284, %v3328, 0
      %v3453 = vsel %vm284, %v3329, 0
      %v3456 = vsel %vm284, %v3330, 0
      %v3459 = vsel %vm284, %v3331, 0
      %v3462 = vsel %vm284, %v3332, 0
      %v3465 = vsel %vm284, %v3333, 0
      %v3468 = vsel %vm284, %v3334, 0
      %v3471 = vsel %vm284, %v3335, 0
      %v3474 = vsel %vm284, %v3336, 0
      %v3477 = vsel %vm284, %v3337, 0
      %v3480 = vsel %vm284, %v3338, 0
      %v3483 = vsel %vm284, %v3339, 0
      %v3486 = vsel %vm284, %v3340, 0
      %v3489 = vsel %vm284, %v3341, 0
      %v3492 = vsel %vm284, %v3342, 0
      %v3495 = vsel %vm284, %v3343, 0
      %v3498 = vsel %vm284, %v3344, 0
      %v3501 = vsel %vm284, %v3345, 0
      %v3504 = vsel %vm284, %v3346, 0
      %v3507 = vsel %vm284, %v3347, 0
      %v3510 = vsel %vm284, %v3348, 0
      %v3513 = vsel %vm284, %v3349, 0
      %v3516 = vsel %vm284, %v3350, 0
      %v3519 = vsel %vm450, %v3352, 0
      %3521 = vmatpush.msra.mxu0 0.0
      %3522 = vmatpush.msra.mxu0 0.0
      %3523 = vmatpush.msra.mxu0 0.0
      %3524 = vmatpush.msra.mxu0 0.0
      %3525 = vmatpush.msra.mxu0 0.0
      %3526 = vmatpush.msra.mxu0 0.0
      %3527 = vmatpush.msra.mxu0 0.0
      %3528 = vmatpush.msra.mxu0 0.0
      %3529 = vmatpush.msra.mxu0 0.0
      %3530 = vmatpush.msra.mxu0 0.0
      %3531 = vmatpush.msra.mxu0 0.0
      %3532 = vmatpush.msra.mxu0 0.0
      %3533 = vmatpush.msra.mxu0 0.0
      %3534 = vmatpush.msra.mxu0 0.0
      %3535 = vmatpush.msra.mxu0 0.0
      %3536 = vmatpush.msra.mxu0 %v3519
      %3537 = vmatmul.f32.gmra.mxu0 %v3354
      %v3538 = vpop.f32.mrf.mxu0
      %v3539 = vadd.f32 0.0, %v3538
      %3540 = vmatmul.f32.gmra.mxu0 %v3357
      %v3541 = vpop.f32.mrf.mxu0
      %v3542 = vadd.f32 0.0, %v3541
      %3543 = vmatmul.f32.gmra.mxu0 %v3360
      %v3544 = vpop.f32.mrf.mxu0
      %v3545 = vadd.f32 0.0, %v3544
      %3546 = vmatmul.f32.gmra.mxu0 %v3363
      %v3547 = vpop.f32.mrf.mxu0
      %v3548 = vadd.f32 0.0, %v3547
      %3549 = vmatmul.f32.gmra.mxu0 %v3366
      %v3550 = vpop.f32.mrf.mxu0
      %v3551 = vadd.f32 0.0, %v3550
      %3552 = vmatmul.f32.gmra.mxu0 %v3369
      %v3553 = vpop.f32.mrf.mxu0
      %v3554 = vadd.f32 0.0, %v3553
      %3555 = vmatmul.f32.gmra.mxu0 %v3372
      %v3556 = vpop.f32.mrf.mxu0
      %v3557 = vadd.f32 0.0, %v3556
      %3558 = vmatmul.f32.gmra.mxu0 %v3375
      %v3559 = vpop.f32.mrf.mxu0
      %v3560 = vadd.f32 0.0, %v3559
      %3561 = vmatmul.f32.gmra.mxu0 %v3378
      %v3562 = vpop.f32.mrf.mxu0
      %v3563 = vadd.f32 0.0, %v3562
      %3564 = vmatmul.f32.gmra.mxu0 %v3381
      %v3565 = vpop.f32.mrf.mxu0
      %v3566 = vadd.f32 0.0, %v3565
      %3567 = vmatmul.f32.gmra.mxu0 %v3384
      %v3568 = vpop.f32.mrf.mxu0
      %v3569 = vadd.f32 0.0, %v3568
      %3570 = vmatmul.f32.gmra.mxu0 %v3387
      %v3571 = vpop.f32.mrf.mxu0
      %v3572 = vadd.f32 0.0, %v3571
      %3573 = vmatmul.f32.gmra.mxu0 %v3390
      %v3574 = vpop.f32.mrf.mxu0
      %v3575 = vadd.f32 0.0, %v3574
      %3576 = vmatmul.f32.gmra.mxu0 %v3393
      %v3577 = vpop.f32.mrf.mxu0
      %v3578 = vadd.f32 0.0, %v3577
      %3579 = vmatmul.f32.gmra.mxu0 %v3396
      %v3580 = vpop.f32.mrf.mxu0
      %v3581 = vadd.f32 0.0, %v3580
      %3582 = vmatmul.f32.gmra.mxu0 %v3399
      %v3583 = vpop.f32.mrf.mxu0
      %v3584 = vadd.f32 0.0, %v3583
      %3585 = vmatmul.f32.gmra.mxu0 %v3402
      %v3586 = vpop.f32.mrf.mxu0
      %v3587 = vadd.f32 0.0, %v3586
      %3588 = vmatmul.f32.gmra.mxu0 %v3405
      %v3589 = vpop.f32.mrf.mxu0
      %v3590 = vadd.f32 0.0, %v3589
      %3591 = vmatmul.f32.gmra.mxu0 %v3408
      %v3592 = vpop.f32.mrf.mxu0
      %v3593 = vadd.f32 0.0, %v3592
      %3594 = vmatmul.f32.gmra.mxu0 %v3411
      %v3595 = vpop.f32.mrf.mxu0
      %v3596 = vadd.f32 0.0, %v3595
      %3597 = vmatmul.f32.gmra.mxu0 %v3414
      %v3598 = vpop.f32.mrf.mxu0
      %v3599 = vadd.f32 0.0, %v3598
      %3600 = vmatmul.f32.gmra.mxu0 %v3417
      %v3601 = vpop.f32.mrf.mxu0
      %v3602 = vadd.f32 0.0, %v3601
      %3603 = vmatmul.f32.gmra.mxu0 %v3420
      %v3604 = vpop.f32.mrf.mxu0
      %v3605 = vadd.f32 0.0, %v3604
      %3606 = vmatmul.f32.gmra.mxu0 %v3423
      %v3607 = vpop.f32.mrf.mxu0
      %v3608 = vadd.f32 0.0, %v3607
      %3609 = vmatmul.f32.gmra.mxu0 %v3426
      %v3610 = vpop.f32.mrf.mxu0
      %v3611 = vadd.f32 0.0, %v3610
      %3612 = vmatmul.f32.gmra.mxu0 %v3429
      %v3613 = vpop.f32.mrf.mxu0
      %v3614 = vadd.f32 0.0, %v3613
      %3615 = vmatmul.f32.gmra.mxu0 %v3432
      %v3616 = vpop.f32.mrf.mxu0
      %v3617 = vadd.f32 0.0, %v3616
      %3618 = vmatmul.f32.gmra.mxu0 %v3435
      %v3619 = vpop.f32.mrf.mxu0
      %v3620 = vadd.f32 0.0, %v3619
      %3621 = vmatmul.f32.gmra.mxu0 %v3438
      %v3622 = vpop.f32.mrf.mxu0
      %v3623 = vadd.f32 0.0, %v3622
      %3624 = vmatmul.f32.gmra.mxu0 %v3441
      %v3625 = vpop.f32.mrf.mxu0
      %v3626 = vadd.f32 0.0, %v3625
      %3627 = vmatmul.f32.gmra.mxu0 %v3444
      %v3628 = vpop.f32.mrf.mxu0
      %v3629 = vadd.f32 0.0, %v3628
      %3630 = vmatmul.f32.gmra.mxu0 %v3447
      %v3631 = vpop.f32.mrf.mxu0
      %v3632 = vadd.f32 0.0, %v3631
      %3633 = vmatmul.f32.gmra.mxu0 %v3450
      %v3634 = vpop.f32.mrf.mxu0
      %v3635 = vadd.f32 0.0, %v3634
      %3636 = vmatmul.f32.gmra.mxu0 %v3453
      %v3637 = vpop.f32.mrf.mxu0
      %v3638 = vadd.f32 0.0, %v3637
      %3639 = vmatmul.f32.gmra.mxu0 %v3456
      %v3640 = vpop.f32.mrf.mxu0
      %v3641 = vadd.f32 0.0, %v3640
      %3642 = vmatmul.f32.gmra.mxu0 %v3459
      %v3643 = vpop.f32.mrf.mxu0
      %v3644 = vadd.f32 0.0, %v3643
      %3645 = vmatmul.f32.gmra.mxu0 %v3462
      %v3646 = vpop.f32.mrf.mxu0
      %v3647 = vadd.f32 0.0, %v3646
      %3648 = vmatmul.f32.gmra.mxu0 %v3465
      %v3649 = vpop.f32.mrf.mxu0
      %v3650 = vadd.f32 0.0, %v3649
      %3651 = vmatmul.f32.gmra.mxu0 %v3468
      %v3652 = vpop.f32.mrf.mxu0
      %v3653 = vadd.f32 0.0, %v3652
      %3654 = vmatmul.f32.gmra.mxu0 %v3471
      %v3655 = vpop.f32.mrf.mxu0
      %v3656 = vadd.f32 0.0, %v3655
      %3657 = vmatmul.f32.gmra.mxu0 %v3474
      %v3658 = vpop.f32.mrf.mxu0
      %v3659 = vadd.f32 0.0, %v3658
      %3660 = vmatmul.f32.gmra.mxu0 %v3477
      %v3661 = vpop.f32.mrf.mxu0
      %v3662 = vadd.f32 0.0, %v3661
      %3663 = vmatmul.f32.gmra.mxu0 %v3480
      %v3664 = vpop.f32.mrf.mxu0
      %v3665 = vadd.f32 0.0, %v3664
      %3666 = vmatmul.f32.gmra.mxu0 %v3483
      %v3667 = vpop.f32.mrf.mxu0
      %v3668 = vadd.f32 0.0, %v3667
      %3669 = vmatmul.f32.gmra.mxu0 %v3486
      %v3670 = vpop.f32.mrf.mxu0
      %v3671 = vadd.f32 0.0, %v3670
      %3672 = vmatmul.f32.gmra.mxu0 %v3489
      %v3673 = vpop.f32.mrf.mxu0
      %v3674 = vadd.f32 0.0, %v3673
      %3675 = vmatmul.f32.gmra.mxu0 %v3492
      %v3676 = vpop.f32.mrf.mxu0
      %v3677 = vadd.f32 0.0, %v3676
      %3678 = vmatmul.f32.gmra.mxu0 %v3495
      %v3679 = vpop.f32.mrf.mxu0
      %v3680 = vadd.f32 0.0, %v3679
      %3681 = vmatmul.f32.gmra.mxu0 %v3498
      %v3682 = vpop.f32.mrf.mxu0
      %v3683 = vadd.f32 0.0, %v3682
      %3684 = vmatmul.f32.gmra.mxu0 %v3501
      %v3685 = vpop.f32.mrf.mxu0
      %v3686 = vadd.f32 0.0, %v3685
      %3687 = vmatmul.f32.gmra.mxu0 %v3504
      %v3688 = vpop.f32.mrf.mxu0
      %v3689 = vadd.f32 0.0, %v3688
      %3690 = vmatmul.f32.gmra.mxu0 %v3507
      %v3691 = vpop.f32.mrf.mxu0
      %v3692 = vadd.f32 0.0, %v3691
      %3693 = vmatmul.f32.gmra.mxu0 %v3510
      %v3694 = vpop.f32.mrf.mxu0
      %v3695 = vadd.f32 0.0, %v3694
      %3696 = vmatmul.f32.gmra.mxu0 %v3513
      %v3697 = vpop.f32.mrf.mxu0
      %v3698 = vadd.f32 0.0, %v3697
      %3699 = vmatmul.f32.gmra.mxu0 %v3516
      %v3700 = vpop.f32.mrf.mxu0
      %v3701 = vadd.f32 0.0, %v3700
      %3702 = vdwg.mxu0
      %v3703 = vadd.f32 %v3241, %v3539
      %v3704 = vadd.f32 %v3242, %v3542
      %v3705 = vadd.f32 %v3243, %v3545
      %v3706 = vadd.f32 %v3244, %v3548
      %v3707 = vadd.f32 %v3245, %v3551
      %v3708 = vadd.f32 %v3246, %v3554
      %v3709 = vadd.f32 %v3247, %v3557
      %v3710 = vadd.f32 %v3248, %v3560
      %v3711 = vadd.f32 %v3249, %v3563
      %v3712 = vadd.f32 %v3250, %v3566
      %v3713 = vadd.f32 %v3251, %v3569
      %v3714 = vadd.f32 %v3252, %v3572
      %v3715 = vadd.f32 %v3253, %v3575
      %v3716 = vadd.f32 %v3254, %v3578
      %v3717 = vadd.f32 %v3255, %v3581
      %v3718 = vadd.f32 %v3256, %v3584
      %v3719 = vadd.f32 %v3257, %v3587
      %v3720 = vadd.f32 %v3258, %v3590
      %v3721 = vadd.f32 %v3259, %v3593
      %v3722 = vadd.f32 %v3260, %v3596
      %v3723 = vadd.f32 %v3261, %v3599
      %v3724 = vadd.f32 %v3262, %v3602
      %v3725 = vadd.f32 %v3263, %v3605
      %v3726 = vadd.f32 %v3264, %v3608
      %v3727 = vadd.f32 %v3265, %v3611
      %v3728 = vadd.f32 %v3266, %v3614
      %v3729 = vadd.f32 %v3267, %v3617
      %v3730 = vadd.f32 %v3268, %v3620
      %v3731 = vadd.f32 %v3269, %v3623
      %v3732 = vadd.f32 %v3270, %v3626
      %v3733 = vadd.f32 %v3271, %v3629
      %v3734 = vadd.f32 %v3272, %v3632
      %v3735 = vadd.f32 %v3273, %v3635
      %v3736 = vadd.f32 %v3274, %v3638
      %v3737 = vadd.f32 %v3275, %v3641
      %v3738 = vadd.f32 %v3276, %v3644
      %v3739 = vadd.f32 %v3277, %v3647
      %v3740 = vadd.f32 %v3278, %v3650
      %v3741 = vadd.f32 %v3279, %v3653
      %v3742 = vadd.f32 %v3280, %v3656
      %v3743 = vadd.f32 %v3281, %v3659
      %v3744 = vadd.f32 %v3282, %v3662
      %v3745 = vadd.f32 %v3283, %v3665
      %v3746 = vadd.f32 %v3284, %v3668
      %v3747 = vadd.f32 %v3285, %v3671
      %v3748 = vadd.f32 %v3286, %v3674
      %v3749 = vadd.f32 %v3287, %v3677
      %v3750 = vadd.f32 %v3288, %v3680
      %v3751 = vadd.f32 %v3289, %v3683
      %v3752 = vadd.f32 %v3290, %v3686
      %v3753 = vadd.f32 %v3291, %v3689
      %v3754 = vadd.f32 %v3292, %v3692
      %v3755 = vadd.f32 %v3293, %v3695
      %v3756 = vadd.f32 %v3294, %v3698
      %v3757 = vadd.f32 %v3295, %v3701
      %v3758 = vld [vmem:[%s165 + $0x2e] sm:$0xff]
      %v3759 = vld [vmem:[%s165 + $0x36] sm:$0xff]
      %v3760 = vld [vmem:[%s165 + $0x3e] sm:$0xff]
      %v3761 = vld [vmem:[%s165 + $0x46] sm:$0xff]
      %v3762 = vld [vmem:[%s165 + $0x4e] sm:$0xff]
      %v3763 = vld [vmem:[%s165 + $0x56] sm:$0xff]
      %v3764 = vld [vmem:[%s165 + $0x5e] sm:$0xff]
      %v3765 = vld [vmem:[%s165 + $0x66] sm:$0xff]
      %v3766 = vld [vmem:[%s165 + $0x6e] sm:$0xff]
      %v3767 = vld [vmem:[%s165 + $0x76] sm:$0xff]
      %v3768 = vld [vmem:[%s165 + $0x7e] sm:$0xff]
      %v3769 = vld [vmem:[%s165 + $0x86] sm:$0xff]
      %v3770 = vld [vmem:[%s165 + $0x8e] sm:$0xff]
      %v3771 = vld [vmem:[%s165 + $0x96] sm:$0xff]
      %v3772 = vld [vmem:[%s165 + $0x9e] sm:$0xff]
      %v3773 = vld [vmem:[%s165 + $0xa6] sm:$0xff]
      %v3774 = vld [vmem:[%s165 + $0xae] sm:$0xff]
      %v3775 = vld [vmem:[%s165 + $0xb6] sm:$0xff]
      %v3776 = vld [vmem:[%s165 + $0xbe] sm:$0xff]
      %v3777 = vld [vmem:[%s165 + $0xc6] sm:$0xff]
      %v3778 = vld [vmem:[%s165 + $0xce] sm:$0xff]
      %v3779 = vld [vmem:[%s165 + $0xd6] sm:$0xff]
      %v3780 = vld [vmem:[%s165 + $0xde] sm:$0xff]
      %v3781 = vld [vmem:[%s165 + $0xe6] sm:$0xff]
      %v3782 = vld [vmem:[%s165 + $0xee] sm:$0xff]
      %v3783 = vld [vmem:[%s165 + $0xf6] sm:$0xff]
      %v3784 = vld [vmem:[%s165 + $0xfe] sm:$0xff]
      %v3785 = vld [vmem:[%s165 + $0x106] sm:$0xff]
      %v3786 = vld [vmem:[%s165 + $0x10e] sm:$0xff]
      %v3787 = vld [vmem:[%s165 + $0x116] sm:$0xff]
      %v3788 = vld [vmem:[%s165 + $0x11e] sm:$0xff]
      %v3789 = vld [vmem:[%s165 + $0x126] sm:$0xff]
      %v3790 = vld [vmem:[%s165 + $0x12e] sm:$0xff]
      %v3791 = vld [vmem:[%s165 + $0x136] sm:$0xff]
      %v3792 = vld [vmem:[%s165 + $0x13e] sm:$0xff]
      %v3793 = vld [vmem:[%s165 + $0x146] sm:$0xff]
      %v3794 = vld [vmem:[%s165 + $0x14e] sm:$0xff]
      %v3795 = vld [vmem:[%s165 + $0x156] sm:$0xff]
      %v3796 = vld [vmem:[%s165 + $0x15e] sm:$0xff]
      %v3797 = vld [vmem:[%s165 + $0x166] sm:$0xff]
      %v3798 = vld [vmem:[%s165 + $0x16e] sm:$0xff]
      %v3799 = vld [vmem:[%s165 + $0x176] sm:$0xff]
      %v3800 = vld [vmem:[%s165 + $0x17e] sm:$0xff]
      %v3801 = vld [vmem:[%s165 + $0x186] sm:$0xff]
      %v3802 = vld [vmem:[%s165 + $0x18e] sm:$0xff]
      %v3803 = vld [vmem:[%s165 + $0x196] sm:$0xff]
      %v3804 = vld [vmem:[%s165 + $0x19e] sm:$0xff]
      %v3805 = vld [vmem:[%s165 + $0x1a6] sm:$0xff]
      %v3806 = vld [vmem:[%s165 + $0x1ae] sm:$0xff]
      %v3807 = vld [vmem:[%s165 + $0x1b6] sm:$0xff]
      %v3808 = vld [vmem:[%s165 + $0x1be] sm:$0xff]
      %v3809 = vld [vmem:[%s165 + $0x1c6] sm:$0xff]
      %v3810 = vld [vmem:[%s165 + $0x1ce] sm:$0xff]
      %v3811 = vld [vmem:[%s165 + $0x1d6] sm:$0xff]
      %v3812 = vld [vmem:[%s165 + $0x1de] sm:$0x3f]
      %s3813 = scalar_lea.vmem %s1, 32
      %v3814 = vld [vmem:[%s3813] sm:$0x7]
      %v3816 = vsel %vm284, %v3758, 0
      %v3819 = vsel %vm284, %v3759, 0
      %v3822 = vsel %vm284, %v3760, 0
      %v3825 = vsel %vm284, %v3761, 0
      %v3828 = vsel %vm284, %v3762, 0
      %v3831 = vsel %vm284, %v3763, 0
      %v3834 = vsel %vm284, %v3764, 0
      %v3837 = vsel %vm284, %v3765, 0
      %v3840 = vsel %vm284, %v3766, 0
      %v3843 = vsel %vm284, %v3767, 0
      %v3846 = vsel %vm284, %v3768, 0
      %v3849 = vsel %vm284, %v3769, 0
      %v3852 = vsel %vm284, %v3770, 0
      %v3855 = vsel %vm284, %v3771, 0
      %v3858 = vsel %vm284, %v3772, 0
      %v3861 = vsel %vm284, %v3773, 0
      %v3864 = vsel %vm284, %v3774, 0
      %v3867 = vsel %vm284, %v3775, 0
      %v3870 = vsel %vm284, %v3776, 0
      %v3873 = vsel %vm284, %v3777, 0
      %v3876 = vsel %vm284, %v3778, 0
      %v3879 = vsel %vm284, %v3779, 0
      %v3882 = vsel %vm284, %v3780, 0
      %v3885 = vsel %vm284, %v3781, 0
      %v3888 = vsel %vm284, %v3782, 0
      %v3891 = vsel %vm284, %v3783, 0
      %v3894 = vsel %vm284, %v3784, 0
      %v3897 = vsel %vm284, %v3785, 0
      %v3900 = vsel %vm284, %v3786, 0
      %v3903 = vsel %vm284, %v3787, 0
      %v3906 = vsel %vm284, %v3788, 0
      %v3909 = vsel %vm284, %v3789, 0
      %v3912 = vsel %vm284, %v3790, 0
      %v3915 = vsel %vm284, %v3791, 0
      %v3918 = vsel %vm284, %v3792, 0
      %v3921 = vsel %vm284, %v3793, 0
      %v3924 = vsel %vm284, %v3794, 0
      %v3927 = vsel %vm284, %v3795, 0
      %v3930 = vsel %vm284, %v3796, 0
      %v3933 = vsel %vm284, %v3797, 0
      %v3936 = vsel %vm284, %v3798, 0
      %v3939 = vsel %vm284, %v3799, 0
      %v3942 = vsel %vm284, %v3800, 0
      %v3945 = vsel %vm284, %v3801, 0
      %v3948 = vsel %vm284, %v3802, 0
      %v3951 = vsel %vm284, %v3803, 0
      %v3954 = vsel %vm284, %v3804, 0
      %v3957 = vsel %vm284, %v3805, 0
      %v3960 = vsel %vm284, %v3806, 0
      %v3963 = vsel %vm284, %v3807, 0
      %v3966 = vsel %vm284, %v3808, 0
      %v3969 = vsel %vm284, %v3809, 0
      %v3972 = vsel %vm284, %v3810, 0
      %v3975 = vsel %vm284, %v3811, 0
      %v3978 = vsel %vm284, %v3812, 0
      %v3981 = vsel %vm450, %v3814, 0
      %3983 = vmatpush.msra.mxu0 0.0
      %3984 = vmatpush.msra.mxu0 0.0
      %3985 = vmatpush.msra.mxu0 0.0
      %3986 = vmatpush.msra.mxu0 0.0
      %3987 = vmatpush.msra.mxu0 0.0
      %3988 = vmatpush.msra.mxu0 0.0
      %3989 = vmatpush.msra.mxu0 0.0
      %3990 = vmatpush.msra.mxu0 0.0
      %3991 = vmatpush.msra.mxu0 0.0
      %3992 = vmatpush.msra.mxu0 0.0
      %3993 = vmatpush.msra.mxu0 0.0
      %3994 = vmatpush.msra.mxu0 0.0
      %3995 = vmatpush.msra.mxu0 0.0
      %3996 = vmatpush.msra.mxu0 0.0
      %3997 = vmatpush.msra.mxu0 0.0
      %3998 = vmatpush.msra.mxu0 %v3981
      %3999 = vmatmul.f32.gmra.mxu0 %v3816
      %v4000 = vpop.f32.mrf.mxu0
      %v4001 = vadd.f32 0.0, %v4000
      %4002 = vmatmul.f32.gmra.mxu0 %v3819
      %v4003 = vpop.f32.mrf.mxu0
      %v4004 = vadd.f32 0.0, %v4003
      %4005 = vmatmul.f32.gmra.mxu0 %v3822
      %v4006 = vpop.f32.mrf.mxu0
      %v4007 = vadd.f32 0.0, %v4006
      %4008 = vmatmul.f32.gmra.mxu0 %v3825
      %v4009 = vpop.f32.mrf.mxu0
      %v4010 = vadd.f32 0.0, %v4009
      %4011 = vmatmul.f32.gmra.mxu0 %v3828
      %v4012 = vpop.f32.mrf.mxu0
      %v4013 = vadd.f32 0.0, %v4012
      %4014 = vmatmul.f32.gmra.mxu0 %v3831
      %v4015 = vpop.f32.mrf.mxu0
      %v4016 = vadd.f32 0.0, %v4015
      %4017 = vmatmul.f32.gmra.mxu0 %v3834
      %v4018 = vpop.f32.mrf.mxu0
      %v4019 = vadd.f32 0.0, %v4018
      %4020 = vmatmul.f32.gmra.mxu0 %v3837
      %v4021 = vpop.f32.mrf.mxu0
      %v4022 = vadd.f32 0.0, %v4021
      %4023 = vmatmul.f32.gmra.mxu0 %v3840
      %v4024 = vpop.f32.mrf.mxu0
      %v4025 = vadd.f32 0.0, %v4024
      %4026 = vmatmul.f32.gmra.mxu0 %v3843
      %v4027 = vpop.f32.mrf.mxu0
      %v4028 = vadd.f32 0.0, %v4027
      %4029 = vmatmul.f32.gmra.mxu0 %v3846
      %v4030 = vpop.f32.mrf.mxu0
      %v4031 = vadd.f32 0.0, %v4030
      %4032 = vmatmul.f32.gmra.mxu0 %v3849
      %v4033 = vpop.f32.mrf.mxu0
      %v4034 = vadd.f32 0.0, %v4033
      %4035 = vmatmul.f32.gmra.mxu0 %v3852
      %v4036 = vpop.f32.mrf.mxu0
      %v4037 = vadd.f32 0.0, %v4036
      %4038 = vmatmul.f32.gmra.mxu0 %v3855
      %v4039 = vpop.f32.mrf.mxu0
      %v4040 = vadd.f32 0.0, %v4039
      %4041 = vmatmul.f32.gmra.mxu0 %v3858
      %v4042 = vpop.f32.mrf.mxu0
      %v4043 = vadd.f32 0.0, %v4042
      %4044 = vmatmul.f32.gmra.mxu0 %v3861
      %v4045 = vpop.f32.mrf.mxu0
      %v4046 = vadd.f32 0.0, %v4045
      %4047 = vmatmul.f32.gmra.mxu0 %v3864
      %v4048 = vpop.f32.mrf.mxu0
      %v4049 = vadd.f32 0.0, %v4048
      %4050 = vmatmul.f32.gmra.mxu0 %v3867
      %v4051 = vpop.f32.mrf.mxu0
      %v4052 = vadd.f32 0.0, %v4051
      %4053 = vmatmul.f32.gmra.mxu0 %v3870
      %v4054 = vpop.f32.mrf.mxu0
      %v4055 = vadd.f32 0.0, %v4054
      %4056 = vmatmul.f32.gmra.mxu0 %v3873
      %v4057 = vpop.f32.mrf.mxu0
      %v4058 = vadd.f32 0.0, %v4057
      %4059 = vmatmul.f32.gmra.mxu0 %v3876
      %v4060 = vpop.f32.mrf.mxu0
      %v4061 = vadd.f32 0.0, %v4060
      %4062 = vmatmul.f32.gmra.mxu0 %v3879
      %v4063 = vpop.f32.mrf.mxu0
      %v4064 = vadd.f32 0.0, %v4063
      %4065 = vmatmul.f32.gmra.mxu0 %v3882
      %v4066 = vpop.f32.mrf.mxu0
      %v4067 = vadd.f32 0.0, %v4066
      %4068 = vmatmul.f32.gmra.mxu0 %v3885
      %v4069 = vpop.f32.mrf.mxu0
      %v4070 = vadd.f32 0.0, %v4069
      %4071 = vmatmul.f32.gmra.mxu0 %v3888
      %v4072 = vpop.f32.mrf.mxu0
      %v4073 = vadd.f32 0.0, %v4072
      %4074 = vmatmul.f32.gmra.mxu0 %v3891
      %v4075 = vpop.f32.mrf.mxu0
      %v4076 = vadd.f32 0.0, %v4075
      %4077 = vmatmul.f32.gmra.mxu0 %v3894
      %v4078 = vpop.f32.mrf.mxu0
      %v4079 = vadd.f32 0.0, %v4078
      %4080 = vmatmul.f32.gmra.mxu0 %v3897
      %v4081 = vpop.f32.mrf.mxu0
      %v4082 = vadd.f32 0.0, %v4081
      %4083 = vmatmul.f32.gmra.mxu0 %v3900
      %v4084 = vpop.f32.mrf.mxu0
      %v4085 = vadd.f32 0.0, %v4084
      %4086 = vmatmul.f32.gmra.mxu0 %v3903
      %v4087 = vpop.f32.mrf.mxu0
      %v4088 = vadd.f32 0.0, %v4087
      %4089 = vmatmul.f32.gmra.mxu0 %v3906
      %v4090 = vpop.f32.mrf.mxu0
      %v4091 = vadd.f32 0.0, %v4090
      %4092 = vmatmul.f32.gmra.mxu0 %v3909
      %v4093 = vpop.f32.mrf.mxu0
      %v4094 = vadd.f32 0.0, %v4093
      %4095 = vmatmul.f32.gmra.mxu0 %v3912
      %v4096 = vpop.f32.mrf.mxu0
      %v4097 = vadd.f32 0.0, %v4096
      %4098 = vmatmul.f32.gmra.mxu0 %v3915
      %v4099 = vpop.f32.mrf.mxu0
      %v4100 = vadd.f32 0.0, %v4099
      %4101 = vmatmul.f32.gmra.mxu0 %v3918
      %v4102 = vpop.f32.mrf.mxu0
      %v4103 = vadd.f32 0.0, %v4102
      %4104 = vmatmul.f32.gmra.mxu0 %v3921
      %v4105 = vpop.f32.mrf.mxu0
      %v4106 = vadd.f32 0.0, %v4105
      %4107 = vmatmul.f32.gmra.mxu0 %v3924
      %v4108 = vpop.f32.mrf.mxu0
      %v4109 = vadd.f32 0.0, %v4108
      %4110 = vmatmul.f32.gmra.mxu0 %v3927
      %v4111 = vpop.f32.mrf.mxu0
      %v4112 = vadd.f32 0.0, %v4111
      %4113 = vmatmul.f32.gmra.mxu0 %v3930
      %v4114 = vpop.f32.mrf.mxu0
      %v4115 = vadd.f32 0.0, %v4114
      %4116 = vmatmul.f32.gmra.mxu0 %v3933
      %v4117 = vpop.f32.mrf.mxu0
      %v4118 = vadd.f32 0.0, %v4117
      %4119 = vmatmul.f32.gmra.mxu0 %v3936
      %v4120 = vpop.f32.mrf.mxu0
      %v4121 = vadd.f32 0.0, %v4120
      %4122 = vmatmul.f32.gmra.mxu0 %v3939
      %v4123 = vpop.f32.mrf.mxu0
      %v4124 = vadd.f32 0.0, %v4123
      %4125 = vmatmul.f32.gmra.mxu0 %v3942
      %v4126 = vpop.f32.mrf.mxu0
      %v4127 = vadd.f32 0.0, %v4126
      %4128 = vmatmul.f32.gmra.mxu0 %v3945
      %v4129 = vpop.f32.mrf.mxu0
      %v4130 = vadd.f32 0.0, %v4129
      %4131 = vmatmul.f32.gmra.mxu0 %v3948
      %v4132 = vpop.f32.mrf.mxu0
      %v4133 = vadd.f32 0.0, %v4132
      %4134 = vmatmul.f32.gmra.mxu0 %v3951
      %v4135 = vpop.f32.mrf.mxu0
      %v4136 = vadd.f32 0.0, %v4135
      %4137 = vmatmul.f32.gmra.mxu0 %v3954
      %v4138 = vpop.f32.mrf.mxu0
      %v4139 = vadd.f32 0.0, %v4138
      %4140 = vmatmul.f32.gmra.mxu0 %v3957
      %v4141 = vpop.f32.mrf.mxu0
      %v4142 = vadd.f32 0.0, %v4141
      %4143 = vmatmul.f32.gmra.mxu0 %v3960
      %v4144 = vpop.f32.mrf.mxu0
      %v4145 = vadd.f32 0.0, %v4144
      %4146 = vmatmul.f32.gmra.mxu0 %v3963
      %v4147 = vpop.f32.mrf.mxu0
      %v4148 = vadd.f32 0.0, %v4147
      %4149 = vmatmul.f32.gmra.mxu0 %v3966
      %v4150 = vpop.f32.mrf.mxu0
      %v4151 = vadd.f32 0.0, %v4150
      %4152 = vmatmul.f32.gmra.mxu0 %v3969
      %v4153 = vpop.f32.mrf.mxu0
      %v4154 = vadd.f32 0.0, %v4153
      %4155 = vmatmul.f32.gmra.mxu0 %v3972
      %v4156 = vpop.f32.mrf.mxu0
      %v4157 = vadd.f32 0.0, %v4156
      %4158 = vmatmul.f32.gmra.mxu0 %v3975
      %v4159 = vpop.f32.mrf.mxu0
      %v4160 = vadd.f32 0.0, %v4159
      %4161 = vmatmul.f32.gmra.mxu0 %v3978
      %v4162 = vpop.f32.mrf.mxu0
      %v4163 = vadd.f32 0.0, %v4162
      %4164 = vdwg.mxu0
      %v4165 = vadd.f32 %v3703, %v4001
      %v4166 = vadd.f32 %v3704, %v4004
      %v4167 = vadd.f32 %v3705, %v4007
      %v4168 = vadd.f32 %v3706, %v4010
      %v4169 = vadd.f32 %v3707, %v4013
      %v4170 = vadd.f32 %v3708, %v4016
      %v4171 = vadd.f32 %v3709, %v4019
      %v4172 = vadd.f32 %v3710, %v4022
      %v4173 = vadd.f32 %v3711, %v4025
      %v4174 = vadd.f32 %v3712, %v4028
      %v4175 = vadd.f32 %v3713, %v4031
      %v4176 = vadd.f32 %v3714, %v4034
      %v4177 = vadd.f32 %v3715, %v4037
      %v4178 = vadd.f32 %v3716, %v4040
      %v4179 = vadd.f32 %v3717, %v4043
      %v4180 = vadd.f32 %v3718, %v4046
      %v4181 = vadd.f32 %v3719, %v4049
      %v4182 = vadd.f32 %v3720, %v4052
      %v4183 = vadd.f32 %v3721, %v4055
      %v4184 = vadd.f32 %v3722, %v4058
      %v4185 = vadd.f32 %v3723, %v4061
      %v4186 = vadd.f32 %v3724, %v4064
      %v4187 = vadd.f32 %v3725, %v4067
      %v4188 = vadd.f32 %v3726, %v4070
      %v4189 = vadd.f32 %v3727, %v4073
      %v4190 = vadd.f32 %v3728, %v4076
      %v4191 = vadd.f32 %v3729, %v4079
      %v4192 = vadd.f32 %v3730, %v4082
      %v4193 = vadd.f32 %v3731, %v4085
      %v4194 = vadd.f32 %v3732, %v4088
      %v4195 = vadd.f32 %v3733, %v4091
      %v4196 = vadd.f32 %v3734, %v4094
      %v4197 = vadd.f32 %v3735, %v4097
      %v4198 = vadd.f32 %v3736, %v4100
      %v4199 = vadd.f32 %v3737, %v4103
      %v4200 = vadd.f32 %v3738, %v4106
      %v4201 = vadd.f32 %v3739, %v4109
      %v4202 = vadd.f32 %v3740, %v4112
      %v4203 = vadd.f32 %v3741, %v4115
      %v4204 = vadd.f32 %v3742, %v4118
      %v4205 = vadd.f32 %v3743, %v4121
      %v4206 = vadd.f32 %v3744, %v4124
      %v4207 = vadd.f32 %v3745, %v4127
      %v4208 = vadd.f32 %v3746, %v4130
      %v4209 = vadd.f32 %v3747, %v4133
      %v4210 = vadd.f32 %v3748, %v4136
      %v4211 = vadd.f32 %v3749, %v4139
      %v4212 = vadd.f32 %v3750, %v4142
      %v4213 = vadd.f32 %v3751, %v4145
      %v4214 = vadd.f32 %v3752, %v4148
      %v4215 = vadd.f32 %v3753, %v4151
      %v4216 = vadd.f32 %v3754, %v4154
      %v4217 = vadd.f32 %v3755, %v4157
      %v4218 = vadd.f32 %v3756, %v4160
      %v4219 = vadd.f32 %v3757, %v4163
      %v4220 = vld [vmem:[%s2] sm:$0x1]
      %v4222 = vperm.slane %v4220, 0
      %v4224 = vadd.f32 %v4165, %v4222
      %v4225 = vadd.f32 %v4166, %v4222
      %v4226 = vadd.f32 %v4167, %v4222
      %v4227 = vadd.f32 %v4168, %v4222
      %v4228 = vadd.f32 %v4169, %v4222
      %v4229 = vadd.f32 %v4170, %v4222
      %v4230 = vadd.f32 %v4171, %v4222
      %v4231 = vadd.f32 %v4172, %v4222
      %v4232 = vadd.f32 %v4173, %v4222
      %v4233 = vadd.f32 %v4174, %v4222
      %v4234 = vadd.f32 %v4175, %v4222
      %v4235 = vadd.f32 %v4176, %v4222
      %v4236 = vadd.f32 %v4177, %v4222
      %v4237 = vadd.f32 %v4178, %v4222
      %v4238 = vadd.f32 %v4179, %v4222
      %v4239 = vadd.f32 %v4180, %v4222
      %v4240 = vadd.f32 %v4181, %v4222
      %v4241 = vadd.f32 %v4182, %v4222
      %v4242 = vadd.f32 %v4183, %v4222
      %v4243 = vadd.f32 %v4184, %v4222
      %v4244 = vadd.f32 %v4185, %v4222
      %v4245 = vadd.f32 %v4186, %v4222
      %v4246 = vadd.f32 %v4187, %v4222
      %v4247 = vadd.f32 %v4188, %v4222
      %v4248 = vadd.f32 %v4189, %v4222
      %v4249 = vadd.f32 %v4190, %v4222
      %v4250 = vadd.f32 %v4191, %v4222
      %v4251 = vadd.f32 %v4192, %v4222
      %v4252 = vadd.f32 %v4193, %v4222
      %v4253 = vadd.f32 %v4194, %v4222
      %v4254 = vadd.f32 %v4195, %v4222
      %v4255 = vadd.f32 %v4196, %v4222
      %v4256 = vadd.f32 %v4197, %v4222
      %v4257 = vadd.f32 %v4198, %v4222
      %v4258 = vadd.f32 %v4199, %v4222
      %v4259 = vadd.f32 %v4200, %v4222
      %v4260 = vadd.f32 %v4201, %v4222
      %v4261 = vadd.f32 %v4202, %v4222
      %v4262 = vadd.f32 %v4203, %v4222
      %v4263 = vadd.f32 %v4204, %v4222
      %v4264 = vadd.f32 %v4205, %v4222
      %v4265 = vadd.f32 %v4206, %v4222
      %v4266 = vadd.f32 %v4207, %v4222
      %v4267 = vadd.f32 %v4208, %v4222
      %v4268 = vadd.f32 %v4209, %v4222
      %v4269 = vadd.f32 %v4210, %v4222
      %v4270 = vadd.f32 %v4211, %v4222
      %v4271 = vadd.f32 %v4212, %v4222
      %v4272 = vadd.f32 %v4213, %v4222
      %v4273 = vadd.f32 %v4214, %v4222
      %v4274 = vadd.f32 %v4215, %v4222
      %v4275 = vadd.f32 %v4216, %v4222
      %v4276 = vadd.f32 %v4217, %v4222
      %v4277 = vadd.f32 %v4218, %v4222
      %v4278 = vadd.f32 %v4219, %v4222
      %v4279 = vmax.f32 %v4224, 0.0
      %v4280 = vmax.f32 %v4225, 0.0
      %v4281 = vmax.f32 %v4226, 0.0
      %v4282 = vmax.f32 %v4227, 0.0
      %v4283 = vmax.f32 %v4228, 0.0
      %v4284 = vmax.f32 %v4229, 0.0
      %v4285 = vmax.f32 %v4230, 0.0
      %v4286 = vmax.f32 %v4231, 0.0
      %v4287 = vmax.f32 %v4232, 0.0
      %v4288 = vmax.f32 %v4233, 0.0
      %v4289 = vmax.f32 %v4234, 0.0
      %v4290 = vmax.f32 %v4235, 0.0
      %v4291 = vmax.f32 %v4236, 0.0
      %v4292 = vmax.f32 %v4237, 0.0
      %v4293 = vmax.f32 %v4238, 0.0
      %v4294 = vmax.f32 %v4239, 0.0
      %v4295 = vmax.f32 %v4240, 0.0
      %v4296 = vmax.f32 %v4241, 0.0
      %v4297 = vmax.f32 %v4242, 0.0
      %v4298 = vmax.f32 %v4243, 0.0
      %v4299 = vmax.f32 %v4244, 0.0
      %v4300 = vmax.f32 %v4245, 0.0
      %v4301 = vmax.f32 %v4246, 0.0
      %v4302 = vmax.f32 %v4247, 0.0
      %v4303 = vmax.f32 %v4248, 0.0
      %v4304 = vmax.f32 %v4249, 0.0
      %v4305 = vmax.f32 %v4250, 0.0
      %v4306 = vmax.f32 %v4251, 0.0
      %v4307 = vmax.f32 %v4252, 0.0
      %v4308 = vmax.f32 %v4253, 0.0
      %v4309 = vmax.f32 %v4254, 0.0
      %v4310 = vmax.f32 %v4255, 0.0
      %v4311 = vmax.f32 %v4256, 0.0
      %v4312 = vmax.f32 %v4257, 0.0
      %v4313 = vmax.f32 %v4258, 0.0
      %v4314 = vmax.f32 %v4259, 0.0
      %v4315 = vmax.f32 %v4260, 0.0
      %v4316 = vmax.f32 %v4261, 0.0
      %v4317 = vmax.f32 %v4262, 0.0
      %v4318 = vmax.f32 %v4263, 0.0
      %v4319 = vmax.f32 %v4264, 0.0
      %v4320 = vmax.f32 %v4265, 0.0
      %v4321 = vmax.f32 %v4266, 0.0
      %v4322 = vmax.f32 %v4267, 0.0
      %v4323 = vmax.f32 %v4268, 0.0
      %v4324 = vmax.f32 %v4269, 0.0
      %v4325 = vmax.f32 %v4270, 0.0
      %v4326 = vmax.f32 %v4271, 0.0
      %v4327 = vmax.f32 %v4272, 0.0
      %v4328 = vmax.f32 %v4273, 0.0
      %v4329 = vmax.f32 %v4274, 0.0
      %v4330 = vmax.f32 %v4275, 0.0
      %v4331 = vmax.f32 %v4276, 0.0
      %v4332 = vmax.f32 %v4277, 0.0
      %v4333 = vmax.f32 %v4278, 0.0
      %vm4334 = vcmask 261120
      %4335 = vst.msk [vmem:[#allocation2] sm:$0xff] %vm4334, %v4279
      %4336 = vst.msk [vmem:[#allocation2 + $0x8] sm:$0xff] %vm4334, %v4280
      %4337 = vst.msk [vmem:[#allocation2 + $0x10] sm:$0xff] %vm4334, %v4281
      %4338 = vst.msk [vmem:[#allocation2 + $0x18] sm:$0xff] %vm4334, %v4282
      %4339 = vst.msk [vmem:[#allocation2 + $0x20] sm:$0xff] %vm4334, %v4283
      %4340 = vst.msk [vmem:[#allocation2 + $0x28] sm:$0xff] %vm4334, %v4284
      %4341 = vst.msk [vmem:[#allocation2 + $0x30] sm:$0xff] %vm4334, %v4285
      %4342 = vst.msk [vmem:[#allocation2 + $0x38] sm:$0xff] %vm4334, %v4286
      %4343 = vst.msk [vmem:[#allocation2 + $0x40] sm:$0xff] %vm4334, %v4287
      %4344 = vst.msk [vmem:[#allocation2 + $0x48] sm:$0xff] %vm4334, %v4288
      %4345 = vst.msk [vmem:[#allocation2 + $0x50] sm:$0xff] %vm4334, %v4289
      %4346 = vst.msk [vmem:[#allocation2 + $0x58] sm:$0xff] %vm4334, %v4290
      %4347 = vst.msk [vmem:[#allocation2 + $0x60] sm:$0xff] %vm4334, %v4291
      %4348 = vst.msk [vmem:[#allocation2 + $0x68] sm:$0xff] %vm4334, %v4292
      %4349 = vst.msk [vmem:[#allocation2 + $0x70] sm:$0xff] %vm4334, %v4293
      %4350 = vst.msk [vmem:[#allocation2 + $0x78] sm:$0xff] %vm4334, %v4294
      %4351 = vst.msk [vmem:[#allocation2 + $0x80] sm:$0xff] %vm4334, %v4295
      %4352 = vst.msk [vmem:[#allocation2 + $0x88] sm:$0xff] %vm4334, %v4296
      %4353 = vst.msk [vmem:[#allocation2 + $0x90] sm:$0xff] %vm4334, %v4297
      %4354 = vst.msk [vmem:[#allocation2 + $0x98] sm:$0xff] %vm4334, %v4298
      %4355 = vst.msk [vmem:[#allocation2 + $0xa0] sm:$0xff] %vm4334, %v4299
      %4356 = vst.msk [vmem:[#allocation2 + $0xa8] sm:$0xff] %vm4334, %v4300
      %4357 = vst.msk [vmem:[#allocation2 + $0xb0] sm:$0xff] %vm4334, %v4301
      %4358 = vst.msk [vmem:[#allocation2 + $0xb8] sm:$0xff] %vm4334, %v4302
      %4359 = vst.msk [vmem:[#allocation2 + $0xc0] sm:$0xff] %vm4334, %v4303
      %4360 = vst.msk [vmem:[#allocation2 + $0xc8] sm:$0xff] %vm4334, %v4304
      %4361 = vst.msk [vmem:[#allocation2 + $0xd0] sm:$0xff] %vm4334, %v4305
      %4362 = vst.msk [vmem:[#allocation2 + $0xd8] sm:$0xff] %vm4334, %v4306
      %4363 = vst.msk [vmem:[#allocation2 + $0xe0] sm:$0xff] %vm4334, %v4307
      %4364 = vst.msk [vmem:[#allocation2 + $0xe8] sm:$0xff] %vm4334, %v4308
      %4365 = vst.msk [vmem:[#allocation2 + $0xf0] sm:$0xff] %vm4334, %v4309
      %4366 = vst.msk [vmem:[#allocation2 + $0xf8] sm:$0xff] %vm4334, %v4310
      %4367 = vst.msk [vmem:[#allocation2 + $0x100] sm:$0xff] %vm4334, %v4311
      %4368 = vst.msk [vmem:[#allocation2 + $0x108] sm:$0xff] %vm4334, %v4312
      %4369 = vst.msk [vmem:[#allocation2 + $0x110] sm:$0xff] %vm4334, %v4313
      %4370 = vst.msk [vmem:[#allocation2 + $0x118] sm:$0xff] %vm4334, %v4314
      %4371 = vst.msk [vmem:[#allocation2 + $0x120] sm:$0xff] %vm4334, %v4315
      %4372 = vst.msk [vmem:[#allocation2 + $0x128] sm:$0xff] %vm4334, %v4316
      %4373 = vst.msk [vmem:[#allocation2 + $0x130] sm:$0xff] %vm4334, %v4317
      %4374 = vst.msk [vmem:[#allocation2 + $0x138] sm:$0xff] %vm4334, %v4318
      %4375 = vst.msk [vmem:[#allocation2 + $0x140] sm:$0xff] %vm4334, %v4319
      %4376 = vst.msk [vmem:[#allocation2 + $0x148] sm:$0xff] %vm4334, %v4320
      %4377 = vst.msk [vmem:[#allocation2 + $0x150] sm:$0xff] %vm4334, %v4321
      %4378 = vst.msk [vmem:[#allocation2 + $0x158] sm:$0xff] %vm4334, %v4322
      %4379 = vst.msk [vmem:[#allocation2 + $0x160] sm:$0xff] %vm4334, %v4323
      %4380 = vst.msk [vmem:[#allocation2 + $0x168] sm:$0xff] %vm4334, %v4324
      %4381 = vst.msk [vmem:[#allocation2 + $0x170] sm:$0xff] %vm4334, %v4325
      %4382 = vst.msk [vmem:[#allocation2 + $0x178] sm:$0xff] %vm4334, %v4326
      %4383 = vst.msk [vmem:[#allocation2 + $0x180] sm:$0xff] %vm4334, %v4327
      %4384 = vst.msk [vmem:[#allocation2 + $0x188] sm:$0xff] %vm4334, %v4328
      %4385 = vst.msk [vmem:[#allocation2 + $0x190] sm:$0xff] %vm4334, %v4329
      %4386 = vst.msk [vmem:[#allocation2 + $0x198] sm:$0xff] %vm4334, %v4330
      %4387 = vst.msk [vmem:[#allocation2 + $0x1a0] sm:$0xff] %vm4334, %v4331
      %4388 = vst.msk [vmem:[#allocation2 + $0x1a8] sm:$0xff] %vm4334, %v4332
      %vm4389 = vcmask 259072
      %4390 = vst.msk [vmem:[#allocation2 + $0x1b0] sm:$0x3f] %vm4389, %v4333
      %v4391 = vlaneseq
      %v4392 = vand.u32 %v4391, 127
      %v4393 = vlaneseq
      %v4394 = vshrl.u32 %v4393, 7
      %v4395 = vadd.s32 %v4394, 8
      %v4396 = vmul.u32 %v4394, 2
      %v4397 = vmul.u32 %v4395, 2
      %vm4398 = vcmp.eq.s32.totalorder %v4392, %v4396
      %vm4399 = vcmp.eq.s32.totalorder %v4392, %v4397
      %v4400 = vsel %vm4398, 1, 0
      %v4401 = vsel %vm4399, 1, 0
      %v4402 = vcvt.s32.f32 %v4400
      %v4403 = vcvt.s32.f32 %v4401
      %v4404 = vadd.s32 %v4396, 1
      %v4405 = vadd.s32 %v4397, 1
      %vm4406 = vcmp.eq.s32.totalorder %v4392, %v4404
      %vm4407 = vcmp.eq.s32.totalorder %v4392, %v4405
      %v4408 = vsel %vm4406, 1, 0
      %v4409 = vsel %vm4407, 1, 0
      %v4410 = vcvt.s32.f32 %v4408
      %v4411 = vcvt.s32.f32 %v4409
      %v4412 = vld [vmem:[#allocation2] sm:$0xff]
      %v4413 = vld [vmem:[#allocation2 + $0x8] sm:$0xff]
      %v4414 = vld [vmem:[#allocation2 + $0x10] sm:$0xf]
      %v4415 = vld [vmem:[#allocation2 + $0x16] sm:$0xff]
      %v4416 = vld [vmem:[#allocation2 + $0x1e] sm:$0xff]
      %v4417 = vld [vmem:[#allocation2 + $0x26] sm:$0xf]
      %v4418 = vmax.f32 %v4412, %v4415
      %v4419 = vmax.f32 %v4413, %v4416
      %v4420 = vmax.f32 %v4414, %v4417
      %vm4421 = vcmask 162816
      %v4423 = vsel %vm4421, %v4402, 0
      %v4426 = vsel %vm4421, %v4403, 0
      %vm4428 = vcmask 1043456
      %v4430 = vsel %vm4428, %v4420, 0
      %4432 = vmatpush.msra.mxu0 0.0
      %4433 = vmatpush.msra.mxu0 0.0
      %4434 = vmatpush.msra.mxu0 0.0
      %4435 = vmatpush.msra.mxu0 0.0
      %4436 = vmatpush.msra.mxu0 0.0
      %4437 = vmatpush.msra.mxu0 0.0
      %4438 = vmatpush.msra.mxu0 0.0
      %4439 = vmatpush.msra.mxu0 0.0
      %4440 = vmatpush.msra.mxu0 0.0
      %4441 = vmatpush.msra.mxu0 0.0
      %4442 = vmatpush.msra.mxu0 0.0
      %4443 = vmatpush.msra.mxu0 0.0
      %4444 = vmatpush.msra.mxu0 0.0
      %4445 = vmatpush.msra.mxu0 %v4430
      %4446 = vmatpush.msra.mxu0 %v4419
      %4447 = vmatpush.msra.mxu0 %v4418
      %4448 = vmatmul.f32.gmra.mxu0 %v4423
      %v4449 = vpop.f32.mrf.mxu0
      %v4450 = vadd.f32 0.0, %v4449
      %4451 = vmatmul.f32.gmra.mxu0 %v4426
      %v4452 = vpop.f32.mrf.mxu0
      %v4453 = vadd.f32 0.0, %v4452
      %4454 = vdwg.mxu0
      %v4456 = vsel %vm4421, %v4410, 0
      %v4459 = vsel %vm4421, %v4411, 0
      %4461 = vmatpush.msra.mxu0 0.0
      %4462 = vmatpush.msra.mxu0 0.0
      %4463 = vmatpush.msra.mxu0 0.0
      %4464 = vmatpush.msra.mxu0 0.0
      %4465 = vmatpush.msra.mxu0 0.0
      %4466 = vmatpush.msra.mxu0 0.0
      %4467 = vmatpush.msra.mxu0 0.0
      %4468 = vmatpush.msra.mxu0 0.0
      %4469 = vmatpush.msra.mxu0 0.0
      %4470 = vmatpush.msra.mxu0 0.0
      %4471 = vmatpush.msra.mxu0 0.0
      %4472 = vmatpush.msra.mxu0 0.0
      %4473 = vmatpush.msra.mxu0 0.0
      %4474 = vmatpush.msra.mxu0 %v4430
      %4475 = vmatpush.msra.mxu0 %v4419
      %4476 = vmatpush.msra.mxu0 %v4418
      %4477 = vmatmul.f32.gmra.mxu0 %v4456
      %v4478 = vpop.f32.mrf.mxu0
      %v4479 = vadd.f32 0.0, %v4478
      %4480 = vmatmul.f32.gmra.mxu0 %v4459
      %v4481 = vpop.f32.mrf.mxu0
      %v4482 = vadd.f32 0.0, %v4481
      %4483 = vdwg.mxu0
      %v4484 = vmax.f32 %v4450, %v4479
      %v4485 = vmax.f32 %v4453, %v4482
      %4486 = vst.msk [vmem:[%s170] sm:$0xff] %vm4334, %v4484
      %vm4487 = vcmask 254976
      %4488 = vst.msk [vmem:[%s170 + $0x8] sm:$0x3] %vm4487, %v4485
      %v4489 = vld [vmem:[#allocation2 + $0x2c] sm:$0xff]
      %v4490 = vld [vmem:[#allocation2 + $0x34] sm:$0xff]
      %v4491 = vld [vmem:[#allocation2 + $0x3c] sm:$0xf]
      %v4492 = vld [vmem:[#allocation2 + $0x42] sm:$0xff]
      %v4493 = vld [vmem:[#allocation2 + $0x4a] sm:$0xff]
      %v4494 = vld [vmem:[#allocation2 + $0x52] sm:$0xf]
      %v4495 = vmax.f32 %v4489, %v4492
      %v4496 = vmax.f32 %v4490, %v4493
      %v4497 = vmax.f32 %v4491, %v4494
      %v4499 = vsel %vm4428, %v4497, 0
      %4501 = vmatpush.msra.mxu0 0.0
      %4502 = vmatpush.msra.mxu0 0.0
      %4503 = vmatpush.msra.mxu0 0.0
      %4504 = vmatpush.msra.mxu0 0.0
      %4505 = vmatpush.msra.mxu0 0.0
      %4506 = vmatpush.msra.mxu0 0.0
      %4507 = vmatpush.msra.mxu0 0.0
      %4508 = vmatpush.msra.mxu0 0.0
      %4509 = vmatpush.msra.mxu0 0.0
      %4510 = vmatpush.msra.mxu0 0.0
      %4511 = vmatpush.msra.mxu0 0.0
      %4512 = vmatpush.msra.mxu0 0.0
      %4513 = vmatpush.msra.mxu0 0.0
      %4514 = vmatpush.msra.mxu0 %v4499
      %4515 = vmatpush.msra.mxu0 %v4496
      %4516 = vmatpush.msra.mxu0 %v4495
      %4517 = vmatmul.f32.gmra.mxu0 %v4423
      %v4518 = vpop.f32.mrf.mxu0
      %v4519 = vadd.f32 0.0, %v4518
      %4520 = vmatmul.f32.gmra.mxu0 %v4426
      %v4521 = vpop.f32.mrf.mxu0
      %v4522 = vadd.f32 0.0, %v4521
      %4523 = vdwg.mxu0
      %4524 = vmatpush.msra.mxu0 0.0
      %4525 = vmatpush.msra.mxu0 0.0
      %4526 = vmatpush.msra.mxu0 0.0
      %4527 = vmatpush.msra.mxu0 0.0
      %4528 = vmatpush.msra.mxu0 0.0
      %4529 = vmatpush.msra.mxu0 0.0
      %4530 = vmatpush.msra.mxu0 0.0
      %4531 = vmatpush.msra.mxu0 0.0
      %4532 = vmatpush.msra.mxu0 0.0
      %4533 = vmatpush.msra.mxu0 0.0
      %4534 = vmatpush.msra.mxu0 0.0
      %4535 = vmatpush.msra.mxu0 0.0
      %4536 = vmatpush.msra.mxu0 0.0
      %4537 = vmatpush.msra.mxu0 %v4499
      %4538 = vmatpush.msra.mxu0 %v4496
      %4539 = vmatpush.msra.mxu0 %v4495
      %4540 = vmatmul.f32.gmra.mxu0 %v4456
      %v4541 = vpop.f32.mrf.mxu0
      %v4542 = vadd.f32 0.0, %v4541
      %4543 = vmatmul.f32.gmra.mxu0 %v4459
      %v4544 = vpop.f32.mrf.mxu0
      %v4545 = vadd.f32 0.0, %v4544
      %4546 = vdwg.mxu0
      %v4547 = vmax.f32 %v4519, %v4542
      %v4548 = vmax.f32 %v4522, %v4545
      %s4549 = scalar_lea.vmem %s170, 16
      %4550 = vst.msk [vmem:[%s4549] sm:$0xff] %vm4334, %v4547
      %4551 = vst.msk [vmem:[%s4549 + $0x8] sm:$0x3] %vm4487, %v4548
      %v4552 = vld [vmem:[#allocation2 + $0x58] sm:$0xff]
      %v4553 = vld [vmem:[#allocation2 + $0x60] sm:$0xff]
      %v4554 = vld [vmem:[#allocation2 + $0x68] sm:$0xf]
      %v4555 = vld [vmem:[#allocation2 + $0x6e] sm:$0xff]
      %v4556 = vld [vmem:[#allocation2 + $0x76] sm:$0xff]
      %v4557 = vld [vmem:[#allocation2 + $0x7e] sm:$0xf]
      %v4558 = vmax.f32 %v4552, %v4555
      %v4559 = vmax.f32 %v4553, %v4556
      %v4560 = vmax.f32 %v4554, %v4557
      %v4562 = vsel %vm4428, %v4560, 0
      %4564 = vmatpush.msra.mxu0 0.0
      %4565 = vmatpush.msra.mxu0 0.0
      %4566 = vmatpush.msra.mxu0 0.0
      %4567 = vmatpush.msra.mxu0 0.0
      %4568 = vmatpush.msra.mxu0 0.0
      %4569 = vmatpush.msra.mxu0 0.0
      %4570 = vmatpush.msra.mxu0 0.0
      %4571 = vmatpush.msra.mxu0 0.0
      %4572 = vmatpush.msra.mxu0 0.0
      %4573 = vmatpush.msra.mxu0 0.0
      %4574 = vmatpush.msra.mxu0 0.0
      %4575 = vmatpush.msra.mxu0 0.0
      %4576 = vmatpush.msra.mxu0 0.0
      %4577 = vmatpush.msra.mxu0 %v4562
      %4578 = vmatpush.msra.mxu0 %v4559
      %4579 = vmatpush.msra.mxu0 %v4558
      %4580 = vmatmul.f32.gmra.mxu0 %v4423
      %v4581 = vpop.f32.mrf.mxu0
      %v4582 = vadd.f32 0.0, %v4581
      %4583 = vmatmul.f32.gmra.mxu0 %v4426
      %v4584 = vpop.f32.mrf.mxu0
      %v4585 = vadd.f32 0.0, %v4584
      %4586 = vdwg.mxu0
      %4587 = vmatpush.msra.mxu0 0.0
      %4588 = vmatpush.msra.mxu0 0.0
      %4589 = vmatpush.msra.mxu0 0.0
      %4590 = vmatpush.msra.mxu0 0.0
      %4591 = vmatpush.msra.mxu0 0.0
      %4592 = vmatpush.msra.mxu0 0.0
      %4593 = vmatpush.msra.mxu0 0.0
      %4594 = vmatpush.msra.mxu0 0.0
      %4595 = vmatpush.msra.mxu0 0.0
      %4596 = vmatpush.msra.mxu0 0.0
      %4597 = vmatpush.msra.mxu0 0.0
      %4598 = vmatpush.msra.mxu0 0.0
      %4599 = vmatpush.msra.mxu0 0.0
      %4600 = vmatpush.msra.mxu0 %v4562
      %4601 = vmatpush.msra.mxu0 %v4559
      %4602 = vmatpush.msra.mxu0 %v4558
      %4603 = vmatmul.f32.gmra.mxu0 %v4456
      %v4604 = vpop.f32.mrf.mxu0
      %v4605 = vadd.f32 0.0, %v4604
      %4606 = vmatmul.f32.gmra.mxu0 %v4459
      %v4607 = vpop.f32.mrf.mxu0
      %v4608 = vadd.f32 0.0, %v4607
      %4609 = vdwg.mxu0
      %v4610 = vmax.f32 %v4582, %v4605
      %v4611 = vmax.f32 %v4585, %v4608
      %s4612 = scalar_lea.vmem %s170, 32
      %4613 = vst.msk [vmem:[%s4612] sm:$0xff] %vm4334, %v4610
      %4614 = vst.msk [vmem:[%s4612 + $0x8] sm:$0x3] %vm4487, %v4611
      %v4615 = vld [vmem:[#allocation2 + $0x84] sm:$0xff]
      %v4616 = vld [vmem:[#allocation2 + $0x8c] sm:$0xff]
      %v4617 = vld [vmem:[#allocation2 + $0x94] sm:$0xf]
      %v4618 = vld [vmem:[#allocation2 + $0x9a] sm:$0xff]
      %v4619 = vld [vmem:[#allocation2 + $0xa2] sm:$0xff]
      %v4620 = vld [vmem:[#allocation2 + $0xaa] sm:$0xf]
      %v4621 = vmax.f32 %v4615, %v4618
      %v4622 = vmax.f32 %v4616, %v4619
      %v4623 = vmax.f32 %v4617, %v4620
      %v4625 = vsel %vm4428, %v4623, 0
      %4627 = vmatpush.msra.mxu0 0.0
      %4628 = vmatpush.msra.mxu0 0.0
      %4629 = vmatpush.msra.mxu0 0.0
      %4630 = vmatpush.msra.mxu0 0.0
      %4631 = vmatpush.msra.mxu0 0.0
      %4632 = vmatpush.msra.mxu0 0.0
      %4633 = vmatpush.msra.mxu0 0.0
      %4634 = vmatpush.msra.mxu0 0.0
      %4635 = vmatpush.msra.mxu0 0.0
      %4636 = vmatpush.msra.mxu0 0.0
      %4637 = vmatpush.msra.mxu0 0.0
      %4638 = vmatpush.msra.mxu0 0.0
      %4639 = vmatpush.msra.mxu0 0.0
      %4640 = vmatpush.msra.mxu0 %v4625
      %4641 = vmatpush.msra.mxu0 %v4622
      %4642 = vmatpush.msra.mxu0 %v4621
      %4643 = vmatmul.f32.gmra.mxu0 %v4423
      %v4644 = vpop.f32.mrf.mxu0
      %v4645 = vadd.f32 0.0, %v4644
      %4646 = vmatmul.f32.gmra.mxu0 %v4426
      %v4647 = vpop.f32.mrf.mxu0
      %v4648 = vadd.f32 0.0, %v4647
      %4649 = vdwg.mxu0
      %4650 = vmatpush.msra.mxu0 0.0
      %4651 = vmatpush.msra.mxu0 0.0
      %4652 = vmatpush.msra.mxu0 0.0
      %4653 = vmatpush.msra.mxu0 0.0
      %4654 = vmatpush.msra.mxu0 0.0
      %4655 = vmatpush.msra.mxu0 0.0
      %4656 = vmatpush.msra.mxu0 0.0
      %4657 = vmatpush.msra.mxu0 0.0
      %4658 = vmatpush.msra.mxu0 0.0
      %4659 = vmatpush.msra.mxu0 0.0
      %4660 = vmatpush.msra.mxu0 0.0
      %4661 = vmatpush.msra.mxu0 0.0
      %4662 = vmatpush.msra.mxu0 0.0
      %4663 = vmatpush.msra.mxu0 %v4625
      %4664 = vmatpush.msra.mxu0 %v4622
      %4665 = vmatpush.msra.mxu0 %v4621
      %4666 = vmatmul.f32.gmra.mxu0 %v4456
      %v4667 = vpop.f32.mrf.mxu0
      %v4668 = vadd.f32 0.0, %v4667
      %4669 = vmatmul.f32.gmra.mxu0 %v4459
      %v4670 = vpop.f32.mrf.mxu0
      %v4671 = vadd.f32 0.0, %v4670
      %4672 = vdwg.mxu0
      %v4673 = vmax.f32 %v4645, %v4668
      %v4674 = vmax.f32 %v4648, %v4671
      %s4675 = scalar_lea.vmem %s170, 48
      %4676 = vst.msk [vmem:[%s4675] sm:$0xff] %vm4334, %v4673
      %4677 = vst.msk [vmem:[%s4675 + $0x8] sm:$0x3] %vm4487, %v4674
      %v4678 = vld [vmem:[#allocation2 + $0xb0] sm:$0xff]
      %v4679 = vld [vmem:[#allocation2 + $0xb8] sm:$0xff]
      %v4680 = vld [vmem:[#allocation2 + $0xc0] sm:$0xf]
      %v4681 = vld [vmem:[#allocation2 + $0xc6] sm:$0xff]
      %v4682 = vld [vmem:[#allocation2 + $0xce] sm:$0xff]
      %v4683 = vld [vmem:[#allocation2 + $0xd6] sm:$0xf]
      %v4684 = vmax.f32 %v4678, %v4681
      %v4685 = vmax.f32 %v4679, %v4682
      %v4686 = vmax.f32 %v4680, %v4683
      %v4688 = vsel %vm4428, %v4686, 0
      %4690 = vmatpush.msra.mxu0 0.0
      %4691 = vmatpush.msra.mxu0 0.0
      %4692 = vmatpush.msra.mxu0 0.0
      %4693 = vmatpush.msra.mxu0 0.0
      %4694 = vmatpush.msra.mxu0 0.0
      %4695 = vmatpush.msra.mxu0 0.0
      %4696 = vmatpush.msra.mxu0 0.0
      %4697 = vmatpush.msra.mxu0 0.0
      %4698 = vmatpush.msra.mxu0 0.0
      %4699 = vmatpush.msra.mxu0 0.0
      %4700 = vmatpush.msra.mxu0 0.0
      %4701 = vmatpush.msra.mxu0 0.0
      %4702 = vmatpush.msra.mxu0 0.0
      %4703 = vmatpush.msra.mxu0 %v4688
      %4704 = vmatpush.msra.mxu0 %v4685
      %4705 = vmatpush.msra.mxu0 %v4684
      %4706 = vmatmul.f32.gmra.mxu0 %v4423
      %v4707 = vpop.f32.mrf.mxu0
      %v4708 = vadd.f32 0.0, %v4707
      %4709 = vmatmul.f32.gmra.mxu0 %v4426
      %v4710 = vpop.f32.mrf.mxu0
      %v4711 = vadd.f32 0.0, %v4710
      %4712 = vdwg.mxu0
      %4713 = vmatpush.msra.mxu0 0.0
      %4714 = vmatpush.msra.mxu0 0.0
      %4715 = vmatpush.msra.mxu0 0.0
      %4716 = vmatpush.msra.mxu0 0.0
      %4717 = vmatpush.msra.mxu0 0.0
      %4718 = vmatpush.msra.mxu0 0.0
      %4719 = vmatpush.msra.mxu0 0.0
      %4720 = vmatpush.msra.mxu0 0.0
      %4721 = vmatpush.msra.mxu0 0.0
      %4722 = vmatpush.msra.mxu0 0.0
      %4723 = vmatpush.msra.mxu0 0.0
      %4724 = vmatpush.msra.mxu0 0.0
      %4725 = vmatpush.msra.mxu0 0.0
      %4726 = vmatpush.msra.mxu0 %v4688
      %4727 = vmatpush.msra.mxu0 %v4685
      %4728 = vmatpush.msra.mxu0 %v4684
      %4729 = vmatmul.f32.gmra.mxu0 %v4456
      %v4730 = vpop.f32.mrf.mxu0
      %v4731 = vadd.f32 0.0, %v4730
      %4732 = vmatmul.f32.gmra.mxu0 %v4459
      %v4733 = vpop.f32.mrf.mxu0
      %v4734 = vadd.f32 0.0, %v4733
      %4735 = vdwg.mxu0
      %v4736 = vmax.f32 %v4708, %v4731
      %v4737 = vmax.f32 %v4711, %v4734
      %s4738 = scalar_lea.vmem %s170, 64
      %4739 = vst.msk [vmem:[%s4738] sm:$0xff] %vm4334, %v4736
      %4740 = vst.msk [vmem:[%s4738 + $0x8] sm:$0x3] %vm4487, %v4737
      %v4741 = vld [vmem:[#allocation2 + $0xdc] sm:$0xff]
      %v4742 = vld [vmem:[#allocation2 + $0xe4] sm:$0xff]
      %v4743 = vld [vmem:[#allocation2 + $0xec] sm:$0xf]
      %v4744 = vld [vmem:[#allocation2 + $0xf2] sm:$0xff]
      %v4745 = vld [vmem:[#allocation2 + $0xfa] sm:$0xff]
      %v4746 = vld [vmem:[#allocation2 + $0x102] sm:$0xf]
      %v4747 = vmax.f32 %v4741, %v4744
      %v4748 = vmax.f32 %v4742, %v4745
      %v4749 = vmax.f32 %v4743, %v4746
      %v4751 = vsel %vm4428, %v4749, 0
      %4753 = vmatpush.msra.mxu0 0.0
      %4754 = vmatpush.msra.mxu0 0.0
      %4755 = vmatpush.msra.mxu0 0.0
      %4756 = vmatpush.msra.mxu0 0.0
      %4757 = vmatpush.msra.mxu0 0.0
      %4758 = vmatpush.msra.mxu0 0.0
      %4759 = vmatpush.msra.mxu0 0.0
      %4760 = vmatpush.msra.mxu0 0.0
      %4761 = vmatpush.msra.mxu0 0.0
      %4762 = vmatpush.msra.mxu0 0.0
      %4763 = vmatpush.msra.mxu0 0.0
      %4764 = vmatpush.msra.mxu0 0.0
      %4765 = vmatpush.msra.mxu0 0.0
      %4766 = vmatpush.msra.mxu0 %v4751
      %4767 = vmatpush.msra.mxu0 %v4748
      %4768 = vmatpush.msra.mxu0 %v4747
      %4769 = vmatmul.f32.gmra.mxu0 %v4423
      %v4770 = vpop.f32.mrf.mxu0
      %v4771 = vadd.f32 0.0, %v4770
      %4772 = vmatmul.f32.gmra.mxu0 %v4426
      %v4773 = vpop.f32.mrf.mxu0
      %v4774 = vadd.f32 0.0, %v4773
      %4775 = vdwg.mxu0
      %4776 = vmatpush.msra.mxu0 0.0
      %4777 = vmatpush.msra.mxu0 0.0
      %4778 = vmatpush.msra.mxu0 0.0
      %4779 = vmatpush.msra.mxu0 0.0
      %4780 = vmatpush.msra.mxu0 0.0
      %4781 = vmatpush.msra.mxu0 0.0
      %4782 = vmatpush.msra.mxu0 0.0
      %4783 = vmatpush.msra.mxu0 0.0
      %4784 = vmatpush.msra.mxu0 0.0
      %4785 = vmatpush.msra.mxu0 0.0
      %4786 = vmatpush.msra.mxu0 0.0
      %4787 = vmatpush.msra.mxu0 0.0
      %4788 = vmatpush.msra.mxu0 0.0
      %4789 = vmatpush.msra.mxu0 %v4751
      %4790 = vmatpush.msra.mxu0 %v4748
      %4791 = vmatpush.msra.mxu0 %v4747
      %4792 = vmatmul.f32.gmra.mxu0 %v4456
      %v4793 = vpop.f32.mrf.mxu0
      %v4794 = vadd.f32 0.0, %v4793
      %4795 = vmatmul.f32.gmra.mxu0 %v4459
      %v4796 = vpop.f32.mrf.mxu0
      %v4797 = vadd.f32 0.0, %v4796
      %4798 = vdwg.mxu0
      %v4799 = vmax.f32 %v4771, %v4794
      %v4800 = vmax.f32 %v4774, %v4797
      %s4801 = scalar_lea.vmem %s170, 80
      %4802 = vst.msk [vmem:[%s4801] sm:$0xff] %vm4334, %v4799
      %4803 = vst.msk [vmem:[%s4801 + $0x8] sm:$0x3] %vm4487, %v4800
      %v4804 = vld [vmem:[#allocation2 + $0x108] sm:$0xff]
      %v4805 = vld [vmem:[#allocation2 + $0x110] sm:$0xff]
      %v4806 = vld [vmem:[#allocation2 + $0x118] sm:$0xf]
      %v4807 = vld [vmem:[#allocation2 + $0x11e] sm:$0xff]
      %v4808 = vld [vmem:[#allocation2 + $0x126] sm:$0xff]
      %v4809 = vld [vmem:[#allocation2 + $0x12e] sm:$0xf]
      %v4810 = vmax.f32 %v4804, %v4807
      %v4811 = vmax.f32 %v4805, %v4808
      %v4812 = vmax.f32 %v4806, %v4809
      %v4814 = vsel %vm4428, %v4812, 0
      %4816 = vmatpush.msra.mxu0 0.0
      %4817 = vmatpush.msra.mxu0 0.0
      %4818 = vmatpush.msra.mxu0 0.0
      %4819 = vmatpush.msra.mxu0 0.0
      %4820 = vmatpush.msra.mxu0 0.0
      %4821 = vmatpush.msra.mxu0 0.0
      %4822 = vmatpush.msra.mxu0 0.0
      %4823 = vmatpush.msra.mxu0 0.0
      %4824 = vmatpush.msra.mxu0 0.0
      %4825 = vmatpush.msra.mxu0 0.0
      %4826 = vmatpush.msra.mxu0 0.0
      %4827 = vmatpush.msra.mxu0 0.0
      %4828 = vmatpush.msra.mxu0 0.0
      %4829 = vmatpush.msra.mxu0 %v4814
      %4830 = vmatpush.msra.mxu0 %v4811
      %4831 = vmatpush.msra.mxu0 %v4810
      %4832 = vmatmul.f32.gmra.mxu0 %v4423
      %v4833 = vpop.f32.mrf.mxu0
      %v4834 = vadd.f32 0.0, %v4833
      %4835 = vmatmul.f32.gmra.mxu0 %v4426
      %v4836 = vpop.f32.mrf.mxu0
      %v4837 = vadd.f32 0.0, %v4836
      %4838 = vdwg.mxu0
      %4839 = vmatpush.msra.mxu0 0.0
      %4840 = vmatpush.msra.mxu0 0.0
      %4841 = vmatpush.msra.mxu0 0.0
      %4842 = vmatpush.msra.mxu0 0.0
      %4843 = vmatpush.msra.mxu0 0.0
      %4844 = vmatpush.msra.mxu0 0.0
      %4845 = vmatpush.msra.mxu0 0.0
      %4846 = vmatpush.msra.mxu0 0.0
      %4847 = vmatpush.msra.mxu0 0.0
      %4848 = vmatpush.msra.mxu0 0.0
      %4849 = vmatpush.msra.mxu0 0.0
      %4850 = vmatpush.msra.mxu0 0.0
      %4851 = vmatpush.msra.mxu0 0.0
      %4852 = vmatpush.msra.mxu0 %v4814
      %4853 = vmatpush.msra.mxu0 %v4811
      %4854 = vmatpush.msra.mxu0 %v4810
      %4855 = vmatmul.f32.gmra.mxu0 %v4456
      %v4856 = vpop.f32.mrf.mxu0
      %v4857 = vadd.f32 0.0, %v4856
      %4858 = vmatmul.f32.gmra.mxu0 %v4459
      %v4859 = vpop.f32.mrf.mxu0
      %v4860 = vadd.f32 0.0, %v4859
      %4861 = vdwg.mxu0
      %v4862 = vmax.f32 %v4834, %v4857
      %v4863 = vmax.f32 %v4837, %v4860
      %s4864 = scalar_lea.vmem %s170, 96
      %4865 = vst.msk [vmem:[%s4864] sm:$0xff] %vm4334, %v4862
      %4866 = vst.msk [vmem:[%s4864 + $0x8] sm:$0x3] %vm4487, %v4863
      %v4867 = vld [vmem:[#allocation2 + $0x134] sm:$0xff]
      %v4868 = vld [vmem:[#allocation2 + $0x13c] sm:$0xff]
      %v4869 = vld [vmem:[#allocation2 + $0x144] sm:$0xf]
      %v4870 = vld [vmem:[#allocation2 + $0x14a] sm:$0xff]
      %v4871 = vld [vmem:[#allocation2 + $0x152] sm:$0xff]
      %v4872 = vld [vmem:[#allocation2 + $0x15a] sm:$0xf]
      %v4873 = vmax.f32 %v4867, %v4870
      %v4874 = vmax.f32 %v4868, %v4871
      %v4875 = vmax.f32 %v4869, %v4872
      %v4877 = vsel %vm4428, %v4875, 0
      %4879 = vmatpush.msra.mxu0 0.0
      %4880 = vmatpush.msra.mxu0 0.0
      %4881 = vmatpush.msra.mxu0 0.0
      %4882 = vmatpush.msra.mxu0 0.0
      %4883 = vmatpush.msra.mxu0 0.0
      %4884 = vmatpush.msra.mxu0 0.0
      %4885 = vmatpush.msra.mxu0 0.0
      %4886 = vmatpush.msra.mxu0 0.0
      %4887 = vmatpush.msra.mxu0 0.0
      %4888 = vmatpush.msra.mxu0 0.0
      %4889 = vmatpush.msra.mxu0 0.0
      %4890 = vmatpush.msra.mxu0 0.0
      %4891 = vmatpush.msra.mxu0 0.0
      %4892 = vmatpush.msra.mxu0 %v4877
      %4893 = vmatpush.msra.mxu0 %v4874
      %4894 = vmatpush.msra.mxu0 %v4873
      %4895 = vmatmul.f32.gmra.mxu0 %v4423
      %v4896 = vpop.f32.mrf.mxu0
      %v4897 = vadd.f32 0.0, %v4896
      %4898 = vmatmul.f32.gmra.mxu0 %v4426
      %v4899 = vpop.f32.mrf.mxu0
      %v4900 = vadd.f32 0.0, %v4899
      %4901 = vdwg.mxu0
      %4902 = vmatpush.msra.mxu0 0.0
      %4903 = vmatpush.msra.mxu0 0.0
      %4904 = vmatpush.msra.mxu0 0.0
      %4905 = vmatpush.msra.mxu0 0.0
      %4906 = vmatpush.msra.mxu0 0.0
      %4907 = vmatpush.msra.mxu0 0.0
      %4908 = vmatpush.msra.mxu0 0.0
      %4909 = vmatpush.msra.mxu0 0.0
      %4910 = vmatpush.msra.mxu0 0.0
      %4911 = vmatpush.msra.mxu0 0.0
      %4912 = vmatpush.msra.mxu0 0.0
      %4913 = vmatpush.msra.mxu0 0.0
      %4914 = vmatpush.msra.mxu0 0.0
      %4915 = vmatpush.msra.mxu0 %v4877
      %4916 = vmatpush.msra.mxu0 %v4874
      %4917 = vmatpush.msra.mxu0 %v4873
      %4918 = vmatmul.f32.gmra.mxu0 %v4456
      %v4919 = vpop.f32.mrf.mxu0
      %v4920 = vadd.f32 0.0, %v4919
      %4921 = vmatmul.f32.gmra.mxu0 %v4459
      %v4922 = vpop.f32.mrf.mxu0
      %v4923 = vadd.f32 0.0, %v4922
      %4924 = vdwg.mxu0
      %v4925 = vmax.f32 %v4897, %v4920
      %v4926 = vmax.f32 %v4900, %v4923
      %s4927 = scalar_lea.vmem %s170, 112
      %4928 = vst.msk [vmem:[%s4927] sm:$0xff] %vm4334, %v4925
      %4929 = vst.msk [vmem:[%s4927 + $0x8] sm:$0x3] %vm4487, %v4926
      %v4930 = vld [vmem:[#allocation2 + $0x160] sm:$0xff]
      %v4931 = vld [vmem:[#allocation2 + $0x168] sm:$0xff]
      %v4932 = vld [vmem:[#allocation2 + $0x170] sm:$0xf]
      %v4933 = vld [vmem:[#allocation2 + $0x176] sm:$0xff]
      %v4934 = vld [vmem:[#allocation2 + $0x17e] sm:$0xff]
      %v4935 = vld [vmem:[#allocation2 + $0x186] sm:$0xf]
      %v4936 = vmax.f32 %v4930, %v4933
      %v4937 = vmax.f32 %v4931, %v4934
      %v4938 = vmax.f32 %v4932, %v4935
      %v4940 = vsel %vm4428, %v4938, 0
      %4942 = vmatpush.msra.mxu0 0.0
      %4943 = vmatpush.msra.mxu0 0.0
      %4944 = vmatpush.msra.mxu0 0.0
      %4945 = vmatpush.msra.mxu0 0.0
      %4946 = vmatpush.msra.mxu0 0.0
      %4947 = vmatpush.msra.mxu0 0.0
      %4948 = vmatpush.msra.mxu0 0.0
      %4949 = vmatpush.msra.mxu0 0.0
      %4950 = vmatpush.msra.mxu0 0.0
      %4951 = vmatpush.msra.mxu0 0.0
      %4952 = vmatpush.msra.mxu0 0.0
      %4953 = vmatpush.msra.mxu0 0.0
      %4954 = vmatpush.msra.mxu0 0.0
      %4955 = vmatpush.msra.mxu0 %v4940
      %4956 = vmatpush.msra.mxu0 %v4937
      %4957 = vmatpush.msra.mxu0 %v4936
      %4958 = vmatmul.f32.gmra.mxu0 %v4423
      %v4959 = vpop.f32.mrf.mxu0
      %v4960 = vadd.f32 0.0, %v4959
      %4961 = vmatmul.f32.gmra.mxu0 %v4426
      %v4962 = vpop.f32.mrf.mxu0
      %v4963 = vadd.f32 0.0, %v4962
      %4964 = vdwg.mxu0
      %4965 = vmatpush.msra.mxu0 0.0
      %4966 = vmatpush.msra.mxu0 0.0
      %4967 = vmatpush.msra.mxu0 0.0
      %4968 = vmatpush.msra.mxu0 0.0
      %4969 = vmatpush.msra.mxu0 0.0
      %4970 = vmatpush.msra.mxu0 0.0
      %4971 = vmatpush.msra.mxu0 0.0
      %4972 = vmatpush.msra.mxu0 0.0
      %4973 = vmatpush.msra.mxu0 0.0
      %4974 = vmatpush.msra.mxu0 0.0
      %4975 = vmatpush.msra.mxu0 0.0
      %4976 = vmatpush.msra.mxu0 0.0
      %4977 = vmatpush.msra.mxu0 0.0
      %4978 = vmatpush.msra.mxu0 %v4940
      %4979 = vmatpush.msra.mxu0 %v4937
      %4980 = vmatpush.msra.mxu0 %v4936
      %4981 = vmatmul.f32.gmra.mxu0 %v4456
      %v4982 = vpop.f32.mrf.mxu0
      %v4983 = vadd.f32 0.0, %v4982
      %4984 = vmatmul.f32.gmra.mxu0 %v4459
      %v4985 = vpop.f32.mrf.mxu0
      %v4986 = vadd.f32 0.0, %v4985
      %4987 = vdwg.mxu0
      %v4988 = vmax.f32 %v4960, %v4983
      %v4989 = vmax.f32 %v4963, %v4986
      %s4990 = scalar_lea.vmem %s170, 128
      %4991 = vst.msk [vmem:[%s4990] sm:$0xff] %vm4334, %v4988
      %4992 = vst.msk [vmem:[%s4990 + $0x8] sm:$0x3] %vm4487, %v4989
      %v4993 = vld [vmem:[#allocation2 + $0x18c] sm:$0xff]
      %v4994 = vld [vmem:[#allocation2 + $0x194] sm:$0xff]
      %v4995 = vld [vmem:[#allocation2 + $0x19c] sm:$0xf]
      %v4996 = vld [vmem:[#allocation2 + $0x1a2] sm:$0xff]
      %v4997 = vld [vmem:[#allocation2 + $0x1aa] sm:$0xff]
      %v4998 = vld [vmem:[#allocation2 + $0x1b2] sm:$0xf]
      %v4999 = vmax.f32 %v4993, %v4996
      %v5000 = vmax.f32 %v4994, %v4997
      %v5001 = vmax.f32 %v4995, %v4998
      %v5003 = vsel %vm4428, %v5001, 0
      %5005 = vmatpush.msra.mxu0 0.0
      %5006 = vmatpush.msra.mxu0 0.0
      %5007 = vmatpush.msra.mxu0 0.0
      %5008 = vmatpush.msra.mxu0 0.0
      %5009 = vmatpush.msra.mxu0 0.0
      %5010 = vmatpush.msra.mxu0 0.0
      %5011 = vmatpush.msra.mxu0 0.0
      %5012 = vmatpush.msra.mxu0 0.0
      %5013 = vmatpush.msra.mxu0 0.0
      %5014 = vmatpush.msra.mxu0 0.0
      %5015 = vmatpush.msra.mxu0 0.0
      %5016 = vmatpush.msra.mxu0 0.0
      %5017 = vmatpush.msra.mxu0 0.0
      %5018 = vmatpush.msra.mxu0 %v5003
      %5019 = vmatpush.msra.mxu0 %v5000
      %5020 = vmatpush.msra.mxu0 %v4999
      %5021 = vmatmul.f32.gmra.mxu0 %v4423
      %v5022 = vpop.f32.mrf.mxu0
      %v5023 = vadd.f32 0.0, %v5022
      %5024 = vmatmul.f32.gmra.mxu0 %v4426
      %v5025 = vpop.f32.mrf.mxu0
      %v5026 = vadd.f32 0.0, %v5025
      %5027 = vdwg.mxu0
      %5028 = vmatpush.msra.mxu0 0.0
      %5029 = vmatpush.msra.mxu0 0.0
      %5030 = vmatpush.msra.mxu0 0.0
      %5031 = vmatpush.msra.mxu0 0.0
      %5032 = vmatpush.msra.mxu0 0.0
      %5033 = vmatpush.msra.mxu0 0.0
      %5034 = vmatpush.msra.mxu0 0.0
      %5035 = vmatpush.msra.mxu0 0.0
      %5036 = vmatpush.msra.mxu0 0.0
      %5037 = vmatpush.msra.mxu0 0.0
      %5038 = vmatpush.msra.mxu0 0.0
      %5039 = vmatpush.msra.mxu0 0.0
      %5040 = vmatpush.msra.mxu0 0.0
      %5041 = vmatpush.msra.mxu0 %v5003
      %5042 = vmatpush.msra.mxu0 %v5000
      %5043 = vmatpush.msra.mxu0 %v4999
      %5044 = vmatmul.f32.gmra.mxu0 %v4456
      %v5045 = vpop.f32.mrf.mxu0
      %v5046 = vadd.f32 0.0, %v5045
      %5047 = vmatmul.f32.gmra.mxu0 %v4459
      %v5048 = vpop.f32.mrf.mxu0
      %v5049 = vadd.f32 0.0, %v5048
      %5050 = vdwg.mxu0
      %v5051 = vmax.f32 %v5023, %v5046
      %v5052 = vmax.f32 %v5026, %v5049
      %s5053 = scalar_lea.vmem %s170, 144
      %5054 = vst.msk [vmem:[%s5053] sm:$0xff] %vm4334, %v5051
      %5055 = vst.msk [vmem:[%s5053 + $0x8] sm:$0x3] %vm4487, %v5052
      %p5056 = scmp.lt.s32.totalorder %s14, 1
      %s5057 = scalar_select %p5056, %s14, 1
      %s5058 = smul.addr %s5057, 20
      %s5059 = smul.addr %s5058, 8
      %s5060 = scalar_lea.vmem %s3, %s5059
      // Predicated region
      $region33: #{cnn_forward.3} parent=31 // pred_check
        %p5061 = pneg %p100
      $region34: #{cnn_forward.3} parent=31 // pred_check_branch
        %5063 = sbr.rel (%p5061) target = $region36
      $region35: #{cnn_forward.3} parent=31 // pred_region
        _
      $region36: #{cnn_forward.3} parent=31 // pred_fallthru
        _
    $region32: #{cnn_forward.3} parent=5 // pred_fallthru
      _
    %p5064 = scmp.le.s32.totalorder 2, %s9
    // Predicated region
    $region37: #{cnn_forward.3} parent=5 // pred_check
      %p5065 = pneg %p5064
    $region38: #{cnn_forward.3} parent=5 // pred_check_branch
      %5067 = sbr.rel (%p5065) target = $region40
    $region39: #{cnn_forward.3} parent=5 // pred_region
      %s5068 = ssub.s32 %s9, 2
      // Predicated region
      $region41: #{cnn_forward.3} parent=39 // pred_check
        %p5069 = pneg %p106
      $region42: #{cnn_forward.3} parent=39 // pred_check_branch
        %5071 = sbr.rel (%p5069) target = $region44
      $region43: #{cnn_forward.3} parent=39 // pred_region
        %p5072 = scmp.lt.s32.totalorder %s15, 1
        %s5073 = scalar_select %p5072, %s15, 1
        %s5074 = smul.addr %s5073, 20
        %s5075 = smul.addr %s5074, 8
        %s5076 = scalar_lea.vmem %s3, %s5075
      $region44: #{cnn_forward.3} parent=39 // pred_fallthru
        _
    $region40: #{cnn_forward.3} parent=5 // pred_fallthru
      _
  $region6: #{cnn_forward.3} parent=0 // loop_footer
    %s13 = sadd.s32 1, %s9
  $region7: #{cnn_forward.3} parent=0 // loop_footer_branch
    %8 = sbr.rel target = $region3
  $region8: #{cnn_forward.3} parent=0 // loop_exit
    _

</llo_original>
